<compile_context>
chip_gen: v7x
topology: tpu7x:2x2x1
jax: 0.10.0
libtpu: 0.0.40
codegen_flags: <defaults>
</compile_context>

<pallas_src>
import math

import jax
import jax.numpy as jnp
from jax import lax
from jax.experimental import pallas as pl
from jax.experimental.pallas import tpu as pltpu

NEG_SLOPE = 0.01   # nn.LeakyReLU() default
LANE = 128


def _leaky(x):
    return jnp.where(x > 0, x, NEG_SLOPE * x)


def _round_up(a, m):
    return ((a + m - 1) // m) * m


def _make_kernel(*, C, K, dilations, TT, HALO_A, PEXT_A, M1, T_true, compute_dtype):
    pad1 = (K - 1) // 2
    Ws = TT + 2 * HALO_A          # per-layer update slab width (matmul N), 128-aligned
    S0 = PEXT_A                   # slab start inside xpad (128-aligned)
    C0 = PEXT_A + HALO_A          # core start inside xpad (128-aligned)
    W_BUF = Ws + 2 * PEXT_A       # xpad width (outer zero margins for the dilated taps)
    H1W = Ws + 2 * M1             # h1pad width (zero margins for the dilation-1 conv)

    def kernel(xp_ref, xc_ref, xn_ref, w1_ref, b1_ref, w2_ref, b2_ref,
               o_ref, xpad, h1pad, win):
        t = pl.program_id(1)
        nT = pl.num_programs(1)

        # ---- stage tile (+ halos from neighbour tiles) into the f32 slab ----
        # outer zero margins: read by the dilated taps, never written.
        xpad[:, 0:PEXT_A] = jnp.zeros((C, PEXT_A), jnp.float32)
        xpad[:, W_BUF - PEXT_A:W_BUF] = jnp.zeros((C, PEXT_A), jnp.float32)
        # core (128-aligned store)
        xpad[:, C0:C0 + TT] = xc_ref[0].astype(jnp.float32)

        # left halo
        @pl.when(t > 0)
        def _():
            xpad[:, S0:S0 + HALO_A] = xp_ref[0, :, TT - HALO_A:TT].astype(jnp.float32)

        @pl.when(t == 0)
        def _():
            xpad[:, S0:S0 + HALO_A] = jnp.zeros((C, HALO_A), jnp.float32)

        # right halo
        @pl.when(t < nT - 1)
        def _():
            xpad[:, C0 + TT:C0 + TT + HALO_A] = xn_ref[0, :, 0:HALO_A].astype(jnp.float32)

        @pl.when(t == nT - 1)
        def _():
            xpad[:, C0 + TT:C0 + TT + HALO_A] = jnp.zeros((C, HALO_A), jnp.float32)

        # zero margins of the conv2 input buffer (its SAME zero-padding)
        h1pad[:, 0:M1] = jnp.zeros((C, M1), compute_dtype)
        h1pad[:, M1 + Ws:H1W] = jnp.zeros((C, M1), compute_dtype)

        # which slab columns lie inside the real sequence [0, T_true)
        gcol = lax.broadcasted_iota(jnp.int32, (1, Ws), 1) + (t * TT - HALO_A)
        col_ok = jnp.logical_and(gcol >= 0, gcol < T_true)

        # ---- all ResStack layers; activation never leaves VMEM ----
        for i, d in enumerate(dilations):
            # conv1 (kernel K, dilation d): fused K-tap matmul.
            # leaky folded into the tap copy -> no separate full-slab temp.
            for k in range(K):
                off = S0 + (k - pad1) * d
                win[k * C:(k + 1) * C, :] = _leaky(
                    xpad[:, off:off + Ws]).astype(compute_dtype)
            h1 = jnp.dot(w1_ref[i], win[...], preferred_element_type=jnp.float32)
            # out-of-sequence columns of the intermediate activation must be
            # exactly zero (conv2's zero SAME padding in the reference).
            h1pad[:, M1:M1 + Ws] = jnp.where(
                col_ok, _leaky(h1 + b1_ref[i]), 0.0).astype(compute_dtype)

            # conv2 (kernel K, dilation 1): fused K-tap matmul from h1pad.
            for k in range(K):
                off = M1 + (k - pad1)
                win[k * C:(k + 1) * C, :] = h1pad[:, off:off + Ws]
            delta = jnp.dot(w2_ref[i], win[...],
                            preferred_element_type=jnp.float32) + b2_ref[i]

            # residual update of the slab (128-aligned); out-of-sequence
            # columns stay exactly zero so later layers see true zero padding.
            xpad[:, S0:S0 + Ws] = xpad[:, S0:S0 + Ws] + jnp.where(col_ok, delta, 0.0)

        # lane-dense, 128-aligned output store
        o_ref[0] = xpad[:, C0:C0 + TT].astype(o_ref.dtype)

    return kernel


def res_stack_forward(x_ncw, params, *, t_tile_max=4096,
                      compute_dtype=jnp.bfloat16):
    """ResStack forward (use_wn=False, use_shift_scale=False).

    x_ncw : (B, C, T) float32, PyTorch NCW layout (used directly).
    params: list of (w1, b1, w2, b2, dilation), w: (C_out, K, C_in), b: (C,).
    """
    B, C, T = x_ncw.shape
    K = params[0][0].shape[1]
    assert K % 2 == 1, "odd kernel size expected for SAME padding"
    assert C % 8 == 0, "channel count must be a multiple of 8"
    depth = len(params)
    dilations = tuple(int(p[4]) for p in params)
    pad1 = (K - 1) // 2

    # halo so one tile can run the whole stack locally; lane-aligned.
    halo = sum(pad1 * (d + 1) for d in dilations)
    HALO_A = max(LANE, _round_up(halo, LANE))
    PEXT_A = max(LANE, _round_up(pad1 * max(dilations), LANE))
    M1 = LANE

    # T tile: as large as t_tile_max allows (VMEM budget), lane-aligned,
    # and >= HALO_A so halos can be sliced from neighbour tiles.
    TT = min(_round_up(T, LANE), _round_up(t_tile_max, LANE))
    TT = max(TT, HALO_A)
    nT = -(-T // TT)
    Tp = nT * TT
    x_in = x_ncw if Tp == T else jnp.pad(x_ncw, ((0, 0), (0, 0), (0, Tp - T)))

    Ws = TT + 2 * HALO_A
    W_BUF = Ws + 2 * PEXT_A

    # stacked weights: (depth, C, K*C), W[cout, k*C + cin] = w[cout, k, cin]
    w1_all = jnp.stack([p[0].reshape(C, K * C) for p in params]).astype(compute_dtype)
    b1_all = jnp.stack([p[1] for p in params])[:, :, None].astype(jnp.float32)
    w2_all = jnp.stack([p[2].reshape(C, K * C) for p in params]).astype(compute_dtype)
    b2_all = jnp.stack([p[3] for p in params])[:, :, None].astype(jnp.float32)

    kernel = _make_kernel(C=C, K=K, dilations=dilations, TT=TT, HALO_A=HALO_A,
                          PEXT_A=PEXT_A, M1=M1, T_true=T,
                          compute_dtype=compute_dtype)

    itemsize = x_ncw.dtype.itemsize
    wbytes = 2 * depth * C * K * C * jnp.dtype(compute_dtype).itemsize
    cost = pl.CostEstimate(
        flops=2 * 2 * depth * C * (K * C) * Ws * B * nT,
        transcendentals=0,
        bytes_accessed=4 * B * nT * C * TT * itemsize + wbytes)

    out = pl.pallas_call(
        kernel,
        out_shape=jax.ShapeDtypeStruct((B, C, Tp), x_ncw.dtype),
        grid_spec=pltpu.PrefetchScalarGridSpec(
            num_scalar_prefetch=0,
            grid=(B, nT),
            in_specs=[
                # previous / current / next T-tile of x (halo sources)
                pl.BlockSpec((1, C, TT), lambda b, t: (b, 0, jnp.maximum(t - 1, 0))),
                pl.BlockSpec((1, C, TT), lambda b, t: (b, 0, t)),
                pl.BlockSpec((1, C, TT), lambda b, t: (b, 0, jnp.minimum(t + 1, nT - 1))),
                pl.BlockSpec((depth, C, K * C), lambda b, t: (0, 0, 0)),
                pl.BlockSpec((depth, C, 1), lambda b, t: (0, 0, 0)),
                pl.BlockSpec((depth, C, K * C), lambda b, t: (0, 0, 0)),
                pl.BlockSpec((depth, C, 1), lambda b, t: (0, 0, 0)),
            ],
            out_specs=pl.BlockSpec((1, C, TT), lambda b, t: (b, 0, t)),
            scratch_shapes=[
                pltpu.VMEM((C, W_BUF), jnp.float32),          # f32 residual slab
                pltpu.VMEM((C, Ws + 2 * M1), compute_dtype),  # conv2 input (zero-haloed)
                pltpu.VMEM((K * C, Ws), compute_dtype),       # fused K-tap MXU operand
            ],
        ),
        compiler_params=pltpu.CompilerParams(
            dimension_semantics=("parallel", "parallel"),
            vmem_limit_bytes=48 * 1024 * 1024),
        cost_estimate=cost,
    )(x_in, x_in, x_in, w1_all, b1_all, w2_all, b2_all)

    return out if Tp == T else out[:, :, :T]


# ----------------------- pure-JAX reference (for checking) -----------------------
def _ref_res_stack(x_ncw, params):
    y = x_ncw
    for (w1, b1, w2, b2, d) in params:
        K = w1.shape[1]
        p = (K - 1) // 2
        h = _leaky(y)
        wt1 = jnp.transpose(w1, (0, 2, 1))   # (Cout, K, Cin) -> (Cout, Cin, K)
        h = lax.conv_general_dilated(
            h, wt1, window_strides=(1,), padding=[(d * p, d * p)], rhs_dilation=(d,),
            dimension_numbers=("NCH", "OIH", "NCH")) + b1[None, :, None]
        h = _leaky(h)
        wt2 = jnp.transpose(w2, (0, 2, 1))
        h = lax.conv_general_dilated(
            h, wt2, window_strides=(1,), padding=[(p, p)], rhs_dilation=(1,),
            dimension_numbers=("NCH", "OIH", "NCH")) + b2[None, :, None]
        y = y + h
    return y


def make_params(key, channel, kernel_size, depth):
    params = []
    fan_in = channel * kernel_size
    std = math.sqrt(2.0 / fan_in)
    for i in range(depth):
        key, k1, k2, k3, k4 = jax.random.split(key, 5)
        # weights stored as (C_out, K, C_in) so the kernel flat-reshapes to (C, K*C)
        w1 = jax.random.normal(k1, (channel, kernel_size, channel), jnp.float32) * std
        b1 = jax.random.normal(k2, (channel,), jnp.float32) * 0.01
        w2 = jax.random.normal(k3, (channel, kernel_size, channel), jnp.float32) * std
        b2 = jax.random.normal(k4, (channel,), jnp.float32) * 0.01
        dilation = 3 ** (i % 10)
        params.append((w1, b1, w2, b2, dilation))
    return params


if __name__ == "__main__":
    kernel_size, depth = 3, 4            # dilations 1, 3, 9, 27

    key = jax.random.PRNGKey(0)
    key, kx1, kx2, kp = jax.random.split(key, 4)

    # --- test 1: small single-tile, f32 MXU operands (tight check) ---
    B, C, T = 2, 64, 128
    x = jax.random.normal(kx1, (B, C, T), jnp.float32)   # PyTorch NCW layout
    params = make_params(kp, C, kernel_size, depth)
    ref = _ref_res_stack(x, params)

    out_f32 = jax.block_until_ready(
        res_stack_forward(x, params, compute_dtype=jnp.float32))
    assert out_f32.shape == (B, C, T)
    assert jnp.allclose(out_f32, ref, rtol=5e-4, atol=5e-4), "f32 kernel mismatch"

    # --- test 2: same shapes, default bf16 MXU operands (f32 accumulation) ---
    out_bf16 = jax.block_until_ready(res_stack_forward(x, params))
    err = float(jnp.max(jnp.abs(out_bf16 - ref)))
    scale = float(jnp.max(jnp.abs(ref)))
    assert err <= 0.03 * scale + 1e-3, f"bf16 kernel mismatch (err={err}, scale={scale})"

    # --- test 3: multi-tile path (T not a multiple of the tile, halo exchange) ---
    B2, T2 = 1, 576
    x2 = jax.random.normal(kx2, (B2, C, T2), jnp.float32)
    ref2 = _ref_res_stack(x2, params)
    out2 = jax.block_until_ready(
        res_stack_forward(x2, params, t_tile_max=256, compute_dtype=jnp.float32))
    assert out2.shape == (B2, C, T2)
    assert jnp.allclose(out2, ref2, rtol=5e-4, atol=5e-4), "tiled kernel mismatch"

    print("KERNEL_OK")
</pallas_src>

<mosaic_0001>
module attributes {stable_mosaic.version = 11 : i64} {
  func.func @kernel(%arg0: i32, %arg1: i32, %arg2: memref<1x64x128xf32, #tpu.memory_space<vmem>>, %arg3: memref<1x64x128xf32, #tpu.memory_space<vmem>>, %arg4: memref<1x64x128xf32, #tpu.memory_space<vmem>>, %arg5: memref<4x64x192xf32, #tpu.memory_space<vmem>>, %arg6: memref<4x64x1xf32, #tpu.memory_space<vmem>>, %arg7: memref<4x64x192xf32, #tpu.memory_space<vmem>>, %arg8: memref<4x64x1xf32, #tpu.memory_space<vmem>>, %arg9: memref<1x64x128xf32, #tpu.memory_space<vmem>>, %arg10: memref<64x640xf32, #tpu.memory_space<vmem>>, %arg11: memref<64x640xf32, #tpu.memory_space<vmem>>, %arg12: memref<192x384xf32, #tpu.memory_space<vmem>>) attributes {dimension_semantics = [#tpu.dimension_semantics<parallel>, #tpu.dimension_semantics<parallel>], iteration_bounds = array<i64: 2, 1>, scalar_prefetch = 0 : i64, scratch_operands = 3 : i64, tpu.core_type = #tpu.core_type<tc>, window_params = [{transform_indices = @transform_0, window_bounds = array<i64: 1, 64, 128>}, {transform_indices = @transform_1, window_bounds = array<i64: 1, 64, 128>}, {transform_indices = @transform_2, window_bounds = array<i64: 1, 64, 128>}, {pipeline_mode = #tpu.pipeline_mode<synchronous>, transform_indices = @transform_3, window_bounds = array<i64: 4, 64, 192>}, {pipeline_mode = #tpu.pipeline_mode<synchronous>, transform_indices = @transform_4, window_bounds = array<i64: 4, 64, 1>}, {pipeline_mode = #tpu.pipeline_mode<synchronous>, transform_indices = @transform_5, window_bounds = array<i64: 4, 64, 192>}, {pipeline_mode = #tpu.pipeline_mode<synchronous>, transform_indices = @transform_6, window_bounds = array<i64: 4, 64, 1>}, {transform_indices = @transform_7, window_bounds = array<i64: 1, 64, 128>}]} {
    %cst = arith.constant 0.000000e+00 : f32
    %0 = vector.broadcast %cst : f32 to vector<64x128xf32>
    %c0 = arith.constant 0 : index
    %c0_0 = arith.constant 0 : index
    %1 = vector.load %arg10[%c0, %c0_0] : memref<64x640xf32, #tpu.memory_space<vmem>>, vector<64x128xf32>
    tpu.vector_store %arg10[%c0, %c0_0], %0 {strides = array<i32>} : memref<64x640xf32, #tpu.memory_space<vmem>>, vector<64x128xf32>,
    %cst_1 = arith.constant 0.000000e+00 : f32
    %2 = vector.broadcast %cst_1 : f32 to vector<64x128xf32>
    %c0_2 = arith.constant 0 : index
    %c512 = arith.constant 512 : index
    %3 = vector.load %arg10[%c0_2, %c512] : memref<64x640xf32, #tpu.memory_space<vmem>>, vector<64x128xf32>
    tpu.vector_store %arg10[%c0_2, %c512], %2 {strides = array<i32>} : memref<64x640xf32, #tpu.memory_space<vmem>>, vector<64x128xf32>,
    %c0_3 = arith.constant 0 : index
    %c0_4 = arith.constant 0 : index
    %c0_5 = arith.constant 0 : index
    %4 = vector.load %arg3[%c0_3, %c0_4, %c0_5] : memref<1x64x128xf32, #tpu.memory_space<vmem>>, vector<1x64x128xf32>
    %5 = vector.shape_cast %4 : vector<1x64x128xf32> to vector<64x128xf32>
    %c0_6 = arith.constant 0 : index
    %c256 = arith.constant 256 : index
    %6 = vector.load %arg10[%c0_6, %c256] : memref<64x640xf32, #tpu.memory_space<vmem>>, vector<64x128xf32>
    tpu.vector_store %arg10[%c0_6, %c256], %5 {strides = array<i32>} : memref<64x640xf32, #tpu.memory_space<vmem>>, vector<64x128xf32>,
    %c0_i32 = arith.constant 0 : i32
    %7 = arith.cmpi sgt, %arg1, %c0_i32 : i32
    %8 = arith.extui %7 : i1 to i32
    %c0_i32_7 = arith.constant 0 : i32
    %9 = arith.cmpi ne, %8, %c0_i32_7 : i32
    scf.if %9 {
      %c0_247 = arith.constant 0 : index
      %c0_248 = arith.constant 0 : index
      %c0_249 = arith.constant 0 : index
      %277 = vector.load %arg2[%c0_247, %c0_248, %c0_249] : memref<1x64x128xf32, #tpu.memory_space<vmem>>, vector<1x64x128xf32>
      %278 = vector.shape_cast %277 : vector<1x64x128xf32> to vector<64x128xf32>
      %c0_250 = arith.constant 0 : index
      %c128_251 = arith.constant 128 : index
      %279 = vector.load %arg10[%c0_250, %c128_251] : memref<64x640xf32, #tpu.memory_space<vmem>>, vector<64x128xf32>
      tpu.vector_store %arg10[%c0_250, %c128_251], %278 {strides = array<i32>} : memref<64x640xf32, #tpu.memory_space<vmem>>, vector<64x128xf32>,
    } else {
    }
    %c0_i32_8 = arith.constant 0 : i32
    %10 = arith.cmpi eq, %arg1, %c0_i32_8 : i32
    %11 = arith.extui %10 : i1 to i32
    %c0_i32_9 = arith.constant 0 : i32
    %12 = arith.cmpi ne, %11, %c0_i32_9 : i32
    scf.if %12 {
      %cst_247 = arith.constant 0.000000e+00 : f32
      %277 = vector.broadcast %cst_247 : f32 to vector<64x128xf32>
      %c0_248 = arith.constant 0 : index
      %c128_249 = arith.constant 128 : index
      %278 = vector.load %arg10[%c0_248, %c128_249] : memref<64x640xf32, #tpu.memory_space<vmem>>, vector<64x128xf32>
      tpu.vector_store %arg10[%c0_248, %c128_249], %277 {strides = array<i32>} : memref<64x640xf32, #tpu.memory_space<vmem>>, vector<64x128xf32>,
    } else {
    }
    %c0_i32_10 = arith.constant 0 : i32
    %13 = arith.cmpi slt, %arg1, %c0_i32_10 : i32
    %14 = arith.extui %13 : i1 to i32
    %c0_i32_11 = arith.constant 0 : i32
    %15 = arith.cmpi ne, %14, %c0_i32_11 : i32
    scf.if %15 {
      %c0_247 = arith.constant 0 : index
      %c0_248 = arith.constant 0 : index
      %c0_249 = arith.constant 0 : index
      %277 = vector.load %arg4[%c0_247, %c0_248, %c0_249] : memref<1x64x128xf32, #tpu.memory_space<vmem>>, vector<1x64x128xf32>
      %278 = vector.shape_cast %277 : vector<1x64x128xf32> to vector<64x128xf32>
      %c0_250 = arith.constant 0 : index
      %c384 = arith.constant 384 : index
      %279 = vector.load %arg10[%c0_250, %c384] : memref<64x640xf32, #tpu.memory_space<vmem>>, vector<64x128xf32>
      tpu.vector_store %arg10[%c0_250, %c384], %278 {strides = array<i32>} : memref<64x640xf32, #tpu.memory_space<vmem>>, vector<64x128xf32>,
    } else {
    }
    %c0_i32_12 = arith.constant 0 : i32
    %16 = arith.cmpi eq, %arg1, %c0_i32_12 : i32
    %17 = arith.extui %16 : i1 to i32
    %c0_i32_13 = arith.constant 0 : i32
    %18 = arith.cmpi ne, %17, %c0_i32_13 : i32
    scf.if %18 {
      %cst_247 = arith.constant 0.000000e+00 : f32
      %277 = vector.broadcast %cst_247 : f32 to vector<64x128xf32>
      %c0_248 = arith.constant 0 : index
      %c384 = arith.constant 384 : index
      %278 = vector.load %arg10[%c0_248, %c384] : memref<64x640xf32, #tpu.memory_space<vmem>>, vector<64x128xf32>
      tpu.vector_store %arg10[%c0_248, %c384], %277 {strides = array<i32>} : memref<64x640xf32, #tpu.memory_space<vmem>>, vector<64x128xf32>,
    } else {
    }
    %cst_14 = arith.constant 0.000000e+00 : f32
    %19 = vector.broadcast %cst_14 : f32 to vector<64x128xf32>
    %c0_15 = arith.constant 0 : index
    %c0_16 = arith.constant 0 : index
    %20 = vector.load %arg11[%c0_15, %c0_16] : memref<64x640xf32, #tpu.memory_space<vmem>>, vector<64x128xf32>
    tpu.vector_store %arg11[%c0_15, %c0_16], %19 {strides = array<i32>} : memref<64x640xf32, #tpu.memory_space<vmem>>, vector<64x128xf32>,
    %cst_17 = arith.constant 0.000000e+00 : f32
    %21 = vector.broadcast %cst_17 : f32 to vector<64x128xf32>
    %c0_18 = arith.constant 0 : index
    %c512_19 = arith.constant 512 : index
    %22 = vector.load %arg11[%c0_18, %c512_19] : memref<64x640xf32, #tpu.memory_space<vmem>>, vector<64x128xf32>
    tpu.vector_store %arg11[%c0_18, %c512_19], %21 {strides = array<i32>} : memref<64x640xf32, #tpu.memory_space<vmem>>, vector<64x128xf32>,
    %23 = tpu.iota {dimensions = array<i32: 1>} : vector<1x384xi32>
    %c128_i32 = arith.constant 128 : i32
    %24 = arith.muli %arg1, %c128_i32 : i32
    %c128_i32_20 = arith.constant 128 : i32
    %25 = arith.subi %24, %c128_i32_20 : i32
    %26 = vector.broadcast %25 : i32 to vector<1x384xi32>
    %27 = arith.addi %23, %26 : vector<1x384xi32>
    %c0_i32_21 = arith.constant 0 : i32
    %28 = vector.broadcast %c0_i32_21 : i32 to vector<1x384xi32>
    %29 = arith.cmpi sge, %27, %28 : vector<1x384xi32>
    %c128_i32_22 = arith.constant 128 : i32
    %30 = vector.broadcast %c128_i32_22 : i32 to vector<1x384xi32>
    %31 = arith.cmpi slt, %27, %30 : vector<1x384xi32>
    %32 = arith.andi %29, %31 : vector<1x384xi1>
    %c0_23 = arith.constant 0 : index
    %c127 = arith.constant 127 : index
    %33 = vector.load %arg10[%c0_23, %c127] : memref<64x640xf32, #tpu.memory_space<vmem>>, vector<64x384xf32>
    %cst_24 = arith.constant 0.000000e+00 : f32
    %34 = vector.broadcast %cst_24 : f32 to vector<64x384xf32>
    %35 = arith.cmpf ogt, %33, %34 : vector<64x384xf32>
    %cst_25 = arith.constant 0.00999999977 : f32
    %36 = vector.broadcast %cst_25 : f32 to vector<64x384xf32>
    %37 = arith.mulf %36, %33 : vector<64x384xf32>
    %38 = arith.select %35, %33, %37 : vector<64x384xi1>, vector<64x384xf32>
    %c0_26 = arith.constant 0 : index
    %c0_27 = arith.constant 0 : index
    %39 = vector.load %arg12[%c0_26, %c0_27] : memref<192x384xf32, #tpu.memory_space<vmem>>, vector<64x384xf32>
    tpu.vector_store %arg12[%c0_26, %c0_27], %38 {strides = array<i32>} : memref<192x384xf32, #tpu.memory_space<vmem>>, vector<64x384xf32>,
    %c0_28 = arith.constant 0 : index
    %c128 = arith.constant 128 : index
    %40 = vector.load %arg10[%c0_28, %c128] : memref<64x640xf32, #tpu.memory_space<vmem>>, vector<64x384xf32>
    %cst_29 = arith.constant 0.000000e+00 : f32
    %41 = vector.broadcast %cst_29 : f32 to vector<64x384xf32>
    %42 = arith.cmpf ogt, %40, %41 : vector<64x384xf32>
    %cst_30 = arith.constant 0.00999999977 : f32
    %43 = vector.broadcast %cst_30 : f32 to vector<64x384xf32>
    %44 = arith.mulf %43, %40 : vector<64x384xf32>
    %45 = arith.select %42, %40, %44 : vector<64x384xi1>, vector<64x384xf32>
    %c64 = arith.constant 64 : index
    %c0_31 = arith.constant 0 : index
    %46 = vector.load %arg12[%c64, %c0_31] : memref<192x384xf32, #tpu.memory_space<vmem>>, vector<64x384xf32>
    tpu.vector_store %arg12[%c64, %c0_31], %45 {strides = array<i32>} : memref<192x384xf32, #tpu.memory_space<vmem>>, vector<64x384xf32>,
    %c0_32 = arith.constant 0 : index
    %c129 = arith.constant 129 : index
    %47 = vector.load %arg10[%c0_32, %c129] : memref<64x640xf32, #tpu.memory_space<vmem>>, vector<64x384xf32>
    %cst_33 = arith.constant 0.000000e+00 : f32
    %48 = vector.broadcast %cst_33 : f32 to vector<64x384xf32>
    %49 = arith.cmpf ogt, %47, %48 : vector<64x384xf32>
    %cst_34 = arith.constant 0.00999999977 : f32
    %50 = vector.broadcast %cst_34 : f32 to vector<64x384xf32>
    %51 = arith.mulf %50, %47 : vector<64x384xf32>
    %52 = arith.select %49, %47, %51 : vector<64x384xi1>, vector<64x384xf32>
    %c128_35 = arith.constant 128 : index
    %c0_36 = arith.constant 0 : index
    %53 = vector.load %arg12[%c128_35, %c0_36] : memref<192x384xf32, #tpu.memory_space<vmem>>, vector<64x384xf32>
    tpu.vector_store %arg12[%c128_35, %c0_36], %52 {strides = array<i32>} : memref<192x384xf32, #tpu.memory_space<vmem>>, vector<64x384xf32>,
    %c0_37 = arith.constant 0 : index
    %c0_38 = arith.constant 0 : index
    %c0_39 = arith.constant 0 : index
    %54 = vector.load %arg5[%c0_37, %c0_38, %c0_39] : memref<4x64x192xf32, #tpu.memory_space<vmem>>, vector<1x64x192xf32>
    %55 = vector.shape_cast %54 : vector<1x64x192xf32> to vector<64x192xf32>
    %c0_40 = arith.constant 0 : index
    %c0_41 = arith.constant 0 : index
    %56 = vector.load %arg12[%c0_40, %c0_41] : memref<192x384xf32, #tpu.memory_space<vmem>>, vector<192x384xf32>
    %cst_42 = arith.constant dense<0.000000e+00> : vector<64x384xf32>
    %57 = tpu.matmul %55, %56, %cst_42 {dimension_numbers = #tpu.dot_dimension_numbers<[1], [0], [0], [1], [0, 0, 1, 1], [], []>} : vector<64x192xf32>, vector<192x384xf32>, vector<64x384xf32> -> vector<64x384xf32>
    %c0_43 = arith.constant 0 : index
    %c0_44 = arith.constant 0 : index
    %c0_45 = arith.constant 0 : index
    %58 = vector.load %arg6[%c0_43, %c0_44, %c0_45] : memref<4x64x1xf32, #tpu.memory_space<vmem>>, vector<1x64x1xf32>
    %59 = vector.shape_cast %58 : vector<1x64x1xf32> to vector<64x1xf32>
    %60 = vector.broadcast %59 : vector<64x1xf32> to vector<64x384xf32>
    %61 = arith.addf %57, %60 : vector<64x384xf32>
    %cst_46 = arith.constant 0.000000e+00 : f32
    %62 = vector.broadcast %cst_46 : f32 to vector<64x384xf32>
    %63 = arith.cmpf ogt, %61, %62 : vector<64x384xf32>
    %cst_47 = arith.constant 0.00999999977 : f32
    %64 = vector.broadcast %cst_47 : f32 to vector<64x384xf32>
    %65 = arith.mulf %64, %61 : vector<64x384xf32>
    %66 = arith.select %63, %61, %65 : vector<64x384xi1>, vector<64x384xf32>
    %cst_48 = arith.constant 0.000000e+00 : f32
    %67 = vector.shape_cast %32 : vector<1x384xi1> to vector<1x384xi1>
    %68 = vector.broadcast %67 : vector<1x384xi1> to vector<64x384xi1>
    %69 = vector.broadcast %cst_48 : f32 to vector<64x384xf32>
    %70 = arith.select %68, %66, %69 : vector<64x384xi1>, vector<64x384xf32>
    %c0_49 = arith.constant 0 : index
    %c128_50 = arith.constant 128 : index
    %71 = vector.load %arg11[%c0_49, %c128_50] : memref<64x640xf32, #tpu.memory_space<vmem>>, vector<64x384xf32>
    tpu.vector_store %arg11[%c0_49, %c128_50], %70 {strides = array<i32>} : memref<64x640xf32, #tpu.memory_space<vmem>>, vector<64x384xf32>,
    %c0_51 = arith.constant 0 : index
    %c127_52 = arith.constant 127 : index
    %72 = vector.load %arg11[%c0_51, %c127_52] : memref<64x640xf32, #tpu.memory_space<vmem>>, vector<64x384xf32>
    %c0_53 = arith.constant 0 : index
    %c0_54 = arith.constant 0 : index
    %73 = vector.load %arg12[%c0_53, %c0_54] : memref<192x384xf32, #tpu.memory_space<vmem>>, vector<64x384xf32>
    tpu.vector_store %arg12[%c0_53, %c0_54], %72 {strides = array<i32>} : memref<192x384xf32, #tpu.memory_space<vmem>>, vector<64x384xf32>,
    %c0_55 = arith.constant 0 : index
    %c128_56 = arith.constant 128 : index
    %74 = vector.load %arg11[%c0_55, %c128_56] : memref<64x640xf32, #tpu.memory_space<vmem>>, vector<64x384xf32>
    %c64_57 = arith.constant 64 : index
    %c0_58 = arith.constant 0 : index
    %75 = vector.load %arg12[%c64_57, %c0_58] : memref<192x384xf32, #tpu.memory_space<vmem>>, vector<64x384xf32>
    tpu.vector_store %arg12[%c64_57, %c0_58], %74 {strides = array<i32>} : memref<192x384xf32, #tpu.memory_space<vmem>>, vector<64x384xf32>,
    %c0_59 = arith.constant 0 : index
    %c129_60 = arith.constant 129 : index
    %76 = vector.load %arg11[%c0_59, %c129_60] : memref<64x640xf32, #tpu.memory_space<vmem>>, vector<64x384xf32>
    %c128_61 = arith.constant 128 : index
    %c0_62 = arith.constant 0 : index
    %77 = vector.load %arg12[%c128_61, %c0_62] : memref<192x384xf32, #tpu.memory_space<vmem>>, vector<64x384xf32>
    tpu.vector_store %arg12[%c128_61, %c0_62], %76 {strides = array<i32>} : memref<192x384xf32, #tpu.memory_space<vmem>>, vector<64x384xf32>,
    %c0_63 = arith.constant 0 : index
    %c0_64 = arith.constant 0 : index
    %c0_65 = arith.constant 0 : index
    %78 = vector.load %arg7[%c0_63, %c0_64, %c0_65] : memref<4x64x192xf32, #tpu.memory_space<vmem>>, vector<1x64x192xf32>
    %79 = vector.shape_cast %78 : vector<1x64x192xf32> to vector<64x192xf32>
    %c0_66 = arith.constant 0 : index
    %c0_67 = arith.constant 0 : index
    %80 = vector.load %arg12[%c0_66, %c0_67] : memref<192x384xf32, #tpu.memory_space<vmem>>, vector<192x384xf32>
    %cst_68 = arith.constant dense<0.000000e+00> : vector<64x384xf32>
    %81 = tpu.matmul %79, %80, %cst_68 {dimension_numbers = #tpu.dot_dimension_numbers<[1], [0], [0], [1], [0, 0, 1, 1], [], []>} : vector<64x192xf32>, vector<192x384xf32>, vector<64x384xf32> -> vector<64x384xf32>
    %c0_69 = arith.constant 0 : index
    %c0_70 = arith.constant 0 : index
    %c0_71 = arith.constant 0 : index
    %82 = vector.load %arg8[%c0_69, %c0_70, %c0_71] : memref<4x64x1xf32, #tpu.memory_space<vmem>>, vector<1x64x1xf32>
    %83 = vector.shape_cast %82 : vector<1x64x1xf32> to vector<64x1xf32>
    %84 = vector.broadcast %83 : vector<64x1xf32> to vector<64x384xf32>
    %85 = arith.addf %81, %84 : vector<64x384xf32>
    %c0_72 = arith.constant 0 : index
    %c128_73 = arith.constant 128 : index
    %86 = vector.load %arg10[%c0_72, %c128_73] : memref<64x640xf32, #tpu.memory_space<vmem>>, vector<64x384xf32>
    %cst_74 = arith.constant 0.000000e+00 : f32
    %87 = vector.shape_cast %32 : vector<1x384xi1> to vector<1x384xi1>
    %88 = vector.broadcast %87 : vector<1x384xi1> to vector<64x384xi1>
    %89 = vector.broadcast %cst_74 : f32 to vector<64x384xf32>
    %90 = arith.select %88, %85, %89 : vector<64x384xi1>, vector<64x384xf32>
    %91 = arith.addf %86, %90 : vector<64x384xf32>
    %c0_75 = arith.constant 0 : index
    %c128_76 = arith.constant 128 : index
    %92 = vector.load %arg10[%c0_75, %c128_76] : memref<64x640xf32, #tpu.memory_space<vmem>>, vector<64x384xf32>
    tpu.vector_store %arg10[%c0_75, %c128_76], %91 {strides = array<i32>} : memref<64x640xf32, #tpu.memory_space<vmem>>, vector<64x384xf32>,
    %c0_77 = arith.constant 0 : index
    %c125 = arith.constant 125 : index
    %93 = vector.load %arg10[%c0_77, %c125] : memref<64x640xf32, #tpu.memory_space<vmem>>, vector<64x384xf32>
    %cst_78 = arith.constant 0.000000e+00 : f32
    %94 = vector.broadcast %cst_78 : f32 to vector<64x384xf32>
    %95 = arith.cmpf ogt, %93, %94 : vector<64x384xf32>
    %cst_79 = arith.constant 0.00999999977 : f32
    %96 = vector.broadcast %cst_79 : f32 to vector<64x384xf32>
    %97 = arith.mulf %96, %93 : vector<64x384xf32>
    %98 = arith.select %95, %93, %97 : vector<64x384xi1>, vector<64x384xf32>
    %c0_80 = arith.constant 0 : index
    %c0_81 = arith.constant 0 : index
    %99 = vector.load %arg12[%c0_80, %c0_81] : memref<192x384xf32, #tpu.memory_space<vmem>>, vector<64x384xf32>
    tpu.vector_store %arg12[%c0_80, %c0_81], %98 {strides = array<i32>} : memref<192x384xf32, #tpu.memory_space<vmem>>, vector<64x384xf32>,
    %c0_82 = arith.constant 0 : index
    %c128_83 = arith.constant 128 : index
    %100 = vector.load %arg10[%c0_82, %c128_83] : memref<64x640xf32, #tpu.memory_space<vmem>>, vector<64x384xf32>
    %cst_84 = arith.constant 0.000000e+00 : f32
    %101 = vector.broadcast %cst_84 : f32 to vector<64x384xf32>
    %102 = arith.cmpf ogt, %100, %101 : vector<64x384xf32>
    %cst_85 = arith.constant 0.00999999977 : f32
    %103 = vector.broadcast %cst_85 : f32 to vector<64x384xf32>
    %104 = arith.mulf %103, %100 : vector<64x384xf32>
    %105 = arith.select %102, %100, %104 : vector<64x384xi1>, vector<64x384xf32>
    %c64_86 = arith.constant 64 : index
    %c0_87 = arith.constant 0 : index
    %106 = vector.load %arg12[%c64_86, %c0_87] : memref<192x384xf32, #tpu.memory_space<vmem>>, vector<64x384xf32>
    tpu.vector_store %arg12[%c64_86, %c0_87], %105 {strides = array<i32>} : memref<192x384xf32, #tpu.memory_space<vmem>>, vector<64x384xf32>,
    %c0_88 = arith.constant 0 : index
    %c131 = arith.constant 131 : index
    %107 = vector.load %arg10[%c0_88, %c131] : memref<64x640xf32, #tpu.memory_space<vmem>>, vector<64x384xf32>
    %cst_89 = arith.constant 0.000000e+00 : f32
    %108 = vector.broadcast %cst_89 : f32 to vector<64x384xf32>
    %109 = arith.cmpf ogt, %107, %108 : vector<64x384xf32>
    %cst_90 = arith.constant 0.00999999977 : f32
    %110 = vector.broadcast %cst_90 : f32 to vector<64x384xf32>
    %111 = arith.mulf %110, %107 : vector<64x384xf32>
    %112 = arith.select %109, %107, %111 : vector<64x384xi1>, vector<64x384xf32>
    %c128_91 = arith.constant 128 : index
    %c0_92 = arith.constant 0 : index
    %113 = vector.load %arg12[%c128_91, %c0_92] : memref<192x384xf32, #tpu.memory_space<vmem>>, vector<64x384xf32>
    tpu.vector_store %arg12[%c128_91, %c0_92], %112 {strides = array<i32>} : memref<192x384xf32, #tpu.memory_space<vmem>>, vector<64x384xf32>,
    %c1 = arith.constant 1 : index
    %c0_93 = arith.constant 0 : index
    %c0_94 = arith.constant 0 : index
    %114 = vector.load %arg5[%c1, %c0_93, %c0_94] : memref<4x64x192xf32, #tpu.memory_space<vmem>>, vector<1x64x192xf32>
    %115 = vector.shape_cast %114 : vector<1x64x192xf32> to vector<64x192xf32>
    %c0_95 = arith.constant 0 : index
    %c0_96 = arith.constant 0 : index
    %116 = vector.load %arg12[%c0_95, %c0_96] : memref<192x384xf32, #tpu.memory_space<vmem>>, vector<192x384xf32>
    %cst_97 = arith.constant dense<0.000000e+00> : vector<64x384xf32>
    %117 = tpu.matmul %115, %116, %cst_97 {dimension_numbers = #tpu.dot_dimension_numbers<[1], [0], [0], [1], [0, 0, 1, 1], [], []>} : vector<64x192xf32>, vector<192x384xf32>, vector<64x384xf32> -> vector<64x384xf32>
    %c1_98 = arith.constant 1 : index
    %c0_99 = arith.constant 0 : index
    %c0_100 = arith.constant 0 : index
    %118 = vector.load %arg6[%c1_98, %c0_99, %c0_100] : memref<4x64x1xf32, #tpu.memory_space<vmem>>, vector<1x64x1xf32>
    %119 = vector.shape_cast %118 : vector<1x64x1xf32> to vector<64x1xf32>
    %120 = vector.broadcast %119 : vector<64x1xf32> to vector<64x384xf32>
    %121 = arith.addf %117, %120 : vector<64x384xf32>
    %cst_101 = arith.constant 0.000000e+00 : f32
    %122 = vector.broadcast %cst_101 : f32 to vector<64x384xf32>
    %123 = arith.cmpf ogt, %121, %122 : vector<64x384xf32>
    %cst_102 = arith.constant 0.00999999977 : f32
    %124 = vector.broadcast %cst_102 : f32 to vector<64x384xf32>
    %125 = arith.mulf %124, %121 : vector<64x384xf32>
    %126 = arith.select %123, %121, %125 : vector<64x384xi1>, vector<64x384xf32>
    %cst_103 = arith.constant 0.000000e+00 : f32
    %127 = vector.shape_cast %32 : vector<1x384xi1> to vector<1x384xi1>
    %128 = vector.broadcast %127 : vector<1x384xi1> to vector<64x384xi1>
    %129 = vector.broadcast %cst_103 : f32 to vector<64x384xf32>
    %130 = arith.select %128, %126, %129 : vector<64x384xi1>, vector<64x384xf32>
    %c0_104 = arith.constant 0 : index
    %c128_105 = arith.constant 128 : index
    %131 = vector.load %arg11[%c0_104, %c128_105] : memref<64x640xf32, #tpu.memory_space<vmem>>, vector<64x384xf32>
    tpu.vector_store %arg11[%c0_104, %c128_105], %130 {strides = array<i32>} : memref<64x640xf32, #tpu.memory_space<vmem>>, vector<64x384xf32>,
    %c0_106 = arith.constant 0 : index
    %c127_107 = arith.constant 127 : index
    %132 = vector.load %arg11[%c0_106, %c127_107] : memref<64x640xf32, #tpu.memory_space<vmem>>, vector<64x384xf32>
    %c0_108 = arith.constant 0 : index
    %c0_109 = arith.constant 0 : index
    %133 = vector.load %arg12[%c0_108, %c0_109] : memref<192x384xf32, #tpu.memory_space<vmem>>, vector<64x384xf32>
    tpu.vector_store %arg12[%c0_108, %c0_109], %132 {strides = array<i32>} : memref<192x384xf32, #tpu.memory_space<vmem>>, vector<64x384xf32>,
    %c0_110 = arith.constant 0 : index
    %c128_111 = arith.constant 128 : index
    %134 = vector.load %arg11[%c0_110, %c128_111] : memref<64x640xf32, #tpu.memory_space<vmem>>, vector<64x384xf32>
    %c64_112 = arith.constant 64 : index
    %c0_113 = arith.constant 0 : index
    %135 = vector.load %arg12[%c64_112, %c0_113] : memref<192x384xf32, #tpu.memory_space<vmem>>, vector<64x384xf32>
    tpu.vector_store %arg12[%c64_112, %c0_113], %134 {strides = array<i32>} : memref<192x384xf32, #tpu.memory_space<vmem>>, vector<64x384xf32>,
    %c0_114 = arith.constant 0 : index
    %c129_115 = arith.constant 129 : index
    %136 = vector.load %arg11[%c0_114, %c129_115] : memref<64x640xf32, #tpu.memory_space<vmem>>, vector<64x384xf32>
    %c128_116 = arith.constant 128 : index
    %c0_117 = arith.constant 0 : index
    %137 = vector.load %arg12[%c128_116, %c0_117] : memref<192x384xf32, #tpu.memory_space<vmem>>, vector<64x384xf32>
    tpu.vector_store %arg12[%c128_116, %c0_117], %136 {strides = array<i32>} : memref<192x384xf32, #tpu.memory_space<vmem>>, vector<64x384xf32>,
    %c1_118 = arith.constant 1 : index
    %c0_119 = arith.constant 0 : index
    %c0_120 = arith.constant 0 : index
    %138 = vector.load %arg7[%c1_118, %c0_119, %c0_120] : memref<4x64x192xf32, #tpu.memory_space<vmem>>, vector<1x64x192xf32>
    %139 = vector.shape_cast %138 : vector<1x64x192xf32> to vector<64x192xf32>
    %c0_121 = arith.constant 0 : index
    %c0_122 = arith.constant 0 : index
    %140 = vector.load %arg12[%c0_121, %c0_122] : memref<192x384xf32, #tpu.memory_space<vmem>>, vector<192x384xf32>
    %cst_123 = arith.constant dense<0.000000e+00> : vector<64x384xf32>
    %141 = tpu.matmul %139, %140, %cst_123 {dimension_numbers = #tpu.dot_dimension_numbers<[1], [0], [0], [1], [0, 0, 1, 1], [], []>} : vector<64x192xf32>, vector<192x384xf32>, vector<64x384xf32> -> vector<64x384xf32>
    %c1_124 = arith.constant 1 : index
    %c0_125 = arith.constant 0 : index
    %c0_126 = arith.constant 0 : index
    %142 = vector.load %arg8[%c1_124, %c0_125, %c0_126] : memref<4x64x1xf32, #tpu.memory_space<vmem>>, vector<1x64x1xf32>
    %143 = vector.shape_cast %142 : vector<1x64x1xf32> to vector<64x1xf32>
    %144 = vector.broadcast %143 : vector<64x1xf32> to vector<64x384xf32>
    %145 = arith.addf %141, %144 : vector<64x384xf32>
    %c0_127 = arith.constant 0 : index
    %c128_128 = arith.constant 128 : index
    %146 = vector.load %arg10[%c0_127, %c128_128] : memref<64x640xf32, #tpu.memory_space<vmem>>, vector<64x384xf32>
    %cst_129 = arith.constant 0.000000e+00 : f32
    %147 = vector.shape_cast %32 : vector<1x384xi1> to vector<1x384xi1>
    %148 = vector.broadcast %147 : vector<1x384xi1> to vector<64x384xi1>
    %149 = vector.broadcast %cst_129 : f32 to vector<64x384xf32>
    %150 = arith.select %148, %145, %149 : vector<64x384xi1>, vector<64x384xf32>
    %151 = arith.addf %146, %150 : vector<64x384xf32>
    %c0_130 = arith.constant 0 : index
    %c128_131 = arith.constant 128 : index
    %152 = vector.load %arg10[%c0_130, %c128_131] : memref<64x640xf32, #tpu.memory_space<vmem>>, vector<64x384xf32>
    tpu.vector_store %arg10[%c0_130, %c128_131], %151 {strides = array<i32>} : memref<64x640xf32, #tpu.memory_space<vmem>>, vector<64x384xf32>,
    %c0_132 = arith.constant 0 : index
    %c119 = arith.constant 119 : index
    %153 = vector.load %arg10[%c0_132, %c119] : memref<64x640xf32, #tpu.memory_space<vmem>>, vector<64x384xf32>
    %cst_133 = arith.constant 0.000000e+00 : f32
    %154 = vector.broadcast %cst_133 : f32 to vector<64x384xf32>
    %155 = arith.cmpf ogt, %153, %154 : vector<64x384xf32>
    %cst_134 = arith.constant 0.00999999977 : f32
    %156 = vector.broadcast %cst_134 : f32 to vector<64x384xf32>
    %157 = arith.mulf %156, %153 : vector<64x384xf32>
    %158 = arith.select %155, %153, %157 : vector<64x384xi1>, vector<64x384xf32>
    %c0_135 = arith.constant 0 : index
    %c0_136 = arith.constant 0 : index
    %159 = vector.load %arg12[%c0_135, %c0_136] : memref<192x384xf32, #tpu.memory_space<vmem>>, vector<64x384xf32>
    tpu.vector_store %arg12[%c0_135, %c0_136], %158 {strides = array<i32>} : memref<192x384xf32, #tpu.memory_space<vmem>>, vector<64x384xf32>,
    %c0_137 = arith.constant 0 : index
    %c128_138 = arith.constant 128 : index
    %160 = vector.load %arg10[%c0_137, %c128_138] : memref<64x640xf32, #tpu.memory_space<vmem>>, vector<64x384xf32>
    %cst_139 = arith.constant 0.000000e+00 : f32
    %161 = vector.broadcast %cst_139 : f32 to vector<64x384xf32>
    %162 = arith.cmpf ogt, %160, %161 : vector<64x384xf32>
    %cst_140 = arith.constant 0.00999999977 : f32
    %163 = vector.broadcast %cst_140 : f32 to vector<64x384xf32>
    %164 = arith.mulf %163, %160 : vector<64x384xf32>
    %165 = arith.select %162, %160, %164 : vector<64x384xi1>, vector<64x384xf32>
    %c64_141 = arith.constant 64 : index
    %c0_142 = arith.constant 0 : index
    %166 = vector.load %arg12[%c64_141, %c0_142] : memref<192x384xf32, #tpu.memory_space<vmem>>, vector<64x384xf32>
    tpu.vector_store %arg12[%c64_141, %c0_142], %165 {strides = array<i32>} : memref<192x384xf32, #tpu.memory_space<vmem>>, vector<64x384xf32>,
    %c0_143 = arith.constant 0 : index
    %c137 = arith.constant 137 : index
    %167 = vector.load %arg10[%c0_143, %c137] : memref<64x640xf32, #tpu.memory_space<vmem>>, vector<64x384xf32>
    %cst_144 = arith.constant 0.000000e+00 : f32
    %168 = vector.broadcast %cst_144 : f32 to vector<64x384xf32>
    %169 = arith.cmpf ogt, %167, %168 : vector<64x384xf32>
    %cst_145 = arith.constant 0.00999999977 : f32
    %170 = vector.broadcast %cst_145 : f32 to vector<64x384xf32>
    %171 = arith.mulf %170, %167 : vector<64x384xf32>
    %172 = arith.select %169, %167, %171 : vector<64x384xi1>, vector<64x384xf32>
    %c128_146 = arith.constant 128 : index
    %c0_147 = arith.constant 0 : index
    %173 = vector.load %arg12[%c128_146, %c0_147] : memref<192x384xf32, #tpu.memory_space<vmem>>, vector<64x384xf32>
    tpu.vector_store %arg12[%c128_146, %c0_147], %172 {strides = array<i32>} : memref<192x384xf32, #tpu.memory_space<vmem>>, vector<64x384xf32>,
    %c2 = arith.constant 2 : index
    %c0_148 = arith.constant 0 : index
    %c0_149 = arith.constant 0 : index
    %174 = vector.load %arg5[%c2, %c0_148, %c0_149] : memref<4x64x192xf32, #tpu.memory_space<vmem>>, vector<1x64x192xf32>
    %175 = vector.shape_cast %174 : vector<1x64x192xf32> to vector<64x192xf32>
    %c0_150 = arith.constant 0 : index
    %c0_151 = arith.constant 0 : index
    %176 = vector.load %arg12[%c0_150, %c0_151] : memref<192x384xf32, #tpu.memory_space<vmem>>, vector<192x384xf32>
    %cst_152 = arith.constant dense<0.000000e+00> : vector<64x384xf32>
    %177 = tpu.matmul %175, %176, %cst_152 {dimension_numbers = #tpu.dot_dimension_numbers<[1], [0], [0], [1], [0, 0, 1, 1], [], []>} : vector<64x192xf32>, vector<192x384xf32>, vector<64x384xf32> -> vector<64x384xf32>
    %c2_153 = arith.constant 2 : index
    %c0_154 = arith.constant 0 : index
    %c0_155 = arith.constant 0 : index
    %178 = vector.load %arg6[%c2_153, %c0_154, %c0_155] : memref<4x64x1xf32, #tpu.memory_space<vmem>>, vector<1x64x1xf32>
    %179 = vector.shape_cast %178 : vector<1x64x1xf32> to vector<64x1xf32>
    %180 = vector.broadcast %179 : vector<64x1xf32> to vector<64x384xf32>
    %181 = arith.addf %177, %180 : vector<64x384xf32>
    %cst_156 = arith.constant 0.000000e+00 : f32
    %182 = vector.broadcast %cst_156 : f32 to vector<64x384xf32>
    %183 = arith.cmpf ogt, %181, %182 : vector<64x384xf32>
    %cst_157 = arith.constant 0.00999999977 : f32
    %184 = vector.broadcast %cst_157 : f32 to vector<64x384xf32>
    %185 = arith.mulf %184, %181 : vector<64x384xf32>
    %186 = arith.select %183, %181, %185 : vector<64x384xi1>, vector<64x384xf32>
    %cst_158 = arith.constant 0.000000e+00 : f32
    %187 = vector.shape_cast %32 : vector<1x384xi1> to vector<1x384xi1>
    %188 = vector.broadcast %187 : vector<1x384xi1> to vector<64x384xi1>
    %189 = vector.broadcast %cst_158 : f32 to vector<64x384xf32>
    %190 = arith.select %188, %186, %189 : vector<64x384xi1>, vector<64x384xf32>
    %c0_159 = arith.constant 0 : index
    %c128_160 = arith.constant 128 : index
    %191 = vector.load %arg11[%c0_159, %c128_160] : memref<64x640xf32, #tpu.memory_space<vmem>>, vector<64x384xf32>
    tpu.vector_store %arg11[%c0_159, %c128_160], %190 {strides = array<i32>} : memref<64x640xf32, #tpu.memory_space<vmem>>, vector<64x384xf32>,
    %c0_161 = arith.constant 0 : index
    %c127_162 = arith.constant 127 : index
    %192 = vector.load %arg11[%c0_161, %c127_162] : memref<64x640xf32, #tpu.memory_space<vmem>>, vector<64x384xf32>
    %c0_163 = arith.constant 0 : index
    %c0_164 = arith.constant 0 : index
    %193 = vector.load %arg12[%c0_163, %c0_164] : memref<192x384xf32, #tpu.memory_space<vmem>>, vector<64x384xf32>
    tpu.vector_store %arg12[%c0_163, %c0_164], %192 {strides = array<i32>} : memref<192x384xf32, #tpu.memory_space<vmem>>, vector<64x384xf32>,
    %c0_165 = arith.constant 0 : index
    %c128_166 = arith.constant 128 : index
    %194 = vector.load %arg11[%c0_165, %c128_166] : memref<64x640xf32, #tpu.memory_space<vmem>>, vector<64x384xf32>
    %c64_167 = arith.constant 64 : index
    %c0_168 = arith.constant 0 : index
    %195 = vector.load %arg12[%c64_167, %c0_168] : memref<192x384xf32, #tpu.memory_space<vmem>>, vector<64x384xf32>
    tpu.vector_store %arg12[%c64_167, %c0_168], %194 {strides = array<i32>} : memref<192x384xf32, #tpu.memory_space<vmem>>, vector<64x384xf32>,
    %c0_169 = arith.constant 0 : index
    %c129_170 = arith.constant 129 : index
    %196 = vector.load %arg11[%c0_169, %c129_170] : memref<64x640xf32, #tpu.memory_space<vmem>>, vector<64x384xf32>
    %c128_171 = arith.constant 128 : index
    %c0_172 = arith.constant 0 : index
    %197 = vector.load %arg12[%c128_171, %c0_172] : memref<192x384xf32, #tpu.memory_space<vmem>>, vector<64x384xf32>
    tpu.vector_store %arg12[%c128_171, %c0_172], %196 {strides = array<i32>} : memref<192x384xf32, #tpu.memory_space<vmem>>, vector<64x384xf32>,
    %c2_173 = arith.constant 2 : index
    %c0_174 = arith.constant 0 : index
    %c0_175 = arith.constant 0 : index
    %198 = vector.load %arg7[%c2_173, %c0_174, %c0_175] : memref<4x64x192xf32, #tpu.memory_space<vmem>>, vector<1x64x192xf32>
    %199 = vector.shape_cast %198 : vector<1x64x192xf32> to vector<64x192xf32>
    %c0_176 = arith.constant 0 : index
    %c0_177 = arith.constant 0 : index
    %200 = vector.load %arg12[%c0_176, %c0_177] : memref<192x384xf32, #tpu.memory_space<vmem>>, vector<192x384xf32>
    %cst_178 = arith.constant dense<0.000000e+00> : vector<64x384xf32>
    %201 = tpu.matmul %199, %200, %cst_178 {dimension_numbers = #tpu.dot_dimension_numbers<[1], [0], [0], [1], [0, 0, 1, 1], [], []>} : vector<64x192xf32>, vector<192x384xf32>, vector<64x384xf32> -> vector<64x384xf32>
    %c2_179 = arith.constant 2 : index
    %c0_180 = arith.constant 0 : index
    %c0_181 = arith.constant 0 : index
    %202 = vector.load %arg8[%c2_179, %c0_180, %c0_181] : memref<4x64x1xf32, #tpu.memory_space<vmem>>, vector<1x64x1xf32>
    %203 = vector.shape_cast %202 : vector<1x64x1xf32> to vector<64x1xf32>
    %204 = vector.broadcast %203 : vector<64x1xf32> to vector<64x384xf32>
    %205 = arith.addf %201, %204 : vector<64x384xf32>
    %c0_182 = arith.constant 0 : index
    %c128_183 = arith.constant 128 : index
    %206 = vector.load %arg10[%c0_182, %c128_183] : memref<64x640xf32, #tpu.memory_space<vmem>>, vector<64x384xf32>
    %cst_184 = arith.constant 0.000000e+00 : f32
    %207 = vector.shape_cast %32 : vector<1x384xi1> to vector<1x384xi1>
    %208 = vector.broadcast %207 : vector<1x384xi1> to vector<64x384xi1>
    %209 = vector.broadcast %cst_184 : f32 to vector<64x384xf32>
    %210 = arith.select %208, %205, %209 : vector<64x384xi1>, vector<64x384xf32>
    %211 = arith.addf %206, %210 : vector<64x384xf32>
    %c0_185 = arith.constant 0 : index
    %c128_186 = arith.constant 128 : index
    %212 = vector.load %arg10[%c0_185, %c128_186] : memref<64x640xf32, #tpu.memory_space<vmem>>, vector<64x384xf32>
    tpu.vector_store %arg10[%c0_185, %c128_186], %211 {strides = array<i32>} : memref<64x640xf32, #tpu.memory_space<vmem>>, vector<64x384xf32>,
    %c0_187 = arith.constant 0 : index
    %c101 = arith.constant 101 : index
    %213 = vector.load %arg10[%c0_187, %c101] : memref<64x640xf32, #tpu.memory_space<vmem>>, vector<64x384xf32>
    %cst_188 = arith.constant 0.000000e+00 : f32
    %214 = vector.broadcast %cst_188 : f32 to vector<64x384xf32>
    %215 = arith.cmpf ogt, %213, %214 : vector<64x384xf32>
    %cst_189 = arith.constant 0.00999999977 : f32
    %216 = vector.broadcast %cst_189 : f32 to vector<64x384xf32>
    %217 = arith.mulf %216, %213 : vector<64x384xf32>
    %218 = arith.select %215, %213, %217 : vector<64x384xi1>, vector<64x384xf32>
    %c0_190 = arith.constant 0 : index
    %c0_191 = arith.constant 0 : index
    %219 = vector.load %arg12[%c0_190, %c0_191] : memref<192x384xf32, #tpu.memory_space<vmem>>, vector<64x384xf32>
    tpu.vector_store %arg12[%c0_190, %c0_191], %218 {strides = array<i32>} : memref<192x384xf32, #tpu.memory_space<vmem>>, vector<64x384xf32>,
    %c0_192 = arith.constant 0 : index
    %c128_193 = arith.constant 128 : index
    %220 = vector.load %arg10[%c0_192, %c128_193] : memref<64x640xf32, #tpu.memory_space<vmem>>, vector<64x384xf32>
    %cst_194 = arith.constant 0.000000e+00 : f32
    %221 = vector.broadcast %cst_194 : f32 to vector<64x384xf32>
    %222 = arith.cmpf ogt, %220, %221 : vector<64x384xf32>
    %cst_195 = arith.constant 0.00999999977 : f32
    %223 = vector.broadcast %cst_195 : f32 to vector<64x384xf32>
    %224 = arith.mulf %223, %220 : vector<64x384xf32>
    %225 = arith.select %222, %220, %224 : vector<64x384xi1>, vector<64x384xf32>
    %c64_196 = arith.constant 64 : index
    %c0_197 = arith.constant 0 : index
    %226 = vector.load %arg12[%c64_196, %c0_197] : memref<192x384xf32, #tpu.memory_space<vmem>>, vector<64x384xf32>
    tpu.vector_store %arg12[%c64_196, %c0_197], %225 {strides = array<i32>} : memref<192x384xf32, #tpu.memory_space<vmem>>, vector<64x384xf32>,
    %c0_198 = arith.constant 0 : index
    %c155 = arith.constant 155 : index
    %227 = vector.load %arg10[%c0_198, %c155] : memref<64x640xf32, #tpu.memory_space<vmem>>, vector<64x384xf32>
    %cst_199 = arith.constant 0.000000e+00 : f32
    %228 = vector.broadcast %cst_199 : f32 to vector<64x384xf32>
    %229 = arith.cmpf ogt, %227, %228 : vector<64x384xf32>
    %cst_200 = arith.constant 0.00999999977 : f32
    %230 = vector.broadcast %cst_200 : f32 to vector<64x384xf32>
    %231 = arith.mulf %230, %227 : vector<64x384xf32>
    %232 = arith.select %229, %227, %231 : vector<64x384xi1>, vector<64x384xf32>
    %c128_201 = arith.constant 128 : index
    %c0_202 = arith.constant 0 : index
    %233 = vector.load %arg12[%c128_201, %c0_202] : memref<192x384xf32, #tpu.memory_space<vmem>>, vector<64x384xf32>
    tpu.vector_store %arg12[%c128_201, %c0_202], %232 {strides = array<i32>} : memref<192x384xf32, #tpu.memory_space<vmem>>, vector<64x384xf32>,
    %c3 = arith.constant 3 : index
    %c0_203 = arith.constant 0 : index
    %c0_204 = arith.constant 0 : index
    %234 = vector.load %arg5[%c3, %c0_203, %c0_204] : memref<4x64x192xf32, #tpu.memory_space<vmem>>, vector<1x64x192xf32>
    %235 = vector.shape_cast %234 : vector<1x64x192xf32> to vector<64x192xf32>
    %c0_205 = arith.constant 0 : index
    %c0_206 = arith.constant 0 : index
    %236 = vector.load %arg12[%c0_205, %c0_206] : memref<192x384xf32, #tpu.memory_space<vmem>>, vector<192x384xf32>
    %cst_207 = arith.constant dense<0.000000e+00> : vector<64x384xf32>
    %237 = tpu.matmul %235, %236, %cst_207 {dimension_numbers = #tpu.dot_dimension_numbers<[1], [0], [0], [1], [0, 0, 1, 1], [], []>} : vector<64x192xf32>, vector<192x384xf32>, vector<64x384xf32> -> vector<64x384xf32>
    %c3_208 = arith.constant 3 : index
    %c0_209 = arith.constant 0 : index
    %c0_210 = arith.constant 0 : index
    %238 = vector.load %arg6[%c3_208, %c0_209, %c0_210] : memref<4x64x1xf32, #tpu.memory_space<vmem>>, vector<1x64x1xf32>
    %239 = vector.shape_cast %238 : vector<1x64x1xf32> to vector<64x1xf32>
    %240 = vector.broadcast %239 : vector<64x1xf32> to vector<64x384xf32>
    %241 = arith.addf %237, %240 : vector<64x384xf32>
    %cst_211 = arith.constant 0.000000e+00 : f32
    %242 = vector.broadcast %cst_211 : f32 to vector<64x384xf32>
    %243 = arith.cmpf ogt, %241, %242 : vector<64x384xf32>
    %cst_212 = arith.constant 0.00999999977 : f32
    %244 = vector.broadcast %cst_212 : f32 to vector<64x384xf32>
    %245 = arith.mulf %244, %241 : vector<64x384xf32>
    %246 = arith.select %243, %241, %245 : vector<64x384xi1>, vector<64x384xf32>
    %cst_213 = arith.constant 0.000000e+00 : f32
    %247 = vector.shape_cast %32 : vector<1x384xi1> to vector<1x384xi1>
    %248 = vector.broadcast %247 : vector<1x384xi1> to vector<64x384xi1>
    %249 = vector.broadcast %cst_213 : f32 to vector<64x384xf32>
    %250 = arith.select %248, %246, %249 : vector<64x384xi1>, vector<64x384xf32>
    %c0_214 = arith.constant 0 : index
    %c128_215 = arith.constant 128 : index
    %251 = vector.load %arg11[%c0_214, %c128_215] : memref<64x640xf32, #tpu.memory_space<vmem>>, vector<64x384xf32>
    tpu.vector_store %arg11[%c0_214, %c128_215], %250 {strides = array<i32>} : memref<64x640xf32, #tpu.memory_space<vmem>>, vector<64x384xf32>,
    %c0_216 = arith.constant 0 : index
    %c127_217 = arith.constant 127 : index
    %252 = vector.load %arg11[%c0_216, %c127_217] : memref<64x640xf32, #tpu.memory_space<vmem>>, vector<64x384xf32>
    %c0_218 = arith.constant 0 : index
    %c0_219 = arith.constant 0 : index
    %253 = vector.load %arg12[%c0_218, %c0_219] : memref<192x384xf32, #tpu.memory_space<vmem>>, vector<64x384xf32>
    tpu.vector_store %arg12[%c0_218, %c0_219], %252 {strides = array<i32>} : memref<192x384xf32, #tpu.memory_space<vmem>>, vector<64x384xf32>,
    %c0_220 = arith.constant 0 : index
    %c128_221 = arith.constant 128 : index
    %254 = vector.load %arg11[%c0_220, %c128_221] : memref<64x640xf32, #tpu.memory_space<vmem>>, vector<64x384xf32>
    %c64_222 = arith.constant 64 : index
    %c0_223 = arith.constant 0 : index
    %255 = vector.load %arg12[%c64_222, %c0_223] : memref<192x384xf32, #tpu.memory_space<vmem>>, vector<64x384xf32>
    tpu.vector_store %arg12[%c64_222, %c0_223], %254 {strides = array<i32>} : memref<192x384xf32, #tpu.memory_space<vmem>>, vector<64x384xf32>,
    %c0_224 = arith.constant 0 : index
    %c129_225 = arith.constant 129 : index
    %256 = vector.load %arg11[%c0_224, %c129_225] : memref<64x640xf32, #tpu.memory_space<vmem>>, vector<64x384xf32>
    %c128_226 = arith.constant 128 : index
    %c0_227 = arith.constant 0 : index
    %257 = vector.load %arg12[%c128_226, %c0_227] : memref<192x384xf32, #tpu.memory_space<vmem>>, vector<64x384xf32>
    tpu.vector_store %arg12[%c128_226, %c0_227], %256 {strides = array<i32>} : memref<192x384xf32, #tpu.memory_space<vmem>>, vector<64x384xf32>,
    %c3_228 = arith.constant 3 : index
    %c0_229 = arith.constant 0 : index
    %c0_230 = arith.constant 0 : index
    %258 = vector.load %arg7[%c3_228, %c0_229, %c0_230] : memref<4x64x192xf32, #tpu.memory_space<vmem>>, vector<1x64x192xf32>
    %259 = vector.shape_cast %258 : vector<1x64x192xf32> to vector<64x192xf32>
    %c0_231 = arith.constant 0 : index
    %c0_232 = arith.constant 0 : index
    %260 = vector.load %arg12[%c0_231, %c0_232] : memref<192x384xf32, #tpu.memory_space<vmem>>, vector<192x384xf32>
    %cst_233 = arith.constant dense<0.000000e+00> : vector<64x384xf32>
    %261 = tpu.matmul %259, %260, %cst_233 {dimension_numbers = #tpu.dot_dimension_numbers<[1], [0], [0], [1], [0, 0, 1, 1], [], []>} : vector<64x192xf32>, vector<192x384xf32>, vector<64x384xf32> -> vector<64x384xf32>
    %c3_234 = arith.constant 3 : index
    %c0_235 = arith.constant 0 : index
    %c0_236 = arith.constant 0 : index
    %262 = vector.load %arg8[%c3_234, %c0_235, %c0_236] : memref<4x64x1xf32, #tpu.memory_space<vmem>>, vector<1x64x1xf32>
    %263 = vector.shape_cast %262 : vector<1x64x1xf32> to vector<64x1xf32>
    %264 = vector.broadcast %263 : vector<64x1xf32> to vector<64x384xf32>
    %265 = arith.addf %261, %264 : vector<64x384xf32>
    %c0_237 = arith.constant 0 : index
    %c128_238 = arith.constant 128 : index
    %266 = vector.load %arg10[%c0_237, %c128_238] : memref<64x640xf32, #tpu.memory_space<vmem>>, vector<64x384xf32>
    %cst_239 = arith.constant 0.000000e+00 : f32
    %267 = vector.shape_cast %32 : vector<1x384xi1> to vector<1x384xi1>
    %268 = vector.broadcast %267 : vector<1x384xi1> to vector<64x384xi1>
    %269 = vector.broadcast %cst_239 : f32 to vector<64x384xf32>
    %270 = arith.select %268, %265, %269 : vector<64x384xi1>, vector<64x384xf32>
    %271 = arith.addf %266, %270 : vector<64x384xf32>
    %c0_240 = arith.constant 0 : index
    %c128_241 = arith.constant 128 : index
    %272 = vector.load %arg10[%c0_240, %c128_241] : memref<64x640xf32, #tpu.memory_space<vmem>>, vector<64x384xf32>
    tpu.vector_store %arg10[%c0_240, %c128_241], %271 {strides = array<i32>} : memref<64x640xf32, #tpu.memory_space<vmem>>, vector<64x384xf32>,
    %c0_242 = arith.constant 0 : index
    %c256_243 = arith.constant 256 : index
    %273 = vector.load %arg10[%c0_242, %c256_243] : memref<64x640xf32, #tpu.memory_space<vmem>>, vector<64x128xf32>
    %c0_244 = arith.constant 0 : index
    %c0_245 = arith.constant 0 : index
    %c0_246 = arith.constant 0 : index
    %274 = vector.load %arg9[%c0_244, %c0_245, %c0_246] : memref<1x64x128xf32, #tpu.memory_space<vmem>>, vector<1x64x128xf32>
    %275 = vector.shape_cast %274 : vector<1x64x128xf32> to vector<64x128xf32>
    %276 = vector.shape_cast %273 : vector<64x128xf32> to vector<1x64x128xf32>
    tpu.vector_store %arg9[%c0_244, %c0_245, %c0_246], %276 {strides = array<i32>} : memref<1x64x128xf32, #tpu.memory_space<vmem>>, vector<1x64x128xf32>,
    return
  }
  func.func @transform_0(%arg0: i32, %arg1: i32) -> (i32, i32, i32) {
    %c1_i32 = arith.constant 1 : i32
    %0 = arith.subi %arg1, %c1_i32 : i32
    %c0_i32 = arith.constant 0 : i32
    %1 = arith.maxsi %0, %c0_i32 : i32
    %c0_i32_0 = arith.constant 0 : i32
    %c0_i32_1 = arith.constant 0 : i32
    return %arg0, %c0_i32_0, %1 : i32, i32, i32
  }
  func.func @transform_1(%arg0: i32, %arg1: i32) -> (i32, i32, i32) {
    %c0_i32 = arith.constant 0 : i32
    %c0_i32_0 = arith.constant 0 : i32
    return %arg0, %c0_i32, %arg1 : i32, i32, i32
  }
  func.func @transform_2(%arg0: i32, %arg1: i32) -> (i32, i32, i32) {
    %c1_i32 = arith.constant 1 : i32
    %0 = arith.addi %arg1, %c1_i32 : i32
    %c0_i32 = arith.constant 0 : i32
    %1 = arith.minsi %0, %c0_i32 : i32
    %c0_i32_0 = arith.constant 0 : i32
    %c0_i32_1 = arith.constant 0 : i32
    return %arg0, %c0_i32_0, %1 : i32, i32, i32
  }
  func.func @transform_3(%arg0: i32, %arg1: i32) -> (i32, i32, i32) {
    %c0_i32 = arith.constant 0 : i32
    %c0_i32_0 = arith.constant 0 : i32
    %c0_i32_1 = arith.constant 0 : i32
    %c0_i32_2 = arith.constant 0 : i32
    return %c0_i32, %c0_i32_0, %c0_i32_1 : i32, i32, i32
  }
  func.func @transform_4(%arg0: i32, %arg1: i32) -> (i32, i32, i32) {
    %c0_i32 = arith.constant 0 : i32
    %c0_i32_0 = arith.constant 0 : i32
    %c0_i32_1 = arith.constant 0 : i32
    %c0_i32_2 = arith.constant 0 : i32
    return %c0_i32, %c0_i32_0, %c0_i32_1 : i32, i32, i32
  }
  func.func @transform_5(%arg0: i32, %arg1: i32) -> (i32, i32, i32) {
    %c0_i32 = arith.constant 0 : i32
    %c0_i32_0 = arith.constant 0 : i32
    %c0_i32_1 = arith.constant 0 : i32
    %c0_i32_2 = arith.constant 0 : i32
    return %c0_i32, %c0_i32_0, %c0_i32_1 : i32, i32, i32
  }
  func.func @transform_6(%arg0: i32, %arg1: i32) -> (i32, i32, i32) {
    %c0_i32 = arith.constant 0 : i32
    %c0_i32_0 = arith.constant 0 : i32
    %c0_i32_1 = arith.constant 0 : i32
    %c0_i32_2 = arith.constant 0 : i32
    return %c0_i32, %c0_i32_0, %c0_i32_1 : i32, i32, i32
  }
  func.func @transform_7(%arg0: i32, %arg1: i32) -> (i32, i32, i32) {
    %c0_i32 = arith.constant 0 : i32
    %c0_i32_0 = arith.constant 0 : i32
    return %arg0, %c0_i32, %arg1 : i32, i32, i32
  }
}

</mosaic_0001>

<llo_original>
// kernel: tpu_custom_call.1
$region0: #{tpu_custom_call.1}
  #allocation0 [shape = 'u32[]', space=smem, size = 0x4, offset = 0x4, fixed_abs, tag = 'smem constant byte address 0x4 - core index']
  #allocation1 [shape = 'u32[144,128]{1,0:T(1,128)}', space=vmem, size = 0x12000, scoped, tag = 'internal scratch']
  #allocation2 [shape = 'f32[64,640]{1,0:T(8,128)}', space=vmem, size = 0x28000, scoped, tag = 'scratch operand']
  #allocation3 [shape = 'f32[64,640]{1,0:T(8,128)}', space=vmem, size = 0x28000, scoped, tag = 'scratch operand']
  #allocation4 [shape = 'f32[192,384]{1,0:T(8,128)}', space=vmem, size = 0x48000, scoped, tag = 'scratch operand']
  %s0 = inlined_call_operand.hbm [shape: f32[2,64,128], index: 0, kind: input, shape index: {}]
  %s1 = inlined_call_operand.hbm [shape: f32[2,64,128], index: 1, kind: input, shape index: {}]
  %s2 = inlined_call_operand.hbm [shape: f32[2,64,128], index: 2, kind: input, shape index: {}]
  %s3 = inlined_call_operand.vmem [shape: f32[4,64,192], index: 3, kind: input, shape index: {}]
  %s4 = inlined_call_operand.vmem [shape: f32[4,64,1], index: 4, kind: input, shape index: {}]
  %s5 = inlined_call_operand.hbm [shape: f32[4,64,192], index: 5, kind: input, shape index: {}]
  %s6 = inlined_call_operand.vmem [shape: f32[4,64,1], index: 6, kind: input, shape index: {}]
  %s7 = inlined_call_operand.hbm [shape: f32[2,64,128], index: 7, kind: output, shape index: {}]
  %s8 = sld [smem:[#allocation0]]
  $region93: #{tpu_custom_call.1} parent=0
    _
  %s10 = ssub.s32 1, %s8
  %s11 = scalar_select 0, %s10, %s8
  $region1: #{tpu_custom_call.1} parent=0
    #allocation5 [shape = 'u8[65536]{0}', space=vmem, size = 0x10000, scoped, tag = 'input window, operand 0']
    #allocation6 [shape = 's32[2]{0}', space=sflag, size = 0x8, scoped, tag = 'scoped memory for tpu_custom_call.1']
    #allocation7 [shape = 's32[2]{0}', space=sflag, size = 0x8, scoped, tag = 'scoped memory for tpu_custom_call.1']
    #allocation8 [shape = 'u8[65536]{0}', space=vmem, size = 0x10000, scoped, tag = 'input window, operand 1']
    #allocation9 [shape = 's32[2]{0}', space=sflag, size = 0x8, scoped, tag = 'scoped memory for tpu_custom_call.1']
    #allocation10 [shape = 'u8[65536]{0}', space=vmem, size = 0x10000, scoped, tag = 'input window, operand 2']
    #allocation11 [shape = 'u8[262144]{0}', space=vmem, size = 0x40000, scoped, tag = 'input window, operand 5, single buffered']
    #allocation12 [shape = 's32[1]{0}', space=sflag, size = 0x4, scoped, tag = 'scoped memory for tpu_custom_call.1']
    #allocation13 [shape = 'u8[65536]{0}', space=vmem, size = 0x10000, scoped, tag = 'output window, operand 0']
    %12 = vsyncpa [#allocation6], 0
    %s13 = scalar_lea.sflag [#allocation6], 1
    %14 = vsyncpa %s13, 0
    %15 = vsyncpa [#allocation9], 0
    %s16 = scalar_lea.sflag [#allocation9], 1
    %17 = vsyncpa %s16, 0
    %18 = vsyncpa [#allocation12], 0
    %19 = vsyncpa [#allocation7], 0
    %s20 = scalar_lea.sflag [#allocation7], 1
    %21 = vsyncpa %s20, 0
    loop: start=0, step=1, limit=4
    $region2: #{tpu_custom_call.1} parent=1 // loop_pre_header
      _
    $region3: #{tpu_custom_call.1} parent=1 // loop_header
      %s23 = sphi 0, %s27
      %p24 = scmp.ge.s32.totalorder %s23, 4
      %s30 = sphi 0, %s42
      %s31 = sphi 0, %s38
      %s32 = sphi 0, %s30
      %s33 = sphi 0, %s31
      %s34 = sphi 0, %s32
      %s35 = sphi 0, %s33
      %s53 = sphi 0, %s55
      %s56 = sphi 0, %s53
      %s57 = sphi 0, %s56
      %s73 = sphi 0, %s57
      %s81 = sphi 0, %s83
      %s84 = sphi 0, %s81
      %s85 = sphi 0, %s84
      %s101 = sphi 0, %s85
      %s115 = sphi 0, %s117
      %s118 = sphi 0, %s115
      %s119 = sphi 0, %s118
      %s135 = sphi 0, %s119
      %s139 = sphi 0, %s139
      %s141 = sphi 0, %s139
      %s142 = sphi 0, %s141
      %s156 = sphi 0, %s142
      %s160 = sphi 0, %s160
      %s162 = sphi 0, %s160
      %s163 = sphi 0, %s162
      %s177 = sphi 0, %s163
      %s181 = sphi 0, %s181
      %s183 = sphi 0, %s181
      %s184 = sphi 0, %s183
      %s198 = sphi 0, %s184
      %s202 = sphi 0, %s202
      %s204 = sphi 0, %s202
      %s205 = sphi 0, %s204
      %s219 = sphi 0, %s205
      %s227 = sphi 0, %s229
      %s230 = sphi 0, %s227
      %s231 = sphi 0, %s230
      %s247 = sphi 0, %s231
    $region4: #{tpu_custom_call.1} parent=1 // loop_header_branch
      %26 = sbr.rel (%p24) target = $region8
    $region5: #{tpu_custom_call.1} parent=1 // loop_body
      %s28 = ssub.s32 %s23, 1
      %s29 = ssub.s32 %s23, 2
      %s36 = sadd.s32 1, %s31
      %p37 = scmp.ge.s32.totalorder %s36, 1
      %s38 = scalar_select %p37, 0, %s36
      %s39 = sadd.s32 1, %s30
      %s40 = scalar_select %p37, %s39, %s30
      %p41 = scmp.ge.s32.totalorder %s40, 2
      %s42 = scalar_select %p41, 0, %s40
      %s43 = ssub.s32 %s31, 1
      %p44 = scmp.gt.s32.totalorder %s43, 0
      %s45 = scalar_select %p44, %s43, 0
      %s46 = ssub.s32 %s38, 1
      %p47 = scmp.gt.s32.totalorder %s46, 0
      %s48 = scalar_select %p47, %s46, 0
      %s49 = ssub.s32 %s30, %s42
      %s50 = ssub.s32 %s45, %s48
      %s51 = sor.u32 %s49, %s50
      %p52 = scmp.eq.s32.totalorder %s51, 0
      %s54 = sadd.s32 %s53, 1
      %s55 = scalar_select %p52, %s53, %s54
      %p58 = pneg %p52
      %p59 = scmp.eq.s32.totalorder %s23, 1
      %p60 = por %p58, %p59
      %p61 = scmp.ne.s32.totalorder %s53, %s56
      %p62 = scmp.eq.s32.totalorder %s23, 0
      %p63 = por %p61, %p62
      %p64 = scmp.ne.s32.totalorder %s53, %s56
      %p65 = scmp.eq.s32.totalorder %s28, 1
      %p66 = por %p64, %p65
      %p67 = scmp.ne.s32.totalorder %s56, %s57
      %p68 = scmp.eq.s32.totalorder %s28, 0
      %p69 = por %p67, %p68
      %p70 = scmp.ne.s32.totalorder %s56, %s57
      %p71 = scmp.eq.s32.totalorder %s29, 1
      %p72 = por %p70, %p71
      %p74 = scmp.ne.s32.totalorder %s57, %s73
      %p75 = scmp.eq.s32.totalorder %s29, 0
      %p76 = por %p74, %p75
      %s77 = ssub.s32 %s30, %s42
      %s78 = ssub.s32 %s31, %s38
      %s79 = sor.u32 %s77, %s78
      %p80 = scmp.eq.s32.totalorder %s79, 0
      %s82 = sadd.s32 %s81, 1
      %s83 = scalar_select %p80, %s81, %s82
      %p86 = pneg %p80
      %p87 = scmp.eq.s32.totalorder %s23, 1
      %p88 = por %p86, %p87
      %p89 = scmp.ne.s32.totalorder %s81, %s84
      %p90 = scmp.eq.s32.totalorder %s23, 0
      %p91 = por %p89, %p90
      %p92 = scmp.ne.s32.totalorder %s81, %s84
      %p93 = scmp.eq.s32.totalorder %s28, 1
      %p94 = por %p92, %p93
      %p95 = scmp.ne.s32.totalorder %s84, %s85
      %p96 = scmp.eq.s32.totalorder %s28, 0
      %p97 = por %p95, %p96
      %p98 = scmp.ne.s32.totalorder %s84, %s85
      %p99 = scmp.eq.s32.totalorder %s29, 1
      %p100 = por %p98, %p99
      %p102 = scmp.ne.s32.totalorder %s85, %s101
      %p103 = scmp.eq.s32.totalorder %s29, 0
      %p104 = por %p102, %p103
      %s105 = sadd.s32 %s31, 1
      %p106 = scmp.lt.s32.totalorder %s105, 0
      %s107 = scalar_select %p106, %s105, 0
      %s108 = sadd.s32 %s38, 1
      %p109 = scmp.lt.s32.totalorder %s108, 0
      %s110 = scalar_select %p109, %s108, 0
      %s111 = ssub.s32 %s30, %s42
      %s112 = ssub.s32 %s107, %s110
      %s113 = sor.u32 %s111, %s112
      %p114 = scmp.eq.s32.totalorder %s113, 0
      %s116 = sadd.s32 %s115, 1
      %s117 = scalar_select %p114, %s115, %s116
      %p120 = pneg %p114
      %p121 = scmp.eq.s32.totalorder %s23, 1
      %p122 = por %p120, %p121
      %p123 = scmp.ne.s32.totalorder %s115, %s118
      %p124 = scmp.eq.s32.totalorder %s23, 0
      %p125 = por %p123, %p124
      %p126 = scmp.ne.s32.totalorder %s115, %s118
      %p127 = scmp.eq.s32.totalorder %s28, 1
      %p128 = por %p126, %p127
      %p129 = scmp.ne.s32.totalorder %s118, %s119
      %p130 = scmp.eq.s32.totalorder %s28, 0
      %p131 = por %p129, %p130
      %p132 = scmp.ne.s32.totalorder %s118, %s119
      %p133 = scmp.eq.s32.totalorder %s29, 1
      %p134 = por %p132, %p133
      %p136 = scmp.ne.s32.totalorder %s119, %s135
      %p137 = scmp.eq.s32.totalorder %s29, 0
      %p138 = por %p136, %p137
      %s140 = sadd.s32 %s139, 1
      %p143 = scmp.eq.s32.totalorder %s23, 1
      %p144 = scmp.ne.s32.totalorder %s139, %s141
      %p145 = scmp.eq.s32.totalorder %s23, 0
      %p146 = por %p144, %p145
      %p147 = scmp.ne.s32.totalorder %s139, %s141
      %p148 = scmp.eq.s32.totalorder %s28, 1
      %p149 = por %p147, %p148
      %p150 = scmp.ne.s32.totalorder %s141, %s142
      %p151 = scmp.eq.s32.totalorder %s28, 0
      %p152 = por %p150, %p151
      %p153 = scmp.ne.s32.totalorder %s141, %s142
      %p154 = scmp.eq.s32.totalorder %s29, 1
      %p155 = por %p153, %p154
      %p157 = scmp.ne.s32.totalorder %s142, %s156
      %p158 = scmp.eq.s32.totalorder %s29, 0
      %p159 = por %p157, %p158
      %s161 = sadd.s32 %s160, 1
      %p164 = scmp.eq.s32.totalorder %s23, 1
      %p165 = scmp.ne.s32.totalorder %s160, %s162
      %p166 = scmp.eq.s32.totalorder %s23, 0
      %p167 = por %p165, %p166
      %p168 = scmp.ne.s32.totalorder %s160, %s162
      %p169 = scmp.eq.s32.totalorder %s28, 1
      %p170 = por %p168, %p169
      %p171 = scmp.ne.s32.totalorder %s162, %s163
      %p172 = scmp.eq.s32.totalorder %s28, 0
      %p173 = por %p171, %p172
      %p174 = scmp.ne.s32.totalorder %s162, %s163
      %p175 = scmp.eq.s32.totalorder %s29, 1
      %p176 = por %p174, %p175
      %p178 = scmp.ne.s32.totalorder %s163, %s177
      %p179 = scmp.eq.s32.totalorder %s29, 0
      %p180 = por %p178, %p179
      %s182 = sadd.s32 %s181, 1
      %p185 = scmp.eq.s32.totalorder %s23, 1
      %p186 = scmp.ne.s32.totalorder %s181, %s183
      %p187 = scmp.eq.s32.totalorder %s23, 0
      %p188 = por %p186, %p187
      %p189 = scmp.ne.s32.totalorder %s181, %s183
      %p190 = scmp.eq.s32.totalorder %s28, 1
      %p191 = por %p189, %p190
      %p192 = scmp.ne.s32.totalorder %s183, %s184
      %p193 = scmp.eq.s32.totalorder %s28, 0
      %p194 = por %p192, %p193
      %p195 = scmp.ne.s32.totalorder %s183, %s184
      %p196 = scmp.eq.s32.totalorder %s29, 1
      %p197 = por %p195, %p196
      %p199 = scmp.ne.s32.totalorder %s184, %s198
      %p200 = scmp.eq.s32.totalorder %s29, 0
      %p201 = por %p199, %p200
      %s203 = sadd.s32 %s202, 1
      %p206 = scmp.eq.s32.totalorder %s23, 1
      %p207 = scmp.ne.s32.totalorder %s202, %s204
      %p208 = scmp.eq.s32.totalorder %s23, 0
      %p209 = por %p207, %p208
      %p210 = scmp.ne.s32.totalorder %s202, %s204
      %p211 = scmp.eq.s32.totalorder %s28, 1
      %p212 = por %p210, %p211
      %p213 = scmp.ne.s32.totalorder %s204, %s205
      %p214 = scmp.eq.s32.totalorder %s28, 0
      %p215 = por %p213, %p214
      %p216 = scmp.ne.s32.totalorder %s204, %s205
      %p217 = scmp.eq.s32.totalorder %s29, 1
      %p218 = por %p216, %p217
      %p220 = scmp.ne.s32.totalorder %s205, %s219
      %p221 = scmp.eq.s32.totalorder %s29, 0
      %p222 = por %p220, %p221
      %s223 = ssub.s32 %s30, %s42
      %s224 = ssub.s32 %s31, %s38
      %s225 = sor.u32 %s223, %s224
      %p226 = scmp.eq.s32.totalorder %s225, 0
      %s228 = sadd.s32 %s227, 1
      %s229 = scalar_select %p226, %s227, %s228
      %p232 = pneg %p226
      %p233 = scmp.eq.s32.totalorder %s23, 1
      %p234 = por %p232, %p233
      %p235 = scmp.ne.s32.totalorder %s227, %s230
      %p236 = scmp.eq.s32.totalorder %s23, 0
      %p237 = por %p235, %p236
      %p238 = scmp.ne.s32.totalorder %s227, %s230
      %p239 = scmp.eq.s32.totalorder %s28, 1
      %p240 = por %p238, %p239
      %p241 = scmp.ne.s32.totalorder %s230, %s231
      %p242 = scmp.eq.s32.totalorder %s28, 0
      %p243 = por %p241, %p242
      %p244 = scmp.ne.s32.totalorder %s230, %s231
      %p245 = scmp.eq.s32.totalorder %s29, 1
      %p246 = por %p244, %p245
      %p248 = scmp.ne.s32.totalorder %s231, %s247
      %p249 = scmp.eq.s32.totalorder %s29, 0
      %p250 = por %p248, %p249
      %p251 = scmp.le.s32.totalorder 1, %s23
      %p252 = scmp.lt.s32.totalorder %s23, 3
      %p253 = pnand %p251, %p252
      %p254 = pneg %p253
      // Predicated region
      $region9: #{tpu_custom_call.1} parent=5 // pred_check
        _
      $region10: #{tpu_custom_call.1} parent=5 // pred_check_branch
        %256 = sbr.rel (%p253) target = $region12
      $region11: #{tpu_custom_call.1} parent=5 // pred_region
        %s257 = ssub.s32 %s23, 1
        // Predicated region
        $region13: #{tpu_custom_call.1} parent=11 // pred_check
          %p258 = pneg %p152
        $region14: #{tpu_custom_call.1} parent=11 // pred_check_branch
          %260 = sbr.rel (%p258) target = $region16
        $region15: #{tpu_custom_call.1} parent=11 // pred_region
          _
        $region16: #{tpu_custom_call.1} parent=11 // pred_fallthru
          _
        // Predicated region
        $region17: #{tpu_custom_call.1} parent=11 // pred_check
          %p261 = pneg %p173
        $region18: #{tpu_custom_call.1} parent=11 // pred_check_branch
          %263 = sbr.rel (%p261) target = $region20
        $region19: #{tpu_custom_call.1} parent=11 // pred_region
          _
        $region20: #{tpu_custom_call.1} parent=11 // pred_fallthru
          _
        // Predicated region
        $region21: #{tpu_custom_call.1} parent=11 // pred_check
          %p264 = pneg %p194
        $region22: #{tpu_custom_call.1} parent=11 // pred_check_branch
          %266 = sbr.rel (%p264) target = $region24
        $region23: #{tpu_custom_call.1} parent=11 // pred_region
          %s268 = ssub.s32 8192, 8192
          %269 = vsyncadd [#allocation12], %s268
          %s270 = sshll.u32 [#allocation11], 4
          %s271 = int_to_ptr.vmem [resolvable:$true] %s270
          %276 = dma.hbm_to_vmem [thread:$0]  %s5, 8192, %s271, [#allocation12], 256, 256, 16
        $region24: #{tpu_custom_call.1} parent=11 // pred_fallthru
          _
        // Predicated region
        $region25: #{tpu_custom_call.1} parent=11 // pred_check
          %p277 = pneg %p215
        $region26: #{tpu_custom_call.1} parent=11 // pred_check_branch
          %279 = sbr.rel (%p277) target = $region28
        $region27: #{tpu_custom_call.1} parent=11 // pred_region
          _
        $region28: #{tpu_custom_call.1} parent=11 // pred_fallthru
          _
      $region12: #{tpu_custom_call.1} parent=5 // pred_fallthru
        _
      %p280 = scmp.lt.s32.totalorder %s23, 2
      // Predicated region
      $region29: #{tpu_custom_call.1} parent=5 // pred_check
        %p281 = pneg %p280
      $region30: #{tpu_custom_call.1} parent=5 // pred_check_branch
        %283 = sbr.rel (%p281) target = $region32
      $region31: #{tpu_custom_call.1} parent=5 // pred_region
        // Predicated region
        $region33: #{tpu_custom_call.1} parent=31 // pred_check
          %p284 = pneg %p63
        $region34: #{tpu_custom_call.1} parent=31 // pred_check_branch
          %286 = sbr.rel (%p284) target = $region36
        $region35: #{tpu_custom_call.1} parent=31 // pred_region
          %s287 = sand.u32 %s53, 1
          %s288 = scalar_lea.sflag [#allocation6], %s287
          %s289 = sand.u32 %s53, 1
          %s290 = smul.addr %s289, 64
          %s291 = scalar_lea.vmem [#allocation5], %s290
          %s292 = ssub.s32 %s31, 1
          %p293 = scmp.gt.s32.totalorder %s292, 0
          %s294 = scalar_select %p293, %s292, 0
          %s296 = ssub.s32 1024, 1024
          %297 = vsyncadd %s288, %s296
          %s298 = smul.addr %s30, 8
          %s299 = sadd.s32 %s294, %s298
          %s300 = smul.addr %s299, 128
          %s301 = scalar_lea.hbm %s0, %s300
          %s302 = sshll.u32 %s291, 4
          %s303 = int_to_ptr.vmem [resolvable:$true] %s302
          %308 = dma.hbm_to_vmem [thread:$0]  %s301, 1024, %s303, %s288, 128, 128, 8
        $region36: #{tpu_custom_call.1} parent=31 // pred_fallthru
          _
        // Predicated region
        $region37: #{tpu_custom_call.1} parent=31 // pred_check
          %p309 = pneg %p91
        $region38: #{tpu_custom_call.1} parent=31 // pred_check_branch
          %311 = sbr.rel (%p309) target = $region40
        $region39: #{tpu_custom_call.1} parent=31 // pred_region
          %s312 = sand.u32 %s23, 1
          %s313 = scalar_lea.sflag [#allocation9], %s312
          %s314 = sand.u32 %s81, 1
          %s315 = smul.addr %s314, 64
          %s316 = scalar_lea.vmem [#allocation8], %s315
          %s318 = ssub.s32 1024, 1024
          %319 = vsyncadd %s313, %s318
          %s320 = smul.addr %s30, 8
          %s321 = sadd.s32 %s31, %s320
          %s322 = smul.addr %s321, 128
          %s323 = scalar_lea.hbm %s1, %s322
          %s324 = sshll.u32 %s316, 4
          %s325 = int_to_ptr.vmem [resolvable:$true] %s324
          %330 = dma.hbm_to_vmem [thread:$0]  %s323, 1024, %s325, %s313, 128, 128, 8
        $region40: #{tpu_custom_call.1} parent=31 // pred_fallthru
          _
        // Predicated region
        $region41: #{tpu_custom_call.1} parent=31 // pred_check
          %p331 = pneg %p125
        $region42: #{tpu_custom_call.1} parent=31 // pred_check_branch
          %333 = sbr.rel (%p331) target = $region44
        $region43: #{tpu_custom_call.1} parent=31 // pred_region
          %s334 = sand.u32 %s23, 1
          %s335 = scalar_lea.sflag [#allocation9], %s334
          %s336 = sand.u32 %s115, 1
          %s337 = smul.addr %s336, 64
          %s338 = scalar_lea.vmem [#allocation10], %s337
          %s339 = sadd.s32 %s31, 1
          %p340 = scmp.lt.s32.totalorder %s339, 0
          %s341 = scalar_select %p340, %s339, 0
          %s343 = ssub.s32 1024, 1024
          %344 = vsyncadd %s335, %s343
          %s345 = smul.addr %s30, 8
          %s346 = sadd.s32 %s341, %s345
          %s347 = smul.addr %s346, 128
          %s348 = scalar_lea.hbm %s2, %s347
          %s349 = sshll.u32 %s338, 4
          %s350 = int_to_ptr.vmem [resolvable:$true] %s349
          %355 = dma.hbm_to_vmem [thread:$0]  %s348, 1024, %s350, %s335, 128, 128, 8
        $region44: #{tpu_custom_call.1} parent=31 // pred_fallthru
          _
      $region32: #{tpu_custom_call.1} parent=5 // pred_fallthru
        _
      %p356 = scmp.le.s32.totalorder 1, %s23
      %p357 = scmp.lt.s32.totalorder %s23, 3
      %p358 = pnand %p356, %p357
      %p359 = pneg %p358
      // Predicated region
      $region45: #{tpu_custom_call.1} parent=5 // pred_check
        _
      $region46: #{tpu_custom_call.1} parent=5 // pred_check_branch
        %361 = sbr.rel (%p358) target = $region48
      $region47: #{tpu_custom_call.1} parent=5 // pred_region
        %s362 = ssub.s32 %s23, 1
        %s363 = sand.u32 %s56, 1
        %s364 = scalar_lea.sflag [#allocation6], %s363
        %s365 = sand.u32 %s56, 1
        %s366 = smul.addr %s365, 64
        %s367 = scalar_lea.vmem [#allocation5], %s366
        // Predicated region
        $region49: #{tpu_custom_call.1} parent=47 // pred_check
          %p368 = pneg %p69
        $region50: #{tpu_custom_call.1} parent=47 // pred_check_branch
          %370 = sbr.rel (%p368) target = $region52
        $region51: #{tpu_custom_call.1} parent=47 // pred_region
          %371 = dma.done %s364, 1024
        $region52: #{tpu_custom_call.1} parent=47 // pred_fallthru
          _
        %s372 = sand.u32 %s28, 1
        %s373 = scalar_lea.sflag [#allocation9], %s372
        %s374 = sand.u32 %s84, 1
        %s375 = smul.addr %s374, 64
        %s376 = scalar_lea.vmem [#allocation8], %s375
        // Predicated region
        $region53: #{tpu_custom_call.1} parent=47 // pred_check
          %p377 = pneg %p97
        $region54: #{tpu_custom_call.1} parent=47 // pred_check_branch
          %379 = sbr.rel (%p377) target = $region56
        $region55: #{tpu_custom_call.1} parent=47 // pred_region
          %380 = dma.done %s373, 1024
        $region56: #{tpu_custom_call.1} parent=47 // pred_fallthru
          _
        %s381 = sand.u32 %s28, 1
        %s382 = scalar_lea.sflag [#allocation9], %s381
        %s383 = sand.u32 %s118, 1
        %s384 = smul.addr %s383, 64
        %s385 = scalar_lea.vmem [#allocation10], %s384
        // Predicated region
        $region57: #{tpu_custom_call.1} parent=47 // pred_check
          %p386 = pneg %p131
        $region58: #{tpu_custom_call.1} parent=47 // pred_check_branch
          %388 = sbr.rel (%p386) target = $region60
        $region59: #{tpu_custom_call.1} parent=47 // pred_region
          %389 = dma.done %s382, 1024
        $region60: #{tpu_custom_call.1} parent=47 // pred_fallthru
          _
        // Predicated region
        $region61: #{tpu_custom_call.1} parent=47 // pred_check
          %p390 = pneg %p194
        $region62: #{tpu_custom_call.1} parent=47 // pred_check_branch
          %392 = sbr.rel (%p390) target = $region64
        $region63: #{tpu_custom_call.1} parent=47 // pred_region
          %393 = dma.done [#allocation12], 8192
        $region64: #{tpu_custom_call.1} parent=47 // pred_fallthru
          _
        %s394 = sand.u32 %s56, 1
        %s395 = scalar_lea.sflag [#allocation6], %s394
        %s396 = sand.u32 %s56, 1
        %s397 = smul.addr %s396, 64
        %s398 = scalar_lea.vmem [#allocation5], %s397
        %p399 = pneg %p69
        %p400 = pneg %p66
        %s401 = sand.u32 %s28, 1
        %s402 = scalar_lea.sflag [#allocation9], %s401
        %s403 = sand.u32 %s84, 1
        %s404 = smul.addr %s403, 64
        %s405 = scalar_lea.vmem [#allocation8], %s404
        %p406 = pneg %p97
        %p407 = pneg %p94
        %s408 = sand.u32 %s28, 1
        %s409 = scalar_lea.sflag [#allocation9], %s408
        %s410 = sand.u32 %s118, 1
        %s411 = smul.addr %s410, 64
        %s412 = scalar_lea.vmem [#allocation10], %s411
        %p413 = pneg %p131
        %p414 = pneg %p128
        %p415 = pneg %p152
        %p416 = pneg %p149
        %p417 = pneg %p173
        %p418 = pneg %p170
        %p419 = pneg %p194
        %p420 = pneg %p191
        %p421 = pneg %p215
        %p422 = pneg %p212
        %p423 = pneg %p243
        %p424 = pneg %p240
        %s425 = sand.u32 %s230, 1
        %s426 = scalar_lea.sflag [#allocation7], %s425
        %s427 = sand.u32 %s230, 1
        %s428 = smul.addr %s427, 64
        %s429 = scalar_lea.vmem [#allocation13], %s428
        %s430 = ssub.s32 %s33, 1
        %p431 = scmp.gt.s32.totalorder %s430, 0
        %s432 = scalar_select %p431, %s430, 0
        %s433 = sadd.s32 %s33, 1
        %p434 = scmp.lt.s32.totalorder %s433, 0
        %s435 = scalar_select %p434, %s433, 0
        %436 = vst [vmem:[#allocation2] sm:$0xff] 0.0
        %437 = vst [vmem:[#allocation2 + $0x28] sm:$0xff] 0.0
        %438 = vst [vmem:[#allocation2 + $0x50] sm:$0xff] 0.0
        %439 = vst [vmem:[#allocation2 + $0x78] sm:$0xff] 0.0
        %440 = vst [vmem:[#allocation2 + $0xa0] sm:$0xff] 0.0
        %441 = vst [vmem:[#allocation2 + $0xc8] sm:$0xff] 0.0
        %442 = vst [vmem:[#allocation2 + $0xf0] sm:$0xff] 0.0
        %443 = vst [vmem:[#allocation2 + $0x118] sm:$0xff] 0.0
        %444 = vst [vmem:[#allocation2 + $0x20] sm:$0xff] 0.0
        %445 = vst [vmem:[#allocation2 + $0x48] sm:$0xff] 0.0
        %446 = vst [vmem:[#allocation2 + $0x70] sm:$0xff] 0.0
        %447 = vst [vmem:[#allocation2 + $0x98] sm:$0xff] 0.0
        %448 = vst [vmem:[#allocation2 + $0xc0] sm:$0xff] 0.0
        %449 = vst [vmem:[#allocation2 + $0xe8] sm:$0xff] 0.0
        %450 = vst [vmem:[#allocation2 + $0x110] sm:$0xff] 0.0
        %451 = vst [vmem:[#allocation2 + $0x138] sm:$0xff] 0.0
        %v452 = vld [vmem:[%s376] sm:$0xff]
        %v453 = vld [vmem:[%s376 + $0x8] sm:$0xff]
        %v454 = vld [vmem:[%s376 + $0x10] sm:$0xff]
        %v455 = vld [vmem:[%s376 + $0x18] sm:$0xff]
        %v456 = vld [vmem:[%s376 + $0x20] sm:$0xff]
        %v457 = vld [vmem:[%s376 + $0x28] sm:$0xff]
        %v458 = vld [vmem:[%s376 + $0x30] sm:$0xff]
        %v459 = vld [vmem:[%s376 + $0x38] sm:$0xff]
        %460 = vst [vmem:[#allocation2 + $0x10] sm:$0xff] %v452
        %461 = vst [vmem:[#allocation2 + $0x38] sm:$0xff] %v453
        %462 = vst [vmem:[#allocation2 + $0x60] sm:$0xff] %v454
        %463 = vst [vmem:[#allocation2 + $0x88] sm:$0xff] %v455
        %464 = vst [vmem:[#allocation2 + $0xb0] sm:$0xff] %v456
        %465 = vst [vmem:[#allocation2 + $0xd8] sm:$0xff] %v457
        %466 = vst [vmem:[#allocation2 + $0x100] sm:$0xff] %v458
        %467 = vst [vmem:[#allocation2 + $0x128] sm:$0xff] %v459
        %p468 = scmp.gt.s32.totalorder %s33, 0
        // Predicated region
        $region65: #{tpu_custom_call.1} parent=47 // pred_check
          %p469 = pneg %p468
        $region66: #{tpu_custom_call.1} parent=47 // pred_check_branch
          %471 = sbr.rel (%p469) target = $region68
        $region67: #{tpu_custom_call.1} parent=47 // pred_region
          %v472 = vld [vmem:[%s367] sm:$0xff]
          %v473 = vld [vmem:[%s367 + $0x8] sm:$0xff]
          %v474 = vld [vmem:[%s367 + $0x10] sm:$0xff]
          %v475 = vld [vmem:[%s367 + $0x18] sm:$0xff]
          %v476 = vld [vmem:[%s367 + $0x20] sm:$0xff]
          %v477 = vld [vmem:[%s367 + $0x28] sm:$0xff]
          %v478 = vld [vmem:[%s367 + $0x30] sm:$0xff]
          %v479 = vld [vmem:[%s367 + $0x38] sm:$0xff]
          %480 = vst [vmem:[#allocation2 + $0x8] sm:$0xff] %v472
          %481 = vst [vmem:[#allocation2 + $0x30] sm:$0xff] %v473
          %482 = vst [vmem:[#allocation2 + $0x58] sm:$0xff] %v474
          %483 = vst [vmem:[#allocation2 + $0x80] sm:$0xff] %v475
          %484 = vst [vmem:[#allocation2 + $0xa8] sm:$0xff] %v476
          %485 = vst [vmem:[#allocation2 + $0xd0] sm:$0xff] %v477
          %486 = vst [vmem:[#allocation2 + $0xf8] sm:$0xff] %v478
          %487 = vst [vmem:[#allocation2 + $0x120] sm:$0xff] %v479
        $region68: #{tpu_custom_call.1} parent=47 // pred_fallthru
          _
        %p488 = scmp.eq.s32.totalorder %s33, 0
        // Predicated region
        $region69: #{tpu_custom_call.1} parent=47 // pred_check
          %p489 = pneg %p488
        $region70: #{tpu_custom_call.1} parent=47 // pred_check_branch
          %491 = sbr.rel (%p489) target = $region72
        $region71: #{tpu_custom_call.1} parent=47 // pred_region
          %492 = vst [vmem:[#allocation2 + $0x8] sm:$0xff] 0.0
          %493 = vst [vmem:[#allocation2 + $0x30] sm:$0xff] 0.0
          %494 = vst [vmem:[#allocation2 + $0x58] sm:$0xff] 0.0
          %495 = vst [vmem:[#allocation2 + $0x80] sm:$0xff] 0.0
          %496 = vst [vmem:[#allocation2 + $0xa8] sm:$0xff] 0.0
          %497 = vst [vmem:[#allocation2 + $0xd0] sm:$0xff] 0.0
          %498 = vst [vmem:[#allocation2 + $0xf8] sm:$0xff] 0.0
          %499 = vst [vmem:[#allocation2 + $0x120] sm:$0xff] 0.0
        $region72: #{tpu_custom_call.1} parent=47 // pred_fallthru
          _
        %p500 = scmp.lt.s32.totalorder %s33, 0
        // Predicated region
        $region73: #{tpu_custom_call.1} parent=47 // pred_check
          %p501 = pneg %p500
        $region74: #{tpu_custom_call.1} parent=47 // pred_check_branch
          %503 = sbr.rel (%p501) target = $region76
        $region75: #{tpu_custom_call.1} parent=47 // pred_region
          %v504 = vld [vmem:[%s385] sm:$0xff]
          %v505 = vld [vmem:[%s385 + $0x8] sm:$0xff]
          %v506 = vld [vmem:[%s385 + $0x10] sm:$0xff]
          %v507 = vld [vmem:[%s385 + $0x18] sm:$0xff]
          %v508 = vld [vmem:[%s385 + $0x20] sm:$0xff]
          %v509 = vld [vmem:[%s385 + $0x28] sm:$0xff]
          %v510 = vld [vmem:[%s385 + $0x30] sm:$0xff]
          %v511 = vld [vmem:[%s385 + $0x38] sm:$0xff]
          %512 = vst [vmem:[#allocation2 + $0x18] sm:$0xff] %v504
          %513 = vst [vmem:[#allocation2 + $0x40] sm:$0xff] %v505
          %514 = vst [vmem:[#allocation2 + $0x68] sm:$0xff] %v506
          %515 = vst [vmem:[#allocation2 + $0x90] sm:$0xff] %v507
          %516 = vst [vmem:[#allocation2 + $0xb8] sm:$0xff] %v508
          %517 = vst [vmem:[#allocation2 + $0xe0] sm:$0xff] %v509
          %518 = vst [vmem:[#allocation2 + $0x108] sm:$0xff] %v510
          %519 = vst [vmem:[#allocation2 + $0x130] sm:$0xff] %v511
        $region76: #{tpu_custom_call.1} parent=47 // pred_fallthru
          _
        // Predicated region
        $region77: #{tpu_custom_call.1} parent=47 // pred_check
          %p520 = pneg %p488
        $region78: #{tpu_custom_call.1} parent=47 // pred_check_branch
          %522 = sbr.rel (%p520) target = $region80
        $region79: #{tpu_custom_call.1} parent=47 // pred_region
          %523 = vst [vmem:[#allocation2 + $0x18] sm:$0xff] 0.0
          %524 = vst [vmem:[#allocation2 + $0x40] sm:$0xff] 0.0
          %525 = vst [vmem:[#allocation2 + $0x68] sm:$0xff] 0.0
          %526 = vst [vmem:[#allocation2 + $0x90] sm:$0xff] 0.0
          %527 = vst [vmem:[#allocation2 + $0xb8] sm:$0xff] 0.0
          %528 = vst [vmem:[#allocation2 + $0xe0] sm:$0xff] 0.0
          %529 = vst [vmem:[#allocation2 + $0x108] sm:$0xff] 0.0
          %530 = vst [vmem:[#allocation2 + $0x130] sm:$0xff] 0.0
        $region80: #{tpu_custom_call.1} parent=47 // pred_fallthru
          _
        %531 = vst [vmem:[#allocation3] sm:$0xff] 0.0
        %532 = vst [vmem:[#allocation3 + $0x28] sm:$0xff] 0.0
        %533 = vst [vmem:[#allocation3 + $0x50] sm:$0xff] 0.0
        %534 = vst [vmem:[#allocation3 + $0x78] sm:$0xff] 0.0
        %535 = vst [vmem:[#allocation3 + $0xa0] sm:$0xff] 0.0
        %536 = vst [vmem:[#allocation3 + $0xc8] sm:$0xff] 0.0
        %537 = vst [vmem:[#allocation3 + $0xf0] sm:$0xff] 0.0
        %538 = vst [vmem:[#allocation3 + $0x118] sm:$0xff] 0.0
        %539 = vst [vmem:[#allocation3 + $0x20] sm:$0xff] 0.0
        %540 = vst [vmem:[#allocation3 + $0x48] sm:$0xff] 0.0
        %541 = vst [vmem:[#allocation3 + $0x70] sm:$0xff] 0.0
        %542 = vst [vmem:[#allocation3 + $0x98] sm:$0xff] 0.0
        %543 = vst [vmem:[#allocation3 + $0xc0] sm:$0xff] 0.0
        %544 = vst [vmem:[#allocation3 + $0xe8] sm:$0xff] 0.0
        %545 = vst [vmem:[#allocation3 + $0x110] sm:$0xff] 0.0
        %546 = vst [vmem:[#allocation3 + $0x138] sm:$0xff] 0.0
        %v547 = vlaneseq
        %v548 = vand.u32 %v547, 127
        %v549 = vadd.s32 %v548, 128
        %v550 = vadd.s32 %v548, 256
        %s551 = smul.u32 %s33, 128
        %s552 = ssub.s32 %s551, 128
        %v553 = vstv %s552
        %v554 = vadd.s32 %v548, %v553
        %v555 = vadd.s32 %v549, %v553
        %v556 = vadd.s32 %v550, %v553
        %vm557 = vcmp.ge.s32.totalorder %v554, 0
        %vm558 = vcmp.ge.s32.totalorder %v555, 0
        %vm559 = vcmp.ge.s32.totalorder %v556, 0
        %vm560 = vcmp.lt.s32.totalorder %v554, 128
        %vm561 = vcmp.lt.s32.totalorder %v555, 128
        %vm562 = vcmp.lt.s32.totalorder %v556, 128
        %vm563 = vmand %vm557, %vm560
        %vm564 = vmand %vm558, %vm561
        %vm565 = vmand %vm559, %vm562
        %v566 = vld [vmem:[#allocation2] sm:$0xff]
        %v567 = vld [vmem:[#allocation2 + $0x8] sm:$0xff]
        %v568 = vld [vmem:[#allocation2 + $0x10] sm:$0xff]
        %v569 = vld [vmem:[#allocation2 + $0x18] sm:$0xff]
        %v570 = vld [vmem:[#allocation2 + $0x28] sm:$0xff]
        %v571 = vld [vmem:[#allocation2 + $0x30] sm:$0xff]
        %v572 = vld [vmem:[#allocation2 + $0x38] sm:$0xff]
        %v573 = vld [vmem:[#allocation2 + $0x40] sm:$0xff]
        %v574 = vld [vmem:[#allocation2 + $0x50] sm:$0xff]
        %v575 = vld [vmem:[#allocation2 + $0x58] sm:$0xff]
        %v576 = vld [vmem:[#allocation2 + $0x60] sm:$0xff]
        %v577 = vld [vmem:[#allocation2 + $0x68] sm:$0xff]
        %v578 = vld [vmem:[#allocation2 + $0x78] sm:$0xff]
        %v579 = vld [vmem:[#allocation2 + $0x80] sm:$0xff]
        %v580 = vld [vmem:[#allocation2 + $0x88] sm:$0xff]
        %v581 = vld [vmem:[#allocation2 + $0x90] sm:$0xff]
        %v582 = vld [vmem:[#allocation2 + $0xa0] sm:$0xff]
        %v583 = vld [vmem:[#allocation2 + $0xa8] sm:$0xff]
        %v584 = vld [vmem:[#allocation2 + $0xb0] sm:$0xff]
        %v585 = vld [vmem:[#allocation2 + $0xb8] sm:$0xff]
        %v586 = vld [vmem:[#allocation2 + $0xc8] sm:$0xff]
        %v587 = vld [vmem:[#allocation2 + $0xd0] sm:$0xff]
        %v588 = vld [vmem:[#allocation2 + $0xd8] sm:$0xff]
        %v589 = vld [vmem:[#allocation2 + $0xe0] sm:$0xff]
        %v590 = vld [vmem:[#allocation2 + $0xf0] sm:$0xff]
        %v591 = vld [vmem:[#allocation2 + $0xf8] sm:$0xff]
        %v592 = vld [vmem:[#allocation2 + $0x100] sm:$0xff]
        %v593 = vld [vmem:[#allocation2 + $0x108] sm:$0xff]
        %v594 = vld [vmem:[#allocation2 + $0x118] sm:$0xff]
        %v595 = vld [vmem:[#allocation2 + $0x120] sm:$0xff]
        %v596 = vld [vmem:[#allocation2 + $0x128] sm:$0xff]
        %v597 = vld [vmem:[#allocation2 + $0x130] sm:$0xff]
        %vm598 = vcmp.gt.f32.partialorder %v566, 0.0
        %vm599 = vcmp.gt.f32.partialorder %v567, 0.0
        %vm600 = vcmp.gt.f32.partialorder %v568, 0.0
        %vm601 = vcmp.gt.f32.partialorder %v569, 0.0
        %vm602 = vcmp.gt.f32.partialorder %v570, 0.0
        %vm603 = vcmp.gt.f32.partialorder %v571, 0.0
        %vm604 = vcmp.gt.f32.partialorder %v572, 0.0
        %vm605 = vcmp.gt.f32.partialorder %v573, 0.0
        %vm606 = vcmp.gt.f32.partialorder %v574, 0.0
        %vm607 = vcmp.gt.f32.partialorder %v575, 0.0
        %vm608 = vcmp.gt.f32.partialorder %v576, 0.0
        %vm609 = vcmp.gt.f32.partialorder %v577, 0.0
        %vm610 = vcmp.gt.f32.partialorder %v578, 0.0
        %vm611 = vcmp.gt.f32.partialorder %v579, 0.0
        %vm612 = vcmp.gt.f32.partialorder %v580, 0.0
        %vm613 = vcmp.gt.f32.partialorder %v581, 0.0
        %vm614 = vcmp.gt.f32.partialorder %v582, 0.0
        %vm615 = vcmp.gt.f32.partialorder %v583, 0.0
        %vm616 = vcmp.gt.f32.partialorder %v584, 0.0
        %vm617 = vcmp.gt.f32.partialorder %v585, 0.0
        %vm618 = vcmp.gt.f32.partialorder %v586, 0.0
        %vm619 = vcmp.gt.f32.partialorder %v587, 0.0
        %vm620 = vcmp.gt.f32.partialorder %v588, 0.0
        %vm621 = vcmp.gt.f32.partialorder %v589, 0.0
        %vm622 = vcmp.gt.f32.partialorder %v590, 0.0
        %vm623 = vcmp.gt.f32.partialorder %v591, 0.0
        %vm624 = vcmp.gt.f32.partialorder %v592, 0.0
        %vm625 = vcmp.gt.f32.partialorder %v593, 0.0
        %vm626 = vcmp.gt.f32.partialorder %v594, 0.0
        %vm627 = vcmp.gt.f32.partialorder %v595, 0.0
        %vm628 = vcmp.gt.f32.partialorder %v596, 0.0
        %vm629 = vcmp.gt.f32.partialorder %v597, 0.0
        %v630 = vmul.f32 %v566, 0.01
        %v631 = vmul.f32 %v567, 0.01
        %v632 = vmul.f32 %v568, 0.01
        %v633 = vmul.f32 %v569, 0.01
        %v634 = vmul.f32 %v570, 0.01
        %v635 = vmul.f32 %v571, 0.01
        %v636 = vmul.f32 %v572, 0.01
        %v637 = vmul.f32 %v573, 0.01
        %v638 = vmul.f32 %v574, 0.01
        %v639 = vmul.f32 %v575, 0.01
        %v640 = vmul.f32 %v576, 0.01
        %v641 = vmul.f32 %v577, 0.01
        %v642 = vmul.f32 %v578, 0.01
        %v643 = vmul.f32 %v579, 0.01
        %v644 = vmul.f32 %v580, 0.01
        %v645 = vmul.f32 %v581, 0.01
        %v646 = vmul.f32 %v582, 0.01
        %v647 = vmul.f32 %v583, 0.01
        %v648 = vmul.f32 %v584, 0.01
        %v649 = vmul.f32 %v585, 0.01
        %v650 = vmul.f32 %v586, 0.01
        %v651 = vmul.f32 %v587, 0.01
        %v652 = vmul.f32 %v588, 0.01
        %v653 = vmul.f32 %v589, 0.01
        %v654 = vmul.f32 %v590, 0.01
        %v655 = vmul.f32 %v591, 0.01
        %v656 = vmul.f32 %v592, 0.01
        %v657 = vmul.f32 %v593, 0.01
        %v658 = vmul.f32 %v594, 0.01
        %v659 = vmul.f32 %v595, 0.01
        %v660 = vmul.f32 %v596, 0.01
        %v661 = vmul.f32 %v597, 0.01
        %v662 = vsel %vm598, %v566, %v630
        %v663 = vsel %vm599, %v567, %v631
        %v664 = vsel %vm600, %v568, %v632
        %v665 = vsel %vm601, %v569, %v633
        %v666 = vsel %vm602, %v570, %v634
        %v667 = vsel %vm603, %v571, %v635
        %v668 = vsel %vm604, %v572, %v636
        %v669 = vsel %vm605, %v573, %v637
        %v670 = vsel %vm606, %v574, %v638
        %v671 = vsel %vm607, %v575, %v639
        %v672 = vsel %vm608, %v576, %v640
        %v673 = vsel %vm609, %v577, %v641
        %v674 = vsel %vm610, %v578, %v642
        %v675 = vsel %vm611, %v579, %v643
        %v676 = vsel %vm612, %v580, %v644
        %v677 = vsel %vm613, %v581, %v645
        %v678 = vsel %vm614, %v582, %v646
        %v679 = vsel %vm615, %v583, %v647
        %v680 = vsel %vm616, %v584, %v648
        %v681 = vsel %vm617, %v585, %v649
        %v682 = vsel %vm618, %v586, %v650
        %v683 = vsel %vm619, %v587, %v651
        %v684 = vsel %vm620, %v588, %v652
        %v685 = vsel %vm621, %v589, %v653
        %v686 = vsel %vm622, %v590, %v654
        %v687 = vsel %vm623, %v591, %v655
        %v688 = vsel %vm624, %v592, %v656
        %v689 = vsel %vm625, %v593, %v657
        %v690 = vsel %vm626, %v594, %v658
        %v691 = vsel %vm627, %v595, %v659
        %v692 = vsel %vm628, %v596, %v660
        %v693 = vsel %vm629, %v597, %v661
        %726 = vrot.lane.b32.xlu0 %v662, 1
        %v727 = vpop.permute.xlu0 %726
        %728 = vrot.lane.b32.xlu0 %v663, 1
        %v729 = vpop.permute.xlu0 %728
        %730 = vrot.lane.b32.xlu0 %v664, 1
        %v731 = vpop.permute.xlu0 %730
        %732 = vrot.lane.b32.xlu0 %v665, 1
        %v733 = vpop.permute.xlu0 %732
        %734 = vrot.lane.b32.xlu0 %v666, 1
        %v735 = vpop.permute.xlu0 %734
        %736 = vrot.lane.b32.xlu0 %v667, 1
        %v737 = vpop.permute.xlu0 %736
        %738 = vrot.lane.b32.xlu0 %v668, 1
        %v739 = vpop.permute.xlu0 %738
        %740 = vrot.lane.b32.xlu0 %v669, 1
        %v741 = vpop.permute.xlu0 %740
        %742 = vrot.lane.b32.xlu0 %v670, 1
        %v743 = vpop.permute.xlu0 %742
        %744 = vrot.lane.b32.xlu0 %v671, 1
        %v745 = vpop.permute.xlu0 %744
        %746 = vrot.lane.b32.xlu0 %v672, 1
        %v747 = vpop.permute.xlu0 %746
        %748 = vrot.lane.b32.xlu0 %v673, 1
        %v749 = vpop.permute.xlu0 %748
        %750 = vrot.lane.b32.xlu0 %v674, 1
        %v751 = vpop.permute.xlu0 %750
        %752 = vrot.lane.b32.xlu0 %v675, 1
        %v753 = vpop.permute.xlu0 %752
        %754 = vrot.lane.b32.xlu0 %v676, 1
        %v755 = vpop.permute.xlu0 %754
        %756 = vrot.lane.b32.xlu0 %v677, 1
        %v757 = vpop.permute.xlu0 %756
        %758 = vrot.lane.b32.xlu0 %v678, 1
        %v759 = vpop.permute.xlu0 %758
        %760 = vrot.lane.b32.xlu0 %v679, 1
        %v761 = vpop.permute.xlu0 %760
        %762 = vrot.lane.b32.xlu0 %v680, 1
        %v763 = vpop.permute.xlu0 %762
        %764 = vrot.lane.b32.xlu0 %v681, 1
        %v765 = vpop.permute.xlu0 %764
        %766 = vrot.lane.b32.xlu0 %v682, 1
        %v767 = vpop.permute.xlu0 %766
        %768 = vrot.lane.b32.xlu0 %v683, 1
        %v769 = vpop.permute.xlu0 %768
        %770 = vrot.lane.b32.xlu0 %v684, 1
        %v771 = vpop.permute.xlu0 %770
        %772 = vrot.lane.b32.xlu0 %v685, 1
        %v773 = vpop.permute.xlu0 %772
        %774 = vrot.lane.b32.xlu0 %v686, 1
        %v775 = vpop.permute.xlu0 %774
        %776 = vrot.lane.b32.xlu0 %v687, 1
        %v777 = vpop.permute.xlu0 %776
        %778 = vrot.lane.b32.xlu0 %v688, 1
        %v779 = vpop.permute.xlu0 %778
        %780 = vrot.lane.b32.xlu0 %v689, 1
        %v781 = vpop.permute.xlu0 %780
        %782 = vrot.lane.b32.xlu0 %v690, 1
        %v783 = vpop.permute.xlu0 %782
        %784 = vrot.lane.b32.xlu0 %v691, 1
        %v785 = vpop.permute.xlu0 %784
        %786 = vrot.lane.b32.xlu0 %v692, 1
        %v787 = vpop.permute.xlu0 %786
        %788 = vrot.lane.b32.xlu0 %v693, 1
        %v789 = vpop.permute.xlu0 %788
        %vm790 = vcmask 7168
        %v791 = vsel %vm790, %v727, %v729
        %v792 = vsel %vm790, %v729, %v731
        %v793 = vsel %vm790, %v731, %v733
        %v794 = vsel %vm790, %v735, %v737
        %v795 = vsel %vm790, %v737, %v739
        %v796 = vsel %vm790, %v739, %v741
        %v797 = vsel %vm790, %v743, %v745
        %v798 = vsel %vm790, %v745, %v747
        %v799 = vsel %vm790, %v747, %v749
        %v800 = vsel %vm790, %v751, %v753
        %v801 = vsel %vm790, %v753, %v755
        %v802 = vsel %vm790, %v755, %v757
        %v803 = vsel %vm790, %v759, %v761
        %v804 = vsel %vm790, %v761, %v763
        %v805 = vsel %vm790, %v763, %v765
        %v806 = vsel %vm790, %v767, %v769
        %v807 = vsel %vm790, %v769, %v771
        %v808 = vsel %vm790, %v771, %v773
        %v809 = vsel %vm790, %v775, %v777
        %v810 = vsel %vm790, %v777, %v779
        %v811 = vsel %vm790, %v779, %v781
        %v812 = vsel %vm790, %v783, %v785
        %v813 = vsel %vm790, %v785, %v787
        %v814 = vsel %vm790, %v787, %v789
        %839 = vst [vmem:[#allocation4] sm:$0xff] %v791
        %840 = vst [vmem:[#allocation4 + $0x8] sm:$0xff] %v792
        %841 = vst [vmem:[#allocation4 + $0x10] sm:$0xff] %v793
        %842 = vst [vmem:[#allocation4 + $0x18] sm:$0xff] %v794
        %843 = vst [vmem:[#allocation4 + $0x20] sm:$0xff] %v795
        %844 = vst [vmem:[#allocation4 + $0x28] sm:$0xff] %v796
        %845 = vst [vmem:[#allocation4 + $0x30] sm:$0xff] %v797
        %846 = vst [vmem:[#allocation4 + $0x38] sm:$0xff] %v798
        %847 = vst [vmem:[#allocation4 + $0x40] sm:$0xff] %v799
        %848 = vst [vmem:[#allocation4 + $0x48] sm:$0xff] %v800
        %849 = vst [vmem:[#allocation4 + $0x50] sm:$0xff] %v801
        %850 = vst [vmem:[#allocation4 + $0x58] sm:$0xff] %v802
        %851 = vst [vmem:[#allocation4 + $0x60] sm:$0xff] %v803
        %852 = vst [vmem:[#allocation4 + $0x68] sm:$0xff] %v804
        %853 = vst [vmem:[#allocation4 + $0x70] sm:$0xff] %v805
        %854 = vst [vmem:[#allocation4 + $0x78] sm:$0xff] %v806
        %855 = vst [vmem:[#allocation4 + $0x80] sm:$0xff] %v807
        %856 = vst [vmem:[#allocation4 + $0x88] sm:$0xff] %v808
        %857 = vst [vmem:[#allocation4 + $0x90] sm:$0xff] %v809
        %858 = vst [vmem:[#allocation4 + $0x98] sm:$0xff] %v810
        %859 = vst [vmem:[#allocation4 + $0xa0] sm:$0xff] %v811
        %860 = vst [vmem:[#allocation4 + $0xa8] sm:$0xff] %v812
        %861 = vst [vmem:[#allocation4 + $0xb0] sm:$0xff] %v813
        %862 = vst [vmem:[#allocation4 + $0xb8] sm:$0xff] %v814
        %v863 = vld [vmem:[#allocation2 + $0x8] sm:$0xff]
        %v864 = vld [vmem:[#allocation2 + $0x10] sm:$0xff]
        %v865 = vld [vmem:[#allocation2 + $0x18] sm:$0xff]
        %v866 = vld [vmem:[#allocation2 + $0x30] sm:$0xff]
        %v867 = vld [vmem:[#allocation2 + $0x38] sm:$0xff]
        %v868 = vld [vmem:[#allocation2 + $0x40] sm:$0xff]
        %v869 = vld [vmem:[#allocation2 + $0x58] sm:$0xff]
        %v870 = vld [vmem:[#allocation2 + $0x60] sm:$0xff]
        %v871 = vld [vmem:[#allocation2 + $0x68] sm:$0xff]
        %v872 = vld [vmem:[#allocation2 + $0x80] sm:$0xff]
        %v873 = vld [vmem:[#allocation2 + $0x88] sm:$0xff]
        %v874 = vld [vmem:[#allocation2 + $0x90] sm:$0xff]
        %v875 = vld [vmem:[#allocation2 + $0xa8] sm:$0xff]
        %v876 = vld [vmem:[#allocation2 + $0xb0] sm:$0xff]
        %v877 = vld [vmem:[#allocation2 + $0xb8] sm:$0xff]
        %v878 = vld [vmem:[#allocation2 + $0xd0] sm:$0xff]
        %v879 = vld [vmem:[#allocation2 + $0xd8] sm:$0xff]
        %v880 = vld [vmem:[#allocation2 + $0xe0] sm:$0xff]
        %v881 = vld [vmem:[#allocation2 + $0xf8] sm:$0xff]
        %v882 = vld [vmem:[#allocation2 + $0x100] sm:$0xff]
        %v883 = vld [vmem:[#allocation2 + $0x108] sm:$0xff]
        %v884 = vld [vmem:[#allocation2 + $0x120] sm:$0xff]
        %v885 = vld [vmem:[#allocation2 + $0x128] sm:$0xff]
        %v886 = vld [vmem:[#allocation2 + $0x130] sm:$0xff]
        %vm887 = vcmp.gt.f32.partialorder %v863, 0.0
        %vm888 = vcmp.gt.f32.partialorder %v864, 0.0
        %vm889 = vcmp.gt.f32.partialorder %v865, 0.0
        %vm890 = vcmp.gt.f32.partialorder %v866, 0.0
        %vm891 = vcmp.gt.f32.partialorder %v867, 0.0
        %vm892 = vcmp.gt.f32.partialorder %v868, 0.0
        %vm893 = vcmp.gt.f32.partialorder %v869, 0.0
        %vm894 = vcmp.gt.f32.partialorder %v870, 0.0
        %vm895 = vcmp.gt.f32.partialorder %v871, 0.0
        %vm896 = vcmp.gt.f32.partialorder %v872, 0.0
        %vm897 = vcmp.gt.f32.partialorder %v873, 0.0
        %vm898 = vcmp.gt.f32.partialorder %v874, 0.0
        %vm899 = vcmp.gt.f32.partialorder %v875, 0.0
        %vm900 = vcmp.gt.f32.partialorder %v876, 0.0
        %vm901 = vcmp.gt.f32.partialorder %v877, 0.0
        %vm902 = vcmp.gt.f32.partialorder %v878, 0.0
        %vm903 = vcmp.gt.f32.partialorder %v879, 0.0
        %vm904 = vcmp.gt.f32.partialorder %v880, 0.0
        %vm905 = vcmp.gt.f32.partialorder %v881, 0.0
        %vm906 = vcmp.gt.f32.partialorder %v882, 0.0
        %vm907 = vcmp.gt.f32.partialorder %v883, 0.0
        %vm908 = vcmp.gt.f32.partialorder %v884, 0.0
        %vm909 = vcmp.gt.f32.partialorder %v885, 0.0
        %vm910 = vcmp.gt.f32.partialorder %v886, 0.0
        %v911 = vmul.f32 %v863, 0.01
        %v912 = vmul.f32 %v864, 0.01
        %v913 = vmul.f32 %v865, 0.01
        %v914 = vmul.f32 %v866, 0.01
        %v915 = vmul.f32 %v867, 0.01
        %v916 = vmul.f32 %v868, 0.01
        %v917 = vmul.f32 %v869, 0.01
        %v918 = vmul.f32 %v870, 0.01
        %v919 = vmul.f32 %v871, 0.01
        %v920 = vmul.f32 %v872, 0.01
        %v921 = vmul.f32 %v873, 0.01
        %v922 = vmul.f32 %v874, 0.01
        %v923 = vmul.f32 %v875, 0.01
        %v924 = vmul.f32 %v876, 0.01
        %v925 = vmul.f32 %v877, 0.01
        %v926 = vmul.f32 %v878, 0.01
        %v927 = vmul.f32 %v879, 0.01
        %v928 = vmul.f32 %v880, 0.01
        %v929 = vmul.f32 %v881, 0.01
        %v930 = vmul.f32 %v882, 0.01
        %v931 = vmul.f32 %v883, 0.01
        %v932 = vmul.f32 %v884, 0.01
        %v933 = vmul.f32 %v885, 0.01
        %v934 = vmul.f32 %v886, 0.01
        %v935 = vsel %vm887, %v863, %v911
        %v936 = vsel %vm888, %v864, %v912
        %v937 = vsel %vm889, %v865, %v913
        %v938 = vsel %vm890, %v866, %v914
        %v939 = vsel %vm891, %v867, %v915
        %v940 = vsel %vm892, %v868, %v916
        %v941 = vsel %vm893, %v869, %v917
        %v942 = vsel %vm894, %v870, %v918
        %v943 = vsel %vm895, %v871, %v919
        %v944 = vsel %vm896, %v872, %v920
        %v945 = vsel %vm897, %v873, %v921
        %v946 = vsel %vm898, %v874, %v922
        %v947 = vsel %vm899, %v875, %v923
        %v948 = vsel %vm900, %v876, %v924
        %v949 = vsel %vm901, %v877, %v925
        %v950 = vsel %vm902, %v878, %v926
        %v951 = vsel %vm903, %v879, %v927
        %v952 = vsel %vm904, %v880, %v928
        %v953 = vsel %vm905, %v881, %v929
        %v954 = vsel %vm906, %v882, %v930
        %v955 = vsel %vm907, %v883, %v931
        %v956 = vsel %vm908, %v884, %v932
        %v957 = vsel %vm909, %v885, %v933
        %v958 = vsel %vm910, %v886, %v934
        %959 = vst [vmem:[#allocation4 + $0xc0] sm:$0xff] %v935
        %960 = vst [vmem:[#allocation4 + $0xc8] sm:$0xff] %v936
        %961 = vst [vmem:[#allocation4 + $0xd0] sm:$0xff] %v937
        %962 = vst [vmem:[#allocation4 + $0xd8] sm:$0xff] %v938
        %963 = vst [vmem:[#allocation4 + $0xe0] sm:$0xff] %v939
        %964 = vst [vmem:[#allocation4 + $0xe8] sm:$0xff] %v940
        %965 = vst [vmem:[#allocation4 + $0xf0] sm:$0xff] %v941
        %966 = vst [vmem:[#allocation4 + $0xf8] sm:$0xff] %v942
        %967 = vst [vmem:[#allocation4 + $0x100] sm:$0xff] %v943
        %968 = vst [vmem:[#allocation4 + $0x108] sm:$0xff] %v944
        %969 = vst [vmem:[#allocation4 + $0x110] sm:$0xff] %v945
        %970 = vst [vmem:[#allocation4 + $0x118] sm:$0xff] %v946
        %971 = vst [vmem:[#allocation4 + $0x120] sm:$0xff] %v947
        %972 = vst [vmem:[#allocation4 + $0x128] sm:$0xff] %v948
        %973 = vst [vmem:[#allocation4 + $0x130] sm:$0xff] %v949
        %974 = vst [vmem:[#allocation4 + $0x138] sm:$0xff] %v950
        %975 = vst [vmem:[#allocation4 + $0x140] sm:$0xff] %v951
        %976 = vst [vmem:[#allocation4 + $0x148] sm:$0xff] %v952
        %977 = vst [vmem:[#allocation4 + $0x150] sm:$0xff] %v953
        %978 = vst [vmem:[#allocation4 + $0x158] sm:$0xff] %v954
        %979 = vst [vmem:[#allocation4 + $0x160] sm:$0xff] %v955
        %980 = vst [vmem:[#allocation4 + $0x168] sm:$0xff] %v956
        %981 = vst [vmem:[#allocation4 + $0x170] sm:$0xff] %v957
        %982 = vst [vmem:[#allocation4 + $0x178] sm:$0xff] %v958
        %v983 = vld [vmem:[#allocation2 + $0x8] sm:$0xff]
        %v984 = vld [vmem:[#allocation2 + $0x10] sm:$0xff]
        %v985 = vld [vmem:[#allocation2 + $0x18] sm:$0xff]
        %v986 = vld [vmem:[#allocation2 + $0x20] sm:$0xff]
        %v987 = vld [vmem:[#allocation2 + $0x30] sm:$0xff]
        %v988 = vld [vmem:[#allocation2 + $0x38] sm:$0xff]
        %v989 = vld [vmem:[#allocation2 + $0x40] sm:$0xff]
        %v990 = vld [vmem:[#allocation2 + $0x48] sm:$0xff]
        %v991 = vld [vmem:[#allocation2 + $0x58] sm:$0xff]
        %v992 = vld [vmem:[#allocation2 + $0x60] sm:$0xff]
        %v993 = vld [vmem:[#allocation2 + $0x68] sm:$0xff]
        %v994 = vld [vmem:[#allocation2 + $0x70] sm:$0xff]
        %v995 = vld [vmem:[#allocation2 + $0x80] sm:$0xff]
        %v996 = vld [vmem:[#allocation2 + $0x88] sm:$0xff]
        %v997 = vld [vmem:[#allocation2 + $0x90] sm:$0xff]
        %v998 = vld [vmem:[#allocation2 + $0x98] sm:$0xff]
        %v999 = vld [vmem:[#allocation2 + $0xa8] sm:$0xff]
        %v1000 = vld [vmem:[#allocation2 + $0xb0] sm:$0xff]
        %v1001 = vld [vmem:[#allocation2 + $0xb8] sm:$0xff]
        %v1002 = vld [vmem:[#allocation2 + $0xc0] sm:$0xff]
        %v1003 = vld [vmem:[#allocation2 + $0xd0] sm:$0xff]
        %v1004 = vld [vmem:[#allocation2 + $0xd8] sm:$0xff]
        %v1005 = vld [vmem:[#allocation2 + $0xe0] sm:$0xff]
        %v1006 = vld [vmem:[#allocation2 + $0xe8] sm:$0xff]
        %v1007 = vld [vmem:[#allocation2 + $0xf8] sm:$0xff]
        %v1008 = vld [vmem:[#allocation2 + $0x100] sm:$0xff]
        %v1009 = vld [vmem:[#allocation2 + $0x108] sm:$0xff]
        %v1010 = vld [vmem:[#allocation2 + $0x110] sm:$0xff]
        %v1011 = vld [vmem:[#allocation2 + $0x120] sm:$0xff]
        %v1012 = vld [vmem:[#allocation2 + $0x128] sm:$0xff]
        %v1013 = vld [vmem:[#allocation2 + $0x130] sm:$0xff]
        %v1014 = vld [vmem:[#allocation2 + $0x138] sm:$0xff]
        %vm1015 = vcmp.gt.f32.partialorder %v983, 0.0
        %vm1016 = vcmp.gt.f32.partialorder %v984, 0.0
        %vm1017 = vcmp.gt.f32.partialorder %v985, 0.0
        %vm1018 = vcmp.gt.f32.partialorder %v986, 0.0
        %vm1019 = vcmp.gt.f32.partialorder %v987, 0.0
        %vm1020 = vcmp.gt.f32.partialorder %v988, 0.0
        %vm1021 = vcmp.gt.f32.partialorder %v989, 0.0
        %vm1022 = vcmp.gt.f32.partialorder %v990, 0.0
        %vm1023 = vcmp.gt.f32.partialorder %v991, 0.0
        %vm1024 = vcmp.gt.f32.partialorder %v992, 0.0
        %vm1025 = vcmp.gt.f32.partialorder %v993, 0.0
        %vm1026 = vcmp.gt.f32.partialorder %v994, 0.0
        %vm1027 = vcmp.gt.f32.partialorder %v995, 0.0
        %vm1028 = vcmp.gt.f32.partialorder %v996, 0.0
        %vm1029 = vcmp.gt.f32.partialorder %v997, 0.0
        %vm1030 = vcmp.gt.f32.partialorder %v998, 0.0
        %vm1031 = vcmp.gt.f32.partialorder %v999, 0.0
        %vm1032 = vcmp.gt.f32.partialorder %v1000, 0.0
        %vm1033 = vcmp.gt.f32.partialorder %v1001, 0.0
        %vm1034 = vcmp.gt.f32.partialorder %v1002, 0.0
        %vm1035 = vcmp.gt.f32.partialorder %v1003, 0.0
        %vm1036 = vcmp.gt.f32.partialorder %v1004, 0.0
        %vm1037 = vcmp.gt.f32.partialorder %v1005, 0.0
        %vm1038 = vcmp.gt.f32.partialorder %v1006, 0.0
        %vm1039 = vcmp.gt.f32.partialorder %v1007, 0.0
        %vm1040 = vcmp.gt.f32.partialorder %v1008, 0.0
        %vm1041 = vcmp.gt.f32.partialorder %v1009, 0.0
        %vm1042 = vcmp.gt.f32.partialorder %v1010, 0.0
        %vm1043 = vcmp.gt.f32.partialorder %v1011, 0.0
        %vm1044 = vcmp.gt.f32.partialorder %v1012, 0.0
        %vm1045 = vcmp.gt.f32.partialorder %v1013, 0.0
        %vm1046 = vcmp.gt.f32.partialorder %v1014, 0.0
        %v1047 = vmul.f32 %v983, 0.01
        %v1048 = vmul.f32 %v984, 0.01
        %v1049 = vmul.f32 %v985, 0.01
        %v1050 = vmul.f32 %v986, 0.01
        %v1051 = vmul.f32 %v987, 0.01
        %v1052 = vmul.f32 %v988, 0.01
        %v1053 = vmul.f32 %v989, 0.01
        %v1054 = vmul.f32 %v990, 0.01
        %v1055 = vmul.f32 %v991, 0.01
        %v1056 = vmul.f32 %v992, 0.01
        %v1057 = vmul.f32 %v993, 0.01
        %v1058 = vmul.f32 %v994, 0.01
        %v1059 = vmul.f32 %v995, 0.01
        %v1060 = vmul.f32 %v996, 0.01
        %v1061 = vmul.f32 %v997, 0.01
        %v1062 = vmul.f32 %v998, 0.01
        %v1063 = vmul.f32 %v999, 0.01
        %v1064 = vmul.f32 %v1000, 0.01
        %v1065 = vmul.f32 %v1001, 0.01
        %v1066 = vmul.f32 %v1002, 0.01
        %v1067 = vmul.f32 %v1003, 0.01
        %v1068 = vmul.f32 %v1004, 0.01
        %v1069 = vmul.f32 %v1005, 0.01
        %v1070 = vmul.f32 %v1006, 0.01
        %v1071 = vmul.f32 %v1007, 0.01
        %v1072 = vmul.f32 %v1008, 0.01
        %v1073 = vmul.f32 %v1009, 0.01
        %v1074 = vmul.f32 %v1010, 0.01
        %v1075 = vmul.f32 %v1011, 0.01
        %v1076 = vmul.f32 %v1012, 0.01
        %v1077 = vmul.f32 %v1013, 0.01
        %v1078 = vmul.f32 %v1014, 0.01
        %v1079 = vsel %vm1015, %v983, %v1047
        %v1080 = vsel %vm1016, %v984, %v1048
        %v1081 = vsel %vm1017, %v985, %v1049
        %v1082 = vsel %vm1018, %v986, %v1050
        %v1083 = vsel %vm1019, %v987, %v1051
        %v1084 = vsel %vm1020, %v988, %v1052
        %v1085 = vsel %vm1021, %v989, %v1053
        %v1086 = vsel %vm1022, %v990, %v1054
        %v1087 = vsel %vm1023, %v991, %v1055
        %v1088 = vsel %vm1024, %v992, %v1056
        %v1089 = vsel %vm1025, %v993, %v1057
        %v1090 = vsel %vm1026, %v994, %v1058
        %v1091 = vsel %vm1027, %v995, %v1059
        %v1092 = vsel %vm1028, %v996, %v1060
        %v1093 = vsel %vm1029, %v997, %v1061
        %v1094 = vsel %vm1030, %v998, %v1062
        %v1095 = vsel %vm1031, %v999, %v1063
        %v1096 = vsel %vm1032, %v1000, %v1064
        %v1097 = vsel %vm1033, %v1001, %v1065
        %v1098 = vsel %vm1034, %v1002, %v1066
        %v1099 = vsel %vm1035, %v1003, %v1067
        %v1100 = vsel %vm1036, %v1004, %v1068
        %v1101 = vsel %vm1037, %v1005, %v1069
        %v1102 = vsel %vm1038, %v1006, %v1070
        %v1103 = vsel %vm1039, %v1007, %v1071
        %v1104 = vsel %vm1040, %v1008, %v1072
        %v1105 = vsel %vm1041, %v1009, %v1073
        %v1106 = vsel %vm1042, %v1010, %v1074
        %v1107 = vsel %vm1043, %v1011, %v1075
        %v1108 = vsel %vm1044, %v1012, %v1076
        %v1109 = vsel %vm1045, %v1013, %v1077
        %v1110 = vsel %vm1046, %v1014, %v1078
        %1143 = vrot.lane.b32.xlu0 %v1079, 127
        %v1144 = vpop.permute.xlu0 %1143
        %1145 = vrot.lane.b32.xlu0 %v1080, 127
        %v1146 = vpop.permute.xlu0 %1145
        %1147 = vrot.lane.b32.xlu0 %v1081, 127
        %v1148 = vpop.permute.xlu0 %1147
        %1149 = vrot.lane.b32.xlu0 %v1082, 127
        %v1150 = vpop.permute.xlu0 %1149
        %1151 = vrot.lane.b32.xlu0 %v1083, 127
        %v1152 = vpop.permute.xlu0 %1151
        %1153 = vrot.lane.b32.xlu0 %v1084, 127
        %v1154 = vpop.permute.xlu0 %1153
        %1155 = vrot.lane.b32.xlu0 %v1085, 127
        %v1156 = vpop.permute.xlu0 %1155
        %1157 = vrot.lane.b32.xlu0 %v1086, 127
        %v1158 = vpop.permute.xlu0 %1157
        %1159 = vrot.lane.b32.xlu0 %v1087, 127
        %v1160 = vpop.permute.xlu0 %1159
        %1161 = vrot.lane.b32.xlu0 %v1088, 127
        %v1162 = vpop.permute.xlu0 %1161
        %1163 = vrot.lane.b32.xlu0 %v1089, 127
        %v1164 = vpop.permute.xlu0 %1163
        %1165 = vrot.lane.b32.xlu0 %v1090, 127
        %v1166 = vpop.permute.xlu0 %1165
        %1167 = vrot.lane.b32.xlu0 %v1091, 127
        %v1168 = vpop.permute.xlu0 %1167
        %1169 = vrot.lane.b32.xlu0 %v1092, 127
        %v1170 = vpop.permute.xlu0 %1169
        %1171 = vrot.lane.b32.xlu0 %v1093, 127
        %v1172 = vpop.permute.xlu0 %1171
        %1173 = vrot.lane.b32.xlu0 %v1094, 127
        %v1174 = vpop.permute.xlu0 %1173
        %1175 = vrot.lane.b32.xlu0 %v1095, 127
        %v1176 = vpop.permute.xlu0 %1175
        %1177 = vrot.lane.b32.xlu0 %v1096, 127
        %v1178 = vpop.permute.xlu0 %1177
        %1179 = vrot.lane.b32.xlu0 %v1097, 127
        %v1180 = vpop.permute.xlu0 %1179
        %1181 = vrot.lane.b32.xlu0 %v1098, 127
        %v1182 = vpop.permute.xlu0 %1181
        %1183 = vrot.lane.b32.xlu0 %v1099, 127
        %v1184 = vpop.permute.xlu0 %1183
        %1185 = vrot.lane.b32.xlu0 %v1100, 127
        %v1186 = vpop.permute.xlu0 %1185
        %1187 = vrot.lane.b32.xlu0 %v1101, 127
        %v1188 = vpop.permute.xlu0 %1187
        %1189 = vrot.lane.b32.xlu0 %v1102, 127
        %v1190 = vpop.permute.xlu0 %1189
        %1191 = vrot.lane.b32.xlu0 %v1103, 127
        %v1192 = vpop.permute.xlu0 %1191
        %1193 = vrot.lane.b32.xlu0 %v1104, 127
        %v1194 = vpop.permute.xlu0 %1193
        %1195 = vrot.lane.b32.xlu0 %v1105, 127
        %v1196 = vpop.permute.xlu0 %1195
        %1197 = vrot.lane.b32.xlu0 %v1106, 127
        %v1198 = vpop.permute.xlu0 %1197
        %1199 = vrot.lane.b32.xlu0 %v1107, 127
        %v1200 = vpop.permute.xlu0 %1199
        %1201 = vrot.lane.b32.xlu0 %v1108, 127
        %v1202 = vpop.permute.xlu0 %1201
        %1203 = vrot.lane.b32.xlu0 %v1109, 127
        %v1204 = vpop.permute.xlu0 %1203
        %1205 = vrot.lane.b32.xlu0 %v1110, 127
        %v1206 = vpop.permute.xlu0 %1205
        %vm1207 = vcmask 1039360
        %v1208 = vsel %vm1207, %v1144, %v1146
        %v1209 = vsel %vm1207, %v1146, %v1148
        %v1210 = vsel %vm1207, %v1148, %v1150
        %v1211 = vsel %vm1207, %v1152, %v1154
        %v1212 = vsel %vm1207, %v1154, %v1156
        %v1213 = vsel %vm1207, %v1156, %v1158
        %v1214 = vsel %vm1207, %v1160, %v1162
        %v1215 = vsel %vm1207, %v1162, %v1164
        %v1216 = vsel %vm1207, %v1164, %v1166
        %v1217 = vsel %vm1207, %v1168, %v1170
        %v1218 = vsel %vm1207, %v1170, %v1172
        %v1219 = vsel %vm1207, %v1172, %v1174
        %v1220 = vsel %vm1207, %v1176, %v1178
        %v1221 = vsel %vm1207, %v1178, %v1180
        %v1222 = vsel %vm1207, %v1180, %v1182
        %v1223 = vsel %vm1207, %v1184, %v1186
        %v1224 = vsel %vm1207, %v1186, %v1188
        %v1225 = vsel %vm1207, %v1188, %v1190
        %v1226 = vsel %vm1207, %v1192, %v1194
        %v1227 = vsel %vm1207, %v1194, %v1196
        %v1228 = vsel %vm1207, %v1196, %v1198
        %v1229 = vsel %vm1207, %v1200, %v1202
        %v1230 = vsel %vm1207, %v1202, %v1204
        %v1231 = vsel %vm1207, %v1204, %v1206
        %1256 = vst [vmem:[#allocation4 + $0x180] sm:$0xff] %v1208
        %1257 = vst [vmem:[#allocation4 + $0x188] sm:$0xff] %v1209
        %1258 = vst [vmem:[#allocation4 + $0x190] sm:$0xff] %v1210
        %1259 = vst [vmem:[#allocation4 + $0x198] sm:$0xff] %v1211
        %1260 = vst [vmem:[#allocation4 + $0x1a0] sm:$0xff] %v1212
        %1261 = vst [vmem:[#allocation4 + $0x1a8] sm:$0xff] %v1213
        %1262 = vst [vmem:[#allocation4 + $0x1b0] sm:$0xff] %v1214
        %1263 = vst [vmem:[#allocation4 + $0x1b8] sm:$0xff] %v1215
        %1264 = vst [vmem:[#allocation4 + $0x1c0] sm:$0xff] %v1216
        %1265 = vst [vmem:[#allocation4 + $0x1c8] sm:$0xff] %v1217
        %1266 = vst [vmem:[#allocation4 + $0x1d0] sm:$0xff] %v1218
        %1267 = vst [vmem:[#allocation4 + $0x1d8] sm:$0xff] %v1219
        %1268 = vst [vmem:[#allocation4 + $0x1e0] sm:$0xff] %v1220
        %1269 = vst [vmem:[#allocation4 + $0x1e8] sm:$0xff] %v1221
        %1270 = vst [vmem:[#allocation4 + $0x1f0] sm:$0xff] %v1222
        %1271 = vst [vmem:[#allocation4 + $0x1f8] sm:$0xff] %v1223
        %1272 = vst [vmem:[#allocation4 + $0x200] sm:$0xff] %v1224
        %1273 = vst [vmem:[#allocation4 + $0x208] sm:$0xff] %v1225
        %1274 = vst [vmem:[#allocation4 + $0x210] sm:$0xff] %v1226
        %1275 = vst [vmem:[#allocation4 + $0x218] sm:$0xff] %v1227
        %1276 = vst [vmem:[#allocation4 + $0x220] sm:$0xff] %v1228
        %1277 = vst [vmem:[#allocation4 + $0x228] sm:$0xff] %v1229
        %1278 = vst [vmem:[#allocation4 + $0x230] sm:$0xff] %v1230
        %1279 = vst [vmem:[#allocation4 + $0x238] sm:$0xff] %v1231
        %v1280 = vld [vmem:[%s3] sm:$0xff]
        %v1281 = vld [vmem:[%s3 + $0x8] sm:$0xff]
        %v1282 = vld [vmem:[%s3 + $0x10] sm:$0xff]
        %v1283 = vld [vmem:[%s3 + $0x18] sm:$0xff]
        %v1284 = vld [vmem:[%s3 + $0x20] sm:$0xff]
        %v1285 = vld [vmem:[%s3 + $0x28] sm:$0xff]
        %v1286 = vld [vmem:[%s3 + $0x30] sm:$0xff]
        %v1287 = vld [vmem:[%s3 + $0x38] sm:$0xff]
        %v1288 = vld [vmem:[%s3 + $0x40] sm:$0xff]
        %v1289 = vld [vmem:[%s3 + $0x48] sm:$0xff]
        %v1290 = vld [vmem:[%s3 + $0x50] sm:$0xff]
        %v1291 = vld [vmem:[%s3 + $0x58] sm:$0xff]
        %v1292 = vld [vmem:[%s3 + $0x60] sm:$0xff]
        %v1293 = vld [vmem:[%s3 + $0x68] sm:$0xff]
        %v1294 = vld [vmem:[%s3 + $0x70] sm:$0xff]
        %v1295 = vld [vmem:[%s3 + $0x78] sm:$0xff]
        %v1296 = vld [vmem:[#allocation4] sm:$0xff]
        %v1297 = vld [vmem:[#allocation4 + $0x8] sm:$0xff]
        %v1298 = vld [vmem:[#allocation4 + $0x10] sm:$0xff]
        %v1299 = vld [vmem:[#allocation4 + $0x18] sm:$0xff]
        %v1300 = vld [vmem:[#allocation4 + $0x20] sm:$0xff]
        %v1301 = vld [vmem:[#allocation4 + $0x28] sm:$0xff]
        %v1302 = vld [vmem:[#allocation4 + $0x30] sm:$0xff]
        %v1303 = vld [vmem:[#allocation4 + $0x38] sm:$0xff]
        %v1304 = vld [vmem:[#allocation4 + $0x40] sm:$0xff]
        %v1305 = vld [vmem:[#allocation4 + $0x48] sm:$0xff]
        %v1306 = vld [vmem:[#allocation4 + $0x50] sm:$0xff]
        %v1307 = vld [vmem:[#allocation4 + $0x58] sm:$0xff]
        %v1308 = vld [vmem:[#allocation4 + $0x60] sm:$0xff]
        %v1309 = vld [vmem:[#allocation4 + $0x68] sm:$0xff]
        %v1310 = vld [vmem:[#allocation4 + $0x70] sm:$0xff]
        %v1311 = vld [vmem:[#allocation4 + $0x78] sm:$0xff]
        %v1312 = vld [vmem:[#allocation4 + $0x80] sm:$0xff]
        %v1313 = vld [vmem:[#allocation4 + $0x88] sm:$0xff]
        %v1314 = vld [vmem:[#allocation4 + $0x90] sm:$0xff]
        %v1315 = vld [vmem:[#allocation4 + $0x98] sm:$0xff]
        %v1316 = vld [vmem:[#allocation4 + $0xa0] sm:$0xff]
        %v1317 = vld [vmem:[#allocation4 + $0xa8] sm:$0xff]
        %v1318 = vld [vmem:[#allocation4 + $0xb0] sm:$0xff]
        %v1319 = vld [vmem:[#allocation4 + $0xb8] sm:$0xff]
        %v1320 = vld [vmem:[#allocation4 + $0xc0] sm:$0xff]
        %v1321 = vld [vmem:[#allocation4 + $0xc8] sm:$0xff]
        %v1322 = vld [vmem:[#allocation4 + $0xd0] sm:$0xff]
        %v1323 = vld [vmem:[#allocation4 + $0xd8] sm:$0xff]
        %v1324 = vld [vmem:[#allocation4 + $0xe0] sm:$0xff]
        %v1325 = vld [vmem:[#allocation4 + $0xe8] sm:$0xff]
        %v1326 = vld [vmem:[#allocation4 + $0xf0] sm:$0xff]
        %v1327 = vld [vmem:[#allocation4 + $0xf8] sm:$0xff]
        %v1328 = vld [vmem:[#allocation4 + $0x100] sm:$0xff]
        %v1329 = vld [vmem:[#allocation4 + $0x108] sm:$0xff]
        %v1330 = vld [vmem:[#allocation4 + $0x110] sm:$0xff]
        %v1331 = vld [vmem:[#allocation4 + $0x118] sm:$0xff]
        %v1332 = vld [vmem:[#allocation4 + $0x120] sm:$0xff]
        %v1333 = vld [vmem:[#allocation4 + $0x128] sm:$0xff]
        %v1334 = vld [vmem:[#allocation4 + $0x130] sm:$0xff]
        %v1335 = vld [vmem:[#allocation4 + $0x138] sm:$0xff]
        %v1336 = vld [vmem:[#allocation4 + $0x140] sm:$0xff]
        %v1337 = vld [vmem:[#allocation4 + $0x148] sm:$0xff]
        %v1338 = vld [vmem:[#allocation4 + $0x150] sm:$0xff]
        %v1339 = vld [vmem:[#allocation4 + $0x158] sm:$0xff]
        %v1340 = vld [vmem:[#allocation4 + $0x160] sm:$0xff]
        %v1341 = vld [vmem:[#allocation4 + $0x168] sm:$0xff]
        %v1342 = vld [vmem:[#allocation4 + $0x170] sm:$0xff]
        %v1343 = vld [vmem:[#allocation4 + $0x178] sm:$0xff]
        %v1344 = vld [vmem:[#allocation4 + $0x180] sm:$0xff]
        %v1345 = vld [vmem:[#allocation4 + $0x188] sm:$0xff]
        %v1346 = vld [vmem:[#allocation4 + $0x190] sm:$0xff]
        %v1347 = vld [vmem:[#allocation4 + $0x198] sm:$0xff]
        %v1348 = vld [vmem:[#allocation4 + $0x1a0] sm:$0xff]
        %v1349 = vld [vmem:[#allocation4 + $0x1a8] sm:$0xff]
        %v1350 = vld [vmem:[#allocation4 + $0x1b0] sm:$0xff]
        %v1351 = vld [vmem:[#allocation4 + $0x1b8] sm:$0xff]
        %v1352 = vld [vmem:[#allocation4 + $0x1c0] sm:$0xff]
        %v1353 = vld [vmem:[#allocation4 + $0x1c8] sm:$0xff]
        %v1354 = vld [vmem:[#allocation4 + $0x1d0] sm:$0xff]
        %v1355 = vld [vmem:[#allocation4 + $0x1d8] sm:$0xff]
        %v1356 = vld [vmem:[#allocation4 + $0x1e0] sm:$0xff]
        %v1357 = vld [vmem:[#allocation4 + $0x1e8] sm:$0xff]
        %v1358 = vld [vmem:[#allocation4 + $0x1f0] sm:$0xff]
        %v1359 = vld [vmem:[#allocation4 + $0x1f8] sm:$0xff]
        %v1360 = vld [vmem:[#allocation4 + $0x200] sm:$0xff]
        %v1361 = vld [vmem:[#allocation4 + $0x208] sm:$0xff]
        %v1362 = vld [vmem:[#allocation4 + $0x210] sm:$0xff]
        %v1363 = vld [vmem:[#allocation4 + $0x218] sm:$0xff]
        %v1364 = vld [vmem:[#allocation4 + $0x220] sm:$0xff]
        %v1365 = vld [vmem:[#allocation4 + $0x228] sm:$0xff]
        %v1366 = vld [vmem:[#allocation4 + $0x230] sm:$0xff]
        %v1367 = vld [vmem:[#allocation4 + $0x238] sm:$0xff]
        %v1368 = vld [vmem:[%s4] sm:$0xff]
        %v1369 = vld [vmem:[%s4 + $0x8] sm:$0xff]
        %v1370 = vld [vmem:[%s4 + $0x10] sm:$0xff]
        %v1371 = vld [vmem:[%s4 + $0x18] sm:$0xff]
        %v1372 = vld [vmem:[%s4 + $0x20] sm:$0xff]
        %v1373 = vld [vmem:[%s4 + $0x28] sm:$0xff]
        %v1374 = vld [vmem:[%s4 + $0x30] sm:$0xff]
        %v1375 = vld [vmem:[%s4 + $0x38] sm:$0xff]
        %1377 = vset.pattern.permute.xlu0 0
        %1378 = vperm.xlu0 %1377, %v1368
        %v1379 = vpop.permute.xlu0 %1378
        %1382 = vset.pattern.permute.xlu0 0
        %1383 = vperm.xlu0 %1382, %v1369
        %v1384 = vpop.permute.xlu0 %1383
        %1387 = vset.pattern.permute.xlu0 0
        %1388 = vperm.xlu0 %1387, %v1370
        %v1389 = vpop.permute.xlu0 %1388
        %1392 = vset.pattern.permute.xlu0 0
        %1393 = vperm.xlu0 %1392, %v1371
        %v1394 = vpop.permute.xlu0 %1393
        %1397 = vset.pattern.permute.xlu0 0
        %1398 = vperm.xlu0 %1397, %v1372
        %v1399 = vpop.permute.xlu0 %1398
        %1402 = vset.pattern.permute.xlu0 0
        %1403 = vperm.xlu0 %1402, %v1373
        %v1404 = vpop.permute.xlu0 %1403
        %1407 = vset.pattern.permute.xlu0 0
        %1408 = vperm.xlu0 %1407, %v1374
        %v1409 = vpop.permute.xlu0 %1408
        %1412 = vset.pattern.permute.xlu0 0
        %1413 = vperm.xlu0 %1412, %v1375
        %v1414 = vpop.permute.xlu0 %1413
        %vm1416 = vcmask 523264
        %v1418 = vsel %vm1416, %v1281, 0
        %v1421 = vsel %vm1416, %v1283, 0
        %v1424 = vsel %vm1416, %v1285, 0
        %v1427 = vsel %vm1416, %v1287, 0
        %v1430 = vsel %vm1416, %v1289, 0
        %v1433 = vsel %vm1416, %v1291, 0
        %v1436 = vsel %vm1416, %v1293, 0
        %v1439 = vsel %vm1416, %v1295, 0
        %1441 = vmatprep.subr.mxu0 %v1297
        %1442 = vmatpush1.msra.mxu0 %v1296
        %1443 = vmatprep.subr.mxu0 %v1300
        %1444 = vmatpush1.msra.mxu0 %v1299
        %1445 = vmatprep.subr.mxu0 %v1303
        %1446 = vmatpush1.msra.mxu0 %v1302
        %1447 = vmatprep.subr.mxu0 %v1306
        %1448 = vmatpush1.msra.mxu0 %v1305
        %1449 = vmatprep.subr.mxu0 %v1309
        %1450 = vmatpush1.msra.mxu0 %v1308
        %1451 = vmatprep.subr.mxu0 %v1312
        %1452 = vmatpush1.msra.mxu0 %v1311
        %1453 = vmatprep.subr.mxu0 %v1315
        %1454 = vmatpush1.msra.mxu0 %v1314
        %1455 = vmatprep.subr.mxu0 %v1318
        %1456 = vmatpush1.msra.mxu0 %v1317
        %1457 = vmatprep.subr.mxu0 %v1321
        %1458 = vmatpush1.msra.mxu0 %v1320
        %1459 = vmatprep.subr.mxu0 %v1324
        %1460 = vmatpush1.msra.mxu0 %v1323
        %1461 = vmatprep.subr.mxu0 %v1327
        %1462 = vmatpush1.msra.mxu0 %v1326
        %1463 = vmatprep.subr.mxu0 %v1330
        %1464 = vmatpush1.msra.mxu0 %v1329
        %1465 = vmatprep.subr.mxu0 %v1333
        %1466 = vmatpush1.msra.mxu0 %v1332
        %1467 = vmatprep.subr.mxu0 %v1336
        %1468 = vmatpush1.msra.mxu0 %v1335
        %1469 = vmatprep.subr.mxu0 %v1339
        %1470 = vmatpush1.msra.mxu0 %v1338
        %1471 = vmatprep.subr.mxu0 %v1342
        %1472 = vmatpush1.msra.mxu0 %v1341
        %1473 = vmatprep.subr.mxu0 %v1345
        %1474 = vmatpush1.msra.mxu0 %v1344
        %1475 = vmatprep.subr.mxu0 %v1348
        %1476 = vmatpush1.msra.mxu0 %v1347
        %1477 = vmatprep.subr.mxu0 %v1351
        %1478 = vmatpush1.msra.mxu0 %v1350
        %1479 = vmatprep.subr.mxu0 %v1354
        %1480 = vmatpush1.msra.mxu0 %v1353
        %1481 = vmatprep.subr.mxu0 %v1357
        %1482 = vmatpush1.msra.mxu0 %v1356
        %1483 = vmatprep.subr.mxu0 %v1360
        %1484 = vmatpush1.msra.mxu0 %v1359
        %1485 = vmatprep.subr.mxu0 %v1363
        %1486 = vmatpush1.msra.mxu0 %v1362
        %1487 = vmatprep.subr.mxu0 %v1366
        %1488 = vmatpush1.msra.mxu0 %v1365
        %1489 = vmatprep.subr.mxu0 0.0
        %1490 = vmatpush1.msra.mxu0 0.0
        %1491 = vmatprep.subr.mxu0 0.0
        %1492 = vmatpush1.msra.mxu0 0.0
        %1493 = vmatprep.subr.mxu0 0.0
        %1494 = vmatpush1.msra.mxu0 0.0
        %1495 = vmatprep.subr.mxu0 0.0
        %1496 = vmatpush1.msra.mxu0 0.0
        %1497 = vmatprep.subr.mxu0 0.0
        %1498 = vmatpush1.msra.mxu0 0.0
        %1499 = vmatprep.subr.mxu0 0.0
        %1500 = vmatpush1.msra.mxu0 0.0
        %1501 = vmatprep.subr.mxu0 0.0
        %1502 = vmatpush1.msra.mxu0 0.0
        %1503 = vmatprep.subr.mxu0 0.0
        %1504 = vmatpush1.msra.mxu0 0.0
        %1505 = vmatprep.mubr.f32.mxu0 %v1418
        %1506 = vmatmul.mubr.f32.gmra.mrb[0].mxu0 %v1280
        %v1507 = vpop.f32.mrb[0].mxu0
        %v1508 = vadd.f32 %v1379, %v1507
        %v1509 = vpop.f32.mrb[0].mxu0
        %v1510 = vadd.f32 %v1379, %v1509
        %1511 = vmatprep.mubr.f32.mxu0 %v1421
        %1512 = vmatmul.mubr.f32.gmra.mrb[0].mxu0 %v1282
        %v1513 = vpop.f32.mrb[0].mxu0
        %v1514 = vadd.f32 %v1384, %v1513
        %v1515 = vpop.f32.mrb[0].mxu0
        %v1516 = vadd.f32 %v1384, %v1515
        %1517 = vmatprep.mubr.f32.mxu0 %v1424
        %1518 = vmatmul.mubr.f32.gmra.mrb[0].mxu0 %v1284
        %v1519 = vpop.f32.mrb[0].mxu0
        %v1520 = vadd.f32 %v1389, %v1519
        %v1521 = vpop.f32.mrb[0].mxu0
        %v1522 = vadd.f32 %v1389, %v1521
        %1523 = vmatprep.mubr.f32.mxu0 %v1427
        %1524 = vmatmul.mubr.f32.gmra.mrb[0].mxu0 %v1286
        %v1525 = vpop.f32.mrb[0].mxu0
        %v1526 = vadd.f32 %v1394, %v1525
        %v1527 = vpop.f32.mrb[0].mxu0
        %v1528 = vadd.f32 %v1394, %v1527
        %1529 = vmatprep.mubr.f32.mxu0 %v1430
        %1530 = vmatmul.mubr.f32.gmra.mrb[0].mxu0 %v1288
        %v1531 = vpop.f32.mrb[0].mxu0
        %v1532 = vadd.f32 %v1399, %v1531
        %v1533 = vpop.f32.mrb[0].mxu0
        %v1534 = vadd.f32 %v1399, %v1533
        %1535 = vmatprep.mubr.f32.mxu0 %v1433
        %1536 = vmatmul.mubr.f32.gmra.mrb[0].mxu0 %v1290
        %v1537 = vpop.f32.mrb[0].mxu0
        %v1538 = vadd.f32 %v1404, %v1537
        %v1539 = vpop.f32.mrb[0].mxu0
        %v1540 = vadd.f32 %v1404, %v1539
        %1541 = vmatprep.mubr.f32.mxu0 %v1436
        %1542 = vmatmul.mubr.f32.gmra.mrb[0].mxu0 %v1292
        %v1543 = vpop.f32.mrb[0].mxu0
        %v1544 = vadd.f32 %v1409, %v1543
        %v1545 = vpop.f32.mrb[0].mxu0
        %v1546 = vadd.f32 %v1409, %v1545
        %1547 = vmatprep.mubr.f32.mxu0 %v1439
        %1548 = vmatmul.mubr.f32.gmra.mrb[0].mxu0 %v1294
        %v1549 = vpop.f32.mrb[0].mxu0
        %v1550 = vadd.f32 %v1414, %v1549
        %v1551 = vpop.f32.mrb[0].mxu0
        %v1552 = vadd.f32 %v1414, %v1551
        %1553 = vdwg.mxu0
        %1554 = vmatprep.subr.mxu0 0.0
        %1555 = vmatpush1.msra.mxu0 %v1298
        %1556 = vmatprep.subr.mxu0 0.0
        %1557 = vmatpush1.msra.mxu0 %v1301
        %1558 = vmatprep.subr.mxu0 0.0
        %1559 = vmatpush1.msra.mxu0 %v1304
        %1560 = vmatprep.subr.mxu0 0.0
        %1561 = vmatpush1.msra.mxu0 %v1307
        %1562 = vmatprep.subr.mxu0 0.0
        %1563 = vmatpush1.msra.mxu0 %v1310
        %1564 = vmatprep.subr.mxu0 0.0
        %1565 = vmatpush1.msra.mxu0 %v1313
        %1566 = vmatprep.subr.mxu0 0.0
        %1567 = vmatpush1.msra.mxu0 %v1316
        %1568 = vmatprep.subr.mxu0 0.0
        %1569 = vmatpush1.msra.mxu0 %v1319
        %1570 = vmatprep.subr.mxu0 0.0
        %1571 = vmatpush1.msra.mxu0 %v1322
        %1572 = vmatprep.subr.mxu0 0.0
        %1573 = vmatpush1.msra.mxu0 %v1325
        %1574 = vmatprep.subr.mxu0 0.0
        %1575 = vmatpush1.msra.mxu0 %v1328
        %1576 = vmatprep.subr.mxu0 0.0
        %1577 = vmatpush1.msra.mxu0 %v1331
        %1578 = vmatprep.subr.mxu0 0.0
        %1579 = vmatpush1.msra.mxu0 %v1334
        %1580 = vmatprep.subr.mxu0 0.0
        %1581 = vmatpush1.msra.mxu0 %v1337
        %1582 = vmatprep.subr.mxu0 0.0
        %1583 = vmatpush1.msra.mxu0 %v1340
        %1584 = vmatprep.subr.mxu0 0.0
        %1585 = vmatpush1.msra.mxu0 %v1343
        %1586 = vmatprep.subr.mxu0 0.0
        %1587 = vmatpush1.msra.mxu0 %v1346
        %1588 = vmatprep.subr.mxu0 0.0
        %1589 = vmatpush1.msra.mxu0 %v1349
        %1590 = vmatprep.subr.mxu0 0.0
        %1591 = vmatpush1.msra.mxu0 %v1352
        %1592 = vmatprep.subr.mxu0 0.0
        %1593 = vmatpush1.msra.mxu0 %v1355
        %1594 = vmatprep.subr.mxu0 0.0
        %1595 = vmatpush1.msra.mxu0 %v1358
        %1596 = vmatprep.subr.mxu0 0.0
        %1597 = vmatpush1.msra.mxu0 %v1361
        %1598 = vmatprep.subr.mxu0 0.0
        %1599 = vmatpush1.msra.mxu0 %v1364
        %1600 = vmatprep.subr.mxu0 0.0
        %1601 = vmatpush1.msra.mxu0 %v1367
        %1602 = vmatprep.subr.mxu0 0.0
        %1603 = vmatpush1.msra.mxu0 0.0
        %1604 = vmatprep.subr.mxu0 0.0
        %1605 = vmatpush1.msra.mxu0 0.0
        %1606 = vmatprep.subr.mxu0 0.0
        %1607 = vmatpush1.msra.mxu0 0.0
        %1608 = vmatprep.subr.mxu0 0.0
        %1609 = vmatpush1.msra.mxu0 0.0
        %1610 = vmatprep.subr.mxu0 0.0
        %1611 = vmatpush1.msra.mxu0 0.0
        %1612 = vmatprep.subr.mxu0 0.0
        %1613 = vmatpush1.msra.mxu0 0.0
        %1614 = vmatprep.subr.mxu0 0.0
        %1615 = vmatpush1.msra.mxu0 0.0
        %1616 = vmatprep.subr.mxu0 0.0
        %1617 = vmatpush1.msra.mxu0 0.0
        %1618 = vmatprep.mubr.f32.mxu0 %v1418
        %1619 = vmatmul.mubr.f32.gmra.mrb[0].mxu0 %v1280
        %v1620 = vpop.f32.mrb[0].mxu0
        %v1621 = vadd.f32 %v1379, %v1620
        %v1622 = vpop.f32.mrb[0].mxu0
        %1623 = vmatprep.mubr.f32.mxu0 %v1421
        %1624 = vmatmul.mubr.f32.gmra.mrb[0].mxu0 %v1282
        %v1625 = vpop.f32.mrb[0].mxu0
        %v1626 = vadd.f32 %v1384, %v1625
        %v1627 = vpop.f32.mrb[0].mxu0
        %1628 = vmatprep.mubr.f32.mxu0 %v1424
        %1629 = vmatmul.mubr.f32.gmra.mrb[0].mxu0 %v1284
        %v1630 = vpop.f32.mrb[0].mxu0
        %v1631 = vadd.f32 %v1389, %v1630
        %v1632 = vpop.f32.mrb[0].mxu0
        %1633 = vmatprep.mubr.f32.mxu0 %v1427
        %1634 = vmatmul.mubr.f32.gmra.mrb[0].mxu0 %v1286
        %v1635 = vpop.f32.mrb[0].mxu0
        %v1636 = vadd.f32 %v1394, %v1635
        %v1637 = vpop.f32.mrb[0].mxu0
        %1638 = vmatprep.mubr.f32.mxu0 %v1430
        %1639 = vmatmul.mubr.f32.gmra.mrb[0].mxu0 %v1288
        %v1640 = vpop.f32.mrb[0].mxu0
        %v1641 = vadd.f32 %v1399, %v1640
        %v1642 = vpop.f32.mrb[0].mxu0
        %1643 = vmatprep.mubr.f32.mxu0 %v1433
        %1644 = vmatmul.mubr.f32.gmra.mrb[0].mxu0 %v1290
        %v1645 = vpop.f32.mrb[0].mxu0
        %v1646 = vadd.f32 %v1404, %v1645
        %v1647 = vpop.f32.mrb[0].mxu0
        %1648 = vmatprep.mubr.f32.mxu0 %v1436
        %1649 = vmatmul.mubr.f32.gmra.mrb[0].mxu0 %v1292
        %v1650 = vpop.f32.mrb[0].mxu0
        %v1651 = vadd.f32 %v1409, %v1650
        %v1652 = vpop.f32.mrb[0].mxu0
        %1653 = vmatprep.mubr.f32.mxu0 %v1439
        %1654 = vmatmul.mubr.f32.gmra.mrb[0].mxu0 %v1294
        %v1655 = vpop.f32.mrb[0].mxu0
        %v1656 = vadd.f32 %v1414, %v1655
        %v1657 = vpop.f32.mrb[0].mxu0
        %1658 = vdwg.mxu0
        %vm1659 = vcmp.gt.f32.partialorder %v1508, 0.0
        %vm1660 = vcmp.gt.f32.partialorder %v1510, 0.0
        %vm1661 = vcmp.gt.f32.partialorder %v1621, 0.0
        %vm1662 = vcmp.gt.f32.partialorder %v1514, 0.0
        %vm1663 = vcmp.gt.f32.partialorder %v1516, 0.0
        %vm1664 = vcmp.gt.f32.partialorder %v1626, 0.0
        %vm1665 = vcmp.gt.f32.partialorder %v1520, 0.0
        %vm1666 = vcmp.gt.f32.partialorder %v1522, 0.0
        %vm1667 = vcmp.gt.f32.partialorder %v1631, 0.0
        %vm1668 = vcmp.gt.f32.partialorder %v1526, 0.0
        %vm1669 = vcmp.gt.f32.partialorder %v1528, 0.0
        %vm1670 = vcmp.gt.f32.partialorder %v1636, 0.0
        %vm1671 = vcmp.gt.f32.partialorder %v1532, 0.0
        %vm1672 = vcmp.gt.f32.partialorder %v1534, 0.0
        %vm1673 = vcmp.gt.f32.partialorder %v1641, 0.0
        %vm1674 = vcmp.gt.f32.partialorder %v1538, 0.0
        %vm1675 = vcmp.gt.f32.partialorder %v1540, 0.0
        %vm1676 = vcmp.gt.f32.partialorder %v1646, 0.0
        %vm1677 = vcmp.gt.f32.partialorder %v1544, 0.0
        %vm1678 = vcmp.gt.f32.partialorder %v1546, 0.0
        %vm1679 = vcmp.gt.f32.partialorder %v1651, 0.0
        %vm1680 = vcmp.gt.f32.partialorder %v1550, 0.0
        %vm1681 = vcmp.gt.f32.partialorder %v1552, 0.0
        %vm1682 = vcmp.gt.f32.partialorder %v1656, 0.0
        %v1683 = vmul.f32 %v1508, 0.01
        %v1684 = vmul.f32 %v1510, 0.01
        %v1685 = vmul.f32 %v1621, 0.01
        %v1686 = vmul.f32 %v1514, 0.01
        %v1687 = vmul.f32 %v1516, 0.01
        %v1688 = vmul.f32 %v1626, 0.01
        %v1689 = vmul.f32 %v1520, 0.01
        %v1690 = vmul.f32 %v1522, 0.01
        %v1691 = vmul.f32 %v1631, 0.01
        %v1692 = vmul.f32 %v1526, 0.01
        %v1693 = vmul.f32 %v1528, 0.01
        %v1694 = vmul.f32 %v1636, 0.01
        %v1695 = vmul.f32 %v1532, 0.01
        %v1696 = vmul.f32 %v1534, 0.01
        %v1697 = vmul.f32 %v1641, 0.01
        %v1698 = vmul.f32 %v1538, 0.01
        %v1699 = vmul.f32 %v1540, 0.01
        %v1700 = vmul.f32 %v1646, 0.01
        %v1701 = vmul.f32 %v1544, 0.01
        %v1702 = vmul.f32 %v1546, 0.01
        %v1703 = vmul.f32 %v1651, 0.01
        %v1704 = vmul.f32 %v1550, 0.01
        %v1705 = vmul.f32 %v1552, 0.01
        %v1706 = vmul.f32 %v1656, 0.01
        %v1707 = vsel %vm1659, %v1508, %v1683
        %v1708 = vsel %vm1660, %v1510, %v1684
        %v1709 = vsel %vm1661, %v1621, %v1685
        %v1710 = vsel %vm1662, %v1514, %v1686
        %v1711 = vsel %vm1663, %v1516, %v1687
        %v1712 = vsel %vm1664, %v1626, %v1688
        %v1713 = vsel %vm1665, %v1520, %v1689
        %v1714 = vsel %vm1666, %v1522, %v1690
        %v1715 = vsel %vm1667, %v1631, %v1691
        %v1716 = vsel %vm1668, %v1526, %v1692
        %v1717 = vsel %vm1669, %v1528, %v1693
        %v1718 = vsel %vm1670, %v1636, %v1694
        %v1719 = vsel %vm1671, %v1532, %v1695
        %v1720 = vsel %vm1672, %v1534, %v1696
        %v1721 = vsel %vm1673, %v1641, %v1697
        %v1722 = vsel %vm1674, %v1538, %v1698
        %v1723 = vsel %vm1675, %v1540, %v1699
        %v1724 = vsel %vm1676, %v1646, %v1700
        %v1725 = vsel %vm1677, %v1544, %v1701
        %v1726 = vsel %vm1678, %v1546, %v1702
        %v1727 = vsel %vm1679, %v1651, %v1703
        %v1728 = vsel %vm1680, %v1550, %v1704
        %v1729 = vsel %vm1681, %v1552, %v1705
        %v1730 = vsel %vm1682, %v1656, %v1706
        %v1731 = vsel %vm563, 1, 0
        %v1732 = vsel %vm564, 1, 0
        %v1733 = vsel %vm565, 1, 0
        %vm1734 = vcmp.eq.s32.totalorder %v1731, 1
        %vm1735 = vcmp.eq.s32.totalorder %v1732, 1
        %vm1736 = vcmp.eq.s32.totalorder %v1733, 1
        %v1737 = vsel %vm1734, %v1707, 0.0
        %v1738 = vsel %vm1735, %v1708, 0.0
        %v1739 = vsel %vm1736, %v1709, 0.0
        %v1740 = vsel %vm1734, %v1710, 0.0
        %v1741 = vsel %vm1735, %v1711, 0.0
        %v1742 = vsel %vm1736, %v1712, 0.0
        %v1743 = vsel %vm1734, %v1713, 0.0
        %v1744 = vsel %vm1735, %v1714, 0.0
        %v1745 = vsel %vm1736, %v1715, 0.0
        %v1746 = vsel %vm1734, %v1716, 0.0
        %v1747 = vsel %vm1735, %v1717, 0.0
        %v1748 = vsel %vm1736, %v1718, 0.0
        %v1749 = vsel %vm1734, %v1719, 0.0
        %v1750 = vsel %vm1735, %v1720, 0.0
        %v1751 = vsel %vm1736, %v1721, 0.0
        %v1752 = vsel %vm1734, %v1722, 0.0
        %v1753 = vsel %vm1735, %v1723, 0.0
        %v1754 = vsel %vm1736, %v1724, 0.0
        %v1755 = vsel %vm1734, %v1725, 0.0
        %v1756 = vsel %vm1735, %v1726, 0.0
        %v1757 = vsel %vm1736, %v1727, 0.0
        %v1758 = vsel %vm1734, %v1728, 0.0
        %v1759 = vsel %vm1735, %v1729, 0.0
        %v1760 = vsel %vm1736, %v1730, 0.0
        %1761 = vst [vmem:[#allocation3 + $0x8] sm:$0xff] %v1737
        %1762 = vst [vmem:[#allocation3 + $0x10] sm:$0xff] %v1738
        %1763 = vst [vmem:[#allocation3 + $0x18] sm:$0xff] %v1739
        %1764 = vst [vmem:[#allocation3 + $0x30] sm:$0xff] %v1740
        %1765 = vst [vmem:[#allocation3 + $0x38] sm:$0xff] %v1741
        %1766 = vst [vmem:[#allocation3 + $0x40] sm:$0xff] %v1742
        %1767 = vst [vmem:[#allocation3 + $0x58] sm:$0xff] %v1743
        %1768 = vst [vmem:[#allocation3 + $0x60] sm:$0xff] %v1744
        %1769 = vst [vmem:[#allocation3 + $0x68] sm:$0xff] %v1745
        %1770 = vst [vmem:[#allocation3 + $0x80] sm:$0xff] %v1746
        %1771 = vst [vmem:[#allocation3 + $0x88] sm:$0xff] %v1747
        %1772 = vst [vmem:[#allocation3 + $0x90] sm:$0xff] %v1748
        %1773 = vst [vmem:[#allocation3 + $0xa8] sm:$0xff] %v1749
        %1774 = vst [vmem:[#allocation3 + $0xb0] sm:$0xff] %v1750
        %1775 = vst [vmem:[#allocation3 + $0xb8] sm:$0xff] %v1751
        %1776 = vst [vmem:[#allocation3 + $0xd0] sm:$0xff] %v1752
        %1777 = vst [vmem:[#allocation3 + $0xd8] sm:$0xff] %v1753
        %1778 = vst [vmem:[#allocation3 + $0xe0] sm:$0xff] %v1754
        %1779 = vst [vmem:[#allocation3 + $0xf8] sm:$0xff] %v1755
        %1780 = vst [vmem:[#allocation3 + $0x100] sm:$0xff] %v1756
        %1781 = vst [vmem:[#allocation3 + $0x108] sm:$0xff] %v1757
        %1782 = vst [vmem:[#allocation3 + $0x120] sm:$0xff] %v1758
        %1783 = vst [vmem:[#allocation3 + $0x128] sm:$0xff] %v1759
        %1784 = vst [vmem:[#allocation3 + $0x130] sm:$0xff] %v1760
        %v1785 = vld [vmem:[#allocation3] sm:$0xff]
        %v1786 = vld [vmem:[#allocation3 + $0x8] sm:$0xff]
        %v1787 = vld [vmem:[#allocation3 + $0x10] sm:$0xff]
        %v1788 = vld [vmem:[#allocation3 + $0x18] sm:$0xff]
        %v1789 = vld [vmem:[#allocation3 + $0x28] sm:$0xff]
        %v1790 = vld [vmem:[#allocation3 + $0x30] sm:$0xff]
        %v1791 = vld [vmem:[#allocation3 + $0x38] sm:$0xff]
        %v1792 = vld [vmem:[#allocation3 + $0x40] sm:$0xff]
        %v1793 = vld [vmem:[#allocation3 + $0x50] sm:$0xff]
        %v1794 = vld [vmem:[#allocation3 + $0x58] sm:$0xff]
        %v1795 = vld [vmem:[#allocation3 + $0x60] sm:$0xff]
        %v1796 = vld [vmem:[#allocation3 + $0x68] sm:$0xff]
        %v1797 = vld [vmem:[#allocation3 + $0x78] sm:$0xff]
        %v1798 = vld [vmem:[#allocation3 + $0x80] sm:$0xff]
        %v1799 = vld [vmem:[#allocation3 + $0x88] sm:$0xff]
        %v1800 = vld [vmem:[#allocation3 + $0x90] sm:$0xff]
        %v1801 = vld [vmem:[#allocation3 + $0xa0] sm:$0xff]
        %v1802 = vld [vmem:[#allocation3 + $0xa8] sm:$0xff]
        %v1803 = vld [vmem:[#allocation3 + $0xb0] sm:$0xff]
        %v1804 = vld [vmem:[#allocation3 + $0xb8] sm:$0xff]
        %v1805 = vld [vmem:[#allocation3 + $0xc8] sm:$0xff]
        %v1806 = vld [vmem:[#allocation3 + $0xd0] sm:$0xff]
        %v1807 = vld [vmem:[#allocation3 + $0xd8] sm:$0xff]
        %v1808 = vld [vmem:[#allocation3 + $0xe0] sm:$0xff]
        %v1809 = vld [vmem:[#allocation3 + $0xf0] sm:$0xff]
        %v1810 = vld [vmem:[#allocation3 + $0xf8] sm:$0xff]
        %v1811 = vld [vmem:[#allocation3 + $0x100] sm:$0xff]
        %v1812 = vld [vmem:[#allocation3 + $0x108] sm:$0xff]
        %v1813 = vld [vmem:[#allocation3 + $0x118] sm:$0xff]
        %v1814 = vld [vmem:[#allocation3 + $0x120] sm:$0xff]
        %v1815 = vld [vmem:[#allocation3 + $0x128] sm:$0xff]
        %v1816 = vld [vmem:[#allocation3 + $0x130] sm:$0xff]
        %1849 = vrot.lane.b32.xlu0 %v1785, 1
        %v1850 = vpop.permute.xlu0 %1849
        %1851 = vrot.lane.b32.xlu0 %v1786, 1
        %v1852 = vpop.permute.xlu0 %1851
        %1853 = vrot.lane.b32.xlu0 %v1787, 1
        %v1854 = vpop.permute.xlu0 %1853
        %1855 = vrot.lane.b32.xlu0 %v1788, 1
        %v1856 = vpop.permute.xlu0 %1855
        %1857 = vrot.lane.b32.xlu0 %v1789, 1
        %v1858 = vpop.permute.xlu0 %1857
        %1859 = vrot.lane.b32.xlu0 %v1790, 1
        %v1860 = vpop.permute.xlu0 %1859
        %1861 = vrot.lane.b32.xlu0 %v1791, 1
        %v1862 = vpop.permute.xlu0 %1861
        %1863 = vrot.lane.b32.xlu0 %v1792, 1
        %v1864 = vpop.permute.xlu0 %1863
        %1865 = vrot.lane.b32.xlu0 %v1793, 1
        %v1866 = vpop.permute.xlu0 %1865
        %1867 = vrot.lane.b32.xlu0 %v1794, 1
        %v1868 = vpop.permute.xlu0 %1867
        %1869 = vrot.lane.b32.xlu0 %v1795, 1
        %v1870 = vpop.permute.xlu0 %1869
        %1871 = vrot.lane.b32.xlu0 %v1796, 1
        %v1872 = vpop.permute.xlu0 %1871
        %1873 = vrot.lane.b32.xlu0 %v1797, 1
        %v1874 = vpop.permute.xlu0 %1873
        %1875 = vrot.lane.b32.xlu0 %v1798, 1
        %v1876 = vpop.permute.xlu0 %1875
        %1877 = vrot.lane.b32.xlu0 %v1799, 1
        %v1878 = vpop.permute.xlu0 %1877
        %1879 = vrot.lane.b32.xlu0 %v1800, 1
        %v1880 = vpop.permute.xlu0 %1879
        %1881 = vrot.lane.b32.xlu0 %v1801, 1
        %v1882 = vpop.permute.xlu0 %1881
        %1883 = vrot.lane.b32.xlu0 %v1802, 1
        %v1884 = vpop.permute.xlu0 %1883
        %1885 = vrot.lane.b32.xlu0 %v1803, 1
        %v1886 = vpop.permute.xlu0 %1885
        %1887 = vrot.lane.b32.xlu0 %v1804, 1
        %v1888 = vpop.permute.xlu0 %1887
        %1889 = vrot.lane.b32.xlu0 %v1805, 1
        %v1890 = vpop.permute.xlu0 %1889
        %1891 = vrot.lane.b32.xlu0 %v1806, 1
        %v1892 = vpop.permute.xlu0 %1891
        %1893 = vrot.lane.b32.xlu0 %v1807, 1
        %v1894 = vpop.permute.xlu0 %1893
        %1895 = vrot.lane.b32.xlu0 %v1808, 1
        %v1896 = vpop.permute.xlu0 %1895
        %1897 = vrot.lane.b32.xlu0 %v1809, 1
        %v1898 = vpop.permute.xlu0 %1897
        %1899 = vrot.lane.b32.xlu0 %v1810, 1
        %v1900 = vpop.permute.xlu0 %1899
        %1901 = vrot.lane.b32.xlu0 %v1811, 1
        %v1902 = vpop.permute.xlu0 %1901
        %1903 = vrot.lane.b32.xlu0 %v1812, 1
        %v1904 = vpop.permute.xlu0 %1903
        %1905 = vrot.lane.b32.xlu0 %v1813, 1
        %v1906 = vpop.permute.xlu0 %1905
        %1907 = vrot.lane.b32.xlu0 %v1814, 1
        %v1908 = vpop.permute.xlu0 %1907
        %1909 = vrot.lane.b32.xlu0 %v1815, 1
        %v1910 = vpop.permute.xlu0 %1909
        %1911 = vrot.lane.b32.xlu0 %v1816, 1
        %v1912 = vpop.permute.xlu0 %1911
        %v1913 = vsel %vm790, %v1850, %v1852
        %v1914 = vsel %vm790, %v1852, %v1854
        %v1915 = vsel %vm790, %v1854, %v1856
        %v1916 = vsel %vm790, %v1858, %v1860
        %v1917 = vsel %vm790, %v1860, %v1862
        %v1918 = vsel %vm790, %v1862, %v1864
        %v1919 = vsel %vm790, %v1866, %v1868
        %v1920 = vsel %vm790, %v1868, %v1870
        %v1921 = vsel %vm790, %v1870, %v1872
        %v1922 = vsel %vm790, %v1874, %v1876
        %v1923 = vsel %vm790, %v1876, %v1878
        %v1924 = vsel %vm790, %v1878, %v1880
        %v1925 = vsel %vm790, %v1882, %v1884
        %v1926 = vsel %vm790, %v1884, %v1886
        %v1927 = vsel %vm790, %v1886, %v1888
        %v1928 = vsel %vm790, %v1890, %v1892
        %v1929 = vsel %vm790, %v1892, %v1894
        %v1930 = vsel %vm790, %v1894, %v1896
        %v1931 = vsel %vm790, %v1898, %v1900
        %v1932 = vsel %vm790, %v1900, %v1902
        %v1933 = vsel %vm790, %v1902, %v1904
        %v1934 = vsel %vm790, %v1906, %v1908
        %v1935 = vsel %vm790, %v1908, %v1910
        %v1936 = vsel %vm790, %v1910, %v1912
        %1961 = vst [vmem:[#allocation4] sm:$0xff] %v1913
        %1962 = vst [vmem:[#allocation4 + $0x8] sm:$0xff] %v1914
        %1963 = vst [vmem:[#allocation4 + $0x10] sm:$0xff] %v1915
        %1964 = vst [vmem:[#allocation4 + $0x18] sm:$0xff] %v1916
        %1965 = vst [vmem:[#allocation4 + $0x20] sm:$0xff] %v1917
        %1966 = vst [vmem:[#allocation4 + $0x28] sm:$0xff] %v1918
        %1967 = vst [vmem:[#allocation4 + $0x30] sm:$0xff] %v1919
        %1968 = vst [vmem:[#allocation4 + $0x38] sm:$0xff] %v1920
        %1969 = vst [vmem:[#allocation4 + $0x40] sm:$0xff] %v1921
        %1970 = vst [vmem:[#allocation4 + $0x48] sm:$0xff] %v1922
        %1971 = vst [vmem:[#allocation4 + $0x50] sm:$0xff] %v1923
        %1972 = vst [vmem:[#allocation4 + $0x58] sm:$0xff] %v1924
        %1973 = vst [vmem:[#allocation4 + $0x60] sm:$0xff] %v1925
        %1974 = vst [vmem:[#allocation4 + $0x68] sm:$0xff] %v1926
        %1975 = vst [vmem:[#allocation4 + $0x70] sm:$0xff] %v1927
        %1976 = vst [vmem:[#allocation4 + $0x78] sm:$0xff] %v1928
        %1977 = vst [vmem:[#allocation4 + $0x80] sm:$0xff] %v1929
        %1978 = vst [vmem:[#allocation4 + $0x88] sm:$0xff] %v1930
        %1979 = vst [vmem:[#allocation4 + $0x90] sm:$0xff] %v1931
        %1980 = vst [vmem:[#allocation4 + $0x98] sm:$0xff] %v1932
        %1981 = vst [vmem:[#allocation4 + $0xa0] sm:$0xff] %v1933
        %1982 = vst [vmem:[#allocation4 + $0xa8] sm:$0xff] %v1934
        %1983 = vst [vmem:[#allocation4 + $0xb0] sm:$0xff] %v1935
        %1984 = vst [vmem:[#allocation4 + $0xb8] sm:$0xff] %v1936
        %v1985 = vld [vmem:[#allocation3 + $0x8] sm:$0xff]
        %v1986 = vld [vmem:[#allocation3 + $0x10] sm:$0xff]
        %v1987 = vld [vmem:[#allocation3 + $0x18] sm:$0xff]
        %v1988 = vld [vmem:[#allocation3 + $0x30] sm:$0xff]
        %v1989 = vld [vmem:[#allocation3 + $0x38] sm:$0xff]
        %v1990 = vld [vmem:[#allocation3 + $0x40] sm:$0xff]
        %v1991 = vld [vmem:[#allocation3 + $0x58] sm:$0xff]
        %v1992 = vld [vmem:[#allocation3 + $0x60] sm:$0xff]
        %v1993 = vld [vmem:[#allocation3 + $0x68] sm:$0xff]
        %v1994 = vld [vmem:[#allocation3 + $0x80] sm:$0xff]
        %v1995 = vld [vmem:[#allocation3 + $0x88] sm:$0xff]
        %v1996 = vld [vmem:[#allocation3 + $0x90] sm:$0xff]
        %v1997 = vld [vmem:[#allocation3 + $0xa8] sm:$0xff]
        %v1998 = vld [vmem:[#allocation3 + $0xb0] sm:$0xff]
        %v1999 = vld [vmem:[#allocation3 + $0xb8] sm:$0xff]
        %v2000 = vld [vmem:[#allocation3 + $0xd0] sm:$0xff]
        %v2001 = vld [vmem:[#allocation3 + $0xd8] sm:$0xff]
        %v2002 = vld [vmem:[#allocation3 + $0xe0] sm:$0xff]
        %v2003 = vld [vmem:[#allocation3 + $0xf8] sm:$0xff]
        %v2004 = vld [vmem:[#allocation3 + $0x100] sm:$0xff]
        %v2005 = vld [vmem:[#allocation3 + $0x108] sm:$0xff]
        %v2006 = vld [vmem:[#allocation3 + $0x120] sm:$0xff]
        %v2007 = vld [vmem:[#allocation3 + $0x128] sm:$0xff]
        %v2008 = vld [vmem:[#allocation3 + $0x130] sm:$0xff]
        %2009 = vst [vmem:[#allocation4 + $0xc0] sm:$0xff] %v1985
        %2010 = vst [vmem:[#allocation4 + $0xc8] sm:$0xff] %v1986
        %2011 = vst [vmem:[#allocation4 + $0xd0] sm:$0xff] %v1987
        %2012 = vst [vmem:[#allocation4 + $0xd8] sm:$0xff] %v1988
        %2013 = vst [vmem:[#allocation4 + $0xe0] sm:$0xff] %v1989
        %2014 = vst [vmem:[#allocation4 + $0xe8] sm:$0xff] %v1990
        %2015 = vst [vmem:[#allocation4 + $0xf0] sm:$0xff] %v1991
        %2016 = vst [vmem:[#allocation4 + $0xf8] sm:$0xff] %v1992
        %2017 = vst [vmem:[#allocation4 + $0x100] sm:$0xff] %v1993
        %2018 = vst [vmem:[#allocation4 + $0x108] sm:$0xff] %v1994
        %2019 = vst [vmem:[#allocation4 + $0x110] sm:$0xff] %v1995
        %2020 = vst [vmem:[#allocation4 + $0x118] sm:$0xff] %v1996
        %2021 = vst [vmem:[#allocation4 + $0x120] sm:$0xff] %v1997
        %2022 = vst [vmem:[#allocation4 + $0x128] sm:$0xff] %v1998
        %2023 = vst [vmem:[#allocation4 + $0x130] sm:$0xff] %v1999
        %2024 = vst [vmem:[#allocation4 + $0x138] sm:$0xff] %v2000
        %2025 = vst [vmem:[#allocation4 + $0x140] sm:$0xff] %v2001
        %2026 = vst [vmem:[#allocation4 + $0x148] sm:$0xff] %v2002
        %2027 = vst [vmem:[#allocation4 + $0x150] sm:$0xff] %v2003
        %2028 = vst [vmem:[#allocation4 + $0x158] sm:$0xff] %v2004
        %2029 = vst [vmem:[#allocation4 + $0x160] sm:$0xff] %v2005
        %2030 = vst [vmem:[#allocation4 + $0x168] sm:$0xff] %v2006
        %2031 = vst [vmem:[#allocation4 + $0x170] sm:$0xff] %v2007
        %2032 = vst [vmem:[#allocation4 + $0x178] sm:$0xff] %v2008
        %v2033 = vld [vmem:[#allocation3 + $0x8] sm:$0xff]
        %v2034 = vld [vmem:[#allocation3 + $0x10] sm:$0xff]
        %v2035 = vld [vmem:[#allocation3 + $0x18] sm:$0xff]
        %v2036 = vld [vmem:[#allocation3 + $0x20] sm:$0xff]
        %v2037 = vld [vmem:[#allocation3 + $0x30] sm:$0xff]
        %v2038 = vld [vmem:[#allocation3 + $0x38] sm:$0xff]
        %v2039 = vld [vmem:[#allocation3 + $0x40] sm:$0xff]
        %v2040 = vld [vmem:[#allocation3 + $0x48] sm:$0xff]
        %v2041 = vld [vmem:[#allocation3 + $0x58] sm:$0xff]
        %v2042 = vld [vmem:[#allocation3 + $0x60] sm:$0xff]
        %v2043 = vld [vmem:[#allocation3 + $0x68] sm:$0xff]
        %v2044 = vld [vmem:[#allocation3 + $0x70] sm:$0xff]
        %v2045 = vld [vmem:[#allocation3 + $0x80] sm:$0xff]
        %v2046 = vld [vmem:[#allocation3 + $0x88] sm:$0xff]
        %v2047 = vld [vmem:[#allocation3 + $0x90] sm:$0xff]
        %v2048 = vld [vmem:[#allocation3 + $0x98] sm:$0xff]
        %v2049 = vld [vmem:[#allocation3 + $0xa8] sm:$0xff]
        %v2050 = vld [vmem:[#allocation3 + $0xb0] sm:$0xff]
        %v2051 = vld [vmem:[#allocation3 + $0xb8] sm:$0xff]
        %v2052 = vld [vmem:[#allocation3 + $0xc0] sm:$0xff]
        %v2053 = vld [vmem:[#allocation3 + $0xd0] sm:$0xff]
        %v2054 = vld [vmem:[#allocation3 + $0xd8] sm:$0xff]
        %v2055 = vld [vmem:[#allocation3 + $0xe0] sm:$0xff]
        %v2056 = vld [vmem:[#allocation3 + $0xe8] sm:$0xff]
        %v2057 = vld [vmem:[#allocation3 + $0xf8] sm:$0xff]
        %v2058 = vld [vmem:[#allocation3 + $0x100] sm:$0xff]
        %v2059 = vld [vmem:[#allocation3 + $0x108] sm:$0xff]
        %v2060 = vld [vmem:[#allocation3 + $0x110] sm:$0xff]
        %v2061 = vld [vmem:[#allocation3 + $0x120] sm:$0xff]
        %v2062 = vld [vmem:[#allocation3 + $0x128] sm:$0xff]
        %v2063 = vld [vmem:[#allocation3 + $0x130] sm:$0xff]
        %v2064 = vld [vmem:[#allocation3 + $0x138] sm:$0xff]
        %2097 = vrot.lane.b32.xlu0 %v2033, 127
        %v2098 = vpop.permute.xlu0 %2097
        %2099 = vrot.lane.b32.xlu0 %v2034, 127
        %v2100 = vpop.permute.xlu0 %2099
        %2101 = vrot.lane.b32.xlu0 %v2035, 127
        %v2102 = vpop.permute.xlu0 %2101
        %2103 = vrot.lane.b32.xlu0 %v2036, 127
        %v2104 = vpop.permute.xlu0 %2103
        %2105 = vrot.lane.b32.xlu0 %v2037, 127
        %v2106 = vpop.permute.xlu0 %2105
        %2107 = vrot.lane.b32.xlu0 %v2038, 127
        %v2108 = vpop.permute.xlu0 %2107
        %2109 = vrot.lane.b32.xlu0 %v2039, 127
        %v2110 = vpop.permute.xlu0 %2109
        %2111 = vrot.lane.b32.xlu0 %v2040, 127
        %v2112 = vpop.permute.xlu0 %2111
        %2113 = vrot.lane.b32.xlu0 %v2041, 127
        %v2114 = vpop.permute.xlu0 %2113
        %2115 = vrot.lane.b32.xlu0 %v2042, 127
        %v2116 = vpop.permute.xlu0 %2115
        %2117 = vrot.lane.b32.xlu0 %v2043, 127
        %v2118 = vpop.permute.xlu0 %2117
        %2119 = vrot.lane.b32.xlu0 %v2044, 127
        %v2120 = vpop.permute.xlu0 %2119
        %2121 = vrot.lane.b32.xlu0 %v2045, 127
        %v2122 = vpop.permute.xlu0 %2121
        %2123 = vrot.lane.b32.xlu0 %v2046, 127
        %v2124 = vpop.permute.xlu0 %2123
        %2125 = vrot.lane.b32.xlu0 %v2047, 127
        %v2126 = vpop.permute.xlu0 %2125
        %2127 = vrot.lane.b32.xlu0 %v2048, 127
        %v2128 = vpop.permute.xlu0 %2127
        %2129 = vrot.lane.b32.xlu0 %v2049, 127
        %v2130 = vpop.permute.xlu0 %2129
        %2131 = vrot.lane.b32.xlu0 %v2050, 127
        %v2132 = vpop.permute.xlu0 %2131
        %2133 = vrot.lane.b32.xlu0 %v2051, 127
        %v2134 = vpop.permute.xlu0 %2133
        %2135 = vrot.lane.b32.xlu0 %v2052, 127
        %v2136 = vpop.permute.xlu0 %2135
        %2137 = vrot.lane.b32.xlu0 %v2053, 127
        %v2138 = vpop.permute.xlu0 %2137
        %2139 = vrot.lane.b32.xlu0 %v2054, 127
        %v2140 = vpop.permute.xlu0 %2139
        %2141 = vrot.lane.b32.xlu0 %v2055, 127
        %v2142 = vpop.permute.xlu0 %2141
        %2143 = vrot.lane.b32.xlu0 %v2056, 127
        %v2144 = vpop.permute.xlu0 %2143
        %2145 = vrot.lane.b32.xlu0 %v2057, 127
        %v2146 = vpop.permute.xlu0 %2145
        %2147 = vrot.lane.b32.xlu0 %v2058, 127
        %v2148 = vpop.permute.xlu0 %2147
        %2149 = vrot.lane.b32.xlu0 %v2059, 127
        %v2150 = vpop.permute.xlu0 %2149
        %2151 = vrot.lane.b32.xlu0 %v2060, 127
        %v2152 = vpop.permute.xlu0 %2151
        %2153 = vrot.lane.b32.xlu0 %v2061, 127
        %v2154 = vpop.permute.xlu0 %2153
        %2155 = vrot.lane.b32.xlu0 %v2062, 127
        %v2156 = vpop.permute.xlu0 %2155
        %2157 = vrot.lane.b32.xlu0 %v2063, 127
        %v2158 = vpop.permute.xlu0 %2157
        %2159 = vrot.lane.b32.xlu0 %v2064, 127
        %v2160 = vpop.permute.xlu0 %2159
        %v2161 = vsel %vm1207, %v2098, %v2100
        %v2162 = vsel %vm1207, %v2100, %v2102
        %v2163 = vsel %vm1207, %v2102, %v2104
        %v2164 = vsel %vm1207, %v2106, %v2108
        %v2165 = vsel %vm1207, %v2108, %v2110
        %v2166 = vsel %vm1207, %v2110, %v2112
        %v2167 = vsel %vm1207, %v2114, %v2116
        %v2168 = vsel %vm1207, %v2116, %v2118
        %v2169 = vsel %vm1207, %v2118, %v2120
        %v2170 = vsel %vm1207, %v2122, %v2124
        %v2171 = vsel %vm1207, %v2124, %v2126
        %v2172 = vsel %vm1207, %v2126, %v2128
        %v2173 = vsel %vm1207, %v2130, %v2132
        %v2174 = vsel %vm1207, %v2132, %v2134
        %v2175 = vsel %vm1207, %v2134, %v2136
        %v2176 = vsel %vm1207, %v2138, %v2140
        %v2177 = vsel %vm1207, %v2140, %v2142
        %v2178 = vsel %vm1207, %v2142, %v2144
        %v2179 = vsel %vm1207, %v2146, %v2148
        %v2180 = vsel %vm1207, %v2148, %v2150
        %v2181 = vsel %vm1207, %v2150, %v2152
        %v2182 = vsel %vm1207, %v2154, %v2156
        %v2183 = vsel %vm1207, %v2156, %v2158
        %v2184 = vsel %vm1207, %v2158, %v2160
        %2209 = vst [vmem:[#allocation4 + $0x180] sm:$0xff] %v2161
        %2210 = vst [vmem:[#allocation4 + $0x188] sm:$0xff] %v2162
        %2211 = vst [vmem:[#allocation4 + $0x190] sm:$0xff] %v2163
        %2212 = vst [vmem:[#allocation4 + $0x198] sm:$0xff] %v2164
        %2213 = vst [vmem:[#allocation4 + $0x1a0] sm:$0xff] %v2165
        %2214 = vst [vmem:[#allocation4 + $0x1a8] sm:$0xff] %v2166
        %2215 = vst [vmem:[#allocation4 + $0x1b0] sm:$0xff] %v2167
        %2216 = vst [vmem:[#allocation4 + $0x1b8] sm:$0xff] %v2168
        %2217 = vst [vmem:[#allocation4 + $0x1c0] sm:$0xff] %v2169
        %2218 = vst [vmem:[#allocation4 + $0x1c8] sm:$0xff] %v2170
        %2219 = vst [vmem:[#allocation4 + $0x1d0] sm:$0xff] %v2171
        %2220 = vst [vmem:[#allocation4 + $0x1d8] sm:$0xff] %v2172
        %2221 = vst [vmem:[#allocation4 + $0x1e0] sm:$0xff] %v2173
        %2222 = vst [vmem:[#allocation4 + $0x1e8] sm:$0xff] %v2174
        %2223 = vst [vmem:[#allocation4 + $0x1f0] sm:$0xff] %v2175
        %2224 = vst [vmem:[#allocation4 + $0x1f8] sm:$0xff] %v2176
        %2225 = vst [vmem:[#allocation4 + $0x200] sm:$0xff] %v2177
        %2226 = vst [vmem:[#allocation4 + $0x208] sm:$0xff] %v2178
        %2227 = vst [vmem:[#allocation4 + $0x210] sm:$0xff] %v2179
        %2228 = vst [vmem:[#allocation4 + $0x218] sm:$0xff] %v2180
        %2229 = vst [vmem:[#allocation4 + $0x220] sm:$0xff] %v2181
        %2230 = vst [vmem:[#allocation4 + $0x228] sm:$0xff] %v2182
        %2231 = vst [vmem:[#allocation4 + $0x230] sm:$0xff] %v2183
        %2232 = vst [vmem:[#allocation4 + $0x238] sm:$0xff] %v2184
        %v2233 = vld [vmem:[#allocation11] sm:$0xff]
        %v2234 = vld [vmem:[#allocation11 + $0x8] sm:$0xff]
        %v2235 = vld [vmem:[#allocation11 + $0x10] sm:$0xff]
        %v2236 = vld [vmem:[#allocation11 + $0x18] sm:$0xff]
        %v2237 = vld [vmem:[#allocation11 + $0x20] sm:$0xff]
        %v2238 = vld [vmem:[#allocation11 + $0x28] sm:$0xff]
        %v2239 = vld [vmem:[#allocation11 + $0x30] sm:$0xff]
        %v2240 = vld [vmem:[#allocation11 + $0x38] sm:$0xff]
        %v2241 = vld [vmem:[#allocation11 + $0x40] sm:$0xff]
        %v2242 = vld [vmem:[#allocation11 + $0x48] sm:$0xff]
        %v2243 = vld [vmem:[#allocation11 + $0x50] sm:$0xff]
        %v2244 = vld [vmem:[#allocation11 + $0x58] sm:$0xff]
        %v2245 = vld [vmem:[#allocation11 + $0x60] sm:$0xff]
        %v2246 = vld [vmem:[#allocation11 + $0x68] sm:$0xff]
        %v2247 = vld [vmem:[#allocation11 + $0x70] sm:$0xff]
        %v2248 = vld [vmem:[#allocation11 + $0x78] sm:$0xff]
        %v2249 = vld [vmem:[#allocation4] sm:$0xff]
        %v2250 = vld [vmem:[#allocation4 + $0x8] sm:$0xff]
        %v2251 = vld [vmem:[#allocation4 + $0x10] sm:$0xff]
        %v2252 = vld [vmem:[#allocation4 + $0x18] sm:$0xff]
        %v2253 = vld [vmem:[#allocation4 + $0x20] sm:$0xff]
        %v2254 = vld [vmem:[#allocation4 + $0x28] sm:$0xff]
        %v2255 = vld [vmem:[#allocation4 + $0x30] sm:$0xff]
        %v2256 = vld [vmem:[#allocation4 + $0x38] sm:$0xff]
        %v2257 = vld [vmem:[#allocation4 + $0x40] sm:$0xff]
        %v2258 = vld [vmem:[#allocation4 + $0x48] sm:$0xff]
        %v2259 = vld [vmem:[#allocation4 + $0x50] sm:$0xff]
        %v2260 = vld [vmem:[#allocation4 + $0x58] sm:$0xff]
        %v2261 = vld [vmem:[#allocation4 + $0x60] sm:$0xff]
        %v2262 = vld [vmem:[#allocation4 + $0x68] sm:$0xff]
        %v2263 = vld [vmem:[#allocation4 + $0x70] sm:$0xff]
        %v2264 = vld [vmem:[#allocation4 + $0x78] sm:$0xff]
        %v2265 = vld [vmem:[#allocation4 + $0x80] sm:$0xff]
        %v2266 = vld [vmem:[#allocation4 + $0x88] sm:$0xff]
        %v2267 = vld [vmem:[#allocation4 + $0x90] sm:$0xff]
        %v2268 = vld [vmem:[#allocation4 + $0x98] sm:$0xff]
        %v2269 = vld [vmem:[#allocation4 + $0xa0] sm:$0xff]
        %v2270 = vld [vmem:[#allocation4 + $0xa8] sm:$0xff]
        %v2271 = vld [vmem:[#allocation4 + $0xb0] sm:$0xff]
        %v2272 = vld [vmem:[#allocation4 + $0xb8] sm:$0xff]
        %v2273 = vld [vmem:[#allocation4 + $0xc0] sm:$0xff]
        %v2274 = vld [vmem:[#allocation4 + $0xc8] sm:$0xff]
        %v2275 = vld [vmem:[#allocation4 + $0xd0] sm:$0xff]
        %v2276 = vld [vmem:[#allocation4 + $0xd8] sm:$0xff]
        %v2277 = vld [vmem:[#allocation4 + $0xe0] sm:$0xff]
        %v2278 = vld [vmem:[#allocation4 + $0xe8] sm:$0xff]
        %v2279 = vld [vmem:[#allocation4 + $0xf0] sm:$0xff]
        %v2280 = vld [vmem:[#allocation4 + $0xf8] sm:$0xff]
        %v2281 = vld [vmem:[#allocation4 + $0x100] sm:$0xff]
        %v2282 = vld [vmem:[#allocation4 + $0x108] sm:$0xff]
        %v2283 = vld [vmem:[#allocation4 + $0x110] sm:$0xff]
        %v2284 = vld [vmem:[#allocation4 + $0x118] sm:$0xff]
        %v2285 = vld [vmem:[#allocation4 + $0x120] sm:$0xff]
        %v2286 = vld [vmem:[#allocation4 + $0x128] sm:$0xff]
        %v2287 = vld [vmem:[#allocation4 + $0x130] sm:$0xff]
        %v2288 = vld [vmem:[#allocation4 + $0x138] sm:$0xff]
        %v2289 = vld [vmem:[#allocation4 + $0x140] sm:$0xff]
        %v2290 = vld [vmem:[#allocation4 + $0x148] sm:$0xff]
        %v2291 = vld [vmem:[#allocation4 + $0x150] sm:$0xff]
        %v2292 = vld [vmem:[#allocation4 + $0x158] sm:$0xff]
        %v2293 = vld [vmem:[#allocation4 + $0x160] sm:$0xff]
        %v2294 = vld [vmem:[#allocation4 + $0x168] sm:$0xff]
        %v2295 = vld [vmem:[#allocation4 + $0x170] sm:$0xff]
        %v2296 = vld [vmem:[#allocation4 + $0x178] sm:$0xff]
        %v2297 = vld [vmem:[#allocation4 + $0x180] sm:$0xff]
        %v2298 = vld [vmem:[#allocation4 + $0x188] sm:$0xff]
        %v2299 = vld [vmem:[#allocation4 + $0x190] sm:$0xff]
        %v2300 = vld [vmem:[#allocation4 + $0x198] sm:$0xff]
        %v2301 = vld [vmem:[#allocation4 + $0x1a0] sm:$0xff]
        %v2302 = vld [vmem:[#allocation4 + $0x1a8] sm:$0xff]
        %v2303 = vld [vmem:[#allocation4 + $0x1b0] sm:$0xff]
        %v2304 = vld [vmem:[#allocation4 + $0x1b8] sm:$0xff]
        %v2305 = vld [vmem:[#allocation4 + $0x1c0] sm:$0xff]
        %v2306 = vld [vmem:[#allocation4 + $0x1c8] sm:$0xff]
        %v2307 = vld [vmem:[#allocation4 + $0x1d0] sm:$0xff]
        %v2308 = vld [vmem:[#allocation4 + $0x1d8] sm:$0xff]
        %v2309 = vld [vmem:[#allocation4 + $0x1e0] sm:$0xff]
        %v2310 = vld [vmem:[#allocation4 + $0x1e8] sm:$0xff]
        %v2311 = vld [vmem:[#allocation4 + $0x1f0] sm:$0xff]
        %v2312 = vld [vmem:[#allocation4 + $0x1f8] sm:$0xff]
        %v2313 = vld [vmem:[#allocation4 + $0x200] sm:$0xff]
        %v2314 = vld [vmem:[#allocation4 + $0x208] sm:$0xff]
        %v2315 = vld [vmem:[#allocation4 + $0x210] sm:$0xff]
        %v2316 = vld [vmem:[#allocation4 + $0x218] sm:$0xff]
        %v2317 = vld [vmem:[#allocation4 + $0x220] sm:$0xff]
        %v2318 = vld [vmem:[#allocation4 + $0x228] sm:$0xff]
        %v2319 = vld [vmem:[#allocation4 + $0x230] sm:$0xff]
        %v2320 = vld [vmem:[#allocation4 + $0x238] sm:$0xff]
        %v2321 = vld [vmem:[%s6] sm:$0xff]
        %v2322 = vld [vmem:[%s6 + $0x8] sm:$0xff]
        %v2323 = vld [vmem:[%s6 + $0x10] sm:$0xff]
        %v2324 = vld [vmem:[%s6 + $0x18] sm:$0xff]
        %v2325 = vld [vmem:[%s6 + $0x20] sm:$0xff]
        %v2326 = vld [vmem:[%s6 + $0x28] sm:$0xff]
        %v2327 = vld [vmem:[%s6 + $0x30] sm:$0xff]
        %v2328 = vld [vmem:[%s6 + $0x38] sm:$0xff]
        %2330 = vset.pattern.permute.xlu0 0
        %2331 = vperm.xlu0 %2330, %v2321
        %v2332 = vpop.permute.xlu0 %2331
        %2335 = vset.pattern.permute.xlu0 0
        %2336 = vperm.xlu0 %2335, %v2322
        %v2337 = vpop.permute.xlu0 %2336
        %2340 = vset.pattern.permute.xlu0 0
        %2341 = vperm.xlu0 %2340, %v2323
        %v2342 = vpop.permute.xlu0 %2341
        %2345 = vset.pattern.permute.xlu0 0
        %2346 = vperm.xlu0 %2345, %v2324
        %v2347 = vpop.permute.xlu0 %2346
        %2350 = vset.pattern.permute.xlu0 0
        %2351 = vperm.xlu0 %2350, %v2325
        %v2352 = vpop.permute.xlu0 %2351
        %2355 = vset.pattern.permute.xlu0 0
        %2356 = vperm.xlu0 %2355, %v2326
        %v2357 = vpop.permute.xlu0 %2356
        %2360 = vset.pattern.permute.xlu0 0
        %2361 = vperm.xlu0 %2360, %v2327
        %v2362 = vpop.permute.xlu0 %2361
        %2365 = vset.pattern.permute.xlu0 0
        %2366 = vperm.xlu0 %2365, %v2328
        %v2367 = vpop.permute.xlu0 %2366
        %v2370 = vsel %vm1416, %v2234, 0
        %v2373 = vsel %vm1416, %v2236, 0
        %v2376 = vsel %vm1416, %v2238, 0
        %v2379 = vsel %vm1416, %v2240, 0
        %v2382 = vsel %vm1416, %v2242, 0
        %v2385 = vsel %vm1416, %v2244, 0
        %v2388 = vsel %vm1416, %v2246, 0
        %v2391 = vsel %vm1416, %v2248, 0
        %2393 = vmatprep.subr.mxu0 %v2250
        %2394 = vmatpush1.msra.mxu0 %v2249
        %2395 = vmatprep.subr.mxu0 %v2253
        %2396 = vmatpush1.msra.mxu0 %v2252
        %2397 = vmatprep.subr.mxu0 %v2256
        %2398 = vmatpush1.msra.mxu0 %v2255
        %2399 = vmatprep.subr.mxu0 %v2259
        %2400 = vmatpush1.msra.mxu0 %v2258
        %2401 = vmatprep.subr.mxu0 %v2262
        %2402 = vmatpush1.msra.mxu0 %v2261
        %2403 = vmatprep.subr.mxu0 %v2265
        %2404 = vmatpush1.msra.mxu0 %v2264
        %2405 = vmatprep.subr.mxu0 %v2268
        %2406 = vmatpush1.msra.mxu0 %v2267
        %2407 = vmatprep.subr.mxu0 %v2271
        %2408 = vmatpush1.msra.mxu0 %v2270
        %2409 = vmatprep.subr.mxu0 %v2274
        %2410 = vmatpush1.msra.mxu0 %v2273
        %2411 = vmatprep.subr.mxu0 %v2277
        %2412 = vmatpush1.msra.mxu0 %v2276
        %2413 = vmatprep.subr.mxu0 %v2280
        %2414 = vmatpush1.msra.mxu0 %v2279
        %2415 = vmatprep.subr.mxu0 %v2283
        %2416 = vmatpush1.msra.mxu0 %v2282
        %2417 = vmatprep.subr.mxu0 %v2286
        %2418 = vmatpush1.msra.mxu0 %v2285
        %2419 = vmatprep.subr.mxu0 %v2289
        %2420 = vmatpush1.msra.mxu0 %v2288
        %2421 = vmatprep.subr.mxu0 %v2292
        %2422 = vmatpush1.msra.mxu0 %v2291
        %2423 = vmatprep.subr.mxu0 %v2295
        %2424 = vmatpush1.msra.mxu0 %v2294
        %2425 = vmatprep.subr.mxu0 %v2298
        %2426 = vmatpush1.msra.mxu0 %v2297
        %2427 = vmatprep.subr.mxu0 %v2301
        %2428 = vmatpush1.msra.mxu0 %v2300
        %2429 = vmatprep.subr.mxu0 %v2304
        %2430 = vmatpush1.msra.mxu0 %v2303
        %2431 = vmatprep.subr.mxu0 %v2307
        %2432 = vmatpush1.msra.mxu0 %v2306
        %2433 = vmatprep.subr.mxu0 %v2310
        %2434 = vmatpush1.msra.mxu0 %v2309
        %2435 = vmatprep.subr.mxu0 %v2313
        %2436 = vmatpush1.msra.mxu0 %v2312
        %2437 = vmatprep.subr.mxu0 %v2316
        %2438 = vmatpush1.msra.mxu0 %v2315
        %2439 = vmatprep.subr.mxu0 %v2319
        %2440 = vmatpush1.msra.mxu0 %v2318
        %2441 = vmatprep.subr.mxu0 0.0
        %2442 = vmatpush1.msra.mxu0 0.0
        %2443 = vmatprep.subr.mxu0 0.0
        %2444 = vmatpush1.msra.mxu0 0.0
        %2445 = vmatprep.subr.mxu0 0.0
        %2446 = vmatpush1.msra.mxu0 0.0
        %2447 = vmatprep.subr.mxu0 0.0
        %2448 = vmatpush1.msra.mxu0 0.0
        %2449 = vmatprep.subr.mxu0 0.0
        %2450 = vmatpush1.msra.mxu0 0.0
        %2451 = vmatprep.subr.mxu0 0.0
        %2452 = vmatpush1.msra.mxu0 0.0
        %2453 = vmatprep.subr.mxu0 0.0
        %2454 = vmatpush1.msra.mxu0 0.0
        %2455 = vmatprep.subr.mxu0 0.0
        %2456 = vmatpush1.msra.mxu0 0.0
        %2457 = vmatprep.mubr.f32.mxu0 %v2370
        %2458 = vmatmul.mubr.f32.gmra.mrb[0].mxu0 %v2233
        %v2459 = vpop.f32.mrb[0].mxu0
        %v2460 = vadd.f32 %v2332, %v2459
        %v2461 = vpop.f32.mrb[0].mxu0
        %v2462 = vadd.f32 %v2332, %v2461
        %2463 = vmatprep.mubr.f32.mxu0 %v2373
        %2464 = vmatmul.mubr.f32.gmra.mrb[0].mxu0 %v2235
        %v2465 = vpop.f32.mrb[0].mxu0
        %v2466 = vadd.f32 %v2337, %v2465
        %v2467 = vpop.f32.mrb[0].mxu0
        %v2468 = vadd.f32 %v2337, %v2467
        %2469 = vmatprep.mubr.f32.mxu0 %v2376
        %2470 = vmatmul.mubr.f32.gmra.mrb[0].mxu0 %v2237
        %v2471 = vpop.f32.mrb[0].mxu0
        %v2472 = vadd.f32 %v2342, %v2471
        %v2473 = vpop.f32.mrb[0].mxu0
        %v2474 = vadd.f32 %v2342, %v2473
        %2475 = vmatprep.mubr.f32.mxu0 %v2379
        %2476 = vmatmul.mubr.f32.gmra.mrb[0].mxu0 %v2239
        %v2477 = vpop.f32.mrb[0].mxu0
        %v2478 = vadd.f32 %v2347, %v2477
        %v2479 = vpop.f32.mrb[0].mxu0
        %v2480 = vadd.f32 %v2347, %v2479
        %2481 = vmatprep.mubr.f32.mxu0 %v2382
        %2482 = vmatmul.mubr.f32.gmra.mrb[0].mxu0 %v2241
        %v2483 = vpop.f32.mrb[0].mxu0
        %v2484 = vadd.f32 %v2352, %v2483
        %v2485 = vpop.f32.mrb[0].mxu0
        %v2486 = vadd.f32 %v2352, %v2485
        %2487 = vmatprep.mubr.f32.mxu0 %v2385
        %2488 = vmatmul.mubr.f32.gmra.mrb[0].mxu0 %v2243
        %v2489 = vpop.f32.mrb[0].mxu0
        %v2490 = vadd.f32 %v2357, %v2489
        %v2491 = vpop.f32.mrb[0].mxu0
        %v2492 = vadd.f32 %v2357, %v2491
        %2493 = vmatprep.mubr.f32.mxu0 %v2388
        %2494 = vmatmul.mubr.f32.gmra.mrb[0].mxu0 %v2245
        %v2495 = vpop.f32.mrb[0].mxu0
        %v2496 = vadd.f32 %v2362, %v2495
        %v2497 = vpop.f32.mrb[0].mxu0
        %v2498 = vadd.f32 %v2362, %v2497
        %2499 = vmatprep.mubr.f32.mxu0 %v2391
        %2500 = vmatmul.mubr.f32.gmra.mrb[0].mxu0 %v2247
        %v2501 = vpop.f32.mrb[0].mxu0
        %v2502 = vadd.f32 %v2367, %v2501
        %v2503 = vpop.f32.mrb[0].mxu0
        %v2504 = vadd.f32 %v2367, %v2503
        %2505 = vdwg.mxu0
        %2506 = vmatprep.subr.mxu0 0.0
        %2507 = vmatpush1.msra.mxu0 %v2251
        %2508 = vmatprep.subr.mxu0 0.0
        %2509 = vmatpush1.msra.mxu0 %v2254
        %2510 = vmatprep.subr.mxu0 0.0
        %2511 = vmatpush1.msra.mxu0 %v2257
        %2512 = vmatprep.subr.mxu0 0.0
        %2513 = vmatpush1.msra.mxu0 %v2260
        %2514 = vmatprep.subr.mxu0 0.0
        %2515 = vmatpush1.msra.mxu0 %v2263
        %2516 = vmatprep.subr.mxu0 0.0
        %2517 = vmatpush1.msra.mxu0 %v2266
        %2518 = vmatprep.subr.mxu0 0.0
        %2519 = vmatpush1.msra.mxu0 %v2269
        %2520 = vmatprep.subr.mxu0 0.0
        %2521 = vmatpush1.msra.mxu0 %v2272
        %2522 = vmatprep.subr.mxu0 0.0
        %2523 = vmatpush1.msra.mxu0 %v2275
        %2524 = vmatprep.subr.mxu0 0.0
        %2525 = vmatpush1.msra.mxu0 %v2278
        %2526 = vmatprep.subr.mxu0 0.0
        %2527 = vmatpush1.msra.mxu0 %v2281
        %2528 = vmatprep.subr.mxu0 0.0
        %2529 = vmatpush1.msra.mxu0 %v2284
        %2530 = vmatprep.subr.mxu0 0.0
        %2531 = vmatpush1.msra.mxu0 %v2287
        %2532 = vmatprep.subr.mxu0 0.0
        %2533 = vmatpush1.msra.mxu0 %v2290
        %2534 = vmatprep.subr.mxu0 0.0
        %2535 = vmatpush1.msra.mxu0 %v2293
        %2536 = vmatprep.subr.mxu0 0.0
        %2537 = vmatpush1.msra.mxu0 %v2296
        %2538 = vmatprep.subr.mxu0 0.0
        %2539 = vmatpush1.msra.mxu0 %v2299
        %2540 = vmatprep.subr.mxu0 0.0
        %2541 = vmatpush1.msra.mxu0 %v2302
        %2542 = vmatprep.subr.mxu0 0.0
        %2543 = vmatpush1.msra.mxu0 %v2305
        %2544 = vmatprep.subr.mxu0 0.0
        %2545 = vmatpush1.msra.mxu0 %v2308
        %2546 = vmatprep.subr.mxu0 0.0
        %2547 = vmatpush1.msra.mxu0 %v2311
        %2548 = vmatprep.subr.mxu0 0.0
        %2549 = vmatpush1.msra.mxu0 %v2314
        %2550 = vmatprep.subr.mxu0 0.0
        %2551 = vmatpush1.msra.mxu0 %v2317
        %2552 = vmatprep.subr.mxu0 0.0
        %2553 = vmatpush1.msra.mxu0 %v2320
        %2554 = vmatprep.subr.mxu0 0.0
        %2555 = vmatpush1.msra.mxu0 0.0
        %2556 = vmatprep.subr.mxu0 0.0
        %2557 = vmatpush1.msra.mxu0 0.0
        %2558 = vmatprep.subr.mxu0 0.0
        %2559 = vmatpush1.msra.mxu0 0.0
        %2560 = vmatprep.subr.mxu0 0.0
        %2561 = vmatpush1.msra.mxu0 0.0
        %2562 = vmatprep.subr.mxu0 0.0
        %2563 = vmatpush1.msra.mxu0 0.0
        %2564 = vmatprep.subr.mxu0 0.0
        %2565 = vmatpush1.msra.mxu0 0.0
        %2566 = vmatprep.subr.mxu0 0.0
        %2567 = vmatpush1.msra.mxu0 0.0
        %2568 = vmatprep.subr.mxu0 0.0
        %2569 = vmatpush1.msra.mxu0 0.0
        %2570 = vmatprep.mubr.f32.mxu0 %v2370
        %2571 = vmatmul.mubr.f32.gmra.mrb[0].mxu0 %v2233
        %v2572 = vpop.f32.mrb[0].mxu0
        %v2573 = vadd.f32 %v2332, %v2572
        %v2574 = vpop.f32.mrb[0].mxu0
        %2575 = vmatprep.mubr.f32.mxu0 %v2373
        %2576 = vmatmul.mubr.f32.gmra.mrb[0].mxu0 %v2235
        %v2577 = vpop.f32.mrb[0].mxu0
        %v2578 = vadd.f32 %v2337, %v2577
        %v2579 = vpop.f32.mrb[0].mxu0
        %2580 = vmatprep.mubr.f32.mxu0 %v2376
        %2581 = vmatmul.mubr.f32.gmra.mrb[0].mxu0 %v2237
        %v2582 = vpop.f32.mrb[0].mxu0
        %v2583 = vadd.f32 %v2342, %v2582
        %v2584 = vpop.f32.mrb[0].mxu0
        %2585 = vmatprep.mubr.f32.mxu0 %v2379
        %2586 = vmatmul.mubr.f32.gmra.mrb[0].mxu0 %v2239
        %v2587 = vpop.f32.mrb[0].mxu0
        %v2588 = vadd.f32 %v2347, %v2587
        %v2589 = vpop.f32.mrb[0].mxu0
        %2590 = vmatprep.mubr.f32.mxu0 %v2382
        %2591 = vmatmul.mubr.f32.gmra.mrb[0].mxu0 %v2241
        %v2592 = vpop.f32.mrb[0].mxu0
        %v2593 = vadd.f32 %v2352, %v2592
        %v2594 = vpop.f32.mrb[0].mxu0
        %2595 = vmatprep.mubr.f32.mxu0 %v2385
        %2596 = vmatmul.mubr.f32.gmra.mrb[0].mxu0 %v2243
        %v2597 = vpop.f32.mrb[0].mxu0
        %v2598 = vadd.f32 %v2357, %v2597
        %v2599 = vpop.f32.mrb[0].mxu0
        %2600 = vmatprep.mubr.f32.mxu0 %v2388
        %2601 = vmatmul.mubr.f32.gmra.mrb[0].mxu0 %v2245
        %v2602 = vpop.f32.mrb[0].mxu0
        %v2603 = vadd.f32 %v2362, %v2602
        %v2604 = vpop.f32.mrb[0].mxu0
        %2605 = vmatprep.mubr.f32.mxu0 %v2391
        %2606 = vmatmul.mubr.f32.gmra.mrb[0].mxu0 %v2247
        %v2607 = vpop.f32.mrb[0].mxu0
        %v2608 = vadd.f32 %v2367, %v2607
        %v2609 = vpop.f32.mrb[0].mxu0
        %2610 = vdwg.mxu0
        %v2611 = vld [vmem:[#allocation2 + $0x8] sm:$0xff]
        %v2612 = vld [vmem:[#allocation2 + $0x10] sm:$0xff]
        %v2613 = vld [vmem:[#allocation2 + $0x18] sm:$0xff]
        %v2614 = vld [vmem:[#allocation2 + $0x30] sm:$0xff]
        %v2615 = vld [vmem:[#allocation2 + $0x38] sm:$0xff]
        %v2616 = vld [vmem:[#allocation2 + $0x40] sm:$0xff]
        %v2617 = vld [vmem:[#allocation2 + $0x58] sm:$0xff]
        %v2618 = vld [vmem:[#allocation2 + $0x60] sm:$0xff]
        %v2619 = vld [vmem:[#allocation2 + $0x68] sm:$0xff]
        %v2620 = vld [vmem:[#allocation2 + $0x80] sm:$0xff]
        %v2621 = vld [vmem:[#allocation2 + $0x88] sm:$0xff]
        %v2622 = vld [vmem:[#allocation2 + $0x90] sm:$0xff]
        %v2623 = vld [vmem:[#allocation2 + $0xa8] sm:$0xff]
        %v2624 = vld [vmem:[#allocation2 + $0xb0] sm:$0xff]
        %v2625 = vld [vmem:[#allocation2 + $0xb8] sm:$0xff]
        %v2626 = vld [vmem:[#allocation2 + $0xd0] sm:$0xff]
        %v2627 = vld [vmem:[#allocation2 + $0xd8] sm:$0xff]
        %v2628 = vld [vmem:[#allocation2 + $0xe0] sm:$0xff]
        %v2629 = vld [vmem:[#allocation2 + $0xf8] sm:$0xff]
        %v2630 = vld [vmem:[#allocation2 + $0x100] sm:$0xff]
        %v2631 = vld [vmem:[#allocation2 + $0x108] sm:$0xff]
        %v2632 = vld [vmem:[#allocation2 + $0x120] sm:$0xff]
        %v2633 = vld [vmem:[#allocation2 + $0x128] sm:$0xff]
        %v2634 = vld [vmem:[#allocation2 + $0x130] sm:$0xff]
        %v2635 = vsel %vm1734, %v2460, 0.0
        %v2636 = vsel %vm1735, %v2462, 0.0
        %v2637 = vsel %vm1736, %v2573, 0.0
        %v2638 = vsel %vm1734, %v2466, 0.0
        %v2639 = vsel %vm1735, %v2468, 0.0
        %v2640 = vsel %vm1736, %v2578, 0.0
        %v2641 = vsel %vm1734, %v2472, 0.0
        %v2642 = vsel %vm1735, %v2474, 0.0
        %v2643 = vsel %vm1736, %v2583, 0.0
        %v2644 = vsel %vm1734, %v2478, 0.0
        %v2645 = vsel %vm1735, %v2480, 0.0
        %v2646 = vsel %vm1736, %v2588, 0.0
        %v2647 = vsel %vm1734, %v2484, 0.0
        %v2648 = vsel %vm1735, %v2486, 0.0
        %v2649 = vsel %vm1736, %v2593, 0.0
        %v2650 = vsel %vm1734, %v2490, 0.0
        %v2651 = vsel %vm1735, %v2492, 0.0
        %v2652 = vsel %vm1736, %v2598, 0.0
        %v2653 = vsel %vm1734, %v2496, 0.0
        %v2654 = vsel %vm1735, %v2498, 0.0
        %v2655 = vsel %vm1736, %v2603, 0.0
        %v2656 = vsel %vm1734, %v2502, 0.0
        %v2657 = vsel %vm1735, %v2504, 0.0
        %v2658 = vsel %vm1736, %v2608, 0.0
        %v2659 = vadd.f32 %v2611, %v2635
        %v2660 = vadd.f32 %v2612, %v2636
        %v2661 = vadd.f32 %v2613, %v2637
        %v2662 = vadd.f32 %v2614, %v2638
        %v2663 = vadd.f32 %v2615, %v2639
        %v2664 = vadd.f32 %v2616, %v2640
        %v2665 = vadd.f32 %v2617, %v2641
        %v2666 = vadd.f32 %v2618, %v2642
        %v2667 = vadd.f32 %v2619, %v2643
        %v2668 = vadd.f32 %v2620, %v2644
        %v2669 = vadd.f32 %v2621, %v2645
        %v2670 = vadd.f32 %v2622, %v2646
        %v2671 = vadd.f32 %v2623, %v2647
        %v2672 = vadd.f32 %v2624, %v2648
        %v2673 = vadd.f32 %v2625, %v2649
        %v2674 = vadd.f32 %v2626, %v2650
        %v2675 = vadd.f32 %v2627, %v2651
        %v2676 = vadd.f32 %v2628, %v2652
        %v2677 = vadd.f32 %v2629, %v2653
        %v2678 = vadd.f32 %v2630, %v2654
        %v2679 = vadd.f32 %v2631, %v2655
        %v2680 = vadd.f32 %v2632, %v2656
        %v2681 = vadd.f32 %v2633, %v2657
        %v2682 = vadd.f32 %v2634, %v2658
        %2683 = vst [vmem:[#allocation2 + $0x8] sm:$0xff] %v2659
        %2684 = vst [vmem:[#allocation2 + $0x10] sm:$0xff] %v2660
        %2685 = vst [vmem:[#allocation2 + $0x18] sm:$0xff] %v2661
        %2686 = vst [vmem:[#allocation2 + $0x30] sm:$0xff] %v2662
        %2687 = vst [vmem:[#allocation2 + $0x38] sm:$0xff] %v2663
        %2688 = vst [vmem:[#allocation2 + $0x40] sm:$0xff] %v2664
        %2689 = vst [vmem:[#allocation2 + $0x58] sm:$0xff] %v2665
        %2690 = vst [vmem:[#allocation2 + $0x60] sm:$0xff] %v2666
        %2691 = vst [vmem:[#allocation2 + $0x68] sm:$0xff] %v2667
        %2692 = vst [vmem:[#allocation2 + $0x80] sm:$0xff] %v2668
        %2693 = vst [vmem:[#allocation2 + $0x88] sm:$0xff] %v2669
        %2694 = vst [vmem:[#allocation2 + $0x90] sm:$0xff] %v2670
        %2695 = vst [vmem:[#allocation2 + $0xa8] sm:$0xff] %v2671
        %2696 = vst [vmem:[#allocation2 + $0xb0] sm:$0xff] %v2672
        %2697 = vst [vmem:[#allocation2 + $0xb8] sm:$0xff] %v2673
        %2698 = vst [vmem:[#allocation2 + $0xd0] sm:$0xff] %v2674
        %2699 = vst [vmem:[#allocation2 + $0xd8] sm:$0xff] %v2675
        %2700 = vst [vmem:[#allocation2 + $0xe0] sm:$0xff] %v2676
        %2701 = vst [vmem:[#allocation2 + $0xf8] sm:$0xff] %v2677
        %2702 = vst [vmem:[#allocation2 + $0x100] sm:$0xff] %v2678
        %2703 = vst [vmem:[#allocation2 + $0x108] sm:$0xff] %v2679
        %2704 = vst [vmem:[#allocation2 + $0x120] sm:$0xff] %v2680
        %2705 = vst [vmem:[#allocation2 + $0x128] sm:$0xff] %v2681
        %2706 = vst [vmem:[#allocation2 + $0x130] sm:$0xff] %v2682
        %v2707 = vld [vmem:[#allocation2] sm:$0xff]
        %v2708 = vld [vmem:[#allocation2 + $0x8] sm:$0xff]
        %v2709 = vld [vmem:[#allocation2 + $0x10] sm:$0xff]
        %v2710 = vld [vmem:[#allocation2 + $0x18] sm:$0xff]
        %v2711 = vld [vmem:[#allocation2 + $0x28] sm:$0xff]
        %v2712 = vld [vmem:[#allocation2 + $0x30] sm:$0xff]
        %v2713 = vld [vmem:[#allocation2 + $0x38] sm:$0xff]
        %v2714 = vld [vmem:[#allocation2 + $0x40] sm:$0xff]
        %v2715 = vld [vmem:[#allocation2 + $0x50] sm:$0xff]
        %v2716 = vld [vmem:[#allocation2 + $0x58] sm:$0xff]
        %v2717 = vld [vmem:[#allocation2 + $0x60] sm:$0xff]
        %v2718 = vld [vmem:[#allocation2 + $0x68] sm:$0xff]
        %v2719 = vld [vmem:[#allocation2 + $0x78] sm:$0xff]
        %v2720 = vld [vmem:[#allocation2 + $0x80] sm:$0xff]
        %v2721 = vld [vmem:[#allocation2 + $0x88] sm:$0xff]
        %v2722 = vld [vmem:[#allocation2 + $0x90] sm:$0xff]
        %v2723 = vld [vmem:[#allocation2 + $0xa0] sm:$0xff]
        %v2724 = vld [vmem:[#allocation2 + $0xa8] sm:$0xff]
        %v2725 = vld [vmem:[#allocation2 + $0xb0] sm:$0xff]
        %v2726 = vld [vmem:[#allocation2 + $0xb8] sm:$0xff]
        %v2727 = vld [vmem:[#allocation2 + $0xc8] sm:$0xff]
        %v2728 = vld [vmem:[#allocation2 + $0xd0] sm:$0xff]
        %v2729 = vld [vmem:[#allocation2 + $0xd8] sm:$0xff]
        %v2730 = vld [vmem:[#allocation2 + $0xe0] sm:$0xff]
        %v2731 = vld [vmem:[#allocation2 + $0xf0] sm:$0xff]
        %v2732 = vld [vmem:[#allocation2 + $0xf8] sm:$0xff]
        %v2733 = vld [vmem:[#allocation2 + $0x100] sm:$0xff]
        %v2734 = vld [vmem:[#allocation2 + $0x108] sm:$0xff]
        %v2735 = vld [vmem:[#allocation2 + $0x118] sm:$0xff]
        %v2736 = vld [vmem:[#allocation2 + $0x120] sm:$0xff]
        %v2737 = vld [vmem:[#allocation2 + $0x128] sm:$0xff]
        %v2738 = vld [vmem:[#allocation2 + $0x130] sm:$0xff]
        %vm2739 = vcmp.gt.f32.partialorder %v2707, 0.0
        %vm2740 = vcmp.gt.f32.partialorder %v2708, 0.0
        %vm2741 = vcmp.gt.f32.partialorder %v2709, 0.0
        %vm2742 = vcmp.gt.f32.partialorder %v2710, 0.0
        %vm2743 = vcmp.gt.f32.partialorder %v2711, 0.0
        %vm2744 = vcmp.gt.f32.partialorder %v2712, 0.0
        %vm2745 = vcmp.gt.f32.partialorder %v2713, 0.0
        %vm2746 = vcmp.gt.f32.partialorder %v2714, 0.0
        %vm2747 = vcmp.gt.f32.partialorder %v2715, 0.0
        %vm2748 = vcmp.gt.f32.partialorder %v2716, 0.0
        %vm2749 = vcmp.gt.f32.partialorder %v2717, 0.0
        %vm2750 = vcmp.gt.f32.partialorder %v2718, 0.0
        %vm2751 = vcmp.gt.f32.partialorder %v2719, 0.0
        %vm2752 = vcmp.gt.f32.partialorder %v2720, 0.0
        %vm2753 = vcmp.gt.f32.partialorder %v2721, 0.0
        %vm2754 = vcmp.gt.f32.partialorder %v2722, 0.0
        %vm2755 = vcmp.gt.f32.partialorder %v2723, 0.0
        %vm2756 = vcmp.gt.f32.partialorder %v2724, 0.0
        %vm2757 = vcmp.gt.f32.partialorder %v2725, 0.0
        %vm2758 = vcmp.gt.f32.partialorder %v2726, 0.0
        %vm2759 = vcmp.gt.f32.partialorder %v2727, 0.0
        %vm2760 = vcmp.gt.f32.partialorder %v2728, 0.0
        %vm2761 = vcmp.gt.f32.partialorder %v2729, 0.0
        %vm2762 = vcmp.gt.f32.partialorder %v2730, 0.0
        %vm2763 = vcmp.gt.f32.partialorder %v2731, 0.0
        %vm2764 = vcmp.gt.f32.partialorder %v2732, 0.0
        %vm2765 = vcmp.gt.f32.partialorder %v2733, 0.0
        %vm2766 = vcmp.gt.f32.partialorder %v2734, 0.0
        %vm2767 = vcmp.gt.f32.partialorder %v2735, 0.0
        %vm2768 = vcmp.gt.f32.partialorder %v2736, 0.0
        %vm2769 = vcmp.gt.f32.partialorder %v2737, 0.0
        %vm2770 = vcmp.gt.f32.partialorder %v2738, 0.0
        %v2771 = vmul.f32 %v2707, 0.01
        %v2772 = vmul.f32 %v2708, 0.01
        %v2773 = vmul.f32 %v2709, 0.01
        %v2774 = vmul.f32 %v2710, 0.01
        %v2775 = vmul.f32 %v2711, 0.01
        %v2776 = vmul.f32 %v2712, 0.01
        %v2777 = vmul.f32 %v2713, 0.01
        %v2778 = vmul.f32 %v2714, 0.01
        %v2779 = vmul.f32 %v2715, 0.01
        %v2780 = vmul.f32 %v2716, 0.01
        %v2781 = vmul.f32 %v2717, 0.01
        %v2782 = vmul.f32 %v2718, 0.01
        %v2783 = vmul.f32 %v2719, 0.01
        %v2784 = vmul.f32 %v2720, 0.01
        %v2785 = vmul.f32 %v2721, 0.01
        %v2786 = vmul.f32 %v2722, 0.01
        %v2787 = vmul.f32 %v2723, 0.01
        %v2788 = vmul.f32 %v2724, 0.01
        %v2789 = vmul.f32 %v2725, 0.01
        %v2790 = vmul.f32 %v2726, 0.01
        %v2791 = vmul.f32 %v2727, 0.01
        %v2792 = vmul.f32 %v2728, 0.01
        %v2793 = vmul.f32 %v2729, 0.01
        %v2794 = vmul.f32 %v2730, 0.01
        %v2795 = vmul.f32 %v2731, 0.01
        %v2796 = vmul.f32 %v2732, 0.01
        %v2797 = vmul.f32 %v2733, 0.01
        %v2798 = vmul.f32 %v2734, 0.01
        %v2799 = vmul.f32 %v2735, 0.01
        %v2800 = vmul.f32 %v2736, 0.01
        %v2801 = vmul.f32 %v2737, 0.01
        %v2802 = vmul.f32 %v2738, 0.01
        %v2803 = vsel %vm2739, %v2707, %v2771
        %v2804 = vsel %vm2740, %v2708, %v2772
        %v2805 = vsel %vm2741, %v2709, %v2773
        %v2806 = vsel %vm2742, %v2710, %v2774
        %v2807 = vsel %vm2743, %v2711, %v2775
        %v2808 = vsel %vm2744, %v2712, %v2776
        %v2809 = vsel %vm2745, %v2713, %v2777
        %v2810 = vsel %vm2746, %v2714, %v2778
        %v2811 = vsel %vm2747, %v2715, %v2779
        %v2812 = vsel %vm2748, %v2716, %v2780
        %v2813 = vsel %vm2749, %v2717, %v2781
        %v2814 = vsel %vm2750, %v2718, %v2782
        %v2815 = vsel %vm2751, %v2719, %v2783
        %v2816 = vsel %vm2752, %v2720, %v2784
        %v2817 = vsel %vm2753, %v2721, %v2785
        %v2818 = vsel %vm2754, %v2722, %v2786
        %v2819 = vsel %vm2755, %v2723, %v2787
        %v2820 = vsel %vm2756, %v2724, %v2788
        %v2821 = vsel %vm2757, %v2725, %v2789
        %v2822 = vsel %vm2758, %v2726, %v2790
        %v2823 = vsel %vm2759, %v2727, %v2791
        %v2824 = vsel %vm2760, %v2728, %v2792
        %v2825 = vsel %vm2761, %v2729, %v2793
        %v2826 = vsel %vm2762, %v2730, %v2794
        %v2827 = vsel %vm2763, %v2731, %v2795
        %v2828 = vsel %vm2764, %v2732, %v2796
        %v2829 = vsel %vm2765, %v2733, %v2797
        %v2830 = vsel %vm2766, %v2734, %v2798
        %v2831 = vsel %vm2767, %v2735, %v2799
        %v2832 = vsel %vm2768, %v2736, %v2800
        %v2833 = vsel %vm2769, %v2737, %v2801
        %v2834 = vsel %vm2770, %v2738, %v2802
        %2867 = vrot.lane.b32.xlu0 %v2803, 3
        %v2868 = vpop.permute.xlu0 %2867
        %2869 = vrot.lane.b32.xlu0 %v2804, 3
        %v2870 = vpop.permute.xlu0 %2869
        %2871 = vrot.lane.b32.xlu0 %v2805, 3
        %v2872 = vpop.permute.xlu0 %2871
        %2873 = vrot.lane.b32.xlu0 %v2806, 3
        %v2874 = vpop.permute.xlu0 %2873
        %2875 = vrot.lane.b32.xlu0 %v2807, 3
        %v2876 = vpop.permute.xlu0 %2875
        %2877 = vrot.lane.b32.xlu0 %v2808, 3
        %v2878 = vpop.permute.xlu0 %2877
        %2879 = vrot.lane.b32.xlu0 %v2809, 3
        %v2880 = vpop.permute.xlu0 %2879
        %2881 = vrot.lane.b32.xlu0 %v2810, 3
        %v2882 = vpop.permute.xlu0 %2881
        %2883 = vrot.lane.b32.xlu0 %v2811, 3
        %v2884 = vpop.permute.xlu0 %2883
        %2885 = vrot.lane.b32.xlu0 %v2812, 3
        %v2886 = vpop.permute.xlu0 %2885
        %2887 = vrot.lane.b32.xlu0 %v2813, 3
        %v2888 = vpop.permute.xlu0 %2887
        %2889 = vrot.lane.b32.xlu0 %v2814, 3
        %v2890 = vpop.permute.xlu0 %2889
        %2891 = vrot.lane.b32.xlu0 %v2815, 3
        %v2892 = vpop.permute.xlu0 %2891
        %2893 = vrot.lane.b32.xlu0 %v2816, 3
        %v2894 = vpop.permute.xlu0 %2893
        %2895 = vrot.lane.b32.xlu0 %v2817, 3
        %v2896 = vpop.permute.xlu0 %2895
        %2897 = vrot.lane.b32.xlu0 %v2818, 3
        %v2898 = vpop.permute.xlu0 %2897
        %2899 = vrot.lane.b32.xlu0 %v2819, 3
        %v2900 = vpop.permute.xlu0 %2899
        %2901 = vrot.lane.b32.xlu0 %v2820, 3
        %v2902 = vpop.permute.xlu0 %2901
        %2903 = vrot.lane.b32.xlu0 %v2821, 3
        %v2904 = vpop.permute.xlu0 %2903
        %2905 = vrot.lane.b32.xlu0 %v2822, 3
        %v2906 = vpop.permute.xlu0 %2905
        %2907 = vrot.lane.b32.xlu0 %v2823, 3
        %v2908 = vpop.permute.xlu0 %2907
        %2909 = vrot.lane.b32.xlu0 %v2824, 3
        %v2910 = vpop.permute.xlu0 %2909
        %2911 = vrot.lane.b32.xlu0 %v2825, 3
        %v2912 = vpop.permute.xlu0 %2911
        %2913 = vrot.lane.b32.xlu0 %v2826, 3
        %v2914 = vpop.permute.xlu0 %2913
        %2915 = vrot.lane.b32.xlu0 %v2827, 3
        %v2916 = vpop.permute.xlu0 %2915
        %2917 = vrot.lane.b32.xlu0 %v2828, 3
        %v2918 = vpop.permute.xlu0 %2917
        %2919 = vrot.lane.b32.xlu0 %v2829, 3
        %v2920 = vpop.permute.xlu0 %2919
        %2921 = vrot.lane.b32.xlu0 %v2830, 3
        %v2922 = vpop.permute.xlu0 %2921
        %2923 = vrot.lane.b32.xlu0 %v2831, 3
        %v2924 = vpop.permute.xlu0 %2923
        %2925 = vrot.lane.b32.xlu0 %v2832, 3
        %v2926 = vpop.permute.xlu0 %2925
        %2927 = vrot.lane.b32.xlu0 %v2833, 3
        %v2928 = vpop.permute.xlu0 %2927
        %2929 = vrot.lane.b32.xlu0 %v2834, 3
        %v2930 = vpop.permute.xlu0 %2929
        %vm2931 = vcmask 23552
        %v2932 = vsel %vm2931, %v2868, %v2870
        %v2933 = vsel %vm2931, %v2870, %v2872
        %v2934 = vsel %vm2931, %v2872, %v2874
        %v2935 = vsel %vm2931, %v2876, %v2878
        %v2936 = vsel %vm2931, %v2878, %v2880
        %v2937 = vsel %vm2931, %v2880, %v2882
        %v2938 = vsel %vm2931, %v2884, %v2886
        %v2939 = vsel %vm2931, %v2886, %v2888
        %v2940 = vsel %vm2931, %v2888, %v2890
        %v2941 = vsel %vm2931, %v2892, %v2894
        %v2942 = vsel %vm2931, %v2894, %v2896
        %v2943 = vsel %vm2931, %v2896, %v2898
        %v2944 = vsel %vm2931, %v2900, %v2902
        %v2945 = vsel %vm2931, %v2902, %v2904
        %v2946 = vsel %vm2931, %v2904, %v2906
        %v2947 = vsel %vm2931, %v2908, %v2910
        %v2948 = vsel %vm2931, %v2910, %v2912
        %v2949 = vsel %vm2931, %v2912, %v2914
        %v2950 = vsel %vm2931, %v2916, %v2918
        %v2951 = vsel %vm2931, %v2918, %v2920
        %v2952 = vsel %vm2931, %v2920, %v2922
        %v2953 = vsel %vm2931, %v2924, %v2926
        %v2954 = vsel %vm2931, %v2926, %v2928
        %v2955 = vsel %vm2931, %v2928, %v2930
        %2980 = vst [vmem:[#allocation4] sm:$0xff] %v2932
        %2981 = vst [vmem:[#allocation4 + $0x8] sm:$0xff] %v2933
        %2982 = vst [vmem:[#allocation4 + $0x10] sm:$0xff] %v2934
        %2983 = vst [vmem:[#allocation4 + $0x18] sm:$0xff] %v2935
        %2984 = vst [vmem:[#allocation4 + $0x20] sm:$0xff] %v2936
        %2985 = vst [vmem:[#allocation4 + $0x28] sm:$0xff] %v2937
        %2986 = vst [vmem:[#allocation4 + $0x30] sm:$0xff] %v2938
        %2987 = vst [vmem:[#allocation4 + $0x38] sm:$0xff] %v2939
        %2988 = vst [vmem:[#allocation4 + $0x40] sm:$0xff] %v2940
        %2989 = vst [vmem:[#allocation4 + $0x48] sm:$0xff] %v2941
        %2990 = vst [vmem:[#allocation4 + $0x50] sm:$0xff] %v2942
        %2991 = vst [vmem:[#allocation4 + $0x58] sm:$0xff] %v2943
        %2992 = vst [vmem:[#allocation4 + $0x60] sm:$0xff] %v2944
        %2993 = vst [vmem:[#allocation4 + $0x68] sm:$0xff] %v2945
        %2994 = vst [vmem:[#allocation4 + $0x70] sm:$0xff] %v2946
        %2995 = vst [vmem:[#allocation4 + $0x78] sm:$0xff] %v2947
        %2996 = vst [vmem:[#allocation4 + $0x80] sm:$0xff] %v2948
        %2997 = vst [vmem:[#allocation4 + $0x88] sm:$0xff] %v2949
        %2998 = vst [vmem:[#allocation4 + $0x90] sm:$0xff] %v2950
        %2999 = vst [vmem:[#allocation4 + $0x98] sm:$0xff] %v2951
        %3000 = vst [vmem:[#allocation4 + $0xa0] sm:$0xff] %v2952
        %3001 = vst [vmem:[#allocation4 + $0xa8] sm:$0xff] %v2953
        %3002 = vst [vmem:[#allocation4 + $0xb0] sm:$0xff] %v2954
        %3003 = vst [vmem:[#allocation4 + $0xb8] sm:$0xff] %v2955
        %v3004 = vld [vmem:[#allocation2 + $0x8] sm:$0xff]
        %v3005 = vld [vmem:[#allocation2 + $0x10] sm:$0xff]
        %v3006 = vld [vmem:[#allocation2 + $0x18] sm:$0xff]
        %v3007 = vld [vmem:[#allocation2 + $0x30] sm:$0xff]
        %v3008 = vld [vmem:[#allocation2 + $0x38] sm:$0xff]
        %v3009 = vld [vmem:[#allocation2 + $0x40] sm:$0xff]
        %v3010 = vld [vmem:[#allocation2 + $0x58] sm:$0xff]
        %v3011 = vld [vmem:[#allocation2 + $0x60] sm:$0xff]
        %v3012 = vld [vmem:[#allocation2 + $0x68] sm:$0xff]
        %v3013 = vld [vmem:[#allocation2 + $0x80] sm:$0xff]
        %v3014 = vld [vmem:[#allocation2 + $0x88] sm:$0xff]
        %v3015 = vld [vmem:[#allocation2 + $0x90] sm:$0xff]
        %v3016 = vld [vmem:[#allocation2 + $0xa8] sm:$0xff]
        %v3017 = vld [vmem:[#allocation2 + $0xb0] sm:$0xff]
        %v3018 = vld [vmem:[#allocation2 + $0xb8] sm:$0xff]
        %v3019 = vld [vmem:[#allocation2 + $0xd0] sm:$0xff]
        %v3020 = vld [vmem:[#allocation2 + $0xd8] sm:$0xff]
        %v3021 = vld [vmem:[#allocation2 + $0xe0] sm:$0xff]
        %v3022 = vld [vmem:[#allocation2 + $0xf8] sm:$0xff]
        %v3023 = vld [vmem:[#allocation2 + $0x100] sm:$0xff]
        %v3024 = vld [vmem:[#allocation2 + $0x108] sm:$0xff]
        %v3025 = vld [vmem:[#allocation2 + $0x120] sm:$0xff]
        %v3026 = vld [vmem:[#allocation2 + $0x128] sm:$0xff]
        %v3027 = vld [vmem:[#allocation2 + $0x130] sm:$0xff]
        %vm3028 = vcmp.gt.f32.partialorder %v3004, 0.0
        %vm3029 = vcmp.gt.f32.partialorder %v3005, 0.0
        %vm3030 = vcmp.gt.f32.partialorder %v3006, 0.0
        %vm3031 = vcmp.gt.f32.partialorder %v3007, 0.0
        %vm3032 = vcmp.gt.f32.partialorder %v3008, 0.0
        %vm3033 = vcmp.gt.f32.partialorder %v3009, 0.0
        %vm3034 = vcmp.gt.f32.partialorder %v3010, 0.0
        %vm3035 = vcmp.gt.f32.partialorder %v3011, 0.0
        %vm3036 = vcmp.gt.f32.partialorder %v3012, 0.0
        %vm3037 = vcmp.gt.f32.partialorder %v3013, 0.0
        %vm3038 = vcmp.gt.f32.partialorder %v3014, 0.0
        %vm3039 = vcmp.gt.f32.partialorder %v3015, 0.0
        %vm3040 = vcmp.gt.f32.partialorder %v3016, 0.0
        %vm3041 = vcmp.gt.f32.partialorder %v3017, 0.0
        %vm3042 = vcmp.gt.f32.partialorder %v3018, 0.0
        %vm3043 = vcmp.gt.f32.partialorder %v3019, 0.0
        %vm3044 = vcmp.gt.f32.partialorder %v3020, 0.0
        %vm3045 = vcmp.gt.f32.partialorder %v3021, 0.0
        %vm3046 = vcmp.gt.f32.partialorder %v3022, 0.0
        %vm3047 = vcmp.gt.f32.partialorder %v3023, 0.0
        %vm3048 = vcmp.gt.f32.partialorder %v3024, 0.0
        %vm3049 = vcmp.gt.f32.partialorder %v3025, 0.0
        %vm3050 = vcmp.gt.f32.partialorder %v3026, 0.0
        %vm3051 = vcmp.gt.f32.partialorder %v3027, 0.0
        %v3052 = vmul.f32 %v3004, 0.01
        %v3053 = vmul.f32 %v3005, 0.01
        %v3054 = vmul.f32 %v3006, 0.01
        %v3055 = vmul.f32 %v3007, 0.01
        %v3056 = vmul.f32 %v3008, 0.01
        %v3057 = vmul.f32 %v3009, 0.01
        %v3058 = vmul.f32 %v3010, 0.01
        %v3059 = vmul.f32 %v3011, 0.01
        %v3060 = vmul.f32 %v3012, 0.01
        %v3061 = vmul.f32 %v3013, 0.01
        %v3062 = vmul.f32 %v3014, 0.01
        %v3063 = vmul.f32 %v3015, 0.01
        %v3064 = vmul.f32 %v3016, 0.01
        %v3065 = vmul.f32 %v3017, 0.01
        %v3066 = vmul.f32 %v3018, 0.01
        %v3067 = vmul.f32 %v3019, 0.01
        %v3068 = vmul.f32 %v3020, 0.01
        %v3069 = vmul.f32 %v3021, 0.01
        %v3070 = vmul.f32 %v3022, 0.01
        %v3071 = vmul.f32 %v3023, 0.01
        %v3072 = vmul.f32 %v3024, 0.01
        %v3073 = vmul.f32 %v3025, 0.01
        %v3074 = vmul.f32 %v3026, 0.01
        %v3075 = vmul.f32 %v3027, 0.01
        %v3076 = vsel %vm3028, %v3004, %v3052
        %v3077 = vsel %vm3029, %v3005, %v3053
        %v3078 = vsel %vm3030, %v3006, %v3054
        %v3079 = vsel %vm3031, %v3007, %v3055
        %v3080 = vsel %vm3032, %v3008, %v3056
        %v3081 = vsel %vm3033, %v3009, %v3057
        %v3082 = vsel %vm3034, %v3010, %v3058
        %v3083 = vsel %vm3035, %v3011, %v3059
        %v3084 = vsel %vm3036, %v3012, %v3060
        %v3085 = vsel %vm3037, %v3013, %v3061
        %v3086 = vsel %vm3038, %v3014, %v3062
        %v3087 = vsel %vm3039, %v3015, %v3063
        %v3088 = vsel %vm3040, %v3016, %v3064
        %v3089 = vsel %vm3041, %v3017, %v3065
        %v3090 = vsel %vm3042, %v3018, %v3066
        %v3091 = vsel %vm3043, %v3019, %v3067
        %v3092 = vsel %vm3044, %v3020, %v3068
        %v3093 = vsel %vm3045, %v3021, %v3069
        %v3094 = vsel %vm3046, %v3022, %v3070
        %v3095 = vsel %vm3047, %v3023, %v3071
        %v3096 = vsel %vm3048, %v3024, %v3072
        %v3097 = vsel %vm3049, %v3025, %v3073
        %v3098 = vsel %vm3050, %v3026, %v3074
        %v3099 = vsel %vm3051, %v3027, %v3075
        %3100 = vst [vmem:[#allocation4 + $0xc0] sm:$0xff] %v3076
        %3101 = vst [vmem:[#allocation4 + $0xc8] sm:$0xff] %v3077
        %3102 = vst [vmem:[#allocation4 + $0xd0] sm:$0xff] %v3078
        %3103 = vst [vmem:[#allocation4 + $0xd8] sm:$0xff] %v3079
        %3104 = vst [vmem:[#allocation4 + $0xe0] sm:$0xff] %v3080
        %3105 = vst [vmem:[#allocation4 + $0xe8] sm:$0xff] %v3081
        %3106 = vst [vmem:[#allocation4 + $0xf0] sm:$0xff] %v3082
        %3107 = vst [vmem:[#allocation4 + $0xf8] sm:$0xff] %v3083
        %3108 = vst [vmem:[#allocation4 + $0x100] sm:$0xff] %v3084
        %3109 = vst [vmem:[#allocation4 + $0x108] sm:$0xff] %v3085
        %3110 = vst [vmem:[#allocation4 + $0x110] sm:$0xff] %v3086
        %3111 = vst [vmem:[#allocation4 + $0x118] sm:$0xff] %v3087
        %3112 = vst [vmem:[#allocation4 + $0x120] sm:$0xff] %v3088
        %3113 = vst [vmem:[#allocation4 + $0x128] sm:$0xff] %v3089
        %3114 = vst [vmem:[#allocation4 + $0x130] sm:$0xff] %v3090
        %3115 = vst [vmem:[#allocation4 + $0x138] sm:$0xff] %v3091
        %3116 = vst [vmem:[#allocation4 + $0x140] sm:$0xff] %v3092
        %3117 = vst [vmem:[#allocation4 + $0x148] sm:$0xff] %v3093
        %3118 = vst [vmem:[#allocation4 + $0x150] sm:$0xff] %v3094
        %3119 = vst [vmem:[#allocation4 + $0x158] sm:$0xff] %v3095
        %3120 = vst [vmem:[#allocation4 + $0x160] sm:$0xff] %v3096
        %3121 = vst [vmem:[#allocation4 + $0x168] sm:$0xff] %v3097
        %3122 = vst [vmem:[#allocation4 + $0x170] sm:$0xff] %v3098
        %3123 = vst [vmem:[#allocation4 + $0x178] sm:$0xff] %v3099
        %v3124 = vld [vmem:[#allocation2 + $0x8] sm:$0xff]
        %v3125 = vld [vmem:[#allocation2 + $0x10] sm:$0xff]
        %v3126 = vld [vmem:[#allocation2 + $0x18] sm:$0xff]
        %v3127 = vld [vmem:[#allocation2 + $0x20] sm:$0xff]
        %v3128 = vld [vmem:[#allocation2 + $0x30] sm:$0xff]
        %v3129 = vld [vmem:[#allocation2 + $0x38] sm:$0xff]
        %v3130 = vld [vmem:[#allocation2 + $0x40] sm:$0xff]
        %v3131 = vld [vmem:[#allocation2 + $0x48] sm:$0xff]
        %v3132 = vld [vmem:[#allocation2 + $0x58] sm:$0xff]
        %v3133 = vld [vmem:[#allocation2 + $0x60] sm:$0xff]
        %v3134 = vld [vmem:[#allocation2 + $0x68] sm:$0xff]
        %v3135 = vld [vmem:[#allocation2 + $0x70] sm:$0xff]
        %v3136 = vld [vmem:[#allocation2 + $0x80] sm:$0xff]
        %v3137 = vld [vmem:[#allocation2 + $0x88] sm:$0xff]
        %v3138 = vld [vmem:[#allocation2 + $0x90] sm:$0xff]
        %v3139 = vld [vmem:[#allocation2 + $0x98] sm:$0xff]
        %v3140 = vld [vmem:[#allocation2 + $0xa8] sm:$0xff]
        %v3141 = vld [vmem:[#allocation2 + $0xb0] sm:$0xff]
        %v3142 = vld [vmem:[#allocation2 + $0xb8] sm:$0xff]
        %v3143 = vld [vmem:[#allocation2 + $0xc0] sm:$0xff]
        %v3144 = vld [vmem:[#allocation2 + $0xd0] sm:$0xff]
        %v3145 = vld [vmem:[#allocation2 + $0xd8] sm:$0xff]
        %v3146 = vld [vmem:[#allocation2 + $0xe0] sm:$0xff]
        %v3147 = vld [vmem:[#allocation2 + $0xe8] sm:$0xff]
        %v3148 = vld [vmem:[#allocation2 + $0xf8] sm:$0xff]
        %v3149 = vld [vmem:[#allocation2 + $0x100] sm:$0xff]
        %v3150 = vld [vmem:[#allocation2 + $0x108] sm:$0xff]
        %v3151 = vld [vmem:[#allocation2 + $0x110] sm:$0xff]
        %v3152 = vld [vmem:[#allocation2 + $0x120] sm:$0xff]
        %v3153 = vld [vmem:[#allocation2 + $0x128] sm:$0xff]
        %v3154 = vld [vmem:[#allocation2 + $0x130] sm:$0xff]
        %v3155 = vld [vmem:[#allocation2 + $0x138] sm:$0xff]
        %vm3156 = vcmp.gt.f32.partialorder %v3124, 0.0
        %vm3157 = vcmp.gt.f32.partialorder %v3125, 0.0
        %vm3158 = vcmp.gt.f32.partialorder %v3126, 0.0
        %vm3159 = vcmp.gt.f32.partialorder %v3127, 0.0
        %vm3160 = vcmp.gt.f32.partialorder %v3128, 0.0
        %vm3161 = vcmp.gt.f32.partialorder %v3129, 0.0
        %vm3162 = vcmp.gt.f32.partialorder %v3130, 0.0
        %vm3163 = vcmp.gt.f32.partialorder %v3131, 0.0
        %vm3164 = vcmp.gt.f32.partialorder %v3132, 0.0
        %vm3165 = vcmp.gt.f32.partialorder %v3133, 0.0
        %vm3166 = vcmp.gt.f32.partialorder %v3134, 0.0
        %vm3167 = vcmp.gt.f32.partialorder %v3135, 0.0
        %vm3168 = vcmp.gt.f32.partialorder %v3136, 0.0
        %vm3169 = vcmp.gt.f32.partialorder %v3137, 0.0
        %vm3170 = vcmp.gt.f32.partialorder %v3138, 0.0
        %vm3171 = vcmp.gt.f32.partialorder %v3139, 0.0
        %vm3172 = vcmp.gt.f32.partialorder %v3140, 0.0
        %vm3173 = vcmp.gt.f32.partialorder %v3141, 0.0
        %vm3174 = vcmp.gt.f32.partialorder %v3142, 0.0
        %vm3175 = vcmp.gt.f32.partialorder %v3143, 0.0
        %vm3176 = vcmp.gt.f32.partialorder %v3144, 0.0
        %vm3177 = vcmp.gt.f32.partialorder %v3145, 0.0
        %vm3178 = vcmp.gt.f32.partialorder %v3146, 0.0
        %vm3179 = vcmp.gt.f32.partialorder %v3147, 0.0
        %vm3180 = vcmp.gt.f32.partialorder %v3148, 0.0
        %vm3181 = vcmp.gt.f32.partialorder %v3149, 0.0
        %vm3182 = vcmp.gt.f32.partialorder %v3150, 0.0
        %vm3183 = vcmp.gt.f32.partialorder %v3151, 0.0
        %vm3184 = vcmp.gt.f32.partialorder %v3152, 0.0
        %vm3185 = vcmp.gt.f32.partialorder %v3153, 0.0
        %vm3186 = vcmp.gt.f32.partialorder %v3154, 0.0
        %vm3187 = vcmp.gt.f32.partialorder %v3155, 0.0
        %v3188 = vmul.f32 %v3124, 0.01
        %v3189 = vmul.f32 %v3125, 0.01
        %v3190 = vmul.f32 %v3126, 0.01
        %v3191 = vmul.f32 %v3127, 0.01
        %v3192 = vmul.f32 %v3128, 0.01
        %v3193 = vmul.f32 %v3129, 0.01
        %v3194 = vmul.f32 %v3130, 0.01
        %v3195 = vmul.f32 %v3131, 0.01
        %v3196 = vmul.f32 %v3132, 0.01
        %v3197 = vmul.f32 %v3133, 0.01
        %v3198 = vmul.f32 %v3134, 0.01
        %v3199 = vmul.f32 %v3135, 0.01
        %v3200 = vmul.f32 %v3136, 0.01
        %v3201 = vmul.f32 %v3137, 0.01
        %v3202 = vmul.f32 %v3138, 0.01
        %v3203 = vmul.f32 %v3139, 0.01
        %v3204 = vmul.f32 %v3140, 0.01
        %v3205 = vmul.f32 %v3141, 0.01
        %v3206 = vmul.f32 %v3142, 0.01
        %v3207 = vmul.f32 %v3143, 0.01
        %v3208 = vmul.f32 %v3144, 0.01
        %v3209 = vmul.f32 %v3145, 0.01
        %v3210 = vmul.f32 %v3146, 0.01
        %v3211 = vmul.f32 %v3147, 0.01
        %v3212 = vmul.f32 %v3148, 0.01
        %v3213 = vmul.f32 %v3149, 0.01
        %v3214 = vmul.f32 %v3150, 0.01
        %v3215 = vmul.f32 %v3151, 0.01
        %v3216 = vmul.f32 %v3152, 0.01
        %v3217 = vmul.f32 %v3153, 0.01
        %v3218 = vmul.f32 %v3154, 0.01
        %v3219 = vmul.f32 %v3155, 0.01
        %v3220 = vsel %vm3156, %v3124, %v3188
        %v3221 = vsel %vm3157, %v3125, %v3189
        %v3222 = vsel %vm3158, %v3126, %v3190
        %v3223 = vsel %vm3159, %v3127, %v3191
        %v3224 = vsel %vm3160, %v3128, %v3192
        %v3225 = vsel %vm3161, %v3129, %v3193
        %v3226 = vsel %vm3162, %v3130, %v3194
        %v3227 = vsel %vm3163, %v3131, %v3195
        %v3228 = vsel %vm3164, %v3132, %v3196
        %v3229 = vsel %vm3165, %v3133, %v3197
        %v3230 = vsel %vm3166, %v3134, %v3198
        %v3231 = vsel %vm3167, %v3135, %v3199
        %v3232 = vsel %vm3168, %v3136, %v3200
        %v3233 = vsel %vm3169, %v3137, %v3201
        %v3234 = vsel %vm3170, %v3138, %v3202
        %v3235 = vsel %vm3171, %v3139, %v3203
        %v3236 = vsel %vm3172, %v3140, %v3204
        %v3237 = vsel %vm3173, %v3141, %v3205
        %v3238 = vsel %vm3174, %v3142, %v3206
        %v3239 = vsel %vm3175, %v3143, %v3207
        %v3240 = vsel %vm3176, %v3144, %v3208
        %v3241 = vsel %vm3177, %v3145, %v3209
        %v3242 = vsel %vm3178, %v3146, %v3210
        %v3243 = vsel %vm3179, %v3147, %v3211
        %v3244 = vsel %vm3180, %v3148, %v3212
        %v3245 = vsel %vm3181, %v3149, %v3213
        %v3246 = vsel %vm3182, %v3150, %v3214
        %v3247 = vsel %vm3183, %v3151, %v3215
        %v3248 = vsel %vm3184, %v3152, %v3216
        %v3249 = vsel %vm3185, %v3153, %v3217
        %v3250 = vsel %vm3186, %v3154, %v3218
        %v3251 = vsel %vm3187, %v3155, %v3219
        %3284 = vrot.lane.b32.xlu0 %v3220, 125
        %v3285 = vpop.permute.xlu0 %3284
        %3286 = vrot.lane.b32.xlu0 %v3221, 125
        %v3287 = vpop.permute.xlu0 %3286
        %3288 = vrot.lane.b32.xlu0 %v3222, 125
        %v3289 = vpop.permute.xlu0 %3288
        %3290 = vrot.lane.b32.xlu0 %v3223, 125
        %v3291 = vpop.permute.xlu0 %3290
        %3292 = vrot.lane.b32.xlu0 %v3224, 125
        %v3293 = vpop.permute.xlu0 %3292
        %3294 = vrot.lane.b32.xlu0 %v3225, 125
        %v3295 = vpop.permute.xlu0 %3294
        %3296 = vrot.lane.b32.xlu0 %v3226, 125
        %v3297 = vpop.permute.xlu0 %3296
        %3298 = vrot.lane.b32.xlu0 %v3227, 125
        %v3299 = vpop.permute.xlu0 %3298
        %3300 = vrot.lane.b32.xlu0 %v3228, 125
        %v3301 = vpop.permute.xlu0 %3300
        %3302 = vrot.lane.b32.xlu0 %v3229, 125
        %v3303 = vpop.permute.xlu0 %3302
        %3304 = vrot.lane.b32.xlu0 %v3230, 125
        %v3305 = vpop.permute.xlu0 %3304
        %3306 = vrot.lane.b32.xlu0 %v3231, 125
        %v3307 = vpop.permute.xlu0 %3306
        %3308 = vrot.lane.b32.xlu0 %v3232, 125
        %v3309 = vpop.permute.xlu0 %3308
        %3310 = vrot.lane.b32.xlu0 %v3233, 125
        %v3311 = vpop.permute.xlu0 %3310
        %3312 = vrot.lane.b32.xlu0 %v3234, 125
        %v3313 = vpop.permute.xlu0 %3312
        %3314 = vrot.lane.b32.xlu0 %v3235, 125
        %v3315 = vpop.permute.xlu0 %3314
        %3316 = vrot.lane.b32.xlu0 %v3236, 125
        %v3317 = vpop.permute.xlu0 %3316
        %3318 = vrot.lane.b32.xlu0 %v3237, 125
        %v3319 = vpop.permute.xlu0 %3318
        %3320 = vrot.lane.b32.xlu0 %v3238, 125
        %v3321 = vpop.permute.xlu0 %3320
        %3322 = vrot.lane.b32.xlu0 %v3239, 125
        %v3323 = vpop.permute.xlu0 %3322
        %3324 = vrot.lane.b32.xlu0 %v3240, 125
        %v3325 = vpop.permute.xlu0 %3324
        %3326 = vrot.lane.b32.xlu0 %v3241, 125
        %v3327 = vpop.permute.xlu0 %3326
        %3328 = vrot.lane.b32.xlu0 %v3242, 125
        %v3329 = vpop.permute.xlu0 %3328
        %3330 = vrot.lane.b32.xlu0 %v3243, 125
        %v3331 = vpop.permute.xlu0 %3330
        %3332 = vrot.lane.b32.xlu0 %v3244, 125
        %v3333 = vpop.permute.xlu0 %3332
        %3334 = vrot.lane.b32.xlu0 %v3245, 125
        %v3335 = vpop.permute.xlu0 %3334
        %3336 = vrot.lane.b32.xlu0 %v3246, 125
        %v3337 = vpop.permute.xlu0 %3336
        %3338 = vrot.lane.b32.xlu0 %v3247, 125
        %v3339 = vpop.permute.xlu0 %3338
        %3340 = vrot.lane.b32.xlu0 %v3248, 125
        %v3341 = vpop.permute.xlu0 %3340
        %3342 = vrot.lane.b32.xlu0 %v3249, 125
        %v3343 = vpop.permute.xlu0 %3342
        %3344 = vrot.lane.b32.xlu0 %v3250, 125
        %v3345 = vpop.permute.xlu0 %3344
        %3346 = vrot.lane.b32.xlu0 %v3251, 125
        %v3347 = vpop.permute.xlu0 %3346
        %vm3348 = vcmask 1022976
        %v3349 = vsel %vm3348, %v3285, %v3287
        %v3350 = vsel %vm3348, %v3287, %v3289
        %v3351 = vsel %vm3348, %v3289, %v3291
        %v3352 = vsel %vm3348, %v3293, %v3295
        %v3353 = vsel %vm3348, %v3295, %v3297
        %v3354 = vsel %vm3348, %v3297, %v3299
        %v3355 = vsel %vm3348, %v3301, %v3303
        %v3356 = vsel %vm3348, %v3303, %v3305
        %v3357 = vsel %vm3348, %v3305, %v3307
        %v3358 = vsel %vm3348, %v3309, %v3311
        %v3359 = vsel %vm3348, %v3311, %v3313
        %v3360 = vsel %vm3348, %v3313, %v3315
        %v3361 = vsel %vm3348, %v3317, %v3319
        %v3362 = vsel %vm3348, %v3319, %v3321
        %v3363 = vsel %vm3348, %v3321, %v3323
        %v3364 = vsel %vm3348, %v3325, %v3327
        %v3365 = vsel %vm3348, %v3327, %v3329
        %v3366 = vsel %vm3348, %v3329, %v3331
        %v3367 = vsel %vm3348, %v3333, %v3335
        %v3368 = vsel %vm3348, %v3335, %v3337
        %v3369 = vsel %vm3348, %v3337, %v3339
        %v3370 = vsel %vm3348, %v3341, %v3343
        %v3371 = vsel %vm3348, %v3343, %v3345
        %v3372 = vsel %vm3348, %v3345, %v3347
        %3397 = vst [vmem:[#allocation4 + $0x180] sm:$0xff] %v3349
        %3398 = vst [vmem:[#allocation4 + $0x188] sm:$0xff] %v3350
        %3399 = vst [vmem:[#allocation4 + $0x190] sm:$0xff] %v3351
        %3400 = vst [vmem:[#allocation4 + $0x198] sm:$0xff] %v3352
        %3401 = vst [vmem:[#allocation4 + $0x1a0] sm:$0xff] %v3353
        %3402 = vst [vmem:[#allocation4 + $0x1a8] sm:$0xff] %v3354
        %3403 = vst [vmem:[#allocation4 + $0x1b0] sm:$0xff] %v3355
        %3404 = vst [vmem:[#allocation4 + $0x1b8] sm:$0xff] %v3356
        %3405 = vst [vmem:[#allocation4 + $0x1c0] sm:$0xff] %v3357
        %3406 = vst [vmem:[#allocation4 + $0x1c8] sm:$0xff] %v3358
        %3407 = vst [vmem:[#allocation4 + $0x1d0] sm:$0xff] %v3359
        %3408 = vst [vmem:[#allocation4 + $0x1d8] sm:$0xff] %v3360
        %3409 = vst [vmem:[#allocation4 + $0x1e0] sm:$0xff] %v3361
        %3410 = vst [vmem:[#allocation4 + $0x1e8] sm:$0xff] %v3362
        %3411 = vst [vmem:[#allocation4 + $0x1f0] sm:$0xff] %v3363
        %3412 = vst [vmem:[#allocation4 + $0x1f8] sm:$0xff] %v3364
        %3413 = vst [vmem:[#allocation4 + $0x200] sm:$0xff] %v3365
        %3414 = vst [vmem:[#allocation4 + $0x208] sm:$0xff] %v3366
        %3415 = vst [vmem:[#allocation4 + $0x210] sm:$0xff] %v3367
        %3416 = vst [vmem:[#allocation4 + $0x218] sm:$0xff] %v3368
        %3417 = vst [vmem:[#allocation4 + $0x220] sm:$0xff] %v3369
        %3418 = vst [vmem:[#allocation4 + $0x228] sm:$0xff] %v3370
        %3419 = vst [vmem:[#allocation4 + $0x230] sm:$0xff] %v3371
        %3420 = vst [vmem:[#allocation4 + $0x238] sm:$0xff] %v3372
        %s3421 = scalar_lea.vmem %s3, 128
        %v3422 = vld [vmem:[%s3421] sm:$0xff]
        %v3423 = vld [vmem:[%s3421 + $0x8] sm:$0xff]
        %v3424 = vld [vmem:[%s3421 + $0x10] sm:$0xff]
        %v3425 = vld [vmem:[%s3421 + $0x18] sm:$0xff]
        %v3426 = vld [vmem:[%s3421 + $0x20] sm:$0xff]
        %v3427 = vld [vmem:[%s3421 + $0x28] sm:$0xff]
        %v3428 = vld [vmem:[%s3421 + $0x30] sm:$0xff]
        %v3429 = vld [vmem:[%s3421 + $0x38] sm:$0xff]
        %v3430 = vld [vmem:[%s3421 + $0x40] sm:$0xff]
        %v3431 = vld [vmem:[%s3421 + $0x48] sm:$0xff]
        %v3432 = vld [vmem:[%s3421 + $0x50] sm:$0xff]
        %v3433 = vld [vmem:[%s3421 + $0x58] sm:$0xff]
        %v3434 = vld [vmem:[%s3421 + $0x60] sm:$0xff]
        %v3435 = vld [vmem:[%s3421 + $0x68] sm:$0xff]
        %v3436 = vld [vmem:[%s3421 + $0x70] sm:$0xff]
        %v3437 = vld [vmem:[%s3421 + $0x78] sm:$0xff]
        %v3438 = vld [vmem:[#allocation4] sm:$0xff]
        %v3439 = vld [vmem:[#allocation4 + $0x8] sm:$0xff]
        %v3440 = vld [vmem:[#allocation4 + $0x10] sm:$0xff]
        %v3441 = vld [vmem:[#allocation4 + $0x18] sm:$0xff]
        %v3442 = vld [vmem:[#allocation4 + $0x20] sm:$0xff]
        %v3443 = vld [vmem:[#allocation4 + $0x28] sm:$0xff]
        %v3444 = vld [vmem:[#allocation4 + $0x30] sm:$0xff]
        %v3445 = vld [vmem:[#allocation4 + $0x38] sm:$0xff]
        %v3446 = vld [vmem:[#allocation4 + $0x40] sm:$0xff]
        %v3447 = vld [vmem:[#allocation4 + $0x48] sm:$0xff]
        %v3448 = vld [vmem:[#allocation4 + $0x50] sm:$0xff]
        %v3449 = vld [vmem:[#allocation4 + $0x58] sm:$0xff]
        %v3450 = vld [vmem:[#allocation4 + $0x60] sm:$0xff]
        %v3451 = vld [vmem:[#allocation4 + $0x68] sm:$0xff]
        %v3452 = vld [vmem:[#allocation4 + $0x70] sm:$0xff]
        %v3453 = vld [vmem:[#allocation4 + $0x78] sm:$0xff]
        %v3454 = vld [vmem:[#allocation4 + $0x80] sm:$0xff]
        %v3455 = vld [vmem:[#allocation4 + $0x88] sm:$0xff]
        %v3456 = vld [vmem:[#allocation4 + $0x90] sm:$0xff]
        %v3457 = vld [vmem:[#allocation4 + $0x98] sm:$0xff]
        %v3458 = vld [vmem:[#allocation4 + $0xa0] sm:$0xff]
        %v3459 = vld [vmem:[#allocation4 + $0xa8] sm:$0xff]
        %v3460 = vld [vmem:[#allocation4 + $0xb0] sm:$0xff]
        %v3461 = vld [vmem:[#allocation4 + $0xb8] sm:$0xff]
        %v3462 = vld [vmem:[#allocation4 + $0xc0] sm:$0xff]
        %v3463 = vld [vmem:[#allocation4 + $0xc8] sm:$0xff]
        %v3464 = vld [vmem:[#allocation4 + $0xd0] sm:$0xff]
        %v3465 = vld [vmem:[#allocation4 + $0xd8] sm:$0xff]
        %v3466 = vld [vmem:[#allocation4 + $0xe0] sm:$0xff]
        %v3467 = vld [vmem:[#allocation4 + $0xe8] sm:$0xff]
        %v3468 = vld [vmem:[#allocation4 + $0xf0] sm:$0xff]
        %v3469 = vld [vmem:[#allocation4 + $0xf8] sm:$0xff]
        %v3470 = vld [vmem:[#allocation4 + $0x100] sm:$0xff]
        %v3471 = vld [vmem:[#allocation4 + $0x108] sm:$0xff]
        %v3472 = vld [vmem:[#allocation4 + $0x110] sm:$0xff]
        %v3473 = vld [vmem:[#allocation4 + $0x118] sm:$0xff]
        %v3474 = vld [vmem:[#allocation4 + $0x120] sm:$0xff]
        %v3475 = vld [vmem:[#allocation4 + $0x128] sm:$0xff]
        %v3476 = vld [vmem:[#allocation4 + $0x130] sm:$0xff]
        %v3477 = vld [vmem:[#allocation4 + $0x138] sm:$0xff]
        %v3478 = vld [vmem:[#allocation4 + $0x140] sm:$0xff]
        %v3479 = vld [vmem:[#allocation4 + $0x148] sm:$0xff]
        %v3480 = vld [vmem:[#allocation4 + $0x150] sm:$0xff]
        %v3481 = vld [vmem:[#allocation4 + $0x158] sm:$0xff]
        %v3482 = vld [vmem:[#allocation4 + $0x160] sm:$0xff]
        %v3483 = vld [vmem:[#allocation4 + $0x168] sm:$0xff]
        %v3484 = vld [vmem:[#allocation4 + $0x170] sm:$0xff]
        %v3485 = vld [vmem:[#allocation4 + $0x178] sm:$0xff]
        %v3486 = vld [vmem:[#allocation4 + $0x180] sm:$0xff]
        %v3487 = vld [vmem:[#allocation4 + $0x188] sm:$0xff]
        %v3488 = vld [vmem:[#allocation4 + $0x190] sm:$0xff]
        %v3489 = vld [vmem:[#allocation4 + $0x198] sm:$0xff]
        %v3490 = vld [vmem:[#allocation4 + $0x1a0] sm:$0xff]
        %v3491 = vld [vmem:[#allocation4 + $0x1a8] sm:$0xff]
        %v3492 = vld [vmem:[#allocation4 + $0x1b0] sm:$0xff]
        %v3493 = vld [vmem:[#allocation4 + $0x1b8] sm:$0xff]
        %v3494 = vld [vmem:[#allocation4 + $0x1c0] sm:$0xff]
        %v3495 = vld [vmem:[#allocation4 + $0x1c8] sm:$0xff]
        %v3496 = vld [vmem:[#allocation4 + $0x1d0] sm:$0xff]
        %v3497 = vld [vmem:[#allocation4 + $0x1d8] sm:$0xff]
        %v3498 = vld [vmem:[#allocation4 + $0x1e0] sm:$0xff]
        %v3499 = vld [vmem:[#allocation4 + $0x1e8] sm:$0xff]
        %v3500 = vld [vmem:[#allocation4 + $0x1f0] sm:$0xff]
        %v3501 = vld [vmem:[#allocation4 + $0x1f8] sm:$0xff]
        %v3502 = vld [vmem:[#allocation4 + $0x200] sm:$0xff]
        %v3503 = vld [vmem:[#allocation4 + $0x208] sm:$0xff]
        %v3504 = vld [vmem:[#allocation4 + $0x210] sm:$0xff]
        %v3505 = vld [vmem:[#allocation4 + $0x218] sm:$0xff]
        %v3506 = vld [vmem:[#allocation4 + $0x220] sm:$0xff]
        %v3507 = vld [vmem:[#allocation4 + $0x228] sm:$0xff]
        %v3508 = vld [vmem:[#allocation4 + $0x230] sm:$0xff]
        %v3509 = vld [vmem:[#allocation4 + $0x238] sm:$0xff]
        %s3510 = scalar_lea.vmem %s4, 64
        %v3511 = vld [vmem:[%s3510] sm:$0xff]
        %v3512 = vld [vmem:[%s3510 + $0x8] sm:$0xff]
        %v3513 = vld [vmem:[%s3510 + $0x10] sm:$0xff]
        %v3514 = vld [vmem:[%s3510 + $0x18] sm:$0xff]
        %v3515 = vld [vmem:[%s3510 + $0x20] sm:$0xff]
        %v3516 = vld [vmem:[%s3510 + $0x28] sm:$0xff]
        %v3517 = vld [vmem:[%s3510 + $0x30] sm:$0xff]
        %v3518 = vld [vmem:[%s3510 + $0x38] sm:$0xff]
        %3520 = vset.pattern.permute.xlu0 0
        %3521 = vperm.xlu0 %3520, %v3511
        %v3522 = vpop.permute.xlu0 %3521
        %3525 = vset.pattern.permute.xlu0 0
        %3526 = vperm.xlu0 %3525, %v3512
        %v3527 = vpop.permute.xlu0 %3526
        %3530 = vset.pattern.permute.xlu0 0
        %3531 = vperm.xlu0 %3530, %v3513
        %v3532 = vpop.permute.xlu0 %3531
        %3535 = vset.pattern.permute.xlu0 0
        %3536 = vperm.xlu0 %3535, %v3514
        %v3537 = vpop.permute.xlu0 %3536
        %3540 = vset.pattern.permute.xlu0 0
        %3541 = vperm.xlu0 %3540, %v3515
        %v3542 = vpop.permute.xlu0 %3541
        %3545 = vset.pattern.permute.xlu0 0
        %3546 = vperm.xlu0 %3545, %v3516
        %v3547 = vpop.permute.xlu0 %3546
        %3550 = vset.pattern.permute.xlu0 0
        %3551 = vperm.xlu0 %3550, %v3517
        %v3552 = vpop.permute.xlu0 %3551
        %3555 = vset.pattern.permute.xlu0 0
        %3556 = vperm.xlu0 %3555, %v3518
        %v3557 = vpop.permute.xlu0 %3556
        %v3560 = vsel %vm1416, %v3423, 0
        %v3563 = vsel %vm1416, %v3425, 0
        %v3566 = vsel %vm1416, %v3427, 0
        %v3569 = vsel %vm1416, %v3429, 0
        %v3572 = vsel %vm1416, %v3431, 0
        %v3575 = vsel %vm1416, %v3433, 0
        %v3578 = vsel %vm1416, %v3435, 0
        %v3581 = vsel %vm1416, %v3437, 0
        %3583 = vmatprep.subr.mxu0 %v3439
        %3584 = vmatpush1.msra.mxu0 %v3438
        %3585 = vmatprep.subr.mxu0 %v3442
        %3586 = vmatpush1.msra.mxu0 %v3441
        %3587 = vmatprep.subr.mxu0 %v3445
        %3588 = vmatpush1.msra.mxu0 %v3444
        %3589 = vmatprep.subr.mxu0 %v3448
        %3590 = vmatpush1.msra.mxu0 %v3447
        %3591 = vmatprep.subr.mxu0 %v3451
        %3592 = vmatpush1.msra.mxu0 %v3450
        %3593 = vmatprep.subr.mxu0 %v3454
        %3594 = vmatpush1.msra.mxu0 %v3453
        %3595 = vmatprep.subr.mxu0 %v3457
        %3596 = vmatpush1.msra.mxu0 %v3456
        %3597 = vmatprep.subr.mxu0 %v3460
        %3598 = vmatpush1.msra.mxu0 %v3459
        %3599 = vmatprep.subr.mxu0 %v3463
        %3600 = vmatpush1.msra.mxu0 %v3462
        %3601 = vmatprep.subr.mxu0 %v3466
        %3602 = vmatpush1.msra.mxu0 %v3465
        %3603 = vmatprep.subr.mxu0 %v3469
        %3604 = vmatpush1.msra.mxu0 %v3468
        %3605 = vmatprep.subr.mxu0 %v3472
        %3606 = vmatpush1.msra.mxu0 %v3471
        %3607 = vmatprep.subr.mxu0 %v3475
        %3608 = vmatpush1.msra.mxu0 %v3474
        %3609 = vmatprep.subr.mxu0 %v3478
        %3610 = vmatpush1.msra.mxu0 %v3477
        %3611 = vmatprep.subr.mxu0 %v3481
        %3612 = vmatpush1.msra.mxu0 %v3480
        %3613 = vmatprep.subr.mxu0 %v3484
        %3614 = vmatpush1.msra.mxu0 %v3483
        %3615 = vmatprep.subr.mxu0 %v3487
        %3616 = vmatpush1.msra.mxu0 %v3486
        %3617 = vmatprep.subr.mxu0 %v3490
        %3618 = vmatpush1.msra.mxu0 %v3489
        %3619 = vmatprep.subr.mxu0 %v3493
        %3620 = vmatpush1.msra.mxu0 %v3492
        %3621 = vmatprep.subr.mxu0 %v3496
        %3622 = vmatpush1.msra.mxu0 %v3495
        %3623 = vmatprep.subr.mxu0 %v3499
        %3624 = vmatpush1.msra.mxu0 %v3498
        %3625 = vmatprep.subr.mxu0 %v3502
        %3626 = vmatpush1.msra.mxu0 %v3501
        %3627 = vmatprep.subr.mxu0 %v3505
        %3628 = vmatpush1.msra.mxu0 %v3504
        %3629 = vmatprep.subr.mxu0 %v3508
        %3630 = vmatpush1.msra.mxu0 %v3507
        %3631 = vmatprep.subr.mxu0 0.0
        %3632 = vmatpush1.msra.mxu0 0.0
        %3633 = vmatprep.subr.mxu0 0.0
        %3634 = vmatpush1.msra.mxu0 0.0
        %3635 = vmatprep.subr.mxu0 0.0
        %3636 = vmatpush1.msra.mxu0 0.0
        %3637 = vmatprep.subr.mxu0 0.0
        %3638 = vmatpush1.msra.mxu0 0.0
        %3639 = vmatprep.subr.mxu0 0.0
        %3640 = vmatpush1.msra.mxu0 0.0
        %3641 = vmatprep.subr.mxu0 0.0
        %3642 = vmatpush1.msra.mxu0 0.0
        %3643 = vmatprep.subr.mxu0 0.0
        %3644 = vmatpush1.msra.mxu0 0.0
        %3645 = vmatprep.subr.mxu0 0.0
        %3646 = vmatpush1.msra.mxu0 0.0
        %3647 = vmatprep.mubr.f32.mxu0 %v3560
        %3648 = vmatmul.mubr.f32.gmra.mrb[0].mxu0 %v3422
        %v3649 = vpop.f32.mrb[0].mxu0
        %v3650 = vadd.f32 %v3522, %v3649
        %v3651 = vpop.f32.mrb[0].mxu0
        %v3652 = vadd.f32 %v3522, %v3651
        %3653 = vmatprep.mubr.f32.mxu0 %v3563
        %3654 = vmatmul.mubr.f32.gmra.mrb[0].mxu0 %v3424
        %v3655 = vpop.f32.mrb[0].mxu0
        %v3656 = vadd.f32 %v3527, %v3655
        %v3657 = vpop.f32.mrb[0].mxu0
        %v3658 = vadd.f32 %v3527, %v3657
        %3659 = vmatprep.mubr.f32.mxu0 %v3566
        %3660 = vmatmul.mubr.f32.gmra.mrb[0].mxu0 %v3426
        %v3661 = vpop.f32.mrb[0].mxu0
        %v3662 = vadd.f32 %v3532, %v3661
        %v3663 = vpop.f32.mrb[0].mxu0
        %v3664 = vadd.f32 %v3532, %v3663
        %3665 = vmatprep.mubr.f32.mxu0 %v3569
        %3666 = vmatmul.mubr.f32.gmra.mrb[0].mxu0 %v3428
        %v3667 = vpop.f32.mrb[0].mxu0
        %v3668 = vadd.f32 %v3537, %v3667
        %v3669 = vpop.f32.mrb[0].mxu0
        %v3670 = vadd.f32 %v3537, %v3669
        %3671 = vmatprep.mubr.f32.mxu0 %v3572
        %3672 = vmatmul.mubr.f32.gmra.mrb[0].mxu0 %v3430
        %v3673 = vpop.f32.mrb[0].mxu0
        %v3674 = vadd.f32 %v3542, %v3673
        %v3675 = vpop.f32.mrb[0].mxu0
        %v3676 = vadd.f32 %v3542, %v3675
        %3677 = vmatprep.mubr.f32.mxu0 %v3575
        %3678 = vmatmul.mubr.f32.gmra.mrb[0].mxu0 %v3432
        %v3679 = vpop.f32.mrb[0].mxu0
        %v3680 = vadd.f32 %v3547, %v3679
        %v3681 = vpop.f32.mrb[0].mxu0
        %v3682 = vadd.f32 %v3547, %v3681
        %3683 = vmatprep.mubr.f32.mxu0 %v3578
        %3684 = vmatmul.mubr.f32.gmra.mrb[0].mxu0 %v3434
        %v3685 = vpop.f32.mrb[0].mxu0
        %v3686 = vadd.f32 %v3552, %v3685
        %v3687 = vpop.f32.mrb[0].mxu0
        %v3688 = vadd.f32 %v3552, %v3687
        %3689 = vmatprep.mubr.f32.mxu0 %v3581
        %3690 = vmatmul.mubr.f32.gmra.mrb[0].mxu0 %v3436
        %v3691 = vpop.f32.mrb[0].mxu0
        %v3692 = vadd.f32 %v3557, %v3691
        %v3693 = vpop.f32.mrb[0].mxu0
        %v3694 = vadd.f32 %v3557, %v3693
        %3695 = vdwg.mxu0
        %3696 = vmatprep.subr.mxu0 0.0
        %3697 = vmatpush1.msra.mxu0 %v3440
        %3698 = vmatprep.subr.mxu0 0.0
        %3699 = vmatpush1.msra.mxu0 %v3443
        %3700 = vmatprep.subr.mxu0 0.0
        %3701 = vmatpush1.msra.mxu0 %v3446
        %3702 = vmatprep.subr.mxu0 0.0
        %3703 = vmatpush1.msra.mxu0 %v3449
        %3704 = vmatprep.subr.mxu0 0.0
        %3705 = vmatpush1.msra.mxu0 %v3452
        %3706 = vmatprep.subr.mxu0 0.0
        %3707 = vmatpush1.msra.mxu0 %v3455
        %3708 = vmatprep.subr.mxu0 0.0
        %3709 = vmatpush1.msra.mxu0 %v3458
        %3710 = vmatprep.subr.mxu0 0.0
        %3711 = vmatpush1.msra.mxu0 %v3461
        %3712 = vmatprep.subr.mxu0 0.0
        %3713 = vmatpush1.msra.mxu0 %v3464
        %3714 = vmatprep.subr.mxu0 0.0
        %3715 = vmatpush1.msra.mxu0 %v3467
        %3716 = vmatprep.subr.mxu0 0.0
        %3717 = vmatpush1.msra.mxu0 %v3470
        %3718 = vmatprep.subr.mxu0 0.0
        %3719 = vmatpush1.msra.mxu0 %v3473
        %3720 = vmatprep.subr.mxu0 0.0
        %3721 = vmatpush1.msra.mxu0 %v3476
        %3722 = vmatprep.subr.mxu0 0.0
        %3723 = vmatpush1.msra.mxu0 %v3479
        %3724 = vmatprep.subr.mxu0 0.0
        %3725 = vmatpush1.msra.mxu0 %v3482
        %3726 = vmatprep.subr.mxu0 0.0
        %3727 = vmatpush1.msra.mxu0 %v3485
        %3728 = vmatprep.subr.mxu0 0.0
        %3729 = vmatpush1.msra.mxu0 %v3488
        %3730 = vmatprep.subr.mxu0 0.0
        %3731 = vmatpush1.msra.mxu0 %v3491
        %3732 = vmatprep.subr.mxu0 0.0
        %3733 = vmatpush1.msra.mxu0 %v3494
        %3734 = vmatprep.subr.mxu0 0.0
        %3735 = vmatpush1.msra.mxu0 %v3497
        %3736 = vmatprep.subr.mxu0 0.0
        %3737 = vmatpush1.msra.mxu0 %v3500
        %3738 = vmatprep.subr.mxu0 0.0
        %3739 = vmatpush1.msra.mxu0 %v3503
        %3740 = vmatprep.subr.mxu0 0.0
        %3741 = vmatpush1.msra.mxu0 %v3506
        %3742 = vmatprep.subr.mxu0 0.0
        %3743 = vmatpush1.msra.mxu0 %v3509
        %3744 = vmatprep.subr.mxu0 0.0
        %3745 = vmatpush1.msra.mxu0 0.0
        %3746 = vmatprep.subr.mxu0 0.0
        %3747 = vmatpush1.msra.mxu0 0.0
        %3748 = vmatprep.subr.mxu0 0.0
        %3749 = vmatpush1.msra.mxu0 0.0
        %3750 = vmatprep.subr.mxu0 0.0
        %3751 = vmatpush1.msra.mxu0 0.0
        %3752 = vmatprep.subr.mxu0 0.0
        %3753 = vmatpush1.msra.mxu0 0.0
        %3754 = vmatprep.subr.mxu0 0.0
        %3755 = vmatpush1.msra.mxu0 0.0
        %3756 = vmatprep.subr.mxu0 0.0
        %3757 = vmatpush1.msra.mxu0 0.0
        %3758 = vmatprep.subr.mxu0 0.0
        %3759 = vmatpush1.msra.mxu0 0.0
        %3760 = vmatprep.mubr.f32.mxu0 %v3560
        %3761 = vmatmul.mubr.f32.gmra.mrb[0].mxu0 %v3422
        %v3762 = vpop.f32.mrb[0].mxu0
        %v3763 = vadd.f32 %v3522, %v3762
        %v3764 = vpop.f32.mrb[0].mxu0
        %3765 = vmatprep.mubr.f32.mxu0 %v3563
        %3766 = vmatmul.mubr.f32.gmra.mrb[0].mxu0 %v3424
        %v3767 = vpop.f32.mrb[0].mxu0
        %v3768 = vadd.f32 %v3527, %v3767
        %v3769 = vpop.f32.mrb[0].mxu0
        %3770 = vmatprep.mubr.f32.mxu0 %v3566
        %3771 = vmatmul.mubr.f32.gmra.mrb[0].mxu0 %v3426
        %v3772 = vpop.f32.mrb[0].mxu0
        %v3773 = vadd.f32 %v3532, %v3772
        %v3774 = vpop.f32.mrb[0].mxu0
        %3775 = vmatprep.mubr.f32.mxu0 %v3569
        %3776 = vmatmul.mubr.f32.gmra.mrb[0].mxu0 %v3428
        %v3777 = vpop.f32.mrb[0].mxu0
        %v3778 = vadd.f32 %v3537, %v3777
        %v3779 = vpop.f32.mrb[0].mxu0
        %3780 = vmatprep.mubr.f32.mxu0 %v3572
        %3781 = vmatmul.mubr.f32.gmra.mrb[0].mxu0 %v3430
        %v3782 = vpop.f32.mrb[0].mxu0
        %v3783 = vadd.f32 %v3542, %v3782
        %v3784 = vpop.f32.mrb[0].mxu0
        %3785 = vmatprep.mubr.f32.mxu0 %v3575
        %3786 = vmatmul.mubr.f32.gmra.mrb[0].mxu0 %v3432
        %v3787 = vpop.f32.mrb[0].mxu0
        %v3788 = vadd.f32 %v3547, %v3787
        %v3789 = vpop.f32.mrb[0].mxu0
        %3790 = vmatprep.mubr.f32.mxu0 %v3578
        %3791 = vmatmul.mubr.f32.gmra.mrb[0].mxu0 %v3434
        %v3792 = vpop.f32.mrb[0].mxu0
        %v3793 = vadd.f32 %v3552, %v3792
        %v3794 = vpop.f32.mrb[0].mxu0
        %3795 = vmatprep.mubr.f32.mxu0 %v3581
        %3796 = vmatmul.mubr.f32.gmra.mrb[0].mxu0 %v3436
        %v3797 = vpop.f32.mrb[0].mxu0
        %v3798 = vadd.f32 %v3557, %v3797
        %v3799 = vpop.f32.mrb[0].mxu0
        %3800 = vdwg.mxu0
        %vm3801 = vcmp.gt.f32.partialorder %v3650, 0.0
        %vm3802 = vcmp.gt.f32.partialorder %v3652, 0.0
        %vm3803 = vcmp.gt.f32.partialorder %v3763, 0.0
        %vm3804 = vcmp.gt.f32.partialorder %v3656, 0.0
        %vm3805 = vcmp.gt.f32.partialorder %v3658, 0.0
        %vm3806 = vcmp.gt.f32.partialorder %v3768, 0.0
        %vm3807 = vcmp.gt.f32.partialorder %v3662, 0.0
        %vm3808 = vcmp.gt.f32.partialorder %v3664, 0.0
        %vm3809 = vcmp.gt.f32.partialorder %v3773, 0.0
        %vm3810 = vcmp.gt.f32.partialorder %v3668, 0.0
        %vm3811 = vcmp.gt.f32.partialorder %v3670, 0.0
        %vm3812 = vcmp.gt.f32.partialorder %v3778, 0.0
        %vm3813 = vcmp.gt.f32.partialorder %v3674, 0.0
        %vm3814 = vcmp.gt.f32.partialorder %v3676, 0.0
        %vm3815 = vcmp.gt.f32.partialorder %v3783, 0.0
        %vm3816 = vcmp.gt.f32.partialorder %v3680, 0.0
        %vm3817 = vcmp.gt.f32.partialorder %v3682, 0.0
        %vm3818 = vcmp.gt.f32.partialorder %v3788, 0.0
        %vm3819 = vcmp.gt.f32.partialorder %v3686, 0.0
        %vm3820 = vcmp.gt.f32.partialorder %v3688, 0.0
        %vm3821 = vcmp.gt.f32.partialorder %v3793, 0.0
        %vm3822 = vcmp.gt.f32.partialorder %v3692, 0.0
        %vm3823 = vcmp.gt.f32.partialorder %v3694, 0.0
        %vm3824 = vcmp.gt.f32.partialorder %v3798, 0.0
        %v3825 = vmul.f32 %v3650, 0.01
        %v3826 = vmul.f32 %v3652, 0.01
        %v3827 = vmul.f32 %v3763, 0.01
        %v3828 = vmul.f32 %v3656, 0.01
        %v3829 = vmul.f32 %v3658, 0.01
        %v3830 = vmul.f32 %v3768, 0.01
        %v3831 = vmul.f32 %v3662, 0.01
        %v3832 = vmul.f32 %v3664, 0.01
        %v3833 = vmul.f32 %v3773, 0.01
        %v3834 = vmul.f32 %v3668, 0.01
        %v3835 = vmul.f32 %v3670, 0.01
        %v3836 = vmul.f32 %v3778, 0.01
        %v3837 = vmul.f32 %v3674, 0.01
        %v3838 = vmul.f32 %v3676, 0.01
        %v3839 = vmul.f32 %v3783, 0.01
        %v3840 = vmul.f32 %v3680, 0.01
        %v3841 = vmul.f32 %v3682, 0.01
        %v3842 = vmul.f32 %v3788, 0.01
        %v3843 = vmul.f32 %v3686, 0.01
        %v3844 = vmul.f32 %v3688, 0.01
        %v3845 = vmul.f32 %v3793, 0.01
        %v3846 = vmul.f32 %v3692, 0.01
        %v3847 = vmul.f32 %v3694, 0.01
        %v3848 = vmul.f32 %v3798, 0.01
        %v3849 = vsel %vm3801, %v3650, %v3825
        %v3850 = vsel %vm3802, %v3652, %v3826
        %v3851 = vsel %vm3803, %v3763, %v3827
        %v3852 = vsel %vm3804, %v3656, %v3828
        %v3853 = vsel %vm3805, %v3658, %v3829
        %v3854 = vsel %vm3806, %v3768, %v3830
        %v3855 = vsel %vm3807, %v3662, %v3831
        %v3856 = vsel %vm3808, %v3664, %v3832
        %v3857 = vsel %vm3809, %v3773, %v3833
        %v3858 = vsel %vm3810, %v3668, %v3834
        %v3859 = vsel %vm3811, %v3670, %v3835
        %v3860 = vsel %vm3812, %v3778, %v3836
        %v3861 = vsel %vm3813, %v3674, %v3837
        %v3862 = vsel %vm3814, %v3676, %v3838
        %v3863 = vsel %vm3815, %v3783, %v3839
        %v3864 = vsel %vm3816, %v3680, %v3840
        %v3865 = vsel %vm3817, %v3682, %v3841
        %v3866 = vsel %vm3818, %v3788, %v3842
        %v3867 = vsel %vm3819, %v3686, %v3843
        %v3868 = vsel %vm3820, %v3688, %v3844
        %v3869 = vsel %vm3821, %v3793, %v3845
        %v3870 = vsel %vm3822, %v3692, %v3846
        %v3871 = vsel %vm3823, %v3694, %v3847
        %v3872 = vsel %vm3824, %v3798, %v3848
        %v3873 = vsel %vm1734, %v3849, 0.0
        %v3874 = vsel %vm1735, %v3850, 0.0
        %v3875 = vsel %vm1736, %v3851, 0.0
        %v3876 = vsel %vm1734, %v3852, 0.0
        %v3877 = vsel %vm1735, %v3853, 0.0
        %v3878 = vsel %vm1736, %v3854, 0.0
        %v3879 = vsel %vm1734, %v3855, 0.0
        %v3880 = vsel %vm1735, %v3856, 0.0
        %v3881 = vsel %vm1736, %v3857, 0.0
        %v3882 = vsel %vm1734, %v3858, 0.0
        %v3883 = vsel %vm1735, %v3859, 0.0
        %v3884 = vsel %vm1736, %v3860, 0.0
        %v3885 = vsel %vm1734, %v3861, 0.0
        %v3886 = vsel %vm1735, %v3862, 0.0
        %v3887 = vsel %vm1736, %v3863, 0.0
        %v3888 = vsel %vm1734, %v3864, 0.0
        %v3889 = vsel %vm1735, %v3865, 0.0
        %v3890 = vsel %vm1736, %v3866, 0.0
        %v3891 = vsel %vm1734, %v3867, 0.0
        %v3892 = vsel %vm1735, %v3868, 0.0
        %v3893 = vsel %vm1736, %v3869, 0.0
        %v3894 = vsel %vm1734, %v3870, 0.0
        %v3895 = vsel %vm1735, %v3871, 0.0
        %v3896 = vsel %vm1736, %v3872, 0.0
        %3897 = vst [vmem:[#allocation3 + $0x8] sm:$0xff] %v3873
        %3898 = vst [vmem:[#allocation3 + $0x10] sm:$0xff] %v3874
        %3899 = vst [vmem:[#allocation3 + $0x18] sm:$0xff] %v3875
        %3900 = vst [vmem:[#allocation3 + $0x30] sm:$0xff] %v3876
        %3901 = vst [vmem:[#allocation3 + $0x38] sm:$0xff] %v3877
        %3902 = vst [vmem:[#allocation3 + $0x40] sm:$0xff] %v3878
        %3903 = vst [vmem:[#allocation3 + $0x58] sm:$0xff] %v3879
        %3904 = vst [vmem:[#allocation3 + $0x60] sm:$0xff] %v3880
        %3905 = vst [vmem:[#allocation3 + $0x68] sm:$0xff] %v3881
        %3906 = vst [vmem:[#allocation3 + $0x80] sm:$0xff] %v3882
        %3907 = vst [vmem:[#allocation3 + $0x88] sm:$0xff] %v3883
        %3908 = vst [vmem:[#allocation3 + $0x90] sm:$0xff] %v3884
        %3909 = vst [vmem:[#allocation3 + $0xa8] sm:$0xff] %v3885
        %3910 = vst [vmem:[#allocation3 + $0xb0] sm:$0xff] %v3886
        %3911 = vst [vmem:[#allocation3 + $0xb8] sm:$0xff] %v3887
        %3912 = vst [vmem:[#allocation3 + $0xd0] sm:$0xff] %v3888
        %3913 = vst [vmem:[#allocation3 + $0xd8] sm:$0xff] %v3889
        %3914 = vst [vmem:[#allocation3 + $0xe0] sm:$0xff] %v3890
        %3915 = vst [vmem:[#allocation3 + $0xf8] sm:$0xff] %v3891
        %3916 = vst [vmem:[#allocation3 + $0x100] sm:$0xff] %v3892
        %3917 = vst [vmem:[#allocation3 + $0x108] sm:$0xff] %v3893
        %3918 = vst [vmem:[#allocation3 + $0x120] sm:$0xff] %v3894
        %3919 = vst [vmem:[#allocation3 + $0x128] sm:$0xff] %v3895
        %3920 = vst [vmem:[#allocation3 + $0x130] sm:$0xff] %v3896
        %v3921 = vld [vmem:[#allocation3] sm:$0xff]
        %v3922 = vld [vmem:[#allocation3 + $0x8] sm:$0xff]
        %v3923 = vld [vmem:[#allocation3 + $0x10] sm:$0xff]
        %v3924 = vld [vmem:[#allocation3 + $0x18] sm:$0xff]
        %v3925 = vld [vmem:[#allocation3 + $0x28] sm:$0xff]
        %v3926 = vld [vmem:[#allocation3 + $0x30] sm:$0xff]
        %v3927 = vld [vmem:[#allocation3 + $0x38] sm:$0xff]
        %v3928 = vld [vmem:[#allocation3 + $0x40] sm:$0xff]
        %v3929 = vld [vmem:[#allocation3 + $0x50] sm:$0xff]
        %v3930 = vld [vmem:[#allocation3 + $0x58] sm:$0xff]
        %v3931 = vld [vmem:[#allocation3 + $0x60] sm:$0xff]
        %v3932 = vld [vmem:[#allocation3 + $0x68] sm:$0xff]
        %v3933 = vld [vmem:[#allocation3 + $0x78] sm:$0xff]
        %v3934 = vld [vmem:[#allocation3 + $0x80] sm:$0xff]
        %v3935 = vld [vmem:[#allocation3 + $0x88] sm:$0xff]
        %v3936 = vld [vmem:[#allocation3 + $0x90] sm:$0xff]
        %v3937 = vld [vmem:[#allocation3 + $0xa0] sm:$0xff]
        %v3938 = vld [vmem:[#allocation3 + $0xa8] sm:$0xff]
        %v3939 = vld [vmem:[#allocation3 + $0xb0] sm:$0xff]
        %v3940 = vld [vmem:[#allocation3 + $0xb8] sm:$0xff]
        %v3941 = vld [vmem:[#allocation3 + $0xc8] sm:$0xff]
        %v3942 = vld [vmem:[#allocation3 + $0xd0] sm:$0xff]
        %v3943 = vld [vmem:[#allocation3 + $0xd8] sm:$0xff]
        %v3944 = vld [vmem:[#allocation3 + $0xe0] sm:$0xff]
        %v3945 = vld [vmem:[#allocation3 + $0xf0] sm:$0xff]
        %v3946 = vld [vmem:[#allocation3 + $0xf8] sm:$0xff]
        %v3947 = vld [vmem:[#allocation3 + $0x100] sm:$0xff]
        %v3948 = vld [vmem:[#allocation3 + $0x108] sm:$0xff]
        %v3949 = vld [vmem:[#allocation3 + $0x118] sm:$0xff]
        %v3950 = vld [vmem:[#allocation3 + $0x120] sm:$0xff]
        %v3951 = vld [vmem:[#allocation3 + $0x128] sm:$0xff]
        %v3952 = vld [vmem:[#allocation3 + $0x130] sm:$0xff]
        %3985 = vrot.lane.b32.xlu0 %v3921, 1
        %v3986 = vpop.permute.xlu0 %3985
        %3987 = vrot.lane.b32.xlu0 %v3922, 1
        %v3988 = vpop.permute.xlu0 %3987
        %3989 = vrot.lane.b32.xlu0 %v3923, 1
        %v3990 = vpop.permute.xlu0 %3989
        %3991 = vrot.lane.b32.xlu0 %v3924, 1
        %v3992 = vpop.permute.xlu0 %3991
        %3993 = vrot.lane.b32.xlu0 %v3925, 1
        %v3994 = vpop.permute.xlu0 %3993
        %3995 = vrot.lane.b32.xlu0 %v3926, 1
        %v3996 = vpop.permute.xlu0 %3995
        %3997 = vrot.lane.b32.xlu0 %v3927, 1
        %v3998 = vpop.permute.xlu0 %3997
        %3999 = vrot.lane.b32.xlu0 %v3928, 1
        %v4000 = vpop.permute.xlu0 %3999
        %4001 = vrot.lane.b32.xlu0 %v3929, 1
        %v4002 = vpop.permute.xlu0 %4001
        %4003 = vrot.lane.b32.xlu0 %v3930, 1
        %v4004 = vpop.permute.xlu0 %4003
        %4005 = vrot.lane.b32.xlu0 %v3931, 1
        %v4006 = vpop.permute.xlu0 %4005
        %4007 = vrot.lane.b32.xlu0 %v3932, 1
        %v4008 = vpop.permute.xlu0 %4007
        %4009 = vrot.lane.b32.xlu0 %v3933, 1
        %v4010 = vpop.permute.xlu0 %4009
        %4011 = vrot.lane.b32.xlu0 %v3934, 1
        %v4012 = vpop.permute.xlu0 %4011
        %4013 = vrot.lane.b32.xlu0 %v3935, 1
        %v4014 = vpop.permute.xlu0 %4013
        %4015 = vrot.lane.b32.xlu0 %v3936, 1
        %v4016 = vpop.permute.xlu0 %4015
        %4017 = vrot.lane.b32.xlu0 %v3937, 1
        %v4018 = vpop.permute.xlu0 %4017
        %4019 = vrot.lane.b32.xlu0 %v3938, 1
        %v4020 = vpop.permute.xlu0 %4019
        %4021 = vrot.lane.b32.xlu0 %v3939, 1
        %v4022 = vpop.permute.xlu0 %4021
        %4023 = vrot.lane.b32.xlu0 %v3940, 1
        %v4024 = vpop.permute.xlu0 %4023
        %4025 = vrot.lane.b32.xlu0 %v3941, 1
        %v4026 = vpop.permute.xlu0 %4025
        %4027 = vrot.lane.b32.xlu0 %v3942, 1
        %v4028 = vpop.permute.xlu0 %4027
        %4029 = vrot.lane.b32.xlu0 %v3943, 1
        %v4030 = vpop.permute.xlu0 %4029
        %4031 = vrot.lane.b32.xlu0 %v3944, 1
        %v4032 = vpop.permute.xlu0 %4031
        %4033 = vrot.lane.b32.xlu0 %v3945, 1
        %v4034 = vpop.permute.xlu0 %4033
        %4035 = vrot.lane.b32.xlu0 %v3946, 1
        %v4036 = vpop.permute.xlu0 %4035
        %4037 = vrot.lane.b32.xlu0 %v3947, 1
        %v4038 = vpop.permute.xlu0 %4037
        %4039 = vrot.lane.b32.xlu0 %v3948, 1
        %v4040 = vpop.permute.xlu0 %4039
        %4041 = vrot.lane.b32.xlu0 %v3949, 1
        %v4042 = vpop.permute.xlu0 %4041
        %4043 = vrot.lane.b32.xlu0 %v3950, 1
        %v4044 = vpop.permute.xlu0 %4043
        %4045 = vrot.lane.b32.xlu0 %v3951, 1
        %v4046 = vpop.permute.xlu0 %4045
        %4047 = vrot.lane.b32.xlu0 %v3952, 1
        %v4048 = vpop.permute.xlu0 %4047
        %v4049 = vsel %vm790, %v3986, %v3988
        %v4050 = vsel %vm790, %v3988, %v3990
        %v4051 = vsel %vm790, %v3990, %v3992
        %v4052 = vsel %vm790, %v3994, %v3996
        %v4053 = vsel %vm790, %v3996, %v3998
        %v4054 = vsel %vm790, %v3998, %v4000
        %v4055 = vsel %vm790, %v4002, %v4004
        %v4056 = vsel %vm790, %v4004, %v4006
        %v4057 = vsel %vm790, %v4006, %v4008
        %v4058 = vsel %vm790, %v4010, %v4012
        %v4059 = vsel %vm790, %v4012, %v4014
        %v4060 = vsel %vm790, %v4014, %v4016
        %v4061 = vsel %vm790, %v4018, %v4020
        %v4062 = vsel %vm790, %v4020, %v4022
        %v4063 = vsel %vm790, %v4022, %v4024
        %v4064 = vsel %vm790, %v4026, %v4028
        %v4065 = vsel %vm790, %v4028, %v4030
        %v4066 = vsel %vm790, %v4030, %v4032
        %v4067 = vsel %vm790, %v4034, %v4036
        %v4068 = vsel %vm790, %v4036, %v4038
        %v4069 = vsel %vm790, %v4038, %v4040
        %v4070 = vsel %vm790, %v4042, %v4044
        %v4071 = vsel %vm790, %v4044, %v4046
        %v4072 = vsel %vm790, %v4046, %v4048
        %4097 = vst [vmem:[#allocation4] sm:$0xff] %v4049
        %4098 = vst [vmem:[#allocation4 + $0x8] sm:$0xff] %v4050
        %4099 = vst [vmem:[#allocation4 + $0x10] sm:$0xff] %v4051
        %4100 = vst [vmem:[#allocation4 + $0x18] sm:$0xff] %v4052
        %4101 = vst [vmem:[#allocation4 + $0x20] sm:$0xff] %v4053
        %4102 = vst [vmem:[#allocation4 + $0x28] sm:$0xff] %v4054
        %4103 = vst [vmem:[#allocation4 + $0x30] sm:$0xff] %v4055
        %4104 = vst [vmem:[#allocation4 + $0x38] sm:$0xff] %v4056
        %4105 = vst [vmem:[#allocation4 + $0x40] sm:$0xff] %v4057
        %4106 = vst [vmem:[#allocation4 + $0x48] sm:$0xff] %v4058
        %4107 = vst [vmem:[#allocation4 + $0x50] sm:$0xff] %v4059
        %4108 = vst [vmem:[#allocation4 + $0x58] sm:$0xff] %v4060
        %4109 = vst [vmem:[#allocation4 + $0x60] sm:$0xff] %v4061
        %4110 = vst [vmem:[#allocation4 + $0x68] sm:$0xff] %v4062
        %4111 = vst [vmem:[#allocation4 + $0x70] sm:$0xff] %v4063
        %4112 = vst [vmem:[#allocation4 + $0x78] sm:$0xff] %v4064
        %4113 = vst [vmem:[#allocation4 + $0x80] sm:$0xff] %v4065
        %4114 = vst [vmem:[#allocation4 + $0x88] sm:$0xff] %v4066
        %4115 = vst [vmem:[#allocation4 + $0x90] sm:$0xff] %v4067
        %4116 = vst [vmem:[#allocation4 + $0x98] sm:$0xff] %v4068
        %4117 = vst [vmem:[#allocation4 + $0xa0] sm:$0xff] %v4069
        %4118 = vst [vmem:[#allocation4 + $0xa8] sm:$0xff] %v4070
        %4119 = vst [vmem:[#allocation4 + $0xb0] sm:$0xff] %v4071
        %4120 = vst [vmem:[#allocation4 + $0xb8] sm:$0xff] %v4072
        %v4121 = vld [vmem:[#allocation3 + $0x8] sm:$0xff]
        %v4122 = vld [vmem:[#allocation3 + $0x10] sm:$0xff]
        %v4123 = vld [vmem:[#allocation3 + $0x18] sm:$0xff]
        %v4124 = vld [vmem:[#allocation3 + $0x30] sm:$0xff]
        %v4125 = vld [vmem:[#allocation3 + $0x38] sm:$0xff]
        %v4126 = vld [vmem:[#allocation3 + $0x40] sm:$0xff]
        %v4127 = vld [vmem:[#allocation3 + $0x58] sm:$0xff]
        %v4128 = vld [vmem:[#allocation3 + $0x60] sm:$0xff]
        %v4129 = vld [vmem:[#allocation3 + $0x68] sm:$0xff]
        %v4130 = vld [vmem:[#allocation3 + $0x80] sm:$0xff]
        %v4131 = vld [vmem:[#allocation3 + $0x88] sm:$0xff]
        %v4132 = vld [vmem:[#allocation3 + $0x90] sm:$0xff]
        %v4133 = vld [vmem:[#allocation3 + $0xa8] sm:$0xff]
        %v4134 = vld [vmem:[#allocation3 + $0xb0] sm:$0xff]
        %v4135 = vld [vmem:[#allocation3 + $0xb8] sm:$0xff]
        %v4136 = vld [vmem:[#allocation3 + $0xd0] sm:$0xff]
        %v4137 = vld [vmem:[#allocation3 + $0xd8] sm:$0xff]
        %v4138 = vld [vmem:[#allocation3 + $0xe0] sm:$0xff]
        %v4139 = vld [vmem:[#allocation3 + $0xf8] sm:$0xff]
        %v4140 = vld [vmem:[#allocation3 + $0x100] sm:$0xff]
        %v4141 = vld [vmem:[#allocation3 + $0x108] sm:$0xff]
        %v4142 = vld [vmem:[#allocation3 + $0x120] sm:$0xff]
        %v4143 = vld [vmem:[#allocation3 + $0x128] sm:$0xff]
        %v4144 = vld [vmem:[#allocation3 + $0x130] sm:$0xff]
        %4145 = vst [vmem:[#allocation4 + $0xc0] sm:$0xff] %v4121
        %4146 = vst [vmem:[#allocation4 + $0xc8] sm:$0xff] %v4122
        %4147 = vst [vmem:[#allocation4 + $0xd0] sm:$0xff] %v4123
        %4148 = vst [vmem:[#allocation4 + $0xd8] sm:$0xff] %v4124
        %4149 = vst [vmem:[#allocation4 + $0xe0] sm:$0xff] %v4125
        %4150 = vst [vmem:[#allocation4 + $0xe8] sm:$0xff] %v4126
        %4151 = vst [vmem:[#allocation4 + $0xf0] sm:$0xff] %v4127
        %4152 = vst [vmem:[#allocation4 + $0xf8] sm:$0xff] %v4128
        %4153 = vst [vmem:[#allocation4 + $0x100] sm:$0xff] %v4129
        %4154 = vst [vmem:[#allocation4 + $0x108] sm:$0xff] %v4130
        %4155 = vst [vmem:[#allocation4 + $0x110] sm:$0xff] %v4131
        %4156 = vst [vmem:[#allocation4 + $0x118] sm:$0xff] %v4132
        %4157 = vst [vmem:[#allocation4 + $0x120] sm:$0xff] %v4133
        %4158 = vst [vmem:[#allocation4 + $0x128] sm:$0xff] %v4134
        %4159 = vst [vmem:[#allocation4 + $0x130] sm:$0xff] %v4135
        %4160 = vst [vmem:[#allocation4 + $0x138] sm:$0xff] %v4136
        %4161 = vst [vmem:[#allocation4 + $0x140] sm:$0xff] %v4137
        %4162 = vst [vmem:[#allocation4 + $0x148] sm:$0xff] %v4138
        %4163 = vst [vmem:[#allocation4 + $0x150] sm:$0xff] %v4139
        %4164 = vst [vmem:[#allocation4 + $0x158] sm:$0xff] %v4140
        %4165 = vst [vmem:[#allocation4 + $0x160] sm:$0xff] %v4141
        %4166 = vst [vmem:[#allocation4 + $0x168] sm:$0xff] %v4142
        %4167 = vst [vmem:[#allocation4 + $0x170] sm:$0xff] %v4143
        %4168 = vst [vmem:[#allocation4 + $0x178] sm:$0xff] %v4144
        %v4169 = vld [vmem:[#allocation3 + $0x8] sm:$0xff]
        %v4170 = vld [vmem:[#allocation3 + $0x10] sm:$0xff]
        %v4171 = vld [vmem:[#allocation3 + $0x18] sm:$0xff]
        %v4172 = vld [vmem:[#allocation3 + $0x20] sm:$0xff]
        %v4173 = vld [vmem:[#allocation3 + $0x30] sm:$0xff]
        %v4174 = vld [vmem:[#allocation3 + $0x38] sm:$0xff]
        %v4175 = vld [vmem:[#allocation3 + $0x40] sm:$0xff]
        %v4176 = vld [vmem:[#allocation3 + $0x48] sm:$0xff]
        %v4177 = vld [vmem:[#allocation3 + $0x58] sm:$0xff]
        %v4178 = vld [vmem:[#allocation3 + $0x60] sm:$0xff]
        %v4179 = vld [vmem:[#allocation3 + $0x68] sm:$0xff]
        %v4180 = vld [vmem:[#allocation3 + $0x70] sm:$0xff]
        %v4181 = vld [vmem:[#allocation3 + $0x80] sm:$0xff]
        %v4182 = vld [vmem:[#allocation3 + $0x88] sm:$0xff]
        %v4183 = vld [vmem:[#allocation3 + $0x90] sm:$0xff]
        %v4184 = vld [vmem:[#allocation3 + $0x98] sm:$0xff]
        %v4185 = vld [vmem:[#allocation3 + $0xa8] sm:$0xff]
        %v4186 = vld [vmem:[#allocation3 + $0xb0] sm:$0xff]
        %v4187 = vld [vmem:[#allocation3 + $0xb8] sm:$0xff]
        %v4188 = vld [vmem:[#allocation3 + $0xc0] sm:$0xff]
        %v4189 = vld [vmem:[#allocation3 + $0xd0] sm:$0xff]
        %v4190 = vld [vmem:[#allocation3 + $0xd8] sm:$0xff]
        %v4191 = vld [vmem:[#allocation3 + $0xe0] sm:$0xff]
        %v4192 = vld [vmem:[#allocation3 + $0xe8] sm:$0xff]
        %v4193 = vld [vmem:[#allocation3 + $0xf8] sm:$0xff]
        %v4194 = vld [vmem:[#allocation3 + $0x100] sm:$0xff]
        %v4195 = vld [vmem:[#allocation3 + $0x108] sm:$0xff]
        %v4196 = vld [vmem:[#allocation3 + $0x110] sm:$0xff]
        %v4197 = vld [vmem:[#allocation3 + $0x120] sm:$0xff]
        %v4198 = vld [vmem:[#allocation3 + $0x128] sm:$0xff]
        %v4199 = vld [vmem:[#allocation3 + $0x130] sm:$0xff]
        %v4200 = vld [vmem:[#allocation3 + $0x138] sm:$0xff]
        %4233 = vrot.lane.b32.xlu0 %v4169, 127
        %v4234 = vpop.permute.xlu0 %4233
        %4235 = vrot.lane.b32.xlu0 %v4170, 127
        %v4236 = vpop.permute.xlu0 %4235
        %4237 = vrot.lane.b32.xlu0 %v4171, 127
        %v4238 = vpop.permute.xlu0 %4237
        %4239 = vrot.lane.b32.xlu0 %v4172, 127
        %v4240 = vpop.permute.xlu0 %4239
        %4241 = vrot.lane.b32.xlu0 %v4173, 127
        %v4242 = vpop.permute.xlu0 %4241
        %4243 = vrot.lane.b32.xlu0 %v4174, 127
        %v4244 = vpop.permute.xlu0 %4243
        %4245 = vrot.lane.b32.xlu0 %v4175, 127
        %v4246 = vpop.permute.xlu0 %4245
        %4247 = vrot.lane.b32.xlu0 %v4176, 127
        %v4248 = vpop.permute.xlu0 %4247
        %4249 = vrot.lane.b32.xlu0 %v4177, 127
        %v4250 = vpop.permute.xlu0 %4249
        %4251 = vrot.lane.b32.xlu0 %v4178, 127
        %v4252 = vpop.permute.xlu0 %4251
        %4253 = vrot.lane.b32.xlu0 %v4179, 127
        %v4254 = vpop.permute.xlu0 %4253
        %4255 = vrot.lane.b32.xlu0 %v4180, 127
        %v4256 = vpop.permute.xlu0 %4255
        %4257 = vrot.lane.b32.xlu0 %v4181, 127
        %v4258 = vpop.permute.xlu0 %4257
        %4259 = vrot.lane.b32.xlu0 %v4182, 127
        %v4260 = vpop.permute.xlu0 %4259
        %4261 = vrot.lane.b32.xlu0 %v4183, 127
        %v4262 = vpop.permute.xlu0 %4261
        %4263 = vrot.lane.b32.xlu0 %v4184, 127
        %v4264 = vpop.permute.xlu0 %4263
        %4265 = vrot.lane.b32.xlu0 %v4185, 127
        %v4266 = vpop.permute.xlu0 %4265
        %4267 = vrot.lane.b32.xlu0 %v4186, 127
        %v4268 = vpop.permute.xlu0 %4267
        %4269 = vrot.lane.b32.xlu0 %v4187, 127
        %v4270 = vpop.permute.xlu0 %4269
        %4271 = vrot.lane.b32.xlu0 %v4188, 127
        %v4272 = vpop.permute.xlu0 %4271
        %4273 = vrot.lane.b32.xlu0 %v4189, 127
        %v4274 = vpop.permute.xlu0 %4273
        %4275 = vrot.lane.b32.xlu0 %v4190, 127
        %v4276 = vpop.permute.xlu0 %4275
        %4277 = vrot.lane.b32.xlu0 %v4191, 127
        %v4278 = vpop.permute.xlu0 %4277
        %4279 = vrot.lane.b32.xlu0 %v4192, 127
        %v4280 = vpop.permute.xlu0 %4279
        %4281 = vrot.lane.b32.xlu0 %v4193, 127
        %v4282 = vpop.permute.xlu0 %4281
        %4283 = vrot.lane.b32.xlu0 %v4194, 127
        %v4284 = vpop.permute.xlu0 %4283
        %4285 = vrot.lane.b32.xlu0 %v4195, 127
        %v4286 = vpop.permute.xlu0 %4285
        %4287 = vrot.lane.b32.xlu0 %v4196, 127
        %v4288 = vpop.permute.xlu0 %4287
        %4289 = vrot.lane.b32.xlu0 %v4197, 127
        %v4290 = vpop.permute.xlu0 %4289
        %4291 = vrot.lane.b32.xlu0 %v4198, 127
        %v4292 = vpop.permute.xlu0 %4291
        %4293 = vrot.lane.b32.xlu0 %v4199, 127
        %v4294 = vpop.permute.xlu0 %4293
        %4295 = vrot.lane.b32.xlu0 %v4200, 127
        %v4296 = vpop.permute.xlu0 %4295
        %v4297 = vsel %vm1207, %v4234, %v4236
        %v4298 = vsel %vm1207, %v4236, %v4238
        %v4299 = vsel %vm1207, %v4238, %v4240
        %v4300 = vsel %vm1207, %v4242, %v4244
        %v4301 = vsel %vm1207, %v4244, %v4246
        %v4302 = vsel %vm1207, %v4246, %v4248
        %v4303 = vsel %vm1207, %v4250, %v4252
        %v4304 = vsel %vm1207, %v4252, %v4254
        %v4305 = vsel %vm1207, %v4254, %v4256
        %v4306 = vsel %vm1207, %v4258, %v4260
        %v4307 = vsel %vm1207, %v4260, %v4262
        %v4308 = vsel %vm1207, %v4262, %v4264
        %v4309 = vsel %vm1207, %v4266, %v4268
        %v4310 = vsel %vm1207, %v4268, %v4270
        %v4311 = vsel %vm1207, %v4270, %v4272
        %v4312 = vsel %vm1207, %v4274, %v4276
        %v4313 = vsel %vm1207, %v4276, %v4278
        %v4314 = vsel %vm1207, %v4278, %v4280
        %v4315 = vsel %vm1207, %v4282, %v4284
        %v4316 = vsel %vm1207, %v4284, %v4286
        %v4317 = vsel %vm1207, %v4286, %v4288
        %v4318 = vsel %vm1207, %v4290, %v4292
        %v4319 = vsel %vm1207, %v4292, %v4294
        %v4320 = vsel %vm1207, %v4294, %v4296
        %4345 = vst [vmem:[#allocation4 + $0x180] sm:$0xff] %v4297
        %4346 = vst [vmem:[#allocation4 + $0x188] sm:$0xff] %v4298
        %4347 = vst [vmem:[#allocation4 + $0x190] sm:$0xff] %v4299
        %4348 = vst [vmem:[#allocation4 + $0x198] sm:$0xff] %v4300
        %4349 = vst [vmem:[#allocation4 + $0x1a0] sm:$0xff] %v4301
        %4350 = vst [vmem:[#allocation4 + $0x1a8] sm:$0xff] %v4302
        %4351 = vst [vmem:[#allocation4 + $0x1b0] sm:$0xff] %v4303
        %4352 = vst [vmem:[#allocation4 + $0x1b8] sm:$0xff] %v4304
        %4353 = vst [vmem:[#allocation4 + $0x1c0] sm:$0xff] %v4305
        %4354 = vst [vmem:[#allocation4 + $0x1c8] sm:$0xff] %v4306
        %4355 = vst [vmem:[#allocation4 + $0x1d0] sm:$0xff] %v4307
        %4356 = vst [vmem:[#allocation4 + $0x1d8] sm:$0xff] %v4308
        %4357 = vst [vmem:[#allocation4 + $0x1e0] sm:$0xff] %v4309
        %4358 = vst [vmem:[#allocation4 + $0x1e8] sm:$0xff] %v4310
        %4359 = vst [vmem:[#allocation4 + $0x1f0] sm:$0xff] %v4311
        %4360 = vst [vmem:[#allocation4 + $0x1f8] sm:$0xff] %v4312
        %4361 = vst [vmem:[#allocation4 + $0x200] sm:$0xff] %v4313
        %4362 = vst [vmem:[#allocation4 + $0x208] sm:$0xff] %v4314
        %4363 = vst [vmem:[#allocation4 + $0x210] sm:$0xff] %v4315
        %4364 = vst [vmem:[#allocation4 + $0x218] sm:$0xff] %v4316
        %4365 = vst [vmem:[#allocation4 + $0x220] sm:$0xff] %v4317
        %4366 = vst [vmem:[#allocation4 + $0x228] sm:$0xff] %v4318
        %4367 = vst [vmem:[#allocation4 + $0x230] sm:$0xff] %v4319
        %4368 = vst [vmem:[#allocation4 + $0x238] sm:$0xff] %v4320
        %s4369 = scalar_lea.vmem [#allocation11], 128
        %v4370 = vld [vmem:[%s4369] sm:$0xff]
        %v4371 = vld [vmem:[%s4369 + $0x8] sm:$0xff]
        %v4372 = vld [vmem:[%s4369 + $0x10] sm:$0xff]
        %v4373 = vld [vmem:[%s4369 + $0x18] sm:$0xff]
        %v4374 = vld [vmem:[%s4369 + $0x20] sm:$0xff]
        %v4375 = vld [vmem:[%s4369 + $0x28] sm:$0xff]
        %v4376 = vld [vmem:[%s4369 + $0x30] sm:$0xff]
        %v4377 = vld [vmem:[%s4369 + $0x38] sm:$0xff]
        %v4378 = vld [vmem:[%s4369 + $0x40] sm:$0xff]
        %v4379 = vld [vmem:[%s4369 + $0x48] sm:$0xff]
        %v4380 = vld [vmem:[%s4369 + $0x50] sm:$0xff]
        %v4381 = vld [vmem:[%s4369 + $0x58] sm:$0xff]
        %v4382 = vld [vmem:[%s4369 + $0x60] sm:$0xff]
        %v4383 = vld [vmem:[%s4369 + $0x68] sm:$0xff]
        %v4384 = vld [vmem:[%s4369 + $0x70] sm:$0xff]
        %v4385 = vld [vmem:[%s4369 + $0x78] sm:$0xff]
        %v4386 = vld [vmem:[#allocation4] sm:$0xff]
        %v4387 = vld [vmem:[#allocation4 + $0x8] sm:$0xff]
        %v4388 = vld [vmem:[#allocation4 + $0x10] sm:$0xff]
        %v4389 = vld [vmem:[#allocation4 + $0x18] sm:$0xff]
        %v4390 = vld [vmem:[#allocation4 + $0x20] sm:$0xff]
        %v4391 = vld [vmem:[#allocation4 + $0x28] sm:$0xff]
        %v4392 = vld [vmem:[#allocation4 + $0x30] sm:$0xff]
        %v4393 = vld [vmem:[#allocation4 + $0x38] sm:$0xff]
        %v4394 = vld [vmem:[#allocation4 + $0x40] sm:$0xff]
        %v4395 = vld [vmem:[#allocation4 + $0x48] sm:$0xff]
        %v4396 = vld [vmem:[#allocation4 + $0x50] sm:$0xff]
        %v4397 = vld [vmem:[#allocation4 + $0x58] sm:$0xff]
        %v4398 = vld [vmem:[#allocation4 + $0x60] sm:$0xff]
        %v4399 = vld [vmem:[#allocation4 + $0x68] sm:$0xff]
        %v4400 = vld [vmem:[#allocation4 + $0x70] sm:$0xff]
        %v4401 = vld [vmem:[#allocation4 + $0x78] sm:$0xff]
        %v4402 = vld [vmem:[#allocation4 + $0x80] sm:$0xff]
        %v4403 = vld [vmem:[#allocation4 + $0x88] sm:$0xff]
        %v4404 = vld [vmem:[#allocation4 + $0x90] sm:$0xff]
        %v4405 = vld [vmem:[#allocation4 + $0x98] sm:$0xff]
        %v4406 = vld [vmem:[#allocation4 + $0xa0] sm:$0xff]
        %v4407 = vld [vmem:[#allocation4 + $0xa8] sm:$0xff]
        %v4408 = vld [vmem:[#allocation4 + $0xb0] sm:$0xff]
        %v4409 = vld [vmem:[#allocation4 + $0xb8] sm:$0xff]
        %v4410 = vld [vmem:[#allocation4 + $0xc0] sm:$0xff]
        %v4411 = vld [vmem:[#allocation4 + $0xc8] sm:$0xff]
        %v4412 = vld [vmem:[#allocation4 + $0xd0] sm:$0xff]
        %v4413 = vld [vmem:[#allocation4 + $0xd8] sm:$0xff]
        %v4414 = vld [vmem:[#allocation4 + $0xe0] sm:$0xff]
        %v4415 = vld [vmem:[#allocation4 + $0xe8] sm:$0xff]
        %v4416 = vld [vmem:[#allocation4 + $0xf0] sm:$0xff]
        %v4417 = vld [vmem:[#allocation4 + $0xf8] sm:$0xff]
        %v4418 = vld [vmem:[#allocation4 + $0x100] sm:$0xff]
        %v4419 = vld [vmem:[#allocation4 + $0x108] sm:$0xff]
        %v4420 = vld [vmem:[#allocation4 + $0x110] sm:$0xff]
        %v4421 = vld [vmem:[#allocation4 + $0x118] sm:$0xff]
        %v4422 = vld [vmem:[#allocation4 + $0x120] sm:$0xff]
        %v4423 = vld [vmem:[#allocation4 + $0x128] sm:$0xff]
        %v4424 = vld [vmem:[#allocation4 + $0x130] sm:$0xff]
        %v4425 = vld [vmem:[#allocation4 + $0x138] sm:$0xff]
        %v4426 = vld [vmem:[#allocation4 + $0x140] sm:$0xff]
        %v4427 = vld [vmem:[#allocation4 + $0x148] sm:$0xff]
        %v4428 = vld [vmem:[#allocation4 + $0x150] sm:$0xff]
        %v4429 = vld [vmem:[#allocation4 + $0x158] sm:$0xff]
        %v4430 = vld [vmem:[#allocation4 + $0x160] sm:$0xff]
        %v4431 = vld [vmem:[#allocation4 + $0x168] sm:$0xff]
        %v4432 = vld [vmem:[#allocation4 + $0x170] sm:$0xff]
        %v4433 = vld [vmem:[#allocation4 + $0x178] sm:$0xff]
        %v4434 = vld [vmem:[#allocation4 + $0x180] sm:$0xff]
        %v4435 = vld [vmem:[#allocation4 + $0x188] sm:$0xff]
        %v4436 = vld [vmem:[#allocation4 + $0x190] sm:$0xff]
        %v4437 = vld [vmem:[#allocation4 + $0x198] sm:$0xff]
        %v4438 = vld [vmem:[#allocation4 + $0x1a0] sm:$0xff]
        %v4439 = vld [vmem:[#allocation4 + $0x1a8] sm:$0xff]
        %v4440 = vld [vmem:[#allocation4 + $0x1b0] sm:$0xff]
        %v4441 = vld [vmem:[#allocation4 + $0x1b8] sm:$0xff]
        %v4442 = vld [vmem:[#allocation4 + $0x1c0] sm:$0xff]
        %v4443 = vld [vmem:[#allocation4 + $0x1c8] sm:$0xff]
        %v4444 = vld [vmem:[#allocation4 + $0x1d0] sm:$0xff]
        %v4445 = vld [vmem:[#allocation4 + $0x1d8] sm:$0xff]
        %v4446 = vld [vmem:[#allocation4 + $0x1e0] sm:$0xff]
        %v4447 = vld [vmem:[#allocation4 + $0x1e8] sm:$0xff]
        %v4448 = vld [vmem:[#allocation4 + $0x1f0] sm:$0xff]
        %v4449 = vld [vmem:[#allocation4 + $0x1f8] sm:$0xff]
        %v4450 = vld [vmem:[#allocation4 + $0x200] sm:$0xff]
        %v4451 = vld [vmem:[#allocation4 + $0x208] sm:$0xff]
        %v4452 = vld [vmem:[#allocation4 + $0x210] sm:$0xff]
        %v4453 = vld [vmem:[#allocation4 + $0x218] sm:$0xff]
        %v4454 = vld [vmem:[#allocation4 + $0x220] sm:$0xff]
        %v4455 = vld [vmem:[#allocation4 + $0x228] sm:$0xff]
        %v4456 = vld [vmem:[#allocation4 + $0x230] sm:$0xff]
        %v4457 = vld [vmem:[#allocation4 + $0x238] sm:$0xff]
        %s4458 = scalar_lea.vmem %s6, 64
        %v4459 = vld [vmem:[%s4458] sm:$0xff]
        %v4460 = vld [vmem:[%s4458 + $0x8] sm:$0xff]
        %v4461 = vld [vmem:[%s4458 + $0x10] sm:$0xff]
        %v4462 = vld [vmem:[%s4458 + $0x18] sm:$0xff]
        %v4463 = vld [vmem:[%s4458 + $0x20] sm:$0xff]
        %v4464 = vld [vmem:[%s4458 + $0x28] sm:$0xff]
        %v4465 = vld [vmem:[%s4458 + $0x30] sm:$0xff]
        %v4466 = vld [vmem:[%s4458 + $0x38] sm:$0xff]
        %4468 = vset.pattern.permute.xlu0 0
        %4469 = vperm.xlu0 %4468, %v4459
        %v4470 = vpop.permute.xlu0 %4469
        %4473 = vset.pattern.permute.xlu0 0
        %4474 = vperm.xlu0 %4473, %v4460
        %v4475 = vpop.permute.xlu0 %4474
        %4478 = vset.pattern.permute.xlu0 0
        %4479 = vperm.xlu0 %4478, %v4461
        %v4480 = vpop.permute.xlu0 %4479
        %4483 = vset.pattern.permute.xlu0 0
        %4484 = vperm.xlu0 %4483, %v4462
        %v4485 = vpop.permute.xlu0 %4484
        %4488 = vset.pattern.permute.xlu0 0
        %4489 = vperm.xlu0 %4488, %v4463
        %v4490 = vpop.permute.xlu0 %4489
        %4493 = vset.pattern.permute.xlu0 0
        %4494 = vperm.xlu0 %4493, %v4464
        %v4495 = vpop.permute.xlu0 %4494
        %4498 = vset.pattern.permute.xlu0 0
        %4499 = vperm.xlu0 %4498, %v4465
        %v4500 = vpop.permute.xlu0 %4499
        %4503 = vset.pattern.permute.xlu0 0
        %4504 = vperm.xlu0 %4503, %v4466
        %v4505 = vpop.permute.xlu0 %4504
        %v4508 = vsel %vm1416, %v4371, 0
        %v4511 = vsel %vm1416, %v4373, 0
        %v4514 = vsel %vm1416, %v4375, 0
        %v4517 = vsel %vm1416, %v4377, 0
        %v4520 = vsel %vm1416, %v4379, 0
        %v4523 = vsel %vm1416, %v4381, 0
        %v4526 = vsel %vm1416, %v4383, 0
        %v4529 = vsel %vm1416, %v4385, 0
        %4531 = vmatprep.subr.mxu0 %v4387
        %4532 = vmatpush1.msra.mxu0 %v4386
        %4533 = vmatprep.subr.mxu0 %v4390
        %4534 = vmatpush1.msra.mxu0 %v4389
        %4535 = vmatprep.subr.mxu0 %v4393
        %4536 = vmatpush1.msra.mxu0 %v4392
        %4537 = vmatprep.subr.mxu0 %v4396
        %4538 = vmatpush1.msra.mxu0 %v4395
        %4539 = vmatprep.subr.mxu0 %v4399
        %4540 = vmatpush1.msra.mxu0 %v4398
        %4541 = vmatprep.subr.mxu0 %v4402
        %4542 = vmatpush1.msra.mxu0 %v4401
        %4543 = vmatprep.subr.mxu0 %v4405
        %4544 = vmatpush1.msra.mxu0 %v4404
        %4545 = vmatprep.subr.mxu0 %v4408
        %4546 = vmatpush1.msra.mxu0 %v4407
        %4547 = vmatprep.subr.mxu0 %v4411
        %4548 = vmatpush1.msra.mxu0 %v4410
        %4549 = vmatprep.subr.mxu0 %v4414
        %4550 = vmatpush1.msra.mxu0 %v4413
        %4551 = vmatprep.subr.mxu0 %v4417
        %4552 = vmatpush1.msra.mxu0 %v4416
        %4553 = vmatprep.subr.mxu0 %v4420
        %4554 = vmatpush1.msra.mxu0 %v4419
        %4555 = vmatprep.subr.mxu0 %v4423
        %4556 = vmatpush1.msra.mxu0 %v4422
        %4557 = vmatprep.subr.mxu0 %v4426
        %4558 = vmatpush1.msra.mxu0 %v4425
        %4559 = vmatprep.subr.mxu0 %v4429
        %4560 = vmatpush1.msra.mxu0 %v4428
        %4561 = vmatprep.subr.mxu0 %v4432
        %4562 = vmatpush1.msra.mxu0 %v4431
        %4563 = vmatprep.subr.mxu0 %v4435
        %4564 = vmatpush1.msra.mxu0 %v4434
        %4565 = vmatprep.subr.mxu0 %v4438
        %4566 = vmatpush1.msra.mxu0 %v4437
        %4567 = vmatprep.subr.mxu0 %v4441
        %4568 = vmatpush1.msra.mxu0 %v4440
        %4569 = vmatprep.subr.mxu0 %v4444
        %4570 = vmatpush1.msra.mxu0 %v4443
        %4571 = vmatprep.subr.mxu0 %v4447
        %4572 = vmatpush1.msra.mxu0 %v4446
        %4573 = vmatprep.subr.mxu0 %v4450
        %4574 = vmatpush1.msra.mxu0 %v4449
        %4575 = vmatprep.subr.mxu0 %v4453
        %4576 = vmatpush1.msra.mxu0 %v4452
        %4577 = vmatprep.subr.mxu0 %v4456
        %4578 = vmatpush1.msra.mxu0 %v4455
        %4579 = vmatprep.subr.mxu0 0.0
        %4580 = vmatpush1.msra.mxu0 0.0
        %4581 = vmatprep.subr.mxu0 0.0
        %4582 = vmatpush1.msra.mxu0 0.0
        %4583 = vmatprep.subr.mxu0 0.0
        %4584 = vmatpush1.msra.mxu0 0.0
        %4585 = vmatprep.subr.mxu0 0.0
        %4586 = vmatpush1.msra.mxu0 0.0
        %4587 = vmatprep.subr.mxu0 0.0
        %4588 = vmatpush1.msra.mxu0 0.0
        %4589 = vmatprep.subr.mxu0 0.0
        %4590 = vmatpush1.msra.mxu0 0.0
        %4591 = vmatprep.subr.mxu0 0.0
        %4592 = vmatpush1.msra.mxu0 0.0
        %4593 = vmatprep.subr.mxu0 0.0
        %4594 = vmatpush1.msra.mxu0 0.0
        %4595 = vmatprep.mubr.f32.mxu0 %v4508
        %4596 = vmatmul.mubr.f32.gmra.mrb[0].mxu0 %v4370
        %v4597 = vpop.f32.mrb[0].mxu0
        %v4598 = vadd.f32 %v4470, %v4597
        %v4599 = vpop.f32.mrb[0].mxu0
        %v4600 = vadd.f32 %v4470, %v4599
        %4601 = vmatprep.mubr.f32.mxu0 %v4511
        %4602 = vmatmul.mubr.f32.gmra.mrb[0].mxu0 %v4372
        %v4603 = vpop.f32.mrb[0].mxu0
        %v4604 = vadd.f32 %v4475, %v4603
        %v4605 = vpop.f32.mrb[0].mxu0
        %v4606 = vadd.f32 %v4475, %v4605
        %4607 = vmatprep.mubr.f32.mxu0 %v4514
        %4608 = vmatmul.mubr.f32.gmra.mrb[0].mxu0 %v4374
        %v4609 = vpop.f32.mrb[0].mxu0
        %v4610 = vadd.f32 %v4480, %v4609
        %v4611 = vpop.f32.mrb[0].mxu0
        %v4612 = vadd.f32 %v4480, %v4611
        %4613 = vmatprep.mubr.f32.mxu0 %v4517
        %4614 = vmatmul.mubr.f32.gmra.mrb[0].mxu0 %v4376
        %v4615 = vpop.f32.mrb[0].mxu0
        %v4616 = vadd.f32 %v4485, %v4615
        %v4617 = vpop.f32.mrb[0].mxu0
        %v4618 = vadd.f32 %v4485, %v4617
        %4619 = vmatprep.mubr.f32.mxu0 %v4520
        %4620 = vmatmul.mubr.f32.gmra.mrb[0].mxu0 %v4378
        %v4621 = vpop.f32.mrb[0].mxu0
        %v4622 = vadd.f32 %v4490, %v4621
        %v4623 = vpop.f32.mrb[0].mxu0
        %v4624 = vadd.f32 %v4490, %v4623
        %4625 = vmatprep.mubr.f32.mxu0 %v4523
        %4626 = vmatmul.mubr.f32.gmra.mrb[0].mxu0 %v4380
        %v4627 = vpop.f32.mrb[0].mxu0
        %v4628 = vadd.f32 %v4495, %v4627
        %v4629 = vpop.f32.mrb[0].mxu0
        %v4630 = vadd.f32 %v4495, %v4629
        %4631 = vmatprep.mubr.f32.mxu0 %v4526
        %4632 = vmatmul.mubr.f32.gmra.mrb[0].mxu0 %v4382
        %v4633 = vpop.f32.mrb[0].mxu0
        %v4634 = vadd.f32 %v4500, %v4633
        %v4635 = vpop.f32.mrb[0].mxu0
        %v4636 = vadd.f32 %v4500, %v4635
        %4637 = vmatprep.mubr.f32.mxu0 %v4529
        %4638 = vmatmul.mubr.f32.gmra.mrb[0].mxu0 %v4384
        %v4639 = vpop.f32.mrb[0].mxu0
        %v4640 = vadd.f32 %v4505, %v4639
        %v4641 = vpop.f32.mrb[0].mxu0
        %v4642 = vadd.f32 %v4505, %v4641
        %4643 = vdwg.mxu0
        %4644 = vmatprep.subr.mxu0 0.0
        %4645 = vmatpush1.msra.mxu0 %v4388
        %4646 = vmatprep.subr.mxu0 0.0
        %4647 = vmatpush1.msra.mxu0 %v4391
        %4648 = vmatprep.subr.mxu0 0.0
        %4649 = vmatpush1.msra.mxu0 %v4394
        %4650 = vmatprep.subr.mxu0 0.0
        %4651 = vmatpush1.msra.mxu0 %v4397
        %4652 = vmatprep.subr.mxu0 0.0
        %4653 = vmatpush1.msra.mxu0 %v4400
        %4654 = vmatprep.subr.mxu0 0.0
        %4655 = vmatpush1.msra.mxu0 %v4403
        %4656 = vmatprep.subr.mxu0 0.0
        %4657 = vmatpush1.msra.mxu0 %v4406
        %4658 = vmatprep.subr.mxu0 0.0
        %4659 = vmatpush1.msra.mxu0 %v4409
        %4660 = vmatprep.subr.mxu0 0.0
        %4661 = vmatpush1.msra.mxu0 %v4412
        %4662 = vmatprep.subr.mxu0 0.0
        %4663 = vmatpush1.msra.mxu0 %v4415
        %4664 = vmatprep.subr.mxu0 0.0
        %4665 = vmatpush1.msra.mxu0 %v4418
        %4666 = vmatprep.subr.mxu0 0.0
        %4667 = vmatpush1.msra.mxu0 %v4421
        %4668 = vmatprep.subr.mxu0 0.0
        %4669 = vmatpush1.msra.mxu0 %v4424
        %4670 = vmatprep.subr.mxu0 0.0
        %4671 = vmatpush1.msra.mxu0 %v4427
        %4672 = vmatprep.subr.mxu0 0.0
        %4673 = vmatpush1.msra.mxu0 %v4430
        %4674 = vmatprep.subr.mxu0 0.0
        %4675 = vmatpush1.msra.mxu0 %v4433
        %4676 = vmatprep.subr.mxu0 0.0
        %4677 = vmatpush1.msra.mxu0 %v4436
        %4678 = vmatprep.subr.mxu0 0.0
        %4679 = vmatpush1.msra.mxu0 %v4439
        %4680 = vmatprep.subr.mxu0 0.0
        %4681 = vmatpush1.msra.mxu0 %v4442
        %4682 = vmatprep.subr.mxu0 0.0
        %4683 = vmatpush1.msra.mxu0 %v4445
        %4684 = vmatprep.subr.mxu0 0.0
        %4685 = vmatpush1.msra.mxu0 %v4448
        %4686 = vmatprep.subr.mxu0 0.0
        %4687 = vmatpush1.msra.mxu0 %v4451
        %4688 = vmatprep.subr.mxu0 0.0
        %4689 = vmatpush1.msra.mxu0 %v4454
        %4690 = vmatprep.subr.mxu0 0.0
        %4691 = vmatpush1.msra.mxu0 %v4457
        %4692 = vmatprep.subr.mxu0 0.0
        %4693 = vmatpush1.msra.mxu0 0.0
        %4694 = vmatprep.subr.mxu0 0.0
        %4695 = vmatpush1.msra.mxu0 0.0
        %4696 = vmatprep.subr.mxu0 0.0
        %4697 = vmatpush1.msra.mxu0 0.0
        %4698 = vmatprep.subr.mxu0 0.0
        %4699 = vmatpush1.msra.mxu0 0.0
        %4700 = vmatprep.subr.mxu0 0.0
        %4701 = vmatpush1.msra.mxu0 0.0
        %4702 = vmatprep.subr.mxu0 0.0
        %4703 = vmatpush1.msra.mxu0 0.0
        %4704 = vmatprep.subr.mxu0 0.0
        %4705 = vmatpush1.msra.mxu0 0.0
        %4706 = vmatprep.subr.mxu0 0.0
        %4707 = vmatpush1.msra.mxu0 0.0
        %4708 = vmatprep.mubr.f32.mxu0 %v4508
        %4709 = vmatmul.mubr.f32.gmra.mrb[0].mxu0 %v4370
        %v4710 = vpop.f32.mrb[0].mxu0
        %v4711 = vadd.f32 %v4470, %v4710
        %v4712 = vpop.f32.mrb[0].mxu0
        %4713 = vmatprep.mubr.f32.mxu0 %v4511
        %4714 = vmatmul.mubr.f32.gmra.mrb[0].mxu0 %v4372
        %v4715 = vpop.f32.mrb[0].mxu0
        %v4716 = vadd.f32 %v4475, %v4715
        %v4717 = vpop.f32.mrb[0].mxu0
        %4718 = vmatprep.mubr.f32.mxu0 %v4514
        %4719 = vmatmul.mubr.f32.gmra.mrb[0].mxu0 %v4374
        %v4720 = vpop.f32.mrb[0].mxu0
        %v4721 = vadd.f32 %v4480, %v4720
        %v4722 = vpop.f32.mrb[0].mxu0
        %4723 = vmatprep.mubr.f32.mxu0 %v4517
        %4724 = vmatmul.mubr.f32.gmra.mrb[0].mxu0 %v4376
        %v4725 = vpop.f32.mrb[0].mxu0
        %v4726 = vadd.f32 %v4485, %v4725
        %v4727 = vpop.f32.mrb[0].mxu0
        %4728 = vmatprep.mubr.f32.mxu0 %v4520
        %4729 = vmatmul.mubr.f32.gmra.mrb[0].mxu0 %v4378
        %v4730 = vpop.f32.mrb[0].mxu0
        %v4731 = vadd.f32 %v4490, %v4730
        %v4732 = vpop.f32.mrb[0].mxu0
        %4733 = vmatprep.mubr.f32.mxu0 %v4523
        %4734 = vmatmul.mubr.f32.gmra.mrb[0].mxu0 %v4380
        %v4735 = vpop.f32.mrb[0].mxu0
        %v4736 = vadd.f32 %v4495, %v4735
        %v4737 = vpop.f32.mrb[0].mxu0
        %4738 = vmatprep.mubr.f32.mxu0 %v4526
        %4739 = vmatmul.mubr.f32.gmra.mrb[0].mxu0 %v4382
        %v4740 = vpop.f32.mrb[0].mxu0
        %v4741 = vadd.f32 %v4500, %v4740
        %v4742 = vpop.f32.mrb[0].mxu0
        %4743 = vmatprep.mubr.f32.mxu0 %v4529
        %4744 = vmatmul.mubr.f32.gmra.mrb[0].mxu0 %v4384
        %v4745 = vpop.f32.mrb[0].mxu0
        %v4746 = vadd.f32 %v4505, %v4745
        %v4747 = vpop.f32.mrb[0].mxu0
        %4748 = vdwg.mxu0
        %v4749 = vld [vmem:[#allocation2 + $0x8] sm:$0xff]
        %v4750 = vld [vmem:[#allocation2 + $0x10] sm:$0xff]
        %v4751 = vld [vmem:[#allocation2 + $0x18] sm:$0xff]
        %v4752 = vld [vmem:[#allocation2 + $0x30] sm:$0xff]
        %v4753 = vld [vmem:[#allocation2 + $0x38] sm:$0xff]
        %v4754 = vld [vmem:[#allocation2 + $0x40] sm:$0xff]
        %v4755 = vld [vmem:[#allocation2 + $0x58] sm:$0xff]
        %v4756 = vld [vmem:[#allocation2 + $0x60] sm:$0xff]
        %v4757 = vld [vmem:[#allocation2 + $0x68] sm:$0xff]
        %v4758 = vld [vmem:[#allocation2 + $0x80] sm:$0xff]
        %v4759 = vld [vmem:[#allocation2 + $0x88] sm:$0xff]
        %v4760 = vld [vmem:[#allocation2 + $0x90] sm:$0xff]
        %v4761 = vld [vmem:[#allocation2 + $0xa8] sm:$0xff]
        %v4762 = vld [vmem:[#allocation2 + $0xb0] sm:$0xff]
        %v4763 = vld [vmem:[#allocation2 + $0xb8] sm:$0xff]
        %v4764 = vld [vmem:[#allocation2 + $0xd0] sm:$0xff]
        %v4765 = vld [vmem:[#allocation2 + $0xd8] sm:$0xff]
        %v4766 = vld [vmem:[#allocation2 + $0xe0] sm:$0xff]
        %v4767 = vld [vmem:[#allocation2 + $0xf8] sm:$0xff]
        %v4768 = vld [vmem:[#allocation2 + $0x100] sm:$0xff]
        %v4769 = vld [vmem:[#allocation2 + $0x108] sm:$0xff]
        %v4770 = vld [vmem:[#allocation2 + $0x120] sm:$0xff]
        %v4771 = vld [vmem:[#allocation2 + $0x128] sm:$0xff]
        %v4772 = vld [vmem:[#allocation2 + $0x130] sm:$0xff]
        %v4773 = vsel %vm1734, %v4598, 0.0
        %v4774 = vsel %vm1735, %v4600, 0.0
        %v4775 = vsel %vm1736, %v4711, 0.0
        %v4776 = vsel %vm1734, %v4604, 0.0
        %v4777 = vsel %vm1735, %v4606, 0.0
        %v4778 = vsel %vm1736, %v4716, 0.0
        %v4779 = vsel %vm1734, %v4610, 0.0
        %v4780 = vsel %vm1735, %v4612, 0.0
        %v4781 = vsel %vm1736, %v4721, 0.0
        %v4782 = vsel %vm1734, %v4616, 0.0
        %v4783 = vsel %vm1735, %v4618, 0.0
        %v4784 = vsel %vm1736, %v4726, 0.0
        %v4785 = vsel %vm1734, %v4622, 0.0
        %v4786 = vsel %vm1735, %v4624, 0.0
        %v4787 = vsel %vm1736, %v4731, 0.0
        %v4788 = vsel %vm1734, %v4628, 0.0
        %v4789 = vsel %vm1735, %v4630, 0.0
        %v4790 = vsel %vm1736, %v4736, 0.0
        %v4791 = vsel %vm1734, %v4634, 0.0
        %v4792 = vsel %vm1735, %v4636, 0.0
        %v4793 = vsel %vm1736, %v4741, 0.0
        %v4794 = vsel %vm1734, %v4640, 0.0
        %v4795 = vsel %vm1735, %v4642, 0.0
        %v4796 = vsel %vm1736, %v4746, 0.0
        %v4797 = vadd.f32 %v4749, %v4773
        %v4798 = vadd.f32 %v4750, %v4774
        %v4799 = vadd.f32 %v4751, %v4775
        %v4800 = vadd.f32 %v4752, %v4776
        %v4801 = vadd.f32 %v4753, %v4777
        %v4802 = vadd.f32 %v4754, %v4778
        %v4803 = vadd.f32 %v4755, %v4779
        %v4804 = vadd.f32 %v4756, %v4780
        %v4805 = vadd.f32 %v4757, %v4781
        %v4806 = vadd.f32 %v4758, %v4782
        %v4807 = vadd.f32 %v4759, %v4783
        %v4808 = vadd.f32 %v4760, %v4784
        %v4809 = vadd.f32 %v4761, %v4785
        %v4810 = vadd.f32 %v4762, %v4786
        %v4811 = vadd.f32 %v4763, %v4787
        %v4812 = vadd.f32 %v4764, %v4788
        %v4813 = vadd.f32 %v4765, %v4789
        %v4814 = vadd.f32 %v4766, %v4790
        %v4815 = vadd.f32 %v4767, %v4791
        %v4816 = vadd.f32 %v4768, %v4792
        %v4817 = vadd.f32 %v4769, %v4793
        %v4818 = vadd.f32 %v4770, %v4794
        %v4819 = vadd.f32 %v4771, %v4795
        %v4820 = vadd.f32 %v4772, %v4796
        %4821 = vst [vmem:[#allocation2 + $0x8] sm:$0xff] %v4797
        %4822 = vst [vmem:[#allocation2 + $0x10] sm:$0xff] %v4798
        %4823 = vst [vmem:[#allocation2 + $0x18] sm:$0xff] %v4799
        %4824 = vst [vmem:[#allocation2 + $0x30] sm:$0xff] %v4800
        %4825 = vst [vmem:[#allocation2 + $0x38] sm:$0xff] %v4801
        %4826 = vst [vmem:[#allocation2 + $0x40] sm:$0xff] %v4802
        %4827 = vst [vmem:[#allocation2 + $0x58] sm:$0xff] %v4803
        %4828 = vst [vmem:[#allocation2 + $0x60] sm:$0xff] %v4804
        %4829 = vst [vmem:[#allocation2 + $0x68] sm:$0xff] %v4805
        %4830 = vst [vmem:[#allocation2 + $0x80] sm:$0xff] %v4806
        %4831 = vst [vmem:[#allocation2 + $0x88] sm:$0xff] %v4807
        %4832 = vst [vmem:[#allocation2 + $0x90] sm:$0xff] %v4808
        %4833 = vst [vmem:[#allocation2 + $0xa8] sm:$0xff] %v4809
        %4834 = vst [vmem:[#allocation2 + $0xb0] sm:$0xff] %v4810
        %4835 = vst [vmem:[#allocation2 + $0xb8] sm:$0xff] %v4811
        %4836 = vst [vmem:[#allocation2 + $0xd0] sm:$0xff] %v4812
        %4837 = vst [vmem:[#allocation2 + $0xd8] sm:$0xff] %v4813
        %4838 = vst [vmem:[#allocation2 + $0xe0] sm:$0xff] %v4814
        %4839 = vst [vmem:[#allocation2 + $0xf8] sm:$0xff] %v4815
        %4840 = vst [vmem:[#allocation2 + $0x100] sm:$0xff] %v4816
        %4841 = vst [vmem:[#allocation2 + $0x108] sm:$0xff] %v4817
        %4842 = vst [vmem:[#allocation2 + $0x120] sm:$0xff] %v4818
        %4843 = vst [vmem:[#allocation2 + $0x128] sm:$0xff] %v4819
        %4844 = vst [vmem:[#allocation2 + $0x130] sm:$0xff] %v4820
        %v4845 = vld [vmem:[#allocation2] sm:$0xff]
        %v4846 = vld [vmem:[#allocation2 + $0x8] sm:$0xff]
        %v4847 = vld [vmem:[#allocation2 + $0x10] sm:$0xff]
        %v4848 = vld [vmem:[#allocation2 + $0x18] sm:$0xff]
        %v4849 = vld [vmem:[#allocation2 + $0x28] sm:$0xff]
        %v4850 = vld [vmem:[#allocation2 + $0x30] sm:$0xff]
        %v4851 = vld [vmem:[#allocation2 + $0x38] sm:$0xff]
        %v4852 = vld [vmem:[#allocation2 + $0x40] sm:$0xff]
        %v4853 = vld [vmem:[#allocation2 + $0x50] sm:$0xff]
        %v4854 = vld [vmem:[#allocation2 + $0x58] sm:$0xff]
        %v4855 = vld [vmem:[#allocation2 + $0x60] sm:$0xff]
        %v4856 = vld [vmem:[#allocation2 + $0x68] sm:$0xff]
        %v4857 = vld [vmem:[#allocation2 + $0x78] sm:$0xff]
        %v4858 = vld [vmem:[#allocation2 + $0x80] sm:$0xff]
        %v4859 = vld [vmem:[#allocation2 + $0x88] sm:$0xff]
        %v4860 = vld [vmem:[#allocation2 + $0x90] sm:$0xff]
        %v4861 = vld [vmem:[#allocation2 + $0xa0] sm:$0xff]
        %v4862 = vld [vmem:[#allocation2 + $0xa8] sm:$0xff]
        %v4863 = vld [vmem:[#allocation2 + $0xb0] sm:$0xff]
        %v4864 = vld [vmem:[#allocation2 + $0xb8] sm:$0xff]
        %v4865 = vld [vmem:[#allocation2 + $0xc8] sm:$0xff]
        %v4866 = vld [vmem:[#allocation2 + $0xd0] sm:$0xff]
        %v4867 = vld [vmem:[#allocation2 + $0xd8] sm:$0xff]
        %v4868 = vld [vmem:[#allocation2 + $0xe0] sm:$0xff]
        %v4869 = vld [vmem:[#allocation2 + $0xf0] sm:$0xff]
        %v4870 = vld [vmem:[#allocation2 + $0xf8] sm:$0xff]
        %v4871 = vld [vmem:[#allocation2 + $0x100] sm:$0xff]
        %v4872 = vld [vmem:[#allocation2 + $0x108] sm:$0xff]
        %v4873 = vld [vmem:[#allocation2 + $0x118] sm:$0xff]
        %v4874 = vld [vmem:[#allocation2 + $0x120] sm:$0xff]
        %v4875 = vld [vmem:[#allocation2 + $0x128] sm:$0xff]
        %v4876 = vld [vmem:[#allocation2 + $0x130] sm:$0xff]
        %vm4877 = vcmp.gt.f32.partialorder %v4845, 0.0
        %vm4878 = vcmp.gt.f32.partialorder %v4846, 0.0
        %vm4879 = vcmp.gt.f32.partialorder %v4847, 0.0
        %vm4880 = vcmp.gt.f32.partialorder %v4848, 0.0
        %vm4881 = vcmp.gt.f32.partialorder %v4849, 0.0
        %vm4882 = vcmp.gt.f32.partialorder %v4850, 0.0
        %vm4883 = vcmp.gt.f32.partialorder %v4851, 0.0
        %vm4884 = vcmp.gt.f32.partialorder %v4852, 0.0
        %vm4885 = vcmp.gt.f32.partialorder %v4853, 0.0
        %vm4886 = vcmp.gt.f32.partialorder %v4854, 0.0
        %vm4887 = vcmp.gt.f32.partialorder %v4855, 0.0
        %vm4888 = vcmp.gt.f32.partialorder %v4856, 0.0
        %vm4889 = vcmp.gt.f32.partialorder %v4857, 0.0
        %vm4890 = vcmp.gt.f32.partialorder %v4858, 0.0
        %vm4891 = vcmp.gt.f32.partialorder %v4859, 0.0
        %vm4892 = vcmp.gt.f32.partialorder %v4860, 0.0
        %vm4893 = vcmp.gt.f32.partialorder %v4861, 0.0
        %vm4894 = vcmp.gt.f32.partialorder %v4862, 0.0
        %vm4895 = vcmp.gt.f32.partialorder %v4863, 0.0
        %vm4896 = vcmp.gt.f32.partialorder %v4864, 0.0
        %vm4897 = vcmp.gt.f32.partialorder %v4865, 0.0
        %vm4898 = vcmp.gt.f32.partialorder %v4866, 0.0
        %vm4899 = vcmp.gt.f32.partialorder %v4867, 0.0
        %vm4900 = vcmp.gt.f32.partialorder %v4868, 0.0
        %vm4901 = vcmp.gt.f32.partialorder %v4869, 0.0
        %vm4902 = vcmp.gt.f32.partialorder %v4870, 0.0
        %vm4903 = vcmp.gt.f32.partialorder %v4871, 0.0
        %vm4904 = vcmp.gt.f32.partialorder %v4872, 0.0
        %vm4905 = vcmp.gt.f32.partialorder %v4873, 0.0
        %vm4906 = vcmp.gt.f32.partialorder %v4874, 0.0
        %vm4907 = vcmp.gt.f32.partialorder %v4875, 0.0
        %vm4908 = vcmp.gt.f32.partialorder %v4876, 0.0
        %v4909 = vmul.f32 %v4845, 0.01
        %v4910 = vmul.f32 %v4846, 0.01
        %v4911 = vmul.f32 %v4847, 0.01
        %v4912 = vmul.f32 %v4848, 0.01
        %v4913 = vmul.f32 %v4849, 0.01
        %v4914 = vmul.f32 %v4850, 0.01
        %v4915 = vmul.f32 %v4851, 0.01
        %v4916 = vmul.f32 %v4852, 0.01
        %v4917 = vmul.f32 %v4853, 0.01
        %v4918 = vmul.f32 %v4854, 0.01
        %v4919 = vmul.f32 %v4855, 0.01
        %v4920 = vmul.f32 %v4856, 0.01
        %v4921 = vmul.f32 %v4857, 0.01
        %v4922 = vmul.f32 %v4858, 0.01
        %v4923 = vmul.f32 %v4859, 0.01
        %v4924 = vmul.f32 %v4860, 0.01
        %v4925 = vmul.f32 %v4861, 0.01
        %v4926 = vmul.f32 %v4862, 0.01
        %v4927 = vmul.f32 %v4863, 0.01
        %v4928 = vmul.f32 %v4864, 0.01
        %v4929 = vmul.f32 %v4865, 0.01
        %v4930 = vmul.f32 %v4866, 0.01
        %v4931 = vmul.f32 %v4867, 0.01
        %v4932 = vmul.f32 %v4868, 0.01
        %v4933 = vmul.f32 %v4869, 0.01
        %v4934 = vmul.f32 %v4870, 0.01
        %v4935 = vmul.f32 %v4871, 0.01
        %v4936 = vmul.f32 %v4872, 0.01
        %v4937 = vmul.f32 %v4873, 0.01
        %v4938 = vmul.f32 %v4874, 0.01
        %v4939 = vmul.f32 %v4875, 0.01
        %v4940 = vmul.f32 %v4876, 0.01
        %v4941 = vsel %vm4877, %v4845, %v4909
        %v4942 = vsel %vm4878, %v4846, %v4910
        %v4943 = vsel %vm4879, %v4847, %v4911
        %v4944 = vsel %vm4880, %v4848, %v4912
        %v4945 = vsel %vm4881, %v4849, %v4913
        %v4946 = vsel %vm4882, %v4850, %v4914
        %v4947 = vsel %vm4883, %v4851, %v4915
        %v4948 = vsel %vm4884, %v4852, %v4916
        %v4949 = vsel %vm4885, %v4853, %v4917
        %v4950 = vsel %vm4886, %v4854, %v4918
        %v4951 = vsel %vm4887, %v4855, %v4919
        %v4952 = vsel %vm4888, %v4856, %v4920
        %v4953 = vsel %vm4889, %v4857, %v4921
        %v4954 = vsel %vm4890, %v4858, %v4922
        %v4955 = vsel %vm4891, %v4859, %v4923
        %v4956 = vsel %vm4892, %v4860, %v4924
        %v4957 = vsel %vm4893, %v4861, %v4925
        %v4958 = vsel %vm4894, %v4862, %v4926
        %v4959 = vsel %vm4895, %v4863, %v4927
        %v4960 = vsel %vm4896, %v4864, %v4928
        %v4961 = vsel %vm4897, %v4865, %v4929
        %v4962 = vsel %vm4898, %v4866, %v4930
        %v4963 = vsel %vm4899, %v4867, %v4931
        %v4964 = vsel %vm4900, %v4868, %v4932
        %v4965 = vsel %vm4901, %v4869, %v4933
        %v4966 = vsel %vm4902, %v4870, %v4934
        %v4967 = vsel %vm4903, %v4871, %v4935
        %v4968 = vsel %vm4904, %v4872, %v4936
        %v4969 = vsel %vm4905, %v4873, %v4937
        %v4970 = vsel %vm4906, %v4874, %v4938
        %v4971 = vsel %vm4907, %v4875, %v4939
        %v4972 = vsel %vm4908, %v4876, %v4940
        %5005 = vrot.lane.b32.xlu0 %v4941, 9
        %v5006 = vpop.permute.xlu0 %5005
        %5007 = vrot.lane.b32.xlu0 %v4942, 9
        %v5008 = vpop.permute.xlu0 %5007
        %5009 = vrot.lane.b32.xlu0 %v4943, 9
        %v5010 = vpop.permute.xlu0 %5009
        %5011 = vrot.lane.b32.xlu0 %v4944, 9
        %v5012 = vpop.permute.xlu0 %5011
        %5013 = vrot.lane.b32.xlu0 %v4945, 9
        %v5014 = vpop.permute.xlu0 %5013
        %5015 = vrot.lane.b32.xlu0 %v4946, 9
        %v5016 = vpop.permute.xlu0 %5015
        %5017 = vrot.lane.b32.xlu0 %v4947, 9
        %v5018 = vpop.permute.xlu0 %5017
        %5019 = vrot.lane.b32.xlu0 %v4948, 9
        %v5020 = vpop.permute.xlu0 %5019
        %5021 = vrot.lane.b32.xlu0 %v4949, 9
        %v5022 = vpop.permute.xlu0 %5021
        %5023 = vrot.lane.b32.xlu0 %v4950, 9
        %v5024 = vpop.permute.xlu0 %5023
        %5025 = vrot.lane.b32.xlu0 %v4951, 9
        %v5026 = vpop.permute.xlu0 %5025
        %5027 = vrot.lane.b32.xlu0 %v4952, 9
        %v5028 = vpop.permute.xlu0 %5027
        %5029 = vrot.lane.b32.xlu0 %v4953, 9
        %v5030 = vpop.permute.xlu0 %5029
        %5031 = vrot.lane.b32.xlu0 %v4954, 9
        %v5032 = vpop.permute.xlu0 %5031
        %5033 = vrot.lane.b32.xlu0 %v4955, 9
        %v5034 = vpop.permute.xlu0 %5033
        %5035 = vrot.lane.b32.xlu0 %v4956, 9
        %v5036 = vpop.permute.xlu0 %5035
        %5037 = vrot.lane.b32.xlu0 %v4957, 9
        %v5038 = vpop.permute.xlu0 %5037
        %5039 = vrot.lane.b32.xlu0 %v4958, 9
        %v5040 = vpop.permute.xlu0 %5039
        %5041 = vrot.lane.b32.xlu0 %v4959, 9
        %v5042 = vpop.permute.xlu0 %5041
        %5043 = vrot.lane.b32.xlu0 %v4960, 9
        %v5044 = vpop.permute.xlu0 %5043
        %5045 = vrot.lane.b32.xlu0 %v4961, 9
        %v5046 = vpop.permute.xlu0 %5045
        %5047 = vrot.lane.b32.xlu0 %v4962, 9
        %v5048 = vpop.permute.xlu0 %5047
        %5049 = vrot.lane.b32.xlu0 %v4963, 9
        %v5050 = vpop.permute.xlu0 %5049
        %5051 = vrot.lane.b32.xlu0 %v4964, 9
        %v5052 = vpop.permute.xlu0 %5051
        %5053 = vrot.lane.b32.xlu0 %v4965, 9
        %v5054 = vpop.permute.xlu0 %5053
        %5055 = vrot.lane.b32.xlu0 %v4966, 9
        %v5056 = vpop.permute.xlu0 %5055
        %5057 = vrot.lane.b32.xlu0 %v4967, 9
        %v5058 = vpop.permute.xlu0 %5057
        %5059 = vrot.lane.b32.xlu0 %v4968, 9
        %v5060 = vpop.permute.xlu0 %5059
        %5061 = vrot.lane.b32.xlu0 %v4969, 9
        %v5062 = vpop.permute.xlu0 %5061
        %5063 = vrot.lane.b32.xlu0 %v4970, 9
        %v5064 = vpop.permute.xlu0 %5063
        %5065 = vrot.lane.b32.xlu0 %v4971, 9
        %v5066 = vpop.permute.xlu0 %5065
        %5067 = vrot.lane.b32.xlu0 %v4972, 9
        %v5068 = vpop.permute.xlu0 %5067
        %vm5069 = vcmask 72704
        %v5070 = vsel %vm5069, %v5006, %v5008
        %v5071 = vsel %vm5069, %v5008, %v5010
        %v5072 = vsel %vm5069, %v5010, %v5012
        %v5073 = vsel %vm5069, %v5014, %v5016
        %v5074 = vsel %vm5069, %v5016, %v5018
        %v5075 = vsel %vm5069, %v5018, %v5020
        %v5076 = vsel %vm5069, %v5022, %v5024
        %v5077 = vsel %vm5069, %v5024, %v5026
        %v5078 = vsel %vm5069, %v5026, %v5028
        %v5079 = vsel %vm5069, %v5030, %v5032
        %v5080 = vsel %vm5069, %v5032, %v5034
        %v5081 = vsel %vm5069, %v5034, %v5036
        %v5082 = vsel %vm5069, %v5038, %v5040
        %v5083 = vsel %vm5069, %v5040, %v5042
        %v5084 = vsel %vm5069, %v5042, %v5044
        %v5085 = vsel %vm5069, %v5046, %v5048
        %v5086 = vsel %vm5069, %v5048, %v5050
        %v5087 = vsel %vm5069, %v5050, %v5052
        %v5088 = vsel %vm5069, %v5054, %v5056
        %v5089 = vsel %vm5069, %v5056, %v5058
        %v5090 = vsel %vm5069, %v5058, %v5060
        %v5091 = vsel %vm5069, %v5062, %v5064
        %v5092 = vsel %vm5069, %v5064, %v5066
        %v5093 = vsel %vm5069, %v5066, %v5068
        %5118 = vst [vmem:[#allocation4] sm:$0xff] %v5070
        %5119 = vst [vmem:[#allocation4 + $0x8] sm:$0xff] %v5071
        %5120 = vst [vmem:[#allocation4 + $0x10] sm:$0xff] %v5072
        %5121 = vst [vmem:[#allocation4 + $0x18] sm:$0xff] %v5073
        %5122 = vst [vmem:[#allocation4 + $0x20] sm:$0xff] %v5074
        %5123 = vst [vmem:[#allocation4 + $0x28] sm:$0xff] %v5075
        %5124 = vst [vmem:[#allocation4 + $0x30] sm:$0xff] %v5076
        %5125 = vst [vmem:[#allocation4 + $0x38] sm:$0xff] %v5077
        %5126 = vst [vmem:[#allocation4 + $0x40] sm:$0xff] %v5078
        %5127 = vst [vmem:[#allocation4 + $0x48] sm:$0xff] %v5079
        %5128 = vst [vmem:[#allocation4 + $0x50] sm:$0xff] %v5080
        %5129 = vst [vmem:[#allocation4 + $0x58] sm:$0xff] %v5081
        %5130 = vst [vmem:[#allocation4 + $0x60] sm:$0xff] %v5082
        %5131 = vst [vmem:[#allocation4 + $0x68] sm:$0xff] %v5083
        %5132 = vst [vmem:[#allocation4 + $0x70] sm:$0xff] %v5084
        %5133 = vst [vmem:[#allocation4 + $0x78] sm:$0xff] %v5085
        %5134 = vst [vmem:[#allocation4 + $0x80] sm:$0xff] %v5086
        %5135 = vst [vmem:[#allocation4 + $0x88] sm:$0xff] %v5087
        %5136 = vst [vmem:[#allocation4 + $0x90] sm:$0xff] %v5088
        %5137 = vst [vmem:[#allocation4 + $0x98] sm:$0xff] %v5089
        %5138 = vst [vmem:[#allocation4 + $0xa0] sm:$0xff] %v5090
        %5139 = vst [vmem:[#allocation4 + $0xa8] sm:$0xff] %v5091
        %5140 = vst [vmem:[#allocation4 + $0xb0] sm:$0xff] %v5092
        %5141 = vst [vmem:[#allocation4 + $0xb8] sm:$0xff] %v5093
        %v5142 = vld [vmem:[#allocation2 + $0x8] sm:$0xff]
        %v5143 = vld [vmem:[#allocation2 + $0x10] sm:$0xff]
        %v5144 = vld [vmem:[#allocation2 + $0x18] sm:$0xff]
        %v5145 = vld [vmem:[#allocation2 + $0x30] sm:$0xff]
        %v5146 = vld [vmem:[#allocation2 + $0x38] sm:$0xff]
        %v5147 = vld [vmem:[#allocation2 + $0x40] sm:$0xff]
        %v5148 = vld [vmem:[#allocation2 + $0x58] sm:$0xff]
        %v5149 = vld [vmem:[#allocation2 + $0x60] sm:$0xff]
        %v5150 = vld [vmem:[#allocation2 + $0x68] sm:$0xff]
        %v5151 = vld [vmem:[#allocation2 + $0x80] sm:$0xff]
        %v5152 = vld [vmem:[#allocation2 + $0x88] sm:$0xff]
        %v5153 = vld [vmem:[#allocation2 + $0x90] sm:$0xff]
        %v5154 = vld [vmem:[#allocation2 + $0xa8] sm:$0xff]
        %v5155 = vld [vmem:[#allocation2 + $0xb0] sm:$0xff]
        %v5156 = vld [vmem:[#allocation2 + $0xb8] sm:$0xff]
        %v5157 = vld [vmem:[#allocation2 + $0xd0] sm:$0xff]
        %v5158 = vld [vmem:[#allocation2 + $0xd8] sm:$0xff]
        %v5159 = vld [vmem:[#allocation2 + $0xe0] sm:$0xff]
        %v5160 = vld [vmem:[#allocation2 + $0xf8] sm:$0xff]
        %v5161 = vld [vmem:[#allocation2 + $0x100] sm:$0xff]
        %v5162 = vld [vmem:[#allocation2 + $0x108] sm:$0xff]
        %v5163 = vld [vmem:[#allocation2 + $0x120] sm:$0xff]
        %v5164 = vld [vmem:[#allocation2 + $0x128] sm:$0xff]
        %v5165 = vld [vmem:[#allocation2 + $0x130] sm:$0xff]
        %vm5166 = vcmp.gt.f32.partialorder %v5142, 0.0
        %vm5167 = vcmp.gt.f32.partialorder %v5143, 0.0
        %vm5168 = vcmp.gt.f32.partialorder %v5144, 0.0
        %vm5169 = vcmp.gt.f32.partialorder %v5145, 0.0
        %vm5170 = vcmp.gt.f32.partialorder %v5146, 0.0
        %vm5171 = vcmp.gt.f32.partialorder %v5147, 0.0
        %vm5172 = vcmp.gt.f32.partialorder %v5148, 0.0
        %vm5173 = vcmp.gt.f32.partialorder %v5149, 0.0
        %vm5174 = vcmp.gt.f32.partialorder %v5150, 0.0
        %vm5175 = vcmp.gt.f32.partialorder %v5151, 0.0
        %vm5176 = vcmp.gt.f32.partialorder %v5152, 0.0
        %vm5177 = vcmp.gt.f32.partialorder %v5153, 0.0
        %vm5178 = vcmp.gt.f32.partialorder %v5154, 0.0
        %vm5179 = vcmp.gt.f32.partialorder %v5155, 0.0
        %vm5180 = vcmp.gt.f32.partialorder %v5156, 0.0
        %vm5181 = vcmp.gt.f32.partialorder %v5157, 0.0
        %vm5182 = vcmp.gt.f32.partialorder %v5158, 0.0
        %vm5183 = vcmp.gt.f32.partialorder %v5159, 0.0
        %vm5184 = vcmp.gt.f32.partialorder %v5160, 0.0
        %vm5185 = vcmp.gt.f32.partialorder %v5161, 0.0
        %vm5186 = vcmp.gt.f32.partialorder %v5162, 0.0
        %vm5187 = vcmp.gt.f32.partialorder %v5163, 0.0
        %vm5188 = vcmp.gt.f32.partialorder %v5164, 0.0
        %vm5189 = vcmp.gt.f32.partialorder %v5165, 0.0
        %v5190 = vmul.f32 %v5142, 0.01
        %v5191 = vmul.f32 %v5143, 0.01
        %v5192 = vmul.f32 %v5144, 0.01
        %v5193 = vmul.f32 %v5145, 0.01
        %v5194 = vmul.f32 %v5146, 0.01
        %v5195 = vmul.f32 %v5147, 0.01
        %v5196 = vmul.f32 %v5148, 0.01
        %v5197 = vmul.f32 %v5149, 0.01
        %v5198 = vmul.f32 %v5150, 0.01
        %v5199 = vmul.f32 %v5151, 0.01
        %v5200 = vmul.f32 %v5152, 0.01
        %v5201 = vmul.f32 %v5153, 0.01
        %v5202 = vmul.f32 %v5154, 0.01
        %v5203 = vmul.f32 %v5155, 0.01
        %v5204 = vmul.f32 %v5156, 0.01
        %v5205 = vmul.f32 %v5157, 0.01
        %v5206 = vmul.f32 %v5158, 0.01
        %v5207 = vmul.f32 %v5159, 0.01
        %v5208 = vmul.f32 %v5160, 0.01
        %v5209 = vmul.f32 %v5161, 0.01
        %v5210 = vmul.f32 %v5162, 0.01
        %v5211 = vmul.f32 %v5163, 0.01
        %v5212 = vmul.f32 %v5164, 0.01
        %v5213 = vmul.f32 %v5165, 0.01
        %v5214 = vsel %vm5166, %v5142, %v5190
        %v5215 = vsel %vm5167, %v5143, %v5191
        %v5216 = vsel %vm5168, %v5144, %v5192
        %v5217 = vsel %vm5169, %v5145, %v5193
        %v5218 = vsel %vm5170, %v5146, %v5194
        %v5219 = vsel %vm5171, %v5147, %v5195
        %v5220 = vsel %vm5172, %v5148, %v5196
        %v5221 = vsel %vm5173, %v5149, %v5197
        %v5222 = vsel %vm5174, %v5150, %v5198
        %v5223 = vsel %vm5175, %v5151, %v5199
        %v5224 = vsel %vm5176, %v5152, %v5200
        %v5225 = vsel %vm5177, %v5153, %v5201
        %v5226 = vsel %vm5178, %v5154, %v5202
        %v5227 = vsel %vm5179, %v5155, %v5203
        %v5228 = vsel %vm5180, %v5156, %v5204
        %v5229 = vsel %vm5181, %v5157, %v5205
        %v5230 = vsel %vm5182, %v5158, %v5206
        %v5231 = vsel %vm5183, %v5159, %v5207
        %v5232 = vsel %vm5184, %v5160, %v5208
        %v5233 = vsel %vm5185, %v5161, %v5209
        %v5234 = vsel %vm5186, %v5162, %v5210
        %v5235 = vsel %vm5187, %v5163, %v5211
        %v5236 = vsel %vm5188, %v5164, %v5212
        %v5237 = vsel %vm5189, %v5165, %v5213
        %5238 = vst [vmem:[#allocation4 + $0xc0] sm:$0xff] %v5214
        %5239 = vst [vmem:[#allocation4 + $0xc8] sm:$0xff] %v5215
        %5240 = vst [vmem:[#allocation4 + $0xd0] sm:$0xff] %v5216
        %5241 = vst [vmem:[#allocation4 + $0xd8] sm:$0xff] %v5217
        %5242 = vst [vmem:[#allocation4 + $0xe0] sm:$0xff] %v5218
        %5243 = vst [vmem:[#allocation4 + $0xe8] sm:$0xff] %v5219
        %5244 = vst [vmem:[#allocation4 + $0xf0] sm:$0xff] %v5220
        %5245 = vst [vmem:[#allocation4 + $0xf8] sm:$0xff] %v5221
        %5246 = vst [vmem:[#allocation4 + $0x100] sm:$0xff] %v5222
        %5247 = vst [vmem:[#allocation4 + $0x108] sm:$0xff] %v5223
        %5248 = vst [vmem:[#allocation4 + $0x110] sm:$0xff] %v5224
        %5249 = vst [vmem:[#allocation4 + $0x118] sm:$0xff] %v5225
        %5250 = vst [vmem:[#allocation4 + $0x120] sm:$0xff] %v5226
        %5251 = vst [vmem:[#allocation4 + $0x128] sm:$0xff] %v5227
        %5252 = vst [vmem:[#allocation4 + $0x130] sm:$0xff] %v5228
        %5253 = vst [vmem:[#allocation4 + $0x138] sm:$0xff] %v5229
        %5254 = vst [vmem:[#allocation4 + $0x140] sm:$0xff] %v5230
        %5255 = vst [vmem:[#allocation4 + $0x148] sm:$0xff] %v5231
        %5256 = vst [vmem:[#allocation4 + $0x150] sm:$0xff] %v5232
        %5257 = vst [vmem:[#allocation4 + $0x158] sm:$0xff] %v5233
        %5258 = vst [vmem:[#allocation4 + $0x160] sm:$0xff] %v5234
        %5259 = vst [vmem:[#allocation4 + $0x168] sm:$0xff] %v5235
        %5260 = vst [vmem:[#allocation4 + $0x170] sm:$0xff] %v5236
        %5261 = vst [vmem:[#allocation4 + $0x178] sm:$0xff] %v5237
        %v5262 = vld [vmem:[#allocation2 + $0x8] sm:$0xff]
        %v5263 = vld [vmem:[#allocation2 + $0x10] sm:$0xff]
        %v5264 = vld [vmem:[#allocation2 + $0x18] sm:$0xff]
        %v5265 = vld [vmem:[#allocation2 + $0x20] sm:$0xff]
        %v5266 = vld [vmem:[#allocation2 + $0x30] sm:$0xff]
        %v5267 = vld [vmem:[#allocation2 + $0x38] sm:$0xff]
        %v5268 = vld [vmem:[#allocation2 + $0x40] sm:$0xff]
        %v5269 = vld [vmem:[#allocation2 + $0x48] sm:$0xff]
        %v5270 = vld [vmem:[#allocation2 + $0x58] sm:$0xff]
        %v5271 = vld [vmem:[#allocation2 + $0x60] sm:$0xff]
        %v5272 = vld [vmem:[#allocation2 + $0x68] sm:$0xff]
        %v5273 = vld [vmem:[#allocation2 + $0x70] sm:$0xff]
        %v5274 = vld [vmem:[#allocation2 + $0x80] sm:$0xff]
        %v5275 = vld [vmem:[#allocation2 + $0x88] sm:$0xff]
        %v5276 = vld [vmem:[#allocation2 + $0x90] sm:$0xff]
        %v5277 = vld [vmem:[#allocation2 + $0x98] sm:$0xff]
        %v5278 = vld [vmem:[#allocation2 + $0xa8] sm:$0xff]
        %v5279 = vld [vmem:[#allocation2 + $0xb0] sm:$0xff]
        %v5280 = vld [vmem:[#allocation2 + $0xb8] sm:$0xff]
        %v5281 = vld [vmem:[#allocation2 + $0xc0] sm:$0xff]
        %v5282 = vld [vmem:[#allocation2 + $0xd0] sm:$0xff]
        %v5283 = vld [vmem:[#allocation2 + $0xd8] sm:$0xff]
        %v5284 = vld [vmem:[#allocation2 + $0xe0] sm:$0xff]
        %v5285 = vld [vmem:[#allocation2 + $0xe8] sm:$0xff]
        %v5286 = vld [vmem:[#allocation2 + $0xf8] sm:$0xff]
        %v5287 = vld [vmem:[#allocation2 + $0x100] sm:$0xff]
        %v5288 = vld [vmem:[#allocation2 + $0x108] sm:$0xff]
        %v5289 = vld [vmem:[#allocation2 + $0x110] sm:$0xff]
        %v5290 = vld [vmem:[#allocation2 + $0x120] sm:$0xff]
        %v5291 = vld [vmem:[#allocation2 + $0x128] sm:$0xff]
        %v5292 = vld [vmem:[#allocation2 + $0x130] sm:$0xff]
        %v5293 = vld [vmem:[#allocation2 + $0x138] sm:$0xff]
        %vm5294 = vcmp.gt.f32.partialorder %v5262, 0.0
        %vm5295 = vcmp.gt.f32.partialorder %v5263, 0.0
        %vm5296 = vcmp.gt.f32.partialorder %v5264, 0.0
        %vm5297 = vcmp.gt.f32.partialorder %v5265, 0.0
        %vm5298 = vcmp.gt.f32.partialorder %v5266, 0.0
        %vm5299 = vcmp.gt.f32.partialorder %v5267, 0.0
        %vm5300 = vcmp.gt.f32.partialorder %v5268, 0.0
        %vm5301 = vcmp.gt.f32.partialorder %v5269, 0.0
        %vm5302 = vcmp.gt.f32.partialorder %v5270, 0.0
        %vm5303 = vcmp.gt.f32.partialorder %v5271, 0.0
        %vm5304 = vcmp.gt.f32.partialorder %v5272, 0.0
        %vm5305 = vcmp.gt.f32.partialorder %v5273, 0.0
        %vm5306 = vcmp.gt.f32.partialorder %v5274, 0.0
        %vm5307 = vcmp.gt.f32.partialorder %v5275, 0.0
        %vm5308 = vcmp.gt.f32.partialorder %v5276, 0.0
        %vm5309 = vcmp.gt.f32.partialorder %v5277, 0.0
        %vm5310 = vcmp.gt.f32.partialorder %v5278, 0.0
        %vm5311 = vcmp.gt.f32.partialorder %v5279, 0.0
        %vm5312 = vcmp.gt.f32.partialorder %v5280, 0.0
        %vm5313 = vcmp.gt.f32.partialorder %v5281, 0.0
        %vm5314 = vcmp.gt.f32.partialorder %v5282, 0.0
        %vm5315 = vcmp.gt.f32.partialorder %v5283, 0.0
        %vm5316 = vcmp.gt.f32.partialorder %v5284, 0.0
        %vm5317 = vcmp.gt.f32.partialorder %v5285, 0.0
        %vm5318 = vcmp.gt.f32.partialorder %v5286, 0.0
        %vm5319 = vcmp.gt.f32.partialorder %v5287, 0.0
        %vm5320 = vcmp.gt.f32.partialorder %v5288, 0.0
        %vm5321 = vcmp.gt.f32.partialorder %v5289, 0.0
        %vm5322 = vcmp.gt.f32.partialorder %v5290, 0.0
        %vm5323 = vcmp.gt.f32.partialorder %v5291, 0.0
        %vm5324 = vcmp.gt.f32.partialorder %v5292, 0.0
        %vm5325 = vcmp.gt.f32.partialorder %v5293, 0.0
        %v5326 = vmul.f32 %v5262, 0.01
        %v5327 = vmul.f32 %v5263, 0.01
        %v5328 = vmul.f32 %v5264, 0.01
        %v5329 = vmul.f32 %v5265, 0.01
        %v5330 = vmul.f32 %v5266, 0.01
        %v5331 = vmul.f32 %v5267, 0.01
        %v5332 = vmul.f32 %v5268, 0.01
        %v5333 = vmul.f32 %v5269, 0.01
        %v5334 = vmul.f32 %v5270, 0.01
        %v5335 = vmul.f32 %v5271, 0.01
        %v5336 = vmul.f32 %v5272, 0.01
        %v5337 = vmul.f32 %v5273, 0.01
        %v5338 = vmul.f32 %v5274, 0.01
        %v5339 = vmul.f32 %v5275, 0.01
        %v5340 = vmul.f32 %v5276, 0.01
        %v5341 = vmul.f32 %v5277, 0.01
        %v5342 = vmul.f32 %v5278, 0.01
        %v5343 = vmul.f32 %v5279, 0.01
        %v5344 = vmul.f32 %v5280, 0.01
        %v5345 = vmul.f32 %v5281, 0.01
        %v5346 = vmul.f32 %v5282, 0.01
        %v5347 = vmul.f32 %v5283, 0.01
        %v5348 = vmul.f32 %v5284, 0.01
        %v5349 = vmul.f32 %v5285, 0.01
        %v5350 = vmul.f32 %v5286, 0.01
        %v5351 = vmul.f32 %v5287, 0.01
        %v5352 = vmul.f32 %v5288, 0.01
        %v5353 = vmul.f32 %v5289, 0.01
        %v5354 = vmul.f32 %v5290, 0.01
        %v5355 = vmul.f32 %v5291, 0.01
        %v5356 = vmul.f32 %v5292, 0.01
        %v5357 = vmul.f32 %v5293, 0.01
        %v5358 = vsel %vm5294, %v5262, %v5326
        %v5359 = vsel %vm5295, %v5263, %v5327
        %v5360 = vsel %vm5296, %v5264, %v5328
        %v5361 = vsel %vm5297, %v5265, %v5329
        %v5362 = vsel %vm5298, %v5266, %v5330
        %v5363 = vsel %vm5299, %v5267, %v5331
        %v5364 = vsel %vm5300, %v5268, %v5332
        %v5365 = vsel %vm5301, %v5269, %v5333
        %v5366 = vsel %vm5302, %v5270, %v5334
        %v5367 = vsel %vm5303, %v5271, %v5335
        %v5368 = vsel %vm5304, %v5272, %v5336
        %v5369 = vsel %vm5305, %v5273, %v5337
        %v5370 = vsel %vm5306, %v5274, %v5338
        %v5371 = vsel %vm5307, %v5275, %v5339
        %v5372 = vsel %vm5308, %v5276, %v5340
        %v5373 = vsel %vm5309, %v5277, %v5341
        %v5374 = vsel %vm5310, %v5278, %v5342
        %v5375 = vsel %vm5311, %v5279, %v5343
        %v5376 = vsel %vm5312, %v5280, %v5344
        %v5377 = vsel %vm5313, %v5281, %v5345
        %v5378 = vsel %vm5314, %v5282, %v5346
        %v5379 = vsel %vm5315, %v5283, %v5347
        %v5380 = vsel %vm5316, %v5284, %v5348
        %v5381 = vsel %vm5317, %v5285, %v5349
        %v5382 = vsel %vm5318, %v5286, %v5350
        %v5383 = vsel %vm5319, %v5287, %v5351
        %v5384 = vsel %vm5320, %v5288, %v5352
        %v5385 = vsel %vm5321, %v5289, %v5353
        %v5386 = vsel %vm5322, %v5290, %v5354
        %v5387 = vsel %vm5323, %v5291, %v5355
        %v5388 = vsel %vm5324, %v5292, %v5356
        %v5389 = vsel %vm5325, %v5293, %v5357
        %5422 = vrot.lane.b32.xlu0 %v5358, 119
        %v5423 = vpop.permute.xlu0 %5422
        %5424 = vrot.lane.b32.xlu0 %v5359, 119
        %v5425 = vpop.permute.xlu0 %5424
        %5426 = vrot.lane.b32.xlu0 %v5360, 119
        %v5427 = vpop.permute.xlu0 %5426
        %5428 = vrot.lane.b32.xlu0 %v5361, 119
        %v5429 = vpop.permute.xlu0 %5428
        %5430 = vrot.lane.b32.xlu0 %v5362, 119
        %v5431 = vpop.permute.xlu0 %5430
        %5432 = vrot.lane.b32.xlu0 %v5363, 119
        %v5433 = vpop.permute.xlu0 %5432
        %5434 = vrot.lane.b32.xlu0 %v5364, 119
        %v5435 = vpop.permute.xlu0 %5434
        %5436 = vrot.lane.b32.xlu0 %v5365, 119
        %v5437 = vpop.permute.xlu0 %5436
        %5438 = vrot.lane.b32.xlu0 %v5366, 119
        %v5439 = vpop.permute.xlu0 %5438
        %5440 = vrot.lane.b32.xlu0 %v5367, 119
        %v5441 = vpop.permute.xlu0 %5440
        %5442 = vrot.lane.b32.xlu0 %v5368, 119
        %v5443 = vpop.permute.xlu0 %5442
        %5444 = vrot.lane.b32.xlu0 %v5369, 119
        %v5445 = vpop.permute.xlu0 %5444
        %5446 = vrot.lane.b32.xlu0 %v5370, 119
        %v5447 = vpop.permute.xlu0 %5446
        %5448 = vrot.lane.b32.xlu0 %v5371, 119
        %v5449 = vpop.permute.xlu0 %5448
        %5450 = vrot.lane.b32.xlu0 %v5372, 119
        %v5451 = vpop.permute.xlu0 %5450
        %5452 = vrot.lane.b32.xlu0 %v5373, 119
        %v5453 = vpop.permute.xlu0 %5452
        %5454 = vrot.lane.b32.xlu0 %v5374, 119
        %v5455 = vpop.permute.xlu0 %5454
        %5456 = vrot.lane.b32.xlu0 %v5375, 119
        %v5457 = vpop.permute.xlu0 %5456
        %5458 = vrot.lane.b32.xlu0 %v5376, 119
        %v5459 = vpop.permute.xlu0 %5458
        %5460 = vrot.lane.b32.xlu0 %v5377, 119
        %v5461 = vpop.permute.xlu0 %5460
        %5462 = vrot.lane.b32.xlu0 %v5378, 119
        %v5463 = vpop.permute.xlu0 %5462
        %5464 = vrot.lane.b32.xlu0 %v5379, 119
        %v5465 = vpop.permute.xlu0 %5464
        %5466 = vrot.lane.b32.xlu0 %v5380, 119
        %v5467 = vpop.permute.xlu0 %5466
        %5468 = vrot.lane.b32.xlu0 %v5381, 119
        %v5469 = vpop.permute.xlu0 %5468
        %5470 = vrot.lane.b32.xlu0 %v5382, 119
        %v5471 = vpop.permute.xlu0 %5470
        %5472 = vrot.lane.b32.xlu0 %v5383, 119
        %v5473 = vpop.permute.xlu0 %5472
        %5474 = vrot.lane.b32.xlu0 %v5384, 119
        %v5475 = vpop.permute.xlu0 %5474
        %5476 = vrot.lane.b32.xlu0 %v5385, 119
        %v5477 = vpop.permute.xlu0 %5476
        %5478 = vrot.lane.b32.xlu0 %v5386, 119
        %v5479 = vpop.permute.xlu0 %5478
        %5480 = vrot.lane.b32.xlu0 %v5387, 119
        %v5481 = vpop.permute.xlu0 %5480
        %5482 = vrot.lane.b32.xlu0 %v5388, 119
        %v5483 = vpop.permute.xlu0 %5482
        %5484 = vrot.lane.b32.xlu0 %v5389, 119
        %v5485 = vpop.permute.xlu0 %5484
        %vm5486 = vcmask 973824
        %v5487 = vsel %vm5486, %v5423, %v5425
        %v5488 = vsel %vm5486, %v5425, %v5427
        %v5489 = vsel %vm5486, %v5427, %v5429
        %v5490 = vsel %vm5486, %v5431, %v5433
        %v5491 = vsel %vm5486, %v5433, %v5435
        %v5492 = vsel %vm5486, %v5435, %v5437
        %v5493 = vsel %vm5486, %v5439, %v5441
        %v5494 = vsel %vm5486, %v5441, %v5443
        %v5495 = vsel %vm5486, %v5443, %v5445
        %v5496 = vsel %vm5486, %v5447, %v5449
        %v5497 = vsel %vm5486, %v5449, %v5451
        %v5498 = vsel %vm5486, %v5451, %v5453
        %v5499 = vsel %vm5486, %v5455, %v5457
        %v5500 = vsel %vm5486, %v5457, %v5459
        %v5501 = vsel %vm5486, %v5459, %v5461
        %v5502 = vsel %vm5486, %v5463, %v5465
        %v5503 = vsel %vm5486, %v5465, %v5467
        %v5504 = vsel %vm5486, %v5467, %v5469
        %v5505 = vsel %vm5486, %v5471, %v5473
        %v5506 = vsel %vm5486, %v5473, %v5475
        %v5507 = vsel %vm5486, %v5475, %v5477
        %v5508 = vsel %vm5486, %v5479, %v5481
        %v5509 = vsel %vm5486, %v5481, %v5483
        %v5510 = vsel %vm5486, %v5483, %v5485
        %5535 = vst [vmem:[#allocation4 + $0x180] sm:$0xff] %v5487
        %5536 = vst [vmem:[#allocation4 + $0x188] sm:$0xff] %v5488
        %5537 = vst [vmem:[#allocation4 + $0x190] sm:$0xff] %v5489
        %5538 = vst [vmem:[#allocation4 + $0x198] sm:$0xff] %v5490
        %5539 = vst [vmem:[#allocation4 + $0x1a0] sm:$0xff] %v5491
        %5540 = vst [vmem:[#allocation4 + $0x1a8] sm:$0xff] %v5492
        %5541 = vst [vmem:[#allocation4 + $0x1b0] sm:$0xff] %v5493
        %5542 = vst [vmem:[#allocation4 + $0x1b8] sm:$0xff] %v5494
        %5543 = vst [vmem:[#allocation4 + $0x1c0] sm:$0xff] %v5495
        %5544 = vst [vmem:[#allocation4 + $0x1c8] sm:$0xff] %v5496
        %5545 = vst [vmem:[#allocation4 + $0x1d0] sm:$0xff] %v5497
        %5546 = vst [vmem:[#allocation4 + $0x1d8] sm:$0xff] %v5498
        %5547 = vst [vmem:[#allocation4 + $0x1e0] sm:$0xff] %v5499
        %5548 = vst [vmem:[#allocation4 + $0x1e8] sm:$0xff] %v5500
        %5549 = vst [vmem:[#allocation4 + $0x1f0] sm:$0xff] %v5501
        %5550 = vst [vmem:[#allocation4 + $0x1f8] sm:$0xff] %v5502
        %5551 = vst [vmem:[#allocation4 + $0x200] sm:$0xff] %v5503
        %5552 = vst [vmem:[#allocation4 + $0x208] sm:$0xff] %v5504
        %5553 = vst [vmem:[#allocation4 + $0x210] sm:$0xff] %v5505
        %5554 = vst [vmem:[#allocation4 + $0x218] sm:$0xff] %v5506
        %5555 = vst [vmem:[#allocation4 + $0x220] sm:$0xff] %v5507
        %5556 = vst [vmem:[#allocation4 + $0x228] sm:$0xff] %v5508
        %5557 = vst [vmem:[#allocation4 + $0x230] sm:$0xff] %v5509
        %5558 = vst [vmem:[#allocation4 + $0x238] sm:$0xff] %v5510
        %s5559 = scalar_lea.vmem %s3, 256
        %v5560 = vld [vmem:[%s5559] sm:$0xff]
        %v5561 = vld [vmem:[%s5559 + $0x8] sm:$0xff]
        %v5562 = vld [vmem:[%s5559 + $0x10] sm:$0xff]
        %v5563 = vld [vmem:[%s5559 + $0x18] sm:$0xff]
        %v5564 = vld [vmem:[%s5559 + $0x20] sm:$0xff]
        %v5565 = vld [vmem:[%s5559 + $0x28] sm:$0xff]
        %v5566 = vld [vmem:[%s5559 + $0x30] sm:$0xff]
        %v5567 = vld [vmem:[%s5559 + $0x38] sm:$0xff]
        %v5568 = vld [vmem:[%s5559 + $0x40] sm:$0xff]
        %v5569 = vld [vmem:[%s5559 + $0x48] sm:$0xff]
        %v5570 = vld [vmem:[%s5559 + $0x50] sm:$0xff]
        %v5571 = vld [vmem:[%s5559 + $0x58] sm:$0xff]
        %v5572 = vld [vmem:[%s5559 + $0x60] sm:$0xff]
        %v5573 = vld [vmem:[%s5559 + $0x68] sm:$0xff]
        %v5574 = vld [vmem:[%s5559 + $0x70] sm:$0xff]
        %v5575 = vld [vmem:[%s5559 + $0x78] sm:$0xff]
        %v5576 = vld [vmem:[#allocation4] sm:$0xff]
        %v5577 = vld [vmem:[#allocation4 + $0x8] sm:$0xff]
        %v5578 = vld [vmem:[#allocation4 + $0x10] sm:$0xff]
        %v5579 = vld [vmem:[#allocation4 + $0x18] sm:$0xff]
        %v5580 = vld [vmem:[#allocation4 + $0x20] sm:$0xff]
        %v5581 = vld [vmem:[#allocation4 + $0x28] sm:$0xff]
        %v5582 = vld [vmem:[#allocation4 + $0x30] sm:$0xff]
        %v5583 = vld [vmem:[#allocation4 + $0x38] sm:$0xff]
        %v5584 = vld [vmem:[#allocation4 + $0x40] sm:$0xff]
        %v5585 = vld [vmem:[#allocation4 + $0x48] sm:$0xff]
        %v5586 = vld [vmem:[#allocation4 + $0x50] sm:$0xff]
        %v5587 = vld [vmem:[#allocation4 + $0x58] sm:$0xff]
        %v5588 = vld [vmem:[#allocation4 + $0x60] sm:$0xff]
        %v5589 = vld [vmem:[#allocation4 + $0x68] sm:$0xff]
        %v5590 = vld [vmem:[#allocation4 + $0x70] sm:$0xff]
        %v5591 = vld [vmem:[#allocation4 + $0x78] sm:$0xff]
        %v5592 = vld [vmem:[#allocation4 + $0x80] sm:$0xff]
        %v5593 = vld [vmem:[#allocation4 + $0x88] sm:$0xff]
        %v5594 = vld [vmem:[#allocation4 + $0x90] sm:$0xff]
        %v5595 = vld [vmem:[#allocation4 + $0x98] sm:$0xff]
        %v5596 = vld [vmem:[#allocation4 + $0xa0] sm:$0xff]
        %v5597 = vld [vmem:[#allocation4 + $0xa8] sm:$0xff]
        %v5598 = vld [vmem:[#allocation4 + $0xb0] sm:$0xff]
        %v5599 = vld [vmem:[#allocation4 + $0xb8] sm:$0xff]
        %v5600 = vld [vmem:[#allocation4 + $0xc0] sm:$0xff]
        %v5601 = vld [vmem:[#allocation4 + $0xc8] sm:$0xff]
        %v5602 = vld [vmem:[#allocation4 + $0xd0] sm:$0xff]
        %v5603 = vld [vmem:[#allocation4 + $0xd8] sm:$0xff]
        %v5604 = vld [vmem:[#allocation4 + $0xe0] sm:$0xff]
        %v5605 = vld [vmem:[#allocation4 + $0xe8] sm:$0xff]
        %v5606 = vld [vmem:[#allocation4 + $0xf0] sm:$0xff]
        %v5607 = vld [vmem:[#allocation4 + $0xf8] sm:$0xff]
        %v5608 = vld [vmem:[#allocation4 + $0x100] sm:$0xff]
        %v5609 = vld [vmem:[#allocation4 + $0x108] sm:$0xff]
        %v5610 = vld [vmem:[#allocation4 + $0x110] sm:$0xff]
        %v5611 = vld [vmem:[#allocation4 + $0x118] sm:$0xff]
        %v5612 = vld [vmem:[#allocation4 + $0x120] sm:$0xff]
        %v5613 = vld [vmem:[#allocation4 + $0x128] sm:$0xff]
        %v5614 = vld [vmem:[#allocation4 + $0x130] sm:$0xff]
        %v5615 = vld [vmem:[#allocation4 + $0x138] sm:$0xff]
        %v5616 = vld [vmem:[#allocation4 + $0x140] sm:$0xff]
        %v5617 = vld [vmem:[#allocation4 + $0x148] sm:$0xff]
        %v5618 = vld [vmem:[#allocation4 + $0x150] sm:$0xff]
        %v5619 = vld [vmem:[#allocation4 + $0x158] sm:$0xff]
        %v5620 = vld [vmem:[#allocation4 + $0x160] sm:$0xff]
        %v5621 = vld [vmem:[#allocation4 + $0x168] sm:$0xff]
        %v5622 = vld [vmem:[#allocation4 + $0x170] sm:$0xff]
        %v5623 = vld [vmem:[#allocation4 + $0x178] sm:$0xff]
        %v5624 = vld [vmem:[#allocation4 + $0x180] sm:$0xff]
        %v5625 = vld [vmem:[#allocation4 + $0x188] sm:$0xff]
        %v5626 = vld [vmem:[#allocation4 + $0x190] sm:$0xff]
        %v5627 = vld [vmem:[#allocation4 + $0x198] sm:$0xff]
        %v5628 = vld [vmem:[#allocation4 + $0x1a0] sm:$0xff]
        %v5629 = vld [vmem:[#allocation4 + $0x1a8] sm:$0xff]
        %v5630 = vld [vmem:[#allocation4 + $0x1b0] sm:$0xff]
        %v5631 = vld [vmem:[#allocation4 + $0x1b8] sm:$0xff]
        %v5632 = vld [vmem:[#allocation4 + $0x1c0] sm:$0xff]
        %v5633 = vld [vmem:[#allocation4 + $0x1c8] sm:$0xff]
        %v5634 = vld [vmem:[#allocation4 + $0x1d0] sm:$0xff]
        %v5635 = vld [vmem:[#allocation4 + $0x1d8] sm:$0xff]
        %v5636 = vld [vmem:[#allocation4 + $0x1e0] sm:$0xff]
        %v5637 = vld [vmem:[#allocation4 + $0x1e8] sm:$0xff]
        %v5638 = vld [vmem:[#allocation4 + $0x1f0] sm:$0xff]
        %v5639 = vld [vmem:[#allocation4 + $0x1f8] sm:$0xff]
        %v5640 = vld [vmem:[#allocation4 + $0x200] sm:$0xff]
        %v5641 = vld [vmem:[#allocation4 + $0x208] sm:$0xff]
        %v5642 = vld [vmem:[#allocation4 + $0x210] sm:$0xff]
        %v5643 = vld [vmem:[#allocation4 + $0x218] sm:$0xff]
        %v5644 = vld [vmem:[#allocation4 + $0x220] sm:$0xff]
        %v5645 = vld [vmem:[#allocation4 + $0x228] sm:$0xff]
        %v5646 = vld [vmem:[#allocation4 + $0x230] sm:$0xff]
        %v5647 = vld [vmem:[#allocation4 + $0x238] sm:$0xff]
        %s5648 = scalar_lea.vmem %s4, 128
        %v5649 = vld [vmem:[%s5648] sm:$0xff]
        %v5650 = vld [vmem:[%s5648 + $0x8] sm:$0xff]
        %v5651 = vld [vmem:[%s5648 + $0x10] sm:$0xff]
        %v5652 = vld [vmem:[%s5648 + $0x18] sm:$0xff]
        %v5653 = vld [vmem:[%s5648 + $0x20] sm:$0xff]
        %v5654 = vld [vmem:[%s5648 + $0x28] sm:$0xff]
        %v5655 = vld [vmem:[%s5648 + $0x30] sm:$0xff]
        %v5656 = vld [vmem:[%s5648 + $0x38] sm:$0xff]
        %5658 = vset.pattern.permute.xlu0 0
        %5659 = vperm.xlu0 %5658, %v5649
        %v5660 = vpop.permute.xlu0 %5659
        %5663 = vset.pattern.permute.xlu0 0
        %5664 = vperm.xlu0 %5663, %v5650
        %v5665 = vpop.permute.xlu0 %5664
        %5668 = vset.pattern.permute.xlu0 0
        %5669 = vperm.xlu0 %5668, %v5651
        %v5670 = vpop.permute.xlu0 %5669
        %5673 = vset.pattern.permute.xlu0 0
        %5674 = vperm.xlu0 %5673, %v5652
        %v5675 = vpop.permute.xlu0 %5674
        %5678 = vset.pattern.permute.xlu0 0
        %5679 = vperm.xlu0 %5678, %v5653
        %v5680 = vpop.permute.xlu0 %5679
        %5683 = vset.pattern.permute.xlu0 0
        %5684 = vperm.xlu0 %5683, %v5654
        %v5685 = vpop.permute.xlu0 %5684
        %5688 = vset.pattern.permute.xlu0 0
        %5689 = vperm.xlu0 %5688, %v5655
        %v5690 = vpop.permute.xlu0 %5689
        %5693 = vset.pattern.permute.xlu0 0
        %5694 = vperm.xlu0 %5693, %v5656
        %v5695 = vpop.permute.xlu0 %5694
        %v5698 = vsel %vm1416, %v5561, 0
        %v5701 = vsel %vm1416, %v5563, 0
        %v5704 = vsel %vm1416, %v5565, 0
        %v5707 = vsel %vm1416, %v5567, 0
        %v5710 = vsel %vm1416, %v5569, 0
        %v5713 = vsel %vm1416, %v5571, 0
        %v5716 = vsel %vm1416, %v5573, 0
        %v5719 = vsel %vm1416, %v5575, 0
        %5721 = vmatprep.subr.mxu0 %v5577
        %5722 = vmatpush1.msra.mxu0 %v5576
        %5723 = vmatprep.subr.mxu0 %v5580
        %5724 = vmatpush1.msra.mxu0 %v5579
        %5725 = vmatprep.subr.mxu0 %v5583
        %5726 = vmatpush1.msra.mxu0 %v5582
        %5727 = vmatprep.subr.mxu0 %v5586
        %5728 = vmatpush1.msra.mxu0 %v5585
        %5729 = vmatprep.subr.mxu0 %v5589
        %5730 = vmatpush1.msra.mxu0 %v5588
        %5731 = vmatprep.subr.mxu0 %v5592
        %5732 = vmatpush1.msra.mxu0 %v5591
        %5733 = vmatprep.subr.mxu0 %v5595
        %5734 = vmatpush1.msra.mxu0 %v5594
        %5735 = vmatprep.subr.mxu0 %v5598
        %5736 = vmatpush1.msra.mxu0 %v5597
        %5737 = vmatprep.subr.mxu0 %v5601
        %5738 = vmatpush1.msra.mxu0 %v5600
        %5739 = vmatprep.subr.mxu0 %v5604
        %5740 = vmatpush1.msra.mxu0 %v5603
        %5741 = vmatprep.subr.mxu0 %v5607
        %5742 = vmatpush1.msra.mxu0 %v5606
        %5743 = vmatprep.subr.mxu0 %v5610
        %5744 = vmatpush1.msra.mxu0 %v5609
        %5745 = vmatprep.subr.mxu0 %v5613
        %5746 = vmatpush1.msra.mxu0 %v5612
        %5747 = vmatprep.subr.mxu0 %v5616
        %5748 = vmatpush1.msra.mxu0 %v5615
        %5749 = vmatprep.subr.mxu0 %v5619
        %5750 = vmatpush1.msra.mxu0 %v5618
        %5751 = vmatprep.subr.mxu0 %v5622
        %5752 = vmatpush1.msra.mxu0 %v5621
        %5753 = vmatprep.subr.mxu0 %v5625
        %5754 = vmatpush1.msra.mxu0 %v5624
        %5755 = vmatprep.subr.mxu0 %v5628
        %5756 = vmatpush1.msra.mxu0 %v5627
        %5757 = vmatprep.subr.mxu0 %v5631
        %5758 = vmatpush1.msra.mxu0 %v5630
        %5759 = vmatprep.subr.mxu0 %v5634
        %5760 = vmatpush1.msra.mxu0 %v5633
        %5761 = vmatprep.subr.mxu0 %v5637
        %5762 = vmatpush1.msra.mxu0 %v5636
        %5763 = vmatprep.subr.mxu0 %v5640
        %5764 = vmatpush1.msra.mxu0 %v5639
        %5765 = vmatprep.subr.mxu0 %v5643
        %5766 = vmatpush1.msra.mxu0 %v5642
        %5767 = vmatprep.subr.mxu0 %v5646
        %5768 = vmatpush1.msra.mxu0 %v5645
        %5769 = vmatprep.subr.mxu0 0.0
        %5770 = vmatpush1.msra.mxu0 0.0
        %5771 = vmatprep.subr.mxu0 0.0
        %5772 = vmatpush1.msra.mxu0 0.0
        %5773 = vmatprep.subr.mxu0 0.0
        %5774 = vmatpush1.msra.mxu0 0.0
        %5775 = vmatprep.subr.mxu0 0.0
        %5776 = vmatpush1.msra.mxu0 0.0
        %5777 = vmatprep.subr.mxu0 0.0
        %5778 = vmatpush1.msra.mxu0 0.0
        %5779 = vmatprep.subr.mxu0 0.0
        %5780 = vmatpush1.msra.mxu0 0.0
        %5781 = vmatprep.subr.mxu0 0.0
        %5782 = vmatpush1.msra.mxu0 0.0
        %5783 = vmatprep.subr.mxu0 0.0
        %5784 = vmatpush1.msra.mxu0 0.0
        %5785 = vmatprep.mubr.f32.mxu0 %v5698
        %5786 = vmatmul.mubr.f32.gmra.mrb[0].mxu0 %v5560
        %v5787 = vpop.f32.mrb[0].mxu0
        %v5788 = vadd.f32 %v5660, %v5787
        %v5789 = vpop.f32.mrb[0].mxu0
        %v5790 = vadd.f32 %v5660, %v5789
        %5791 = vmatprep.mubr.f32.mxu0 %v5701
        %5792 = vmatmul.mubr.f32.gmra.mrb[0].mxu0 %v5562
        %v5793 = vpop.f32.mrb[0].mxu0
        %v5794 = vadd.f32 %v5665, %v5793
        %v5795 = vpop.f32.mrb[0].mxu0
        %v5796 = vadd.f32 %v5665, %v5795
        %5797 = vmatprep.mubr.f32.mxu0 %v5704
        %5798 = vmatmul.mubr.f32.gmra.mrb[0].mxu0 %v5564
        %v5799 = vpop.f32.mrb[0].mxu0
        %v5800 = vadd.f32 %v5670, %v5799
        %v5801 = vpop.f32.mrb[0].mxu0
        %v5802 = vadd.f32 %v5670, %v5801
        %5803 = vmatprep.mubr.f32.mxu0 %v5707
        %5804 = vmatmul.mubr.f32.gmra.mrb[0].mxu0 %v5566
        %v5805 = vpop.f32.mrb[0].mxu0
        %v5806 = vadd.f32 %v5675, %v5805
        %v5807 = vpop.f32.mrb[0].mxu0
        %v5808 = vadd.f32 %v5675, %v5807
        %5809 = vmatprep.mubr.f32.mxu0 %v5710
        %5810 = vmatmul.mubr.f32.gmra.mrb[0].mxu0 %v5568
        %v5811 = vpop.f32.mrb[0].mxu0
        %v5812 = vadd.f32 %v5680, %v5811
        %v5813 = vpop.f32.mrb[0].mxu0
        %v5814 = vadd.f32 %v5680, %v5813
        %5815 = vmatprep.mubr.f32.mxu0 %v5713
        %5816 = vmatmul.mubr.f32.gmra.mrb[0].mxu0 %v5570
        %v5817 = vpop.f32.mrb[0].mxu0
        %v5818 = vadd.f32 %v5685, %v5817
        %v5819 = vpop.f32.mrb[0].mxu0
        %v5820 = vadd.f32 %v5685, %v5819
        %5821 = vmatprep.mubr.f32.mxu0 %v5716
        %5822 = vmatmul.mubr.f32.gmra.mrb[0].mxu0 %v5572
        %v5823 = vpop.f32.mrb[0].mxu0
        %v5824 = vadd.f32 %v5690, %v5823
        %v5825 = vpop.f32.mrb[0].mxu0
        %v5826 = vadd.f32 %v5690, %v5825
        %5827 = vmatprep.mubr.f32.mxu0 %v5719
        %5828 = vmatmul.mubr.f32.gmra.mrb[0].mxu0 %v5574
        %v5829 = vpop.f32.mrb[0].mxu0
        %v5830 = vadd.f32 %v5695, %v5829
        %v5831 = vpop.f32.mrb[0].mxu0
        %v5832 = vadd.f32 %v5695, %v5831
        %5833 = vdwg.mxu0
        %5834 = vmatprep.subr.mxu0 0.0
        %5835 = vmatpush1.msra.mxu0 %v5578
        %5836 = vmatprep.subr.mxu0 0.0
        %5837 = vmatpush1.msra.mxu0 %v5581
        %5838 = vmatprep.subr.mxu0 0.0
        %5839 = vmatpush1.msra.mxu0 %v5584
        %5840 = vmatprep.subr.mxu0 0.0
        %5841 = vmatpush1.msra.mxu0 %v5587
        %5842 = vmatprep.subr.mxu0 0.0
        %5843 = vmatpush1.msra.mxu0 %v5590
        %5844 = vmatprep.subr.mxu0 0.0
        %5845 = vmatpush1.msra.mxu0 %v5593
        %5846 = vmatprep.subr.mxu0 0.0
        %5847 = vmatpush1.msra.mxu0 %v5596
        %5848 = vmatprep.subr.mxu0 0.0
        %5849 = vmatpush1.msra.mxu0 %v5599
        %5850 = vmatprep.subr.mxu0 0.0
        %5851 = vmatpush1.msra.mxu0 %v5602
        %5852 = vmatprep.subr.mxu0 0.0
        %5853 = vmatpush1.msra.mxu0 %v5605
        %5854 = vmatprep.subr.mxu0 0.0
        %5855 = vmatpush1.msra.mxu0 %v5608
        %5856 = vmatprep.subr.mxu0 0.0
        %5857 = vmatpush1.msra.mxu0 %v5611
        %5858 = vmatprep.subr.mxu0 0.0
        %5859 = vmatpush1.msra.mxu0 %v5614
        %5860 = vmatprep.subr.mxu0 0.0
        %5861 = vmatpush1.msra.mxu0 %v5617
        %5862 = vmatprep.subr.mxu0 0.0
        %5863 = vmatpush1.msra.mxu0 %v5620
        %5864 = vmatprep.subr.mxu0 0.0
        %5865 = vmatpush1.msra.mxu0 %v5623
        %5866 = vmatprep.subr.mxu0 0.0
        %5867 = vmatpush1.msra.mxu0 %v5626
        %5868 = vmatprep.subr.mxu0 0.0
        %5869 = vmatpush1.msra.mxu0 %v5629
        %5870 = vmatprep.subr.mxu0 0.0
        %5871 = vmatpush1.msra.mxu0 %v5632
        %5872 = vmatprep.subr.mxu0 0.0
        %5873 = vmatpush1.msra.mxu0 %v5635
        %5874 = vmatprep.subr.mxu0 0.0
        %5875 = vmatpush1.msra.mxu0 %v5638
        %5876 = vmatprep.subr.mxu0 0.0
        %5877 = vmatpush1.msra.mxu0 %v5641
        %5878 = vmatprep.subr.mxu0 0.0
        %5879 = vmatpush1.msra.mxu0 %v5644
        %5880 = vmatprep.subr.mxu0 0.0
        %5881 = vmatpush1.msra.mxu0 %v5647
        %5882 = vmatprep.subr.mxu0 0.0
        %5883 = vmatpush1.msra.mxu0 0.0
        %5884 = vmatprep.subr.mxu0 0.0
        %5885 = vmatpush1.msra.mxu0 0.0
        %5886 = vmatprep.subr.mxu0 0.0
        %5887 = vmatpush1.msra.mxu0 0.0
        %5888 = vmatprep.subr.mxu0 0.0
        %5889 = vmatpush1.msra.mxu0 0.0
        %5890 = vmatprep.subr.mxu0 0.0
        %5891 = vmatpush1.msra.mxu0 0.0
        %5892 = vmatprep.subr.mxu0 0.0
        %5893 = vmatpush1.msra.mxu0 0.0
        %5894 = vmatprep.subr.mxu0 0.0
        %5895 = vmatpush1.msra.mxu0 0.0
        %5896 = vmatprep.subr.mxu0 0.0
        %5897 = vmatpush1.msra.mxu0 0.0
        %5898 = vmatprep.mubr.f32.mxu0 %v5698
        %5899 = vmatmul.mubr.f32.gmra.mrb[0].mxu0 %v5560
        %v5900 = vpop.f32.mrb[0].mxu0
        %v5901 = vadd.f32 %v5660, %v5900
        %v5902 = vpop.f32.mrb[0].mxu0
        %5903 = vmatprep.mubr.f32.mxu0 %v5701
        %5904 = vmatmul.mubr.f32.gmra.mrb[0].mxu0 %v5562
        %v5905 = vpop.f32.mrb[0].mxu0
        %v5906 = vadd.f32 %v5665, %v5905
        %v5907 = vpop.f32.mrb[0].mxu0
        %5908 = vmatprep.mubr.f32.mxu0 %v5704
        %5909 = vmatmul.mubr.f32.gmra.mrb[0].mxu0 %v5564
        %v5910 = vpop.f32.mrb[0].mxu0
        %v5911 = vadd.f32 %v5670, %v5910
        %v5912 = vpop.f32.mrb[0].mxu0
        %5913 = vmatprep.mubr.f32.mxu0 %v5707
        %5914 = vmatmul.mubr.f32.gmra.mrb[0].mxu0 %v5566
        %v5915 = vpop.f32.mrb[0].mxu0
        %v5916 = vadd.f32 %v5675, %v5915
        %v5917 = vpop.f32.mrb[0].mxu0
        %5918 = vmatprep.mubr.f32.mxu0 %v5710
        %5919 = vmatmul.mubr.f32.gmra.mrb[0].mxu0 %v5568
        %v5920 = vpop.f32.mrb[0].mxu0
        %v5921 = vadd.f32 %v5680, %v5920
        %v5922 = vpop.f32.mrb[0].mxu0
        %5923 = vmatprep.mubr.f32.mxu0 %v5713
        %5924 = vmatmul.mubr.f32.gmra.mrb[0].mxu0 %v5570
        %v5925 = vpop.f32.mrb[0].mxu0
        %v5926 = vadd.f32 %v5685, %v5925
        %v5927 = vpop.f32.mrb[0].mxu0
        %5928 = vmatprep.mubr.f32.mxu0 %v5716
        %5929 = vmatmul.mubr.f32.gmra.mrb[0].mxu0 %v5572
        %v5930 = vpop.f32.mrb[0].mxu0
        %v5931 = vadd.f32 %v5690, %v5930
        %v5932 = vpop.f32.mrb[0].mxu0
        %5933 = vmatprep.mubr.f32.mxu0 %v5719
        %5934 = vmatmul.mubr.f32.gmra.mrb[0].mxu0 %v5574
        %v5935 = vpop.f32.mrb[0].mxu0
        %v5936 = vadd.f32 %v5695, %v5935
        %v5937 = vpop.f32.mrb[0].mxu0
        %5938 = vdwg.mxu0
        %vm5939 = vcmp.gt.f32.partialorder %v5788, 0.0
        %vm5940 = vcmp.gt.f32.partialorder %v5790, 0.0
        %vm5941 = vcmp.gt.f32.partialorder %v5901, 0.0
        %vm5942 = vcmp.gt.f32.partialorder %v5794, 0.0
        %vm5943 = vcmp.gt.f32.partialorder %v5796, 0.0
        %vm5944 = vcmp.gt.f32.partialorder %v5906, 0.0
        %vm5945 = vcmp.gt.f32.partialorder %v5800, 0.0
        %vm5946 = vcmp.gt.f32.partialorder %v5802, 0.0
        %vm5947 = vcmp.gt.f32.partialorder %v5911, 0.0
        %vm5948 = vcmp.gt.f32.partialorder %v5806, 0.0
        %vm5949 = vcmp.gt.f32.partialorder %v5808, 0.0
        %vm5950 = vcmp.gt.f32.partialorder %v5916, 0.0
        %vm5951 = vcmp.gt.f32.partialorder %v5812, 0.0
        %vm5952 = vcmp.gt.f32.partialorder %v5814, 0.0
        %vm5953 = vcmp.gt.f32.partialorder %v5921, 0.0
        %vm5954 = vcmp.gt.f32.partialorder %v5818, 0.0
        %vm5955 = vcmp.gt.f32.partialorder %v5820, 0.0
        %vm5956 = vcmp.gt.f32.partialorder %v5926, 0.0
        %vm5957 = vcmp.gt.f32.partialorder %v5824, 0.0
        %vm5958 = vcmp.gt.f32.partialorder %v5826, 0.0
        %vm5959 = vcmp.gt.f32.partialorder %v5931, 0.0
        %vm5960 = vcmp.gt.f32.partialorder %v5830, 0.0
        %vm5961 = vcmp.gt.f32.partialorder %v5832, 0.0
        %vm5962 = vcmp.gt.f32.partialorder %v5936, 0.0
        %v5963 = vmul.f32 %v5788, 0.01
        %v5964 = vmul.f32 %v5790, 0.01
        %v5965 = vmul.f32 %v5901, 0.01
        %v5966 = vmul.f32 %v5794, 0.01
        %v5967 = vmul.f32 %v5796, 0.01
        %v5968 = vmul.f32 %v5906, 0.01
        %v5969 = vmul.f32 %v5800, 0.01
        %v5970 = vmul.f32 %v5802, 0.01
        %v5971 = vmul.f32 %v5911, 0.01
        %v5972 = vmul.f32 %v5806, 0.01
        %v5973 = vmul.f32 %v5808, 0.01
        %v5974 = vmul.f32 %v5916, 0.01
        %v5975 = vmul.f32 %v5812, 0.01
        %v5976 = vmul.f32 %v5814, 0.01
        %v5977 = vmul.f32 %v5921, 0.01
        %v5978 = vmul.f32 %v5818, 0.01
        %v5979 = vmul.f32 %v5820, 0.01
        %v5980 = vmul.f32 %v5926, 0.01
        %v5981 = vmul.f32 %v5824, 0.01
        %v5982 = vmul.f32 %v5826, 0.01
        %v5983 = vmul.f32 %v5931, 0.01
        %v5984 = vmul.f32 %v5830, 0.01
        %v5985 = vmul.f32 %v5832, 0.01
        %v5986 = vmul.f32 %v5936, 0.01
        %v5987 = vsel %vm5939, %v5788, %v5963
        %v5988 = vsel %vm5940, %v5790, %v5964
        %v5989 = vsel %vm5941, %v5901, %v5965
        %v5990 = vsel %vm5942, %v5794, %v5966
        %v5991 = vsel %vm5943, %v5796, %v5967
        %v5992 = vsel %vm5944, %v5906, %v5968
        %v5993 = vsel %vm5945, %v5800, %v5969
        %v5994 = vsel %vm5946, %v5802, %v5970
        %v5995 = vsel %vm5947, %v5911, %v5971
        %v5996 = vsel %vm5948, %v5806, %v5972
        %v5997 = vsel %vm5949, %v5808, %v5973
        %v5998 = vsel %vm5950, %v5916, %v5974
        %v5999 = vsel %vm5951, %v5812, %v5975
        %v6000 = vsel %vm5952, %v5814, %v5976
        %v6001 = vsel %vm5953, %v5921, %v5977
        %v6002 = vsel %vm5954, %v5818, %v5978
        %v6003 = vsel %vm5955, %v5820, %v5979
        %v6004 = vsel %vm5956, %v5926, %v5980
        %v6005 = vsel %vm5957, %v5824, %v5981
        %v6006 = vsel %vm5958, %v5826, %v5982
        %v6007 = vsel %vm5959, %v5931, %v5983
        %v6008 = vsel %vm5960, %v5830, %v5984
        %v6009 = vsel %vm5961, %v5832, %v5985
        %v6010 = vsel %vm5962, %v5936, %v5986
        %v6011 = vsel %vm1734, %v5987, 0.0
        %v6012 = vsel %vm1735, %v5988, 0.0
        %v6013 = vsel %vm1736, %v5989, 0.0
        %v6014 = vsel %vm1734, %v5990, 0.0
        %v6015 = vsel %vm1735, %v5991, 0.0
        %v6016 = vsel %vm1736, %v5992, 0.0
        %v6017 = vsel %vm1734, %v5993, 0.0
        %v6018 = vsel %vm1735, %v5994, 0.0
        %v6019 = vsel %vm1736, %v5995, 0.0
        %v6020 = vsel %vm1734, %v5996, 0.0
        %v6021 = vsel %vm1735, %v5997, 0.0
        %v6022 = vsel %vm1736, %v5998, 0.0
        %v6023 = vsel %vm1734, %v5999, 0.0
        %v6024 = vsel %vm1735, %v6000, 0.0
        %v6025 = vsel %vm1736, %v6001, 0.0
        %v6026 = vsel %vm1734, %v6002, 0.0
        %v6027 = vsel %vm1735, %v6003, 0.0
        %v6028 = vsel %vm1736, %v6004, 0.0
        %v6029 = vsel %vm1734, %v6005, 0.0
        %v6030 = vsel %vm1735, %v6006, 0.0
        %v6031 = vsel %vm1736, %v6007, 0.0
        %v6032 = vsel %vm1734, %v6008, 0.0
        %v6033 = vsel %vm1735, %v6009, 0.0
        %v6034 = vsel %vm1736, %v6010, 0.0
        %6035 = vst [vmem:[#allocation3 + $0x8] sm:$0xff] %v6011
        %6036 = vst [vmem:[#allocation3 + $0x10] sm:$0xff] %v6012
        %6037 = vst [vmem:[#allocation3 + $0x18] sm:$0xff] %v6013
        %6038 = vst [vmem:[#allocation3 + $0x30] sm:$0xff] %v6014
        %6039 = vst [vmem:[#allocation3 + $0x38] sm:$0xff] %v6015
        %6040 = vst [vmem:[#allocation3 + $0x40] sm:$0xff] %v6016
        %6041 = vst [vmem:[#allocation3 + $0x58] sm:$0xff] %v6017
        %6042 = vst [vmem:[#allocation3 + $0x60] sm:$0xff] %v6018
        %6043 = vst [vmem:[#allocation3 + $0x68] sm:$0xff] %v6019
        %6044 = vst [vmem:[#allocation3 + $0x80] sm:$0xff] %v6020
        %6045 = vst [vmem:[#allocation3 + $0x88] sm:$0xff] %v6021
        %6046 = vst [vmem:[#allocation3 + $0x90] sm:$0xff] %v6022
        %6047 = vst [vmem:[#allocation3 + $0xa8] sm:$0xff] %v6023
        %6048 = vst [vmem:[#allocation3 + $0xb0] sm:$0xff] %v6024
        %6049 = vst [vmem:[#allocation3 + $0xb8] sm:$0xff] %v6025
        %6050 = vst [vmem:[#allocation3 + $0xd0] sm:$0xff] %v6026
        %6051 = vst [vmem:[#allocation3 + $0xd8] sm:$0xff] %v6027
        %6052 = vst [vmem:[#allocation3 + $0xe0] sm:$0xff] %v6028
        %6053 = vst [vmem:[#allocation3 + $0xf8] sm:$0xff] %v6029
        %6054 = vst [vmem:[#allocation3 + $0x100] sm:$0xff] %v6030
        %6055 = vst [vmem:[#allocation3 + $0x108] sm:$0xff] %v6031
        %6056 = vst [vmem:[#allocation3 + $0x120] sm:$0xff] %v6032
        %6057 = vst [vmem:[#allocation3 + $0x128] sm:$0xff] %v6033
        %6058 = vst [vmem:[#allocation3 + $0x130] sm:$0xff] %v6034
        %v6059 = vld [vmem:[#allocation3] sm:$0xff]
        %v6060 = vld [vmem:[#allocation3 + $0x8] sm:$0xff]
        %v6061 = vld [vmem:[#allocation3 + $0x10] sm:$0xff]
        %v6062 = vld [vmem:[#allocation3 + $0x18] sm:$0xff]
        %v6063 = vld [vmem:[#allocation3 + $0x28] sm:$0xff]
        %v6064 = vld [vmem:[#allocation3 + $0x30] sm:$0xff]
        %v6065 = vld [vmem:[#allocation3 + $0x38] sm:$0xff]
        %v6066 = vld [vmem:[#allocation3 + $0x40] sm:$0xff]
        %v6067 = vld [vmem:[#allocation3 + $0x50] sm:$0xff]
        %v6068 = vld [vmem:[#allocation3 + $0x58] sm:$0xff]
        %v6069 = vld [vmem:[#allocation3 + $0x60] sm:$0xff]
        %v6070 = vld [vmem:[#allocation3 + $0x68] sm:$0xff]
        %v6071 = vld [vmem:[#allocation3 + $0x78] sm:$0xff]
        %v6072 = vld [vmem:[#allocation3 + $0x80] sm:$0xff]
        %v6073 = vld [vmem:[#allocation3 + $0x88] sm:$0xff]
        %v6074 = vld [vmem:[#allocation3 + $0x90] sm:$0xff]
        %v6075 = vld [vmem:[#allocation3 + $0xa0] sm:$0xff]
        %v6076 = vld [vmem:[#allocation3 + $0xa8] sm:$0xff]
        %v6077 = vld [vmem:[#allocation3 + $0xb0] sm:$0xff]
        %v6078 = vld [vmem:[#allocation3 + $0xb8] sm:$0xff]
        %v6079 = vld [vmem:[#allocation3 + $0xc8] sm:$0xff]
        %v6080 = vld [vmem:[#allocation3 + $0xd0] sm:$0xff]
        %v6081 = vld [vmem:[#allocation3 + $0xd8] sm:$0xff]
        %v6082 = vld [vmem:[#allocation3 + $0xe0] sm:$0xff]
        %v6083 = vld [vmem:[#allocation3 + $0xf0] sm:$0xff]
        %v6084 = vld [vmem:[#allocation3 + $0xf8] sm:$0xff]
        %v6085 = vld [vmem:[#allocation3 + $0x100] sm:$0xff]
        %v6086 = vld [vmem:[#allocation3 + $0x108] sm:$0xff]
        %v6087 = vld [vmem:[#allocation3 + $0x118] sm:$0xff]
        %v6088 = vld [vmem:[#allocation3 + $0x120] sm:$0xff]
        %v6089 = vld [vmem:[#allocation3 + $0x128] sm:$0xff]
        %v6090 = vld [vmem:[#allocation3 + $0x130] sm:$0xff]
        %6123 = vrot.lane.b32.xlu0 %v6059, 1
        %v6124 = vpop.permute.xlu0 %6123
        %6125 = vrot.lane.b32.xlu0 %v6060, 1
        %v6126 = vpop.permute.xlu0 %6125
        %6127 = vrot.lane.b32.xlu0 %v6061, 1
        %v6128 = vpop.permute.xlu0 %6127
        %6129 = vrot.lane.b32.xlu0 %v6062, 1
        %v6130 = vpop.permute.xlu0 %6129
        %6131 = vrot.lane.b32.xlu0 %v6063, 1
        %v6132 = vpop.permute.xlu0 %6131
        %6133 = vrot.lane.b32.xlu0 %v6064, 1
        %v6134 = vpop.permute.xlu0 %6133
        %6135 = vrot.lane.b32.xlu0 %v6065, 1
        %v6136 = vpop.permute.xlu0 %6135
        %6137 = vrot.lane.b32.xlu0 %v6066, 1
        %v6138 = vpop.permute.xlu0 %6137
        %6139 = vrot.lane.b32.xlu0 %v6067, 1
        %v6140 = vpop.permute.xlu0 %6139
        %6141 = vrot.lane.b32.xlu0 %v6068, 1
        %v6142 = vpop.permute.xlu0 %6141
        %6143 = vrot.lane.b32.xlu0 %v6069, 1
        %v6144 = vpop.permute.xlu0 %6143
        %6145 = vrot.lane.b32.xlu0 %v6070, 1
        %v6146 = vpop.permute.xlu0 %6145
        %6147 = vrot.lane.b32.xlu0 %v6071, 1
        %v6148 = vpop.permute.xlu0 %6147
        %6149 = vrot.lane.b32.xlu0 %v6072, 1
        %v6150 = vpop.permute.xlu0 %6149
        %6151 = vrot.lane.b32.xlu0 %v6073, 1
        %v6152 = vpop.permute.xlu0 %6151
        %6153 = vrot.lane.b32.xlu0 %v6074, 1
        %v6154 = vpop.permute.xlu0 %6153
        %6155 = vrot.lane.b32.xlu0 %v6075, 1
        %v6156 = vpop.permute.xlu0 %6155
        %6157 = vrot.lane.b32.xlu0 %v6076, 1
        %v6158 = vpop.permute.xlu0 %6157
        %6159 = vrot.lane.b32.xlu0 %v6077, 1
        %v6160 = vpop.permute.xlu0 %6159
        %6161 = vrot.lane.b32.xlu0 %v6078, 1
        %v6162 = vpop.permute.xlu0 %6161
        %6163 = vrot.lane.b32.xlu0 %v6079, 1
        %v6164 = vpop.permute.xlu0 %6163
        %6165 = vrot.lane.b32.xlu0 %v6080, 1
        %v6166 = vpop.permute.xlu0 %6165
        %6167 = vrot.lane.b32.xlu0 %v6081, 1
        %v6168 = vpop.permute.xlu0 %6167
        %6169 = vrot.lane.b32.xlu0 %v6082, 1
        %v6170 = vpop.permute.xlu0 %6169
        %6171 = vrot.lane.b32.xlu0 %v6083, 1
        %v6172 = vpop.permute.xlu0 %6171
        %6173 = vrot.lane.b32.xlu0 %v6084, 1
        %v6174 = vpop.permute.xlu0 %6173
        %6175 = vrot.lane.b32.xlu0 %v6085, 1
        %v6176 = vpop.permute.xlu0 %6175
        %6177 = vrot.lane.b32.xlu0 %v6086, 1
        %v6178 = vpop.permute.xlu0 %6177
        %6179 = vrot.lane.b32.xlu0 %v6087, 1
        %v6180 = vpop.permute.xlu0 %6179
        %6181 = vrot.lane.b32.xlu0 %v6088, 1
        %v6182 = vpop.permute.xlu0 %6181
        %6183 = vrot.lane.b32.xlu0 %v6089, 1
        %v6184 = vpop.permute.xlu0 %6183
        %6185 = vrot.lane.b32.xlu0 %v6090, 1
        %v6186 = vpop.permute.xlu0 %6185
        %v6187 = vsel %vm790, %v6124, %v6126
        %v6188 = vsel %vm790, %v6126, %v6128
        %v6189 = vsel %vm790, %v6128, %v6130
        %v6190 = vsel %vm790, %v6132, %v6134
        %v6191 = vsel %vm790, %v6134, %v6136
        %v6192 = vsel %vm790, %v6136, %v6138
        %v6193 = vsel %vm790, %v6140, %v6142
        %v6194 = vsel %vm790, %v6142, %v6144
        %v6195 = vsel %vm790, %v6144, %v6146
        %v6196 = vsel %vm790, %v6148, %v6150
        %v6197 = vsel %vm790, %v6150, %v6152
        %v6198 = vsel %vm790, %v6152, %v6154
        %v6199 = vsel %vm790, %v6156, %v6158
        %v6200 = vsel %vm790, %v6158, %v6160
        %v6201 = vsel %vm790, %v6160, %v6162
        %v6202 = vsel %vm790, %v6164, %v6166
        %v6203 = vsel %vm790, %v6166, %v6168
        %v6204 = vsel %vm790, %v6168, %v6170
        %v6205 = vsel %vm790, %v6172, %v6174
        %v6206 = vsel %vm790, %v6174, %v6176
        %v6207 = vsel %vm790, %v6176, %v6178
        %v6208 = vsel %vm790, %v6180, %v6182
        %v6209 = vsel %vm790, %v6182, %v6184
        %v6210 = vsel %vm790, %v6184, %v6186
        %6235 = vst [vmem:[#allocation4] sm:$0xff] %v6187
        %6236 = vst [vmem:[#allocation4 + $0x8] sm:$0xff] %v6188
        %6237 = vst [vmem:[#allocation4 + $0x10] sm:$0xff] %v6189
        %6238 = vst [vmem:[#allocation4 + $0x18] sm:$0xff] %v6190
        %6239 = vst [vmem:[#allocation4 + $0x20] sm:$0xff] %v6191
        %6240 = vst [vmem:[#allocation4 + $0x28] sm:$0xff] %v6192
        %6241 = vst [vmem:[#allocation4 + $0x30] sm:$0xff] %v6193
        %6242 = vst [vmem:[#allocation4 + $0x38] sm:$0xff] %v6194
        %6243 = vst [vmem:[#allocation4 + $0x40] sm:$0xff] %v6195
        %6244 = vst [vmem:[#allocation4 + $0x48] sm:$0xff] %v6196
        %6245 = vst [vmem:[#allocation4 + $0x50] sm:$0xff] %v6197
        %6246 = vst [vmem:[#allocation4 + $0x58] sm:$0xff] %v6198
        %6247 = vst [vmem:[#allocation4 + $0x60] sm:$0xff] %v6199
        %6248 = vst [vmem:[#allocation4 + $0x68] sm:$0xff] %v6200
        %6249 = vst [vmem:[#allocation4 + $0x70] sm:$0xff] %v6201
        %6250 = vst [vmem:[#allocation4 + $0x78] sm:$0xff] %v6202
        %6251 = vst [vmem:[#allocation4 + $0x80] sm:$0xff] %v6203
        %6252 = vst [vmem:[#allocation4 + $0x88] sm:$0xff] %v6204
        %6253 = vst [vmem:[#allocation4 + $0x90] sm:$0xff] %v6205
        %6254 = vst [vmem:[#allocation4 + $0x98] sm:$0xff] %v6206
        %6255 = vst [vmem:[#allocation4 + $0xa0] sm:$0xff] %v6207
        %6256 = vst [vmem:[#allocation4 + $0xa8] sm:$0xff] %v6208
        %6257 = vst [vmem:[#allocation4 + $0xb0] sm:$0xff] %v6209
        %6258 = vst [vmem:[#allocation4 + $0xb8] sm:$0xff] %v6210
        %v6259 = vld [vmem:[#allocation3 + $0x8] sm:$0xff]
        %v6260 = vld [vmem:[#allocation3 + $0x10] sm:$0xff]
        %v6261 = vld [vmem:[#allocation3 + $0x18] sm:$0xff]
        %v6262 = vld [vmem:[#allocation3 + $0x30] sm:$0xff]
        %v6263 = vld [vmem:[#allocation3 + $0x38] sm:$0xff]
        %v6264 = vld [vmem:[#allocation3 + $0x40] sm:$0xff]
        %v6265 = vld [vmem:[#allocation3 + $0x58] sm:$0xff]
        %v6266 = vld [vmem:[#allocation3 + $0x60] sm:$0xff]
        %v6267 = vld [vmem:[#allocation3 + $0x68] sm:$0xff]
        %v6268 = vld [vmem:[#allocation3 + $0x80] sm:$0xff]
        %v6269 = vld [vmem:[#allocation3 + $0x88] sm:$0xff]
        %v6270 = vld [vmem:[#allocation3 + $0x90] sm:$0xff]
        %v6271 = vld [vmem:[#allocation3 + $0xa8] sm:$0xff]
        %v6272 = vld [vmem:[#allocation3 + $0xb0] sm:$0xff]
        %v6273 = vld [vmem:[#allocation3 + $0xb8] sm:$0xff]
        %v6274 = vld [vmem:[#allocation3 + $0xd0] sm:$0xff]
        %v6275 = vld [vmem:[#allocation3 + $0xd8] sm:$0xff]
        %v6276 = vld [vmem:[#allocation3 + $0xe0] sm:$0xff]
        %v6277 = vld [vmem:[#allocation3 + $0xf8] sm:$0xff]
        %v6278 = vld [vmem:[#allocation3 + $0x100] sm:$0xff]
        %v6279 = vld [vmem:[#allocation3 + $0x108] sm:$0xff]
        %v6280 = vld [vmem:[#allocation3 + $0x120] sm:$0xff]
        %v6281 = vld [vmem:[#allocation3 + $0x128] sm:$0xff]
        %v6282 = vld [vmem:[#allocation3 + $0x130] sm:$0xff]
        %6283 = vst [vmem:[#allocation4 + $0xc0] sm:$0xff] %v6259
        %6284 = vst [vmem:[#allocation4 + $0xc8] sm:$0xff] %v6260
        %6285 = vst [vmem:[#allocation4 + $0xd0] sm:$0xff] %v6261
        %6286 = vst [vmem:[#allocation4 + $0xd8] sm:$0xff] %v6262
        %6287 = vst [vmem:[#allocation4 + $0xe0] sm:$0xff] %v6263
        %6288 = vst [vmem:[#allocation4 + $0xe8] sm:$0xff] %v6264
        %6289 = vst [vmem:[#allocation4 + $0xf0] sm:$0xff] %v6265
        %6290 = vst [vmem:[#allocation4 + $0xf8] sm:$0xff] %v6266
        %6291 = vst [vmem:[#allocation4 + $0x100] sm:$0xff] %v6267
        %6292 = vst [vmem:[#allocation4 + $0x108] sm:$0xff] %v6268
        %6293 = vst [vmem:[#allocation4 + $0x110] sm:$0xff] %v6269
        %6294 = vst [vmem:[#allocation4 + $0x118] sm:$0xff] %v6270
        %6295 = vst [vmem:[#allocation4 + $0x120] sm:$0xff] %v6271
        %6296 = vst [vmem:[#allocation4 + $0x128] sm:$0xff] %v6272
        %6297 = vst [vmem:[#allocation4 + $0x130] sm:$0xff] %v6273
        %6298 = vst [vmem:[#allocation4 + $0x138] sm:$0xff] %v6274
        %6299 = vst [vmem:[#allocation4 + $0x140] sm:$0xff] %v6275
        %6300 = vst [vmem:[#allocation4 + $0x148] sm:$0xff] %v6276
        %6301 = vst [vmem:[#allocation4 + $0x150] sm:$0xff] %v6277
        %6302 = vst [vmem:[#allocation4 + $0x158] sm:$0xff] %v6278
        %6303 = vst [vmem:[#allocation4 + $0x160] sm:$0xff] %v6279
        %6304 = vst [vmem:[#allocation4 + $0x168] sm:$0xff] %v6280
        %6305 = vst [vmem:[#allocation4 + $0x170] sm:$0xff] %v6281
        %6306 = vst [vmem:[#allocation4 + $0x178] sm:$0xff] %v6282
        %v6307 = vld [vmem:[#allocation3 + $0x8] sm:$0xff]
        %v6308 = vld [vmem:[#allocation3 + $0x10] sm:$0xff]
        %v6309 = vld [vmem:[#allocation3 + $0x18] sm:$0xff]
        %v6310 = vld [vmem:[#allocation3 + $0x20] sm:$0xff]
        %v6311 = vld [vmem:[#allocation3 + $0x30] sm:$0xff]
        %v6312 = vld [vmem:[#allocation3 + $0x38] sm:$0xff]
        %v6313 = vld [vmem:[#allocation3 + $0x40] sm:$0xff]
        %v6314 = vld [vmem:[#allocation3 + $0x48] sm:$0xff]
        %v6315 = vld [vmem:[#allocation3 + $0x58] sm:$0xff]
        %v6316 = vld [vmem:[#allocation3 + $0x60] sm:$0xff]
        %v6317 = vld [vmem:[#allocation3 + $0x68] sm:$0xff]
        %v6318 = vld [vmem:[#allocation3 + $0x70] sm:$0xff]
        %v6319 = vld [vmem:[#allocation3 + $0x80] sm:$0xff]
        %v6320 = vld [vmem:[#allocation3 + $0x88] sm:$0xff]
        %v6321 = vld [vmem:[#allocation3 + $0x90] sm:$0xff]
        %v6322 = vld [vmem:[#allocation3 + $0x98] sm:$0xff]
        %v6323 = vld [vmem:[#allocation3 + $0xa8] sm:$0xff]
        %v6324 = vld [vmem:[#allocation3 + $0xb0] sm:$0xff]
        %v6325 = vld [vmem:[#allocation3 + $0xb8] sm:$0xff]
        %v6326 = vld [vmem:[#allocation3 + $0xc0] sm:$0xff]
        %v6327 = vld [vmem:[#allocation3 + $0xd0] sm:$0xff]
        %v6328 = vld [vmem:[#allocation3 + $0xd8] sm:$0xff]
        %v6329 = vld [vmem:[#allocation3 + $0xe0] sm:$0xff]
        %v6330 = vld [vmem:[#allocation3 + $0xe8] sm:$0xff]
        %v6331 = vld [vmem:[#allocation3 + $0xf8] sm:$0xff]
        %v6332 = vld [vmem:[#allocation3 + $0x100] sm:$0xff]
        %v6333 = vld [vmem:[#allocation3 + $0x108] sm:$0xff]
        %v6334 = vld [vmem:[#allocation3 + $0x110] sm:$0xff]
        %v6335 = vld [vmem:[#allocation3 + $0x120] sm:$0xff]
        %v6336 = vld [vmem:[#allocation3 + $0x128] sm:$0xff]
        %v6337 = vld [vmem:[#allocation3 + $0x130] sm:$0xff]
        %v6338 = vld [vmem:[#allocation3 + $0x138] sm:$0xff]
        %6371 = vrot.lane.b32.xlu0 %v6307, 127
        %v6372 = vpop.permute.xlu0 %6371
        %6373 = vrot.lane.b32.xlu0 %v6308, 127
        %v6374 = vpop.permute.xlu0 %6373
        %6375 = vrot.lane.b32.xlu0 %v6309, 127
        %v6376 = vpop.permute.xlu0 %6375
        %6377 = vrot.lane.b32.xlu0 %v6310, 127
        %v6378 = vpop.permute.xlu0 %6377
        %6379 = vrot.lane.b32.xlu0 %v6311, 127
        %v6380 = vpop.permute.xlu0 %6379
        %6381 = vrot.lane.b32.xlu0 %v6312, 127
        %v6382 = vpop.permute.xlu0 %6381
        %6383 = vrot.lane.b32.xlu0 %v6313, 127
        %v6384 = vpop.permute.xlu0 %6383
        %6385 = vrot.lane.b32.xlu0 %v6314, 127
        %v6386 = vpop.permute.xlu0 %6385
        %6387 = vrot.lane.b32.xlu0 %v6315, 127
        %v6388 = vpop.permute.xlu0 %6387
        %6389 = vrot.lane.b32.xlu0 %v6316, 127
        %v6390 = vpop.permute.xlu0 %6389
        %6391 = vrot.lane.b32.xlu0 %v6317, 127
        %v6392 = vpop.permute.xlu0 %6391
        %6393 = vrot.lane.b32.xlu0 %v6318, 127
        %v6394 = vpop.permute.xlu0 %6393
        %6395 = vrot.lane.b32.xlu0 %v6319, 127
        %v6396 = vpop.permute.xlu0 %6395
        %6397 = vrot.lane.b32.xlu0 %v6320, 127
        %v6398 = vpop.permute.xlu0 %6397
        %6399 = vrot.lane.b32.xlu0 %v6321, 127
        %v6400 = vpop.permute.xlu0 %6399
        %6401 = vrot.lane.b32.xlu0 %v6322, 127
        %v6402 = vpop.permute.xlu0 %6401
        %6403 = vrot.lane.b32.xlu0 %v6323, 127
        %v6404 = vpop.permute.xlu0 %6403
        %6405 = vrot.lane.b32.xlu0 %v6324, 127
        %v6406 = vpop.permute.xlu0 %6405
        %6407 = vrot.lane.b32.xlu0 %v6325, 127
        %v6408 = vpop.permute.xlu0 %6407
        %6409 = vrot.lane.b32.xlu0 %v6326, 127
        %v6410 = vpop.permute.xlu0 %6409
        %6411 = vrot.lane.b32.xlu0 %v6327, 127
        %v6412 = vpop.permute.xlu0 %6411
        %6413 = vrot.lane.b32.xlu0 %v6328, 127
        %v6414 = vpop.permute.xlu0 %6413
        %6415 = vrot.lane.b32.xlu0 %v6329, 127
        %v6416 = vpop.permute.xlu0 %6415
        %6417 = vrot.lane.b32.xlu0 %v6330, 127
        %v6418 = vpop.permute.xlu0 %6417
        %6419 = vrot.lane.b32.xlu0 %v6331, 127
        %v6420 = vpop.permute.xlu0 %6419
        %6421 = vrot.lane.b32.xlu0 %v6332, 127
        %v6422 = vpop.permute.xlu0 %6421
        %6423 = vrot.lane.b32.xlu0 %v6333, 127
        %v6424 = vpop.permute.xlu0 %6423
        %6425 = vrot.lane.b32.xlu0 %v6334, 127
        %v6426 = vpop.permute.xlu0 %6425
        %6427 = vrot.lane.b32.xlu0 %v6335, 127
        %v6428 = vpop.permute.xlu0 %6427
        %6429 = vrot.lane.b32.xlu0 %v6336, 127
        %v6430 = vpop.permute.xlu0 %6429
        %6431 = vrot.lane.b32.xlu0 %v6337, 127
        %v6432 = vpop.permute.xlu0 %6431
        %6433 = vrot.lane.b32.xlu0 %v6338, 127
        %v6434 = vpop.permute.xlu0 %6433
        %v6435 = vsel %vm1207, %v6372, %v6374
        %v6436 = vsel %vm1207, %v6374, %v6376
        %v6437 = vsel %vm1207, %v6376, %v6378
        %v6438 = vsel %vm1207, %v6380, %v6382
        %v6439 = vsel %vm1207, %v6382, %v6384
        %v6440 = vsel %vm1207, %v6384, %v6386
        %v6441 = vsel %vm1207, %v6388, %v6390
        %v6442 = vsel %vm1207, %v6390, %v6392
        %v6443 = vsel %vm1207, %v6392, %v6394
        %v6444 = vsel %vm1207, %v6396, %v6398
        %v6445 = vsel %vm1207, %v6398, %v6400
        %v6446 = vsel %vm1207, %v6400, %v6402
        %v6447 = vsel %vm1207, %v6404, %v6406
        %v6448 = vsel %vm1207, %v6406, %v6408
        %v6449 = vsel %vm1207, %v6408, %v6410
        %v6450 = vsel %vm1207, %v6412, %v6414
        %v6451 = vsel %vm1207, %v6414, %v6416
        %v6452 = vsel %vm1207, %v6416, %v6418
        %v6453 = vsel %vm1207, %v6420, %v6422
        %v6454 = vsel %vm1207, %v6422, %v6424
        %v6455 = vsel %vm1207, %v6424, %v6426
        %v6456 = vsel %vm1207, %v6428, %v6430
        %v6457 = vsel %vm1207, %v6430, %v6432
        %v6458 = vsel %vm1207, %v6432, %v6434
        %6483 = vst [vmem:[#allocation4 + $0x180] sm:$0xff] %v6435
        %6484 = vst [vmem:[#allocation4 + $0x188] sm:$0xff] %v6436
        %6485 = vst [vmem:[#allocation4 + $0x190] sm:$0xff] %v6437
        %6486 = vst [vmem:[#allocation4 + $0x198] sm:$0xff] %v6438
        %6487 = vst [vmem:[#allocation4 + $0x1a0] sm:$0xff] %v6439
        %6488 = vst [vmem:[#allocation4 + $0x1a8] sm:$0xff] %v6440
        %6489 = vst [vmem:[#allocation4 + $0x1b0] sm:$0xff] %v6441
        %6490 = vst [vmem:[#allocation4 + $0x1b8] sm:$0xff] %v6442
        %6491 = vst [vmem:[#allocation4 + $0x1c0] sm:$0xff] %v6443
        %6492 = vst [vmem:[#allocation4 + $0x1c8] sm:$0xff] %v6444
        %6493 = vst [vmem:[#allocation4 + $0x1d0] sm:$0xff] %v6445
        %6494 = vst [vmem:[#allocation4 + $0x1d8] sm:$0xff] %v6446
        %6495 = vst [vmem:[#allocation4 + $0x1e0] sm:$0xff] %v6447
        %6496 = vst [vmem:[#allocation4 + $0x1e8] sm:$0xff] %v6448
        %6497 = vst [vmem:[#allocation4 + $0x1f0] sm:$0xff] %v6449
        %6498 = vst [vmem:[#allocation4 + $0x1f8] sm:$0xff] %v6450
        %6499 = vst [vmem:[#allocation4 + $0x200] sm:$0xff] %v6451
        %6500 = vst [vmem:[#allocation4 + $0x208] sm:$0xff] %v6452
        %6501 = vst [vmem:[#allocation4 + $0x210] sm:$0xff] %v6453
        %6502 = vst [vmem:[#allocation4 + $0x218] sm:$0xff] %v6454
        %6503 = vst [vmem:[#allocation4 + $0x220] sm:$0xff] %v6455
        %6504 = vst [vmem:[#allocation4 + $0x228] sm:$0xff] %v6456
        %6505 = vst [vmem:[#allocation4 + $0x230] sm:$0xff] %v6457
        %6506 = vst [vmem:[#allocation4 + $0x238] sm:$0xff] %v6458
        %s6507 = scalar_lea.vmem [#allocation11], 256
        %v6508 = vld [vmem:[%s6507] sm:$0xff]
        %v6509 = vld [vmem:[%s6507 + $0x8] sm:$0xff]
        %v6510 = vld [vmem:[%s6507 + $0x10] sm:$0xff]
        %v6511 = vld [vmem:[%s6507 + $0x18] sm:$0xff]
        %v6512 = vld [vmem:[%s6507 + $0x20] sm:$0xff]
        %v6513 = vld [vmem:[%s6507 + $0x28] sm:$0xff]
        %v6514 = vld [vmem:[%s6507 + $0x30] sm:$0xff]
        %v6515 = vld [vmem:[%s6507 + $0x38] sm:$0xff]
        %v6516 = vld [vmem:[%s6507 + $0x40] sm:$0xff]
        %v6517 = vld [vmem:[%s6507 + $0x48] sm:$0xff]
        %v6518 = vld [vmem:[%s6507 + $0x50] sm:$0xff]
        %v6519 = vld [vmem:[%s6507 + $0x58] sm:$0xff]
        %v6520 = vld [vmem:[%s6507 + $0x60] sm:$0xff]
        %v6521 = vld [vmem:[%s6507 + $0x68] sm:$0xff]
        %v6522 = vld [vmem:[%s6507 + $0x70] sm:$0xff]
        %v6523 = vld [vmem:[%s6507 + $0x78] sm:$0xff]
        %v6524 = vld [vmem:[#allocation4] sm:$0xff]
        %v6525 = vld [vmem:[#allocation4 + $0x8] sm:$0xff]
        %v6526 = vld [vmem:[#allocation4 + $0x10] sm:$0xff]
        %v6527 = vld [vmem:[#allocation4 + $0x18] sm:$0xff]
        %v6528 = vld [vmem:[#allocation4 + $0x20] sm:$0xff]
        %v6529 = vld [vmem:[#allocation4 + $0x28] sm:$0xff]
        %v6530 = vld [vmem:[#allocation4 + $0x30] sm:$0xff]
        %v6531 = vld [vmem:[#allocation4 + $0x38] sm:$0xff]
        %v6532 = vld [vmem:[#allocation4 + $0x40] sm:$0xff]
        %v6533 = vld [vmem:[#allocation4 + $0x48] sm:$0xff]
        %v6534 = vld [vmem:[#allocation4 + $0x50] sm:$0xff]
        %v6535 = vld [vmem:[#allocation4 + $0x58] sm:$0xff]
        %v6536 = vld [vmem:[#allocation4 + $0x60] sm:$0xff]
        %v6537 = vld [vmem:[#allocation4 + $0x68] sm:$0xff]
        %v6538 = vld [vmem:[#allocation4 + $0x70] sm:$0xff]
        %v6539 = vld [vmem:[#allocation4 + $0x78] sm:$0xff]
        %v6540 = vld [vmem:[#allocation4 + $0x80] sm:$0xff]
        %v6541 = vld [vmem:[#allocation4 + $0x88] sm:$0xff]
        %v6542 = vld [vmem:[#allocation4 + $0x90] sm:$0xff]
        %v6543 = vld [vmem:[#allocation4 + $0x98] sm:$0xff]
        %v6544 = vld [vmem:[#allocation4 + $0xa0] sm:$0xff]
        %v6545 = vld [vmem:[#allocation4 + $0xa8] sm:$0xff]
        %v6546 = vld [vmem:[#allocation4 + $0xb0] sm:$0xff]
        %v6547 = vld [vmem:[#allocation4 + $0xb8] sm:$0xff]
        %v6548 = vld [vmem:[#allocation4 + $0xc0] sm:$0xff]
        %v6549 = vld [vmem:[#allocation4 + $0xc8] sm:$0xff]
        %v6550 = vld [vmem:[#allocation4 + $0xd0] sm:$0xff]
        %v6551 = vld [vmem:[#allocation4 + $0xd8] sm:$0xff]
        %v6552 = vld [vmem:[#allocation4 + $0xe0] sm:$0xff]
        %v6553 = vld [vmem:[#allocation4 + $0xe8] sm:$0xff]
        %v6554 = vld [vmem:[#allocation4 + $0xf0] sm:$0xff]
        %v6555 = vld [vmem:[#allocation4 + $0xf8] sm:$0xff]
        %v6556 = vld [vmem:[#allocation4 + $0x100] sm:$0xff]
        %v6557 = vld [vmem:[#allocation4 + $0x108] sm:$0xff]
        %v6558 = vld [vmem:[#allocation4 + $0x110] sm:$0xff]
        %v6559 = vld [vmem:[#allocation4 + $0x118] sm:$0xff]
        %v6560 = vld [vmem:[#allocation4 + $0x120] sm:$0xff]
        %v6561 = vld [vmem:[#allocation4 + $0x128] sm:$0xff]
        %v6562 = vld [vmem:[#allocation4 + $0x130] sm:$0xff]
        %v6563 = vld [vmem:[#allocation4 + $0x138] sm:$0xff]
        %v6564 = vld [vmem:[#allocation4 + $0x140] sm:$0xff]
        %v6565 = vld [vmem:[#allocation4 + $0x148] sm:$0xff]
        %v6566 = vld [vmem:[#allocation4 + $0x150] sm:$0xff]
        %v6567 = vld [vmem:[#allocation4 + $0x158] sm:$0xff]
        %v6568 = vld [vmem:[#allocation4 + $0x160] sm:$0xff]
        %v6569 = vld [vmem:[#allocation4 + $0x168] sm:$0xff]
        %v6570 = vld [vmem:[#allocation4 + $0x170] sm:$0xff]
        %v6571 = vld [vmem:[#allocation4 + $0x178] sm:$0xff]
        %v6572 = vld [vmem:[#allocation4 + $0x180] sm:$0xff]
        %v6573 = vld [vmem:[#allocation4 + $0x188] sm:$0xff]
        %v6574 = vld [vmem:[#allocation4 + $0x190] sm:$0xff]
        %v6575 = vld [vmem:[#allocation4 + $0x198] sm:$0xff]
        %v6576 = vld [vmem:[#allocation4 + $0x1a0] sm:$0xff]
        %v6577 = vld [vmem:[#allocation4 + $0x1a8] sm:$0xff]
        %v6578 = vld [vmem:[#allocation4 + $0x1b0] sm:$0xff]
        %v6579 = vld [vmem:[#allocation4 + $0x1b8] sm:$0xff]
        %v6580 = vld [vmem:[#allocation4 + $0x1c0] sm:$0xff]
        %v6581 = vld [vmem:[#allocation4 + $0x1c8] sm:$0xff]
        %v6582 = vld [vmem:[#allocation4 + $0x1d0] sm:$0xff]
        %v6583 = vld [vmem:[#allocation4 + $0x1d8] sm:$0xff]
        %v6584 = vld [vmem:[#allocation4 + $0x1e0] sm:$0xff]
        %v6585 = vld [vmem:[#allocation4 + $0x1e8] sm:$0xff]
        %v6586 = vld [vmem:[#allocation4 + $0x1f0] sm:$0xff]
        %v6587 = vld [vmem:[#allocation4 + $0x1f8] sm:$0xff]
        %v6588 = vld [vmem:[#allocation4 + $0x200] sm:$0xff]
        %v6589 = vld [vmem:[#allocation4 + $0x208] sm:$0xff]
        %v6590 = vld [vmem:[#allocation4 + $0x210] sm:$0xff]
        %v6591 = vld [vmem:[#allocation4 + $0x218] sm:$0xff]
        %v6592 = vld [vmem:[#allocation4 + $0x220] sm:$0xff]
        %v6593 = vld [vmem:[#allocation4 + $0x228] sm:$0xff]
        %v6594 = vld [vmem:[#allocation4 + $0x230] sm:$0xff]
        %v6595 = vld [vmem:[#allocation4 + $0x238] sm:$0xff]
        %s6596 = scalar_lea.vmem %s6, 128
        %v6597 = vld [vmem:[%s6596] sm:$0xff]
        %v6598 = vld [vmem:[%s6596 + $0x8] sm:$0xff]
        %v6599 = vld [vmem:[%s6596 + $0x10] sm:$0xff]
        %v6600 = vld [vmem:[%s6596 + $0x18] sm:$0xff]
        %v6601 = vld [vmem:[%s6596 + $0x20] sm:$0xff]
        %v6602 = vld [vmem:[%s6596 + $0x28] sm:$0xff]
        %v6603 = vld [vmem:[%s6596 + $0x30] sm:$0xff]
        %v6604 = vld [vmem:[%s6596 + $0x38] sm:$0xff]
        %6606 = vset.pattern.permute.xlu0 0
        %6607 = vperm.xlu0 %6606, %v6597
        %v6608 = vpop.permute.xlu0 %6607
        %6611 = vset.pattern.permute.xlu0 0
        %6612 = vperm.xlu0 %6611, %v6598
        %v6613 = vpop.permute.xlu0 %6612
        %6616 = vset.pattern.permute.xlu0 0
        %6617 = vperm.xlu0 %6616, %v6599
        %v6618 = vpop.permute.xlu0 %6617
        %6621 = vset.pattern.permute.xlu0 0
        %6622 = vperm.xlu0 %6621, %v6600
        %v6623 = vpop.permute.xlu0 %6622
        %6626 = vset.pattern.permute.xlu0 0
        %6627 = vperm.xlu0 %6626, %v6601
        %v6628 = vpop.permute.xlu0 %6627
        %6631 = vset.pattern.permute.xlu0 0
        %6632 = vperm.xlu0 %6631, %v6602
        %v6633 = vpop.permute.xlu0 %6632
        %6636 = vset.pattern.permute.xlu0 0
        %6637 = vperm.xlu0 %6636, %v6603
        %v6638 = vpop.permute.xlu0 %6637
        %6641 = vset.pattern.permute.xlu0 0
        %6642 = vperm.xlu0 %6641, %v6604
        %v6643 = vpop.permute.xlu0 %6642
        %v6646 = vsel %vm1416, %v6509, 0
        %v6649 = vsel %vm1416, %v6511, 0
        %v6652 = vsel %vm1416, %v6513, 0
        %v6655 = vsel %vm1416, %v6515, 0
        %v6658 = vsel %vm1416, %v6517, 0
        %v6661 = vsel %vm1416, %v6519, 0
        %v6664 = vsel %vm1416, %v6521, 0
        %v6667 = vsel %vm1416, %v6523, 0
        %6669 = vmatprep.subr.mxu0 %v6525
        %6670 = vmatpush1.msra.mxu0 %v6524
        %6671 = vmatprep.subr.mxu0 %v6528
        %6672 = vmatpush1.msra.mxu0 %v6527
        %6673 = vmatprep.subr.mxu0 %v6531
        %6674 = vmatpush1.msra.mxu0 %v6530
        %6675 = vmatprep.subr.mxu0 %v6534
        %6676 = vmatpush1.msra.mxu0 %v6533
        %6677 = vmatprep.subr.mxu0 %v6537
        %6678 = vmatpush1.msra.mxu0 %v6536
        %6679 = vmatprep.subr.mxu0 %v6540
        %6680 = vmatpush1.msra.mxu0 %v6539
        %6681 = vmatprep.subr.mxu0 %v6543
        %6682 = vmatpush1.msra.mxu0 %v6542
        %6683 = vmatprep.subr.mxu0 %v6546
        %6684 = vmatpush1.msra.mxu0 %v6545
        %6685 = vmatprep.subr.mxu0 %v6549
        %6686 = vmatpush1.msra.mxu0 %v6548
        %6687 = vmatprep.subr.mxu0 %v6552
        %6688 = vmatpush1.msra.mxu0 %v6551
        %6689 = vmatprep.subr.mxu0 %v6555
        %6690 = vmatpush1.msra.mxu0 %v6554
        %6691 = vmatprep.subr.mxu0 %v6558
        %6692 = vmatpush1.msra.mxu0 %v6557
        %6693 = vmatprep.subr.mxu0 %v6561
        %6694 = vmatpush1.msra.mxu0 %v6560
        %6695 = vmatprep.subr.mxu0 %v6564
        %6696 = vmatpush1.msra.mxu0 %v6563
        %6697 = vmatprep.subr.mxu0 %v6567
        %6698 = vmatpush1.msra.mxu0 %v6566
        %6699 = vmatprep.subr.mxu0 %v6570
        %6700 = vmatpush1.msra.mxu0 %v6569
        %6701 = vmatprep.subr.mxu0 %v6573
        %6702 = vmatpush1.msra.mxu0 %v6572
        %6703 = vmatprep.subr.mxu0 %v6576
        %6704 = vmatpush1.msra.mxu0 %v6575
        %6705 = vmatprep.subr.mxu0 %v6579
        %6706 = vmatpush1.msra.mxu0 %v6578
        %6707 = vmatprep.subr.mxu0 %v6582
        %6708 = vmatpush1.msra.mxu0 %v6581
        %6709 = vmatprep.subr.mxu0 %v6585
        %6710 = vmatpush1.msra.mxu0 %v6584
        %6711 = vmatprep.subr.mxu0 %v6588
        %6712 = vmatpush1.msra.mxu0 %v6587
        %6713 = vmatprep.subr.mxu0 %v6591
        %6714 = vmatpush1.msra.mxu0 %v6590
        %6715 = vmatprep.subr.mxu0 %v6594
        %6716 = vmatpush1.msra.mxu0 %v6593
        %6717 = vmatprep.subr.mxu0 0.0
        %6718 = vmatpush1.msra.mxu0 0.0
        %6719 = vmatprep.subr.mxu0 0.0
        %6720 = vmatpush1.msra.mxu0 0.0
        %6721 = vmatprep.subr.mxu0 0.0
        %6722 = vmatpush1.msra.mxu0 0.0
        %6723 = vmatprep.subr.mxu0 0.0
        %6724 = vmatpush1.msra.mxu0 0.0
        %6725 = vmatprep.subr.mxu0 0.0
        %6726 = vmatpush1.msra.mxu0 0.0
        %6727 = vmatprep.subr.mxu0 0.0
        %6728 = vmatpush1.msra.mxu0 0.0
        %6729 = vmatprep.subr.mxu0 0.0
        %6730 = vmatpush1.msra.mxu0 0.0
        %6731 = vmatprep.subr.mxu0 0.0
        %6732 = vmatpush1.msra.mxu0 0.0
        %6733 = vmatprep.mubr.f32.mxu0 %v6646
        %6734 = vmatmul.mubr.f32.gmra.mrb[0].mxu0 %v6508
        %v6735 = vpop.f32.mrb[0].mxu0
        %v6736 = vadd.f32 %v6608, %v6735
        %v6737 = vpop.f32.mrb[0].mxu0
        %v6738 = vadd.f32 %v6608, %v6737
        %6739 = vmatprep.mubr.f32.mxu0 %v6649
        %6740 = vmatmul.mubr.f32.gmra.mrb[0].mxu0 %v6510
        %v6741 = vpop.f32.mrb[0].mxu0
        %v6742 = vadd.f32 %v6613, %v6741
        %v6743 = vpop.f32.mrb[0].mxu0
        %v6744 = vadd.f32 %v6613, %v6743
        %6745 = vmatprep.mubr.f32.mxu0 %v6652
        %6746 = vmatmul.mubr.f32.gmra.mrb[0].mxu0 %v6512
        %v6747 = vpop.f32.mrb[0].mxu0
        %v6748 = vadd.f32 %v6618, %v6747
        %v6749 = vpop.f32.mrb[0].mxu0
        %v6750 = vadd.f32 %v6618, %v6749
        %6751 = vmatprep.mubr.f32.mxu0 %v6655
        %6752 = vmatmul.mubr.f32.gmra.mrb[0].mxu0 %v6514
        %v6753 = vpop.f32.mrb[0].mxu0
        %v6754 = vadd.f32 %v6623, %v6753
        %v6755 = vpop.f32.mrb[0].mxu0
        %v6756 = vadd.f32 %v6623, %v6755
        %6757 = vmatprep.mubr.f32.mxu0 %v6658
        %6758 = vmatmul.mubr.f32.gmra.mrb[0].mxu0 %v6516
        %v6759 = vpop.f32.mrb[0].mxu0
        %v6760 = vadd.f32 %v6628, %v6759
        %v6761 = vpop.f32.mrb[0].mxu0
        %v6762 = vadd.f32 %v6628, %v6761
        %6763 = vmatprep.mubr.f32.mxu0 %v6661
        %6764 = vmatmul.mubr.f32.gmra.mrb[0].mxu0 %v6518
        %v6765 = vpop.f32.mrb[0].mxu0
        %v6766 = vadd.f32 %v6633, %v6765
        %v6767 = vpop.f32.mrb[0].mxu0
        %v6768 = vadd.f32 %v6633, %v6767
        %6769 = vmatprep.mubr.f32.mxu0 %v6664
        %6770 = vmatmul.mubr.f32.gmra.mrb[0].mxu0 %v6520
        %v6771 = vpop.f32.mrb[0].mxu0
        %v6772 = vadd.f32 %v6638, %v6771
        %v6773 = vpop.f32.mrb[0].mxu0
        %v6774 = vadd.f32 %v6638, %v6773
        %6775 = vmatprep.mubr.f32.mxu0 %v6667
        %6776 = vmatmul.mubr.f32.gmra.mrb[0].mxu0 %v6522
        %v6777 = vpop.f32.mrb[0].mxu0
        %v6778 = vadd.f32 %v6643, %v6777
        %v6779 = vpop.f32.mrb[0].mxu0
        %v6780 = vadd.f32 %v6643, %v6779
        %6781 = vdwg.mxu0
        %6782 = vmatprep.subr.mxu0 0.0
        %6783 = vmatpush1.msra.mxu0 %v6526
        %6784 = vmatprep.subr.mxu0 0.0
        %6785 = vmatpush1.msra.mxu0 %v6529
        %6786 = vmatprep.subr.mxu0 0.0
        %6787 = vmatpush1.msra.mxu0 %v6532
        %6788 = vmatprep.subr.mxu0 0.0
        %6789 = vmatpush1.msra.mxu0 %v6535
        %6790 = vmatprep.subr.mxu0 0.0
        %6791 = vmatpush1.msra.mxu0 %v6538
        %6792 = vmatprep.subr.mxu0 0.0
        %6793 = vmatpush1.msra.mxu0 %v6541
        %6794 = vmatprep.subr.mxu0 0.0
        %6795 = vmatpush1.msra.mxu0 %v6544
        %6796 = vmatprep.subr.mxu0 0.0
        %6797 = vmatpush1.msra.mxu0 %v6547
        %6798 = vmatprep.subr.mxu0 0.0
        %6799 = vmatpush1.msra.mxu0 %v6550
        %6800 = vmatprep.subr.mxu0 0.0
        %6801 = vmatpush1.msra.mxu0 %v6553
        %6802 = vmatprep.subr.mxu0 0.0
        %6803 = vmatpush1.msra.mxu0 %v6556
        %6804 = vmatprep.subr.mxu0 0.0
        %6805 = vmatpush1.msra.mxu0 %v6559
        %6806 = vmatprep.subr.mxu0 0.0
        %6807 = vmatpush1.msra.mxu0 %v6562
        %6808 = vmatprep.subr.mxu0 0.0
        %6809 = vmatpush1.msra.mxu0 %v6565
        %6810 = vmatprep.subr.mxu0 0.0
        %6811 = vmatpush1.msra.mxu0 %v6568
        %6812 = vmatprep.subr.mxu0 0.0
        %6813 = vmatpush1.msra.mxu0 %v6571
        %6814 = vmatprep.subr.mxu0 0.0
        %6815 = vmatpush1.msra.mxu0 %v6574
        %6816 = vmatprep.subr.mxu0 0.0
        %6817 = vmatpush1.msra.mxu0 %v6577
        %6818 = vmatprep.subr.mxu0 0.0
        %6819 = vmatpush1.msra.mxu0 %v6580
        %6820 = vmatprep.subr.mxu0 0.0
        %6821 = vmatpush1.msra.mxu0 %v6583
        %6822 = vmatprep.subr.mxu0 0.0
        %6823 = vmatpush1.msra.mxu0 %v6586
        %6824 = vmatprep.subr.mxu0 0.0
        %6825 = vmatpush1.msra.mxu0 %v6589
        %6826 = vmatprep.subr.mxu0 0.0
        %6827 = vmatpush1.msra.mxu0 %v6592
        %6828 = vmatprep.subr.mxu0 0.0
        %6829 = vmatpush1.msra.mxu0 %v6595
        %6830 = vmatprep.subr.mxu0 0.0
        %6831 = vmatpush1.msra.mxu0 0.0
        %6832 = vmatprep.subr.mxu0 0.0
        %6833 = vmatpush1.msra.mxu0 0.0
        %6834 = vmatprep.subr.mxu0 0.0
        %6835 = vmatpush1.msra.mxu0 0.0
        %6836 = vmatprep.subr.mxu0 0.0
        %6837 = vmatpush1.msra.mxu0 0.0
        %6838 = vmatprep.subr.mxu0 0.0
        %6839 = vmatpush1.msra.mxu0 0.0
        %6840 = vmatprep.subr.mxu0 0.0
        %6841 = vmatpush1.msra.mxu0 0.0
        %6842 = vmatprep.subr.mxu0 0.0
        %6843 = vmatpush1.msra.mxu0 0.0
        %6844 = vmatprep.subr.mxu0 0.0
        %6845 = vmatpush1.msra.mxu0 0.0
        %6846 = vmatprep.mubr.f32.mxu0 %v6646
        %6847 = vmatmul.mubr.f32.gmra.mrb[0].mxu0 %v6508
        %v6848 = vpop.f32.mrb[0].mxu0
        %v6849 = vadd.f32 %v6608, %v6848
        %v6850 = vpop.f32.mrb[0].mxu0
        %6851 = vmatprep.mubr.f32.mxu0 %v6649
        %6852 = vmatmul.mubr.f32.gmra.mrb[0].mxu0 %v6510
        %v6853 = vpop.f32.mrb[0].mxu0
        %v6854 = vadd.f32 %v6613, %v6853
        %v6855 = vpop.f32.mrb[0].mxu0
        %6856 = vmatprep.mubr.f32.mxu0 %v6652
        %6857 = vmatmul.mubr.f32.gmra.mrb[0].mxu0 %v6512
        %v6858 = vpop.f32.mrb[0].mxu0
        %v6859 = vadd.f32 %v6618, %v6858
        %v6860 = vpop.f32.mrb[0].mxu0
        %6861 = vmatprep.mubr.f32.mxu0 %v6655
        %6862 = vmatmul.mubr.f32.gmra.mrb[0].mxu0 %v6514
        %v6863 = vpop.f32.mrb[0].mxu0
        %v6864 = vadd.f32 %v6623, %v6863
        %v6865 = vpop.f32.mrb[0].mxu0
        %6866 = vmatprep.mubr.f32.mxu0 %v6658
        %6867 = vmatmul.mubr.f32.gmra.mrb[0].mxu0 %v6516
        %v6868 = vpop.f32.mrb[0].mxu0
        %v6869 = vadd.f32 %v6628, %v6868
        %v6870 = vpop.f32.mrb[0].mxu0
        %6871 = vmatprep.mubr.f32.mxu0 %v6661
        %6872 = vmatmul.mubr.f32.gmra.mrb[0].mxu0 %v6518
        %v6873 = vpop.f32.mrb[0].mxu0
        %v6874 = vadd.f32 %v6633, %v6873
        %v6875 = vpop.f32.mrb[0].mxu0
        %6876 = vmatprep.mubr.f32.mxu0 %v6664
        %6877 = vmatmul.mubr.f32.gmra.mrb[0].mxu0 %v6520
        %v6878 = vpop.f32.mrb[0].mxu0
        %v6879 = vadd.f32 %v6638, %v6878
        %v6880 = vpop.f32.mrb[0].mxu0
        %6881 = vmatprep.mubr.f32.mxu0 %v6667
        %6882 = vmatmul.mubr.f32.gmra.mrb[0].mxu0 %v6522
        %v6883 = vpop.f32.mrb[0].mxu0
        %v6884 = vadd.f32 %v6643, %v6883
        %v6885 = vpop.f32.mrb[0].mxu0
        %6886 = vdwg.mxu0
        %v6887 = vld [vmem:[#allocation2 + $0x8] sm:$0xff]
        %v6888 = vld [vmem:[#allocation2 + $0x10] sm:$0xff]
        %v6889 = vld [vmem:[#allocation2 + $0x18] sm:$0xff]
        %v6890 = vld [vmem:[#allocation2 + $0x30] sm:$0xff]
        %v6891 = vld [vmem:[#allocation2 + $0x38] sm:$0xff]
        %v6892 = vld [vmem:[#allocation2 + $0x40] sm:$0xff]
        %v6893 = vld [vmem:[#allocation2 + $0x58] sm:$0xff]
        %v6894 = vld [vmem:[#allocation2 + $0x60] sm:$0xff]
        %v6895 = vld [vmem:[#allocation2 + $0x68] sm:$0xff]
        %v6896 = vld [vmem:[#allocation2 + $0x80] sm:$0xff]
        %v6897 = vld [vmem:[#allocation2 + $0x88] sm:$0xff]
        %v6898 = vld [vmem:[#allocation2 + $0x90] sm:$0xff]
        %v6899 = vld [vmem:[#allocation2 + $0xa8] sm:$0xff]
        %v6900 = vld [vmem:[#allocation2 + $0xb0] sm:$0xff]
        %v6901 = vld [vmem:[#allocation2 + $0xb8] sm:$0xff]
        %v6902 = vld [vmem:[#allocation2 + $0xd0] sm:$0xff]
        %v6903 = vld [vmem:[#allocation2 + $0xd8] sm:$0xff]
        %v6904 = vld [vmem:[#allocation2 + $0xe0] sm:$0xff]
        %v6905 = vld [vmem:[#allocation2 + $0xf8] sm:$0xff]
        %v6906 = vld [vmem:[#allocation2 + $0x100] sm:$0xff]
        %v6907 = vld [vmem:[#allocation2 + $0x108] sm:$0xff]
        %v6908 = vld [vmem:[#allocation2 + $0x120] sm:$0xff]
        %v6909 = vld [vmem:[#allocation2 + $0x128] sm:$0xff]
        %v6910 = vld [vmem:[#allocation2 + $0x130] sm:$0xff]
        %v6911 = vsel %vm1734, %v6736, 0.0
        %v6912 = vsel %vm1735, %v6738, 0.0
        %v6913 = vsel %vm1736, %v6849, 0.0
        %v6914 = vsel %vm1734, %v6742, 0.0
        %v6915 = vsel %vm1735, %v6744, 0.0
        %v6916 = vsel %vm1736, %v6854, 0.0
        %v6917 = vsel %vm1734, %v6748, 0.0
        %v6918 = vsel %vm1735, %v6750, 0.0
        %v6919 = vsel %vm1736, %v6859, 0.0
        %v6920 = vsel %vm1734, %v6754, 0.0
        %v6921 = vsel %vm1735, %v6756, 0.0
        %v6922 = vsel %vm1736, %v6864, 0.0
        %v6923 = vsel %vm1734, %v6760, 0.0
        %v6924 = vsel %vm1735, %v6762, 0.0
        %v6925 = vsel %vm1736, %v6869, 0.0
        %v6926 = vsel %vm1734, %v6766, 0.0
        %v6927 = vsel %vm1735, %v6768, 0.0
        %v6928 = vsel %vm1736, %v6874, 0.0
        %v6929 = vsel %vm1734, %v6772, 0.0
        %v6930 = vsel %vm1735, %v6774, 0.0
        %v6931 = vsel %vm1736, %v6879, 0.0
        %v6932 = vsel %vm1734, %v6778, 0.0
        %v6933 = vsel %vm1735, %v6780, 0.0
        %v6934 = vsel %vm1736, %v6884, 0.0
        %v6935 = vadd.f32 %v6887, %v6911
        %v6936 = vadd.f32 %v6888, %v6912
        %v6937 = vadd.f32 %v6889, %v6913
        %v6938 = vadd.f32 %v6890, %v6914
        %v6939 = vadd.f32 %v6891, %v6915
        %v6940 = vadd.f32 %v6892, %v6916
        %v6941 = vadd.f32 %v6893, %v6917
        %v6942 = vadd.f32 %v6894, %v6918
        %v6943 = vadd.f32 %v6895, %v6919
        %v6944 = vadd.f32 %v6896, %v6920
        %v6945 = vadd.f32 %v6897, %v6921
        %v6946 = vadd.f32 %v6898, %v6922
        %v6947 = vadd.f32 %v6899, %v6923
        %v6948 = vadd.f32 %v6900, %v6924
        %v6949 = vadd.f32 %v6901, %v6925
        %v6950 = vadd.f32 %v6902, %v6926
        %v6951 = vadd.f32 %v6903, %v6927
        %v6952 = vadd.f32 %v6904, %v6928
        %v6953 = vadd.f32 %v6905, %v6929
        %v6954 = vadd.f32 %v6906, %v6930
        %v6955 = vadd.f32 %v6907, %v6931
        %v6956 = vadd.f32 %v6908, %v6932
        %v6957 = vadd.f32 %v6909, %v6933
        %v6958 = vadd.f32 %v6910, %v6934
        %6959 = vst [vmem:[#allocation2 + $0x8] sm:$0xff] %v6935
        %6960 = vst [vmem:[#allocation2 + $0x10] sm:$0xff] %v6936
        %6961 = vst [vmem:[#allocation2 + $0x18] sm:$0xff] %v6937
        %6962 = vst [vmem:[#allocation2 + $0x30] sm:$0xff] %v6938
        %6963 = vst [vmem:[#allocation2 + $0x38] sm:$0xff] %v6939
        %6964 = vst [vmem:[#allocation2 + $0x40] sm:$0xff] %v6940
        %6965 = vst [vmem:[#allocation2 + $0x58] sm:$0xff] %v6941
        %6966 = vst [vmem:[#allocation2 + $0x60] sm:$0xff] %v6942
        %6967 = vst [vmem:[#allocation2 + $0x68] sm:$0xff] %v6943
        %6968 = vst [vmem:[#allocation2 + $0x80] sm:$0xff] %v6944
        %6969 = vst [vmem:[#allocation2 + $0x88] sm:$0xff] %v6945
        %6970 = vst [vmem:[#allocation2 + $0x90] sm:$0xff] %v6946
        %6971 = vst [vmem:[#allocation2 + $0xa8] sm:$0xff] %v6947
        %6972 = vst [vmem:[#allocation2 + $0xb0] sm:$0xff] %v6948
        %6973 = vst [vmem:[#allocation2 + $0xb8] sm:$0xff] %v6949
        %6974 = vst [vmem:[#allocation2 + $0xd0] sm:$0xff] %v6950
        %6975 = vst [vmem:[#allocation2 + $0xd8] sm:$0xff] %v6951
        %6976 = vst [vmem:[#allocation2 + $0xe0] sm:$0xff] %v6952
        %6977 = vst [vmem:[#allocation2 + $0xf8] sm:$0xff] %v6953
        %6978 = vst [vmem:[#allocation2 + $0x100] sm:$0xff] %v6954
        %6979 = vst [vmem:[#allocation2 + $0x108] sm:$0xff] %v6955
        %6980 = vst [vmem:[#allocation2 + $0x120] sm:$0xff] %v6956
        %6981 = vst [vmem:[#allocation2 + $0x128] sm:$0xff] %v6957
        %6982 = vst [vmem:[#allocation2 + $0x130] sm:$0xff] %v6958
        %v6983 = vld [vmem:[#allocation2] sm:$0xff]
        %v6984 = vld [vmem:[#allocation2 + $0x8] sm:$0xff]
        %v6985 = vld [vmem:[#allocation2 + $0x10] sm:$0xff]
        %v6986 = vld [vmem:[#allocation2 + $0x18] sm:$0xff]
        %v6987 = vld [vmem:[#allocation2 + $0x28] sm:$0xff]
        %v6988 = vld [vmem:[#allocation2 + $0x30] sm:$0xff]
        %v6989 = vld [vmem:[#allocation2 + $0x38] sm:$0xff]
        %v6990 = vld [vmem:[#allocation2 + $0x40] sm:$0xff]
        %v6991 = vld [vmem:[#allocation2 + $0x50] sm:$0xff]
        %v6992 = vld [vmem:[#allocation2 + $0x58] sm:$0xff]
        %v6993 = vld [vmem:[#allocation2 + $0x60] sm:$0xff]
        %v6994 = vld [vmem:[#allocation2 + $0x68] sm:$0xff]
        %v6995 = vld [vmem:[#allocation2 + $0x78] sm:$0xff]
        %v6996 = vld [vmem:[#allocation2 + $0x80] sm:$0xff]
        %v6997 = vld [vmem:[#allocation2 + $0x88] sm:$0xff]
        %v6998 = vld [vmem:[#allocation2 + $0x90] sm:$0xff]
        %v6999 = vld [vmem:[#allocation2 + $0xa0] sm:$0xff]
        %v7000 = vld [vmem:[#allocation2 + $0xa8] sm:$0xff]
        %v7001 = vld [vmem:[#allocation2 + $0xb0] sm:$0xff]
        %v7002 = vld [vmem:[#allocation2 + $0xb8] sm:$0xff]
        %v7003 = vld [vmem:[#allocation2 + $0xc8] sm:$0xff]
        %v7004 = vld [vmem:[#allocation2 + $0xd0] sm:$0xff]
        %v7005 = vld [vmem:[#allocation2 + $0xd8] sm:$0xff]
        %v7006 = vld [vmem:[#allocation2 + $0xe0] sm:$0xff]
        %v7007 = vld [vmem:[#allocation2 + $0xf0] sm:$0xff]
        %v7008 = vld [vmem:[#allocation2 + $0xf8] sm:$0xff]
        %v7009 = vld [vmem:[#allocation2 + $0x100] sm:$0xff]
        %v7010 = vld [vmem:[#allocation2 + $0x108] sm:$0xff]
        %v7011 = vld [vmem:[#allocation2 + $0x118] sm:$0xff]
        %v7012 = vld [vmem:[#allocation2 + $0x120] sm:$0xff]
        %v7013 = vld [vmem:[#allocation2 + $0x128] sm:$0xff]
        %v7014 = vld [vmem:[#allocation2 + $0x130] sm:$0xff]
        %vm7015 = vcmp.gt.f32.partialorder %v6983, 0.0
        %vm7016 = vcmp.gt.f32.partialorder %v6984, 0.0
        %vm7017 = vcmp.gt.f32.partialorder %v6985, 0.0
        %vm7018 = vcmp.gt.f32.partialorder %v6986, 0.0
        %vm7019 = vcmp.gt.f32.partialorder %v6987, 0.0
        %vm7020 = vcmp.gt.f32.partialorder %v6988, 0.0
        %vm7021 = vcmp.gt.f32.partialorder %v6989, 0.0
        %vm7022 = vcmp.gt.f32.partialorder %v6990, 0.0
        %vm7023 = vcmp.gt.f32.partialorder %v6991, 0.0
        %vm7024 = vcmp.gt.f32.partialorder %v6992, 0.0
        %vm7025 = vcmp.gt.f32.partialorder %v6993, 0.0
        %vm7026 = vcmp.gt.f32.partialorder %v6994, 0.0
        %vm7027 = vcmp.gt.f32.partialorder %v6995, 0.0
        %vm7028 = vcmp.gt.f32.partialorder %v6996, 0.0
        %vm7029 = vcmp.gt.f32.partialorder %v6997, 0.0
        %vm7030 = vcmp.gt.f32.partialorder %v6998, 0.0
        %vm7031 = vcmp.gt.f32.partialorder %v6999, 0.0
        %vm7032 = vcmp.gt.f32.partialorder %v7000, 0.0
        %vm7033 = vcmp.gt.f32.partialorder %v7001, 0.0
        %vm7034 = vcmp.gt.f32.partialorder %v7002, 0.0
        %vm7035 = vcmp.gt.f32.partialorder %v7003, 0.0
        %vm7036 = vcmp.gt.f32.partialorder %v7004, 0.0
        %vm7037 = vcmp.gt.f32.partialorder %v7005, 0.0
        %vm7038 = vcmp.gt.f32.partialorder %v7006, 0.0
        %vm7039 = vcmp.gt.f32.partialorder %v7007, 0.0
        %vm7040 = vcmp.gt.f32.partialorder %v7008, 0.0
        %vm7041 = vcmp.gt.f32.partialorder %v7009, 0.0
        %vm7042 = vcmp.gt.f32.partialorder %v7010, 0.0
        %vm7043 = vcmp.gt.f32.partialorder %v7011, 0.0
        %vm7044 = vcmp.gt.f32.partialorder %v7012, 0.0
        %vm7045 = vcmp.gt.f32.partialorder %v7013, 0.0
        %vm7046 = vcmp.gt.f32.partialorder %v7014, 0.0
        %v7047 = vmul.f32 %v6983, 0.01
        %v7048 = vmul.f32 %v6984, 0.01
        %v7049 = vmul.f32 %v6985, 0.01
        %v7050 = vmul.f32 %v6986, 0.01
        %v7051 = vmul.f32 %v6987, 0.01
        %v7052 = vmul.f32 %v6988, 0.01
        %v7053 = vmul.f32 %v6989, 0.01
        %v7054 = vmul.f32 %v6990, 0.01
        %v7055 = vmul.f32 %v6991, 0.01
        %v7056 = vmul.f32 %v6992, 0.01
        %v7057 = vmul.f32 %v6993, 0.01
        %v7058 = vmul.f32 %v6994, 0.01
        %v7059 = vmul.f32 %v6995, 0.01
        %v7060 = vmul.f32 %v6996, 0.01
        %v7061 = vmul.f32 %v6997, 0.01
        %v7062 = vmul.f32 %v6998, 0.01
        %v7063 = vmul.f32 %v6999, 0.01
        %v7064 = vmul.f32 %v7000, 0.01
        %v7065 = vmul.f32 %v7001, 0.01
        %v7066 = vmul.f32 %v7002, 0.01
        %v7067 = vmul.f32 %v7003, 0.01
        %v7068 = vmul.f32 %v7004, 0.01
        %v7069 = vmul.f32 %v7005, 0.01
        %v7070 = vmul.f32 %v7006, 0.01
        %v7071 = vmul.f32 %v7007, 0.01
        %v7072 = vmul.f32 %v7008, 0.01
        %v7073 = vmul.f32 %v7009, 0.01
        %v7074 = vmul.f32 %v7010, 0.01
        %v7075 = vmul.f32 %v7011, 0.01
        %v7076 = vmul.f32 %v7012, 0.01
        %v7077 = vmul.f32 %v7013, 0.01
        %v7078 = vmul.f32 %v7014, 0.01
        %v7079 = vsel %vm7015, %v6983, %v7047
        %v7080 = vsel %vm7016, %v6984, %v7048
        %v7081 = vsel %vm7017, %v6985, %v7049
        %v7082 = vsel %vm7018, %v6986, %v7050
        %v7083 = vsel %vm7019, %v6987, %v7051
        %v7084 = vsel %vm7020, %v6988, %v7052
        %v7085 = vsel %vm7021, %v6989, %v7053
        %v7086 = vsel %vm7022, %v6990, %v7054
        %v7087 = vsel %vm7023, %v6991, %v7055
        %v7088 = vsel %vm7024, %v6992, %v7056
        %v7089 = vsel %vm7025, %v6993, %v7057
        %v7090 = vsel %vm7026, %v6994, %v7058
        %v7091 = vsel %vm7027, %v6995, %v7059
        %v7092 = vsel %vm7028, %v6996, %v7060
        %v7093 = vsel %vm7029, %v6997, %v7061
        %v7094 = vsel %vm7030, %v6998, %v7062
        %v7095 = vsel %vm7031, %v6999, %v7063
        %v7096 = vsel %vm7032, %v7000, %v7064
        %v7097 = vsel %vm7033, %v7001, %v7065
        %v7098 = vsel %vm7034, %v7002, %v7066
        %v7099 = vsel %vm7035, %v7003, %v7067
        %v7100 = vsel %vm7036, %v7004, %v7068
        %v7101 = vsel %vm7037, %v7005, %v7069
        %v7102 = vsel %vm7038, %v7006, %v7070
        %v7103 = vsel %vm7039, %v7007, %v7071
        %v7104 = vsel %vm7040, %v7008, %v7072
        %v7105 = vsel %vm7041, %v7009, %v7073
        %v7106 = vsel %vm7042, %v7010, %v7074
        %v7107 = vsel %vm7043, %v7011, %v7075
        %v7108 = vsel %vm7044, %v7012, %v7076
        %v7109 = vsel %vm7045, %v7013, %v7077
        %v7110 = vsel %vm7046, %v7014, %v7078
        %7143 = vrot.lane.b32.xlu0 %v7079, 27
        %v7144 = vpop.permute.xlu0 %7143
        %7145 = vrot.lane.b32.xlu0 %v7080, 27
        %v7146 = vpop.permute.xlu0 %7145
        %7147 = vrot.lane.b32.xlu0 %v7081, 27
        %v7148 = vpop.permute.xlu0 %7147
        %7149 = vrot.lane.b32.xlu0 %v7082, 27
        %v7150 = vpop.permute.xlu0 %7149
        %7151 = vrot.lane.b32.xlu0 %v7083, 27
        %v7152 = vpop.permute.xlu0 %7151
        %7153 = vrot.lane.b32.xlu0 %v7084, 27
        %v7154 = vpop.permute.xlu0 %7153
        %7155 = vrot.lane.b32.xlu0 %v7085, 27
        %v7156 = vpop.permute.xlu0 %7155
        %7157 = vrot.lane.b32.xlu0 %v7086, 27
        %v7158 = vpop.permute.xlu0 %7157
        %7159 = vrot.lane.b32.xlu0 %v7087, 27
        %v7160 = vpop.permute.xlu0 %7159
        %7161 = vrot.lane.b32.xlu0 %v7088, 27
        %v7162 = vpop.permute.xlu0 %7161
        %7163 = vrot.lane.b32.xlu0 %v7089, 27
        %v7164 = vpop.permute.xlu0 %7163
        %7165 = vrot.lane.b32.xlu0 %v7090, 27
        %v7166 = vpop.permute.xlu0 %7165
        %7167 = vrot.lane.b32.xlu0 %v7091, 27
        %v7168 = vpop.permute.xlu0 %7167
        %7169 = vrot.lane.b32.xlu0 %v7092, 27
        %v7170 = vpop.permute.xlu0 %7169
        %7171 = vrot.lane.b32.xlu0 %v7093, 27
        %v7172 = vpop.permute.xlu0 %7171
        %7173 = vrot.lane.b32.xlu0 %v7094, 27
        %v7174 = vpop.permute.xlu0 %7173
        %7175 = vrot.lane.b32.xlu0 %v7095, 27
        %v7176 = vpop.permute.xlu0 %7175
        %7177 = vrot.lane.b32.xlu0 %v7096, 27
        %v7178 = vpop.permute.xlu0 %7177
        %7179 = vrot.lane.b32.xlu0 %v7097, 27
        %v7180 = vpop.permute.xlu0 %7179
        %7181 = vrot.lane.b32.xlu0 %v7098, 27
        %v7182 = vpop.permute.xlu0 %7181
        %7183 = vrot.lane.b32.xlu0 %v7099, 27
        %v7184 = vpop.permute.xlu0 %7183
        %7185 = vrot.lane.b32.xlu0 %v7100, 27
        %v7186 = vpop.permute.xlu0 %7185
        %7187 = vrot.lane.b32.xlu0 %v7101, 27
        %v7188 = vpop.permute.xlu0 %7187
        %7189 = vrot.lane.b32.xlu0 %v7102, 27
        %v7190 = vpop.permute.xlu0 %7189
        %7191 = vrot.lane.b32.xlu0 %v7103, 27
        %v7192 = vpop.permute.xlu0 %7191
        %7193 = vrot.lane.b32.xlu0 %v7104, 27
        %v7194 = vpop.permute.xlu0 %7193
        %7195 = vrot.lane.b32.xlu0 %v7105, 27
        %v7196 = vpop.permute.xlu0 %7195
        %7197 = vrot.lane.b32.xlu0 %v7106, 27
        %v7198 = vpop.permute.xlu0 %7197
        %7199 = vrot.lane.b32.xlu0 %v7107, 27
        %v7200 = vpop.permute.xlu0 %7199
        %7201 = vrot.lane.b32.xlu0 %v7108, 27
        %v7202 = vpop.permute.xlu0 %7201
        %7203 = vrot.lane.b32.xlu0 %v7109, 27
        %v7204 = vpop.permute.xlu0 %7203
        %7205 = vrot.lane.b32.xlu0 %v7110, 27
        %v7206 = vpop.permute.xlu0 %7205
        %vm7207 = vcmask 220160
        %v7208 = vsel %vm7207, %v7144, %v7146
        %v7209 = vsel %vm7207, %v7146, %v7148
        %v7210 = vsel %vm7207, %v7148, %v7150
        %v7211 = vsel %vm7207, %v7152, %v7154
        %v7212 = vsel %vm7207, %v7154, %v7156
        %v7213 = vsel %vm7207, %v7156, %v7158
        %v7214 = vsel %vm7207, %v7160, %v7162
        %v7215 = vsel %vm7207, %v7162, %v7164
        %v7216 = vsel %vm7207, %v7164, %v7166
        %v7217 = vsel %vm7207, %v7168, %v7170
        %v7218 = vsel %vm7207, %v7170, %v7172
        %v7219 = vsel %vm7207, %v7172, %v7174
        %v7220 = vsel %vm7207, %v7176, %v7178
        %v7221 = vsel %vm7207, %v7178, %v7180
        %v7222 = vsel %vm7207, %v7180, %v7182
        %v7223 = vsel %vm7207, %v7184, %v7186
        %v7224 = vsel %vm7207, %v7186, %v7188
        %v7225 = vsel %vm7207, %v7188, %v7190
        %v7226 = vsel %vm7207, %v7192, %v7194
        %v7227 = vsel %vm7207, %v7194, %v7196
        %v7228 = vsel %vm7207, %v7196, %v7198
        %v7229 = vsel %vm7207, %v7200, %v7202
        %v7230 = vsel %vm7207, %v7202, %v7204
        %v7231 = vsel %vm7207, %v7204, %v7206
        %7256 = vst [vmem:[#allocation4] sm:$0xff] %v7208
        %7257 = vst [vmem:[#allocation4 + $0x8] sm:$0xff] %v7209
        %7258 = vst [vmem:[#allocation4 + $0x10] sm:$0xff] %v7210
        %7259 = vst [vmem:[#allocation4 + $0x18] sm:$0xff] %v7211
        %7260 = vst [vmem:[#allocation4 + $0x20] sm:$0xff] %v7212
        %7261 = vst [vmem:[#allocation4 + $0x28] sm:$0xff] %v7213
        %7262 = vst [vmem:[#allocation4 + $0x30] sm:$0xff] %v7214
        %7263 = vst [vmem:[#allocation4 + $0x38] sm:$0xff] %v7215
        %7264 = vst [vmem:[#allocation4 + $0x40] sm:$0xff] %v7216
        %7265 = vst [vmem:[#allocation4 + $0x48] sm:$0xff] %v7217
        %7266 = vst [vmem:[#allocation4 + $0x50] sm:$0xff] %v7218
        %7267 = vst [vmem:[#allocation4 + $0x58] sm:$0xff] %v7219
        %7268 = vst [vmem:[#allocation4 + $0x60] sm:$0xff] %v7220
        %7269 = vst [vmem:[#allocation4 + $0x68] sm:$0xff] %v7221
        %7270 = vst [vmem:[#allocation4 + $0x70] sm:$0xff] %v7222
        %7271 = vst [vmem:[#allocation4 + $0x78] sm:$0xff] %v7223
        %7272 = vst [vmem:[#allocation4 + $0x80] sm:$0xff] %v7224
        %7273 = vst [vmem:[#allocation4 + $0x88] sm:$0xff] %v7225
        %7274 = vst [vmem:[#allocation4 + $0x90] sm:$0xff] %v7226
        %7275 = vst [vmem:[#allocation4 + $0x98] sm:$0xff] %v7227
        %7276 = vst [vmem:[#allocation4 + $0xa0] sm:$0xff] %v7228
        %7277 = vst [vmem:[#allocation4 + $0xa8] sm:$0xff] %v7229
        %7278 = vst [vmem:[#allocation4 + $0xb0] sm:$0xff] %v7230
        %7279 = vst [vmem:[#allocation4 + $0xb8] sm:$0xff] %v7231
        %v7280 = vld [vmem:[#allocation2 + $0x8] sm:$0xff]
        %v7281 = vld [vmem:[#allocation2 + $0x10] sm:$0xff]
        %v7282 = vld [vmem:[#allocation2 + $0x18] sm:$0xff]
        %v7283 = vld [vmem:[#allocation2 + $0x30] sm:$0xff]
        %v7284 = vld [vmem:[#allocation2 + $0x38] sm:$0xff]
        %v7285 = vld [vmem:[#allocation2 + $0x40] sm:$0xff]
        %v7286 = vld [vmem:[#allocation2 + $0x58] sm:$0xff]
        %v7287 = vld [vmem:[#allocation2 + $0x60] sm:$0xff]
        %v7288 = vld [vmem:[#allocation2 + $0x68] sm:$0xff]
        %v7289 = vld [vmem:[#allocation2 + $0x80] sm:$0xff]
        %v7290 = vld [vmem:[#allocation2 + $0x88] sm:$0xff]
        %v7291 = vld [vmem:[#allocation2 + $0x90] sm:$0xff]
        %v7292 = vld [vmem:[#allocation2 + $0xa8] sm:$0xff]
        %v7293 = vld [vmem:[#allocation2 + $0xb0] sm:$0xff]
        %v7294 = vld [vmem:[#allocation2 + $0xb8] sm:$0xff]
        %v7295 = vld [vmem:[#allocation2 + $0xd0] sm:$0xff]
        %v7296 = vld [vmem:[#allocation2 + $0xd8] sm:$0xff]
        %v7297 = vld [vmem:[#allocation2 + $0xe0] sm:$0xff]
        %v7298 = vld [vmem:[#allocation2 + $0xf8] sm:$0xff]
        %v7299 = vld [vmem:[#allocation2 + $0x100] sm:$0xff]
        %v7300 = vld [vmem:[#allocation2 + $0x108] sm:$0xff]
        %v7301 = vld [vmem:[#allocation2 + $0x120] sm:$0xff]
        %v7302 = vld [vmem:[#allocation2 + $0x128] sm:$0xff]
        %v7303 = vld [vmem:[#allocation2 + $0x130] sm:$0xff]
        %vm7304 = vcmp.gt.f32.partialorder %v7280, 0.0
        %vm7305 = vcmp.gt.f32.partialorder %v7281, 0.0
        %vm7306 = vcmp.gt.f32.partialorder %v7282, 0.0
        %vm7307 = vcmp.gt.f32.partialorder %v7283, 0.0
        %vm7308 = vcmp.gt.f32.partialorder %v7284, 0.0
        %vm7309 = vcmp.gt.f32.partialorder %v7285, 0.0
        %vm7310 = vcmp.gt.f32.partialorder %v7286, 0.0
        %vm7311 = vcmp.gt.f32.partialorder %v7287, 0.0
        %vm7312 = vcmp.gt.f32.partialorder %v7288, 0.0
        %vm7313 = vcmp.gt.f32.partialorder %v7289, 0.0
        %vm7314 = vcmp.gt.f32.partialorder %v7290, 0.0
        %vm7315 = vcmp.gt.f32.partialorder %v7291, 0.0
        %vm7316 = vcmp.gt.f32.partialorder %v7292, 0.0
        %vm7317 = vcmp.gt.f32.partialorder %v7293, 0.0
        %vm7318 = vcmp.gt.f32.partialorder %v7294, 0.0
        %vm7319 = vcmp.gt.f32.partialorder %v7295, 0.0
        %vm7320 = vcmp.gt.f32.partialorder %v7296, 0.0
        %vm7321 = vcmp.gt.f32.partialorder %v7297, 0.0
        %vm7322 = vcmp.gt.f32.partialorder %v7298, 0.0
        %vm7323 = vcmp.gt.f32.partialorder %v7299, 0.0
        %vm7324 = vcmp.gt.f32.partialorder %v7300, 0.0
        %vm7325 = vcmp.gt.f32.partialorder %v7301, 0.0
        %vm7326 = vcmp.gt.f32.partialorder %v7302, 0.0
        %vm7327 = vcmp.gt.f32.partialorder %v7303, 0.0
        %v7328 = vmul.f32 %v7280, 0.01
        %v7329 = vmul.f32 %v7281, 0.01
        %v7330 = vmul.f32 %v7282, 0.01
        %v7331 = vmul.f32 %v7283, 0.01
        %v7332 = vmul.f32 %v7284, 0.01
        %v7333 = vmul.f32 %v7285, 0.01
        %v7334 = vmul.f32 %v7286, 0.01
        %v7335 = vmul.f32 %v7287, 0.01
        %v7336 = vmul.f32 %v7288, 0.01
        %v7337 = vmul.f32 %v7289, 0.01
        %v7338 = vmul.f32 %v7290, 0.01
        %v7339 = vmul.f32 %v7291, 0.01
        %v7340 = vmul.f32 %v7292, 0.01
        %v7341 = vmul.f32 %v7293, 0.01
        %v7342 = vmul.f32 %v7294, 0.01
        %v7343 = vmul.f32 %v7295, 0.01
        %v7344 = vmul.f32 %v7296, 0.01
        %v7345 = vmul.f32 %v7297, 0.01
        %v7346 = vmul.f32 %v7298, 0.01
        %v7347 = vmul.f32 %v7299, 0.01
        %v7348 = vmul.f32 %v7300, 0.01
        %v7349 = vmul.f32 %v7301, 0.01
        %v7350 = vmul.f32 %v7302, 0.01
        %v7351 = vmul.f32 %v7303, 0.01
        %v7352 = vsel %vm7304, %v7280, %v7328
        %v7353 = vsel %vm7305, %v7281, %v7329
        %v7354 = vsel %vm7306, %v7282, %v7330
        %v7355 = vsel %vm7307, %v7283, %v7331
        %v7356 = vsel %vm7308, %v7284, %v7332
        %v7357 = vsel %vm7309, %v7285, %v7333
        %v7358 = vsel %vm7310, %v7286, %v7334
        %v7359 = vsel %vm7311, %v7287, %v7335
        %v7360 = vsel %vm7312, %v7288, %v7336
        %v7361 = vsel %vm7313, %v7289, %v7337
        %v7362 = vsel %vm7314, %v7290, %v7338
        %v7363 = vsel %vm7315, %v7291, %v7339
        %v7364 = vsel %vm7316, %v7292, %v7340
        %v7365 = vsel %vm7317, %v7293, %v7341
        %v7366 = vsel %vm7318, %v7294, %v7342
        %v7367 = vsel %vm7319, %v7295, %v7343
        %v7368 = vsel %vm7320, %v7296, %v7344
        %v7369 = vsel %vm7321, %v7297, %v7345
        %v7370 = vsel %vm7322, %v7298, %v7346
        %v7371 = vsel %vm7323, %v7299, %v7347
        %v7372 = vsel %vm7324, %v7300, %v7348
        %v7373 = vsel %vm7325, %v7301, %v7349
        %v7374 = vsel %vm7326, %v7302, %v7350
        %v7375 = vsel %vm7327, %v7303, %v7351
        %7376 = vst [vmem:[#allocation4 + $0xc0] sm:$0xff] %v7352
        %7377 = vst [vmem:[#allocation4 + $0xc8] sm:$0xff] %v7353
        %7378 = vst [vmem:[#allocation4 + $0xd0] sm:$0xff] %v7354
        %7379 = vst [vmem:[#allocation4 + $0xd8] sm:$0xff] %v7355
        %7380 = vst [vmem:[#allocation4 + $0xe0] sm:$0xff] %v7356
        %7381 = vst [vmem:[#allocation4 + $0xe8] sm:$0xff] %v7357
        %7382 = vst [vmem:[#allocation4 + $0xf0] sm:$0xff] %v7358
        %7383 = vst [vmem:[#allocation4 + $0xf8] sm:$0xff] %v7359
        %7384 = vst [vmem:[#allocation4 + $0x100] sm:$0xff] %v7360
        %7385 = vst [vmem:[#allocation4 + $0x108] sm:$0xff] %v7361
        %7386 = vst [vmem:[#allocation4 + $0x110] sm:$0xff] %v7362
        %7387 = vst [vmem:[#allocation4 + $0x118] sm:$0xff] %v7363
        %7388 = vst [vmem:[#allocation4 + $0x120] sm:$0xff] %v7364
        %7389 = vst [vmem:[#allocation4 + $0x128] sm:$0xff] %v7365
        %7390 = vst [vmem:[#allocation4 + $0x130] sm:$0xff] %v7366
        %7391 = vst [vmem:[#allocation4 + $0x138] sm:$0xff] %v7367
        %7392 = vst [vmem:[#allocation4 + $0x140] sm:$0xff] %v7368
        %7393 = vst [vmem:[#allocation4 + $0x148] sm:$0xff] %v7369
        %7394 = vst [vmem:[#allocation4 + $0x150] sm:$0xff] %v7370
        %7395 = vst [vmem:[#allocation4 + $0x158] sm:$0xff] %v7371
        %7396 = vst [vmem:[#allocation4 + $0x160] sm:$0xff] %v7372
        %7397 = vst [vmem:[#allocation4 + $0x168] sm:$0xff] %v7373
        %7398 = vst [vmem:[#allocation4 + $0x170] sm:$0xff] %v7374
        %7399 = vst [vmem:[#allocation4 + $0x178] sm:$0xff] %v7375
        %v7400 = vld [vmem:[#allocation2 + $0x8] sm:$0xff]
        %v7401 = vld [vmem:[#allocation2 + $0x10] sm:$0xff]
        %v7402 = vld [vmem:[#allocation2 + $0x18] sm:$0xff]
        %v7403 = vld [vmem:[#allocation2 + $0x20] sm:$0xff]
        %v7404 = vld [vmem:[#allocation2 + $0x30] sm:$0xff]
        %v7405 = vld [vmem:[#allocation2 + $0x38] sm:$0xff]
        %v7406 = vld [vmem:[#allocation2 + $0x40] sm:$0xff]
        %v7407 = vld [vmem:[#allocation2 + $0x48] sm:$0xff]
        %v7408 = vld [vmem:[#allocation2 + $0x58] sm:$0xff]
        %v7409 = vld [vmem:[#allocation2 + $0x60] sm:$0xff]
        %v7410 = vld [vmem:[#allocation2 + $0x68] sm:$0xff]
        %v7411 = vld [vmem:[#allocation2 + $0x70] sm:$0xff]
        %v7412 = vld [vmem:[#allocation2 + $0x80] sm:$0xff]
        %v7413 = vld [vmem:[#allocation2 + $0x88] sm:$0xff]
        %v7414 = vld [vmem:[#allocation2 + $0x90] sm:$0xff]
        %v7415 = vld [vmem:[#allocation2 + $0x98] sm:$0xff]
        %v7416 = vld [vmem:[#allocation2 + $0xa8] sm:$0xff]
        %v7417 = vld [vmem:[#allocation2 + $0xb0] sm:$0xff]
        %v7418 = vld [vmem:[#allocation2 + $0xb8] sm:$0xff]
        %v7419 = vld [vmem:[#allocation2 + $0xc0] sm:$0xff]
        %v7420 = vld [vmem:[#allocation2 + $0xd0] sm:$0xff]
        %v7421 = vld [vmem:[#allocation2 + $0xd8] sm:$0xff]
        %v7422 = vld [vmem:[#allocation2 + $0xe0] sm:$0xff]
        %v7423 = vld [vmem:[#allocation2 + $0xe8] sm:$0xff]
        %v7424 = vld [vmem:[#allocation2 + $0xf8] sm:$0xff]
        %v7425 = vld [vmem:[#allocation2 + $0x100] sm:$0xff]
        %v7426 = vld [vmem:[#allocation2 + $0x108] sm:$0xff]
        %v7427 = vld [vmem:[#allocation2 + $0x110] sm:$0xff]
        %v7428 = vld [vmem:[#allocation2 + $0x120] sm:$0xff]
        %v7429 = vld [vmem:[#allocation2 + $0x128] sm:$0xff]
        %v7430 = vld [vmem:[#allocation2 + $0x130] sm:$0xff]
        %v7431 = vld [vmem:[#allocation2 + $0x138] sm:$0xff]
        %vm7432 = vcmp.gt.f32.partialorder %v7400, 0.0
        %vm7433 = vcmp.gt.f32.partialorder %v7401, 0.0
        %vm7434 = vcmp.gt.f32.partialorder %v7402, 0.0
        %vm7435 = vcmp.gt.f32.partialorder %v7403, 0.0
        %vm7436 = vcmp.gt.f32.partialorder %v7404, 0.0
        %vm7437 = vcmp.gt.f32.partialorder %v7405, 0.0
        %vm7438 = vcmp.gt.f32.partialorder %v7406, 0.0
        %vm7439 = vcmp.gt.f32.partialorder %v7407, 0.0
        %vm7440 = vcmp.gt.f32.partialorder %v7408, 0.0
        %vm7441 = vcmp.gt.f32.partialorder %v7409, 0.0
        %vm7442 = vcmp.gt.f32.partialorder %v7410, 0.0
        %vm7443 = vcmp.gt.f32.partialorder %v7411, 0.0
        %vm7444 = vcmp.gt.f32.partialorder %v7412, 0.0
        %vm7445 = vcmp.gt.f32.partialorder %v7413, 0.0
        %vm7446 = vcmp.gt.f32.partialorder %v7414, 0.0
        %vm7447 = vcmp.gt.f32.partialorder %v7415, 0.0
        %vm7448 = vcmp.gt.f32.partialorder %v7416, 0.0
        %vm7449 = vcmp.gt.f32.partialorder %v7417, 0.0
        %vm7450 = vcmp.gt.f32.partialorder %v7418, 0.0
        %vm7451 = vcmp.gt.f32.partialorder %v7419, 0.0
        %vm7452 = vcmp.gt.f32.partialorder %v7420, 0.0
        %vm7453 = vcmp.gt.f32.partialorder %v7421, 0.0
        %vm7454 = vcmp.gt.f32.partialorder %v7422, 0.0
        %vm7455 = vcmp.gt.f32.partialorder %v7423, 0.0
        %vm7456 = vcmp.gt.f32.partialorder %v7424, 0.0
        %vm7457 = vcmp.gt.f32.partialorder %v7425, 0.0
        %vm7458 = vcmp.gt.f32.partialorder %v7426, 0.0
        %vm7459 = vcmp.gt.f32.partialorder %v7427, 0.0
        %vm7460 = vcmp.gt.f32.partialorder %v7428, 0.0
        %vm7461 = vcmp.gt.f32.partialorder %v7429, 0.0
        %vm7462 = vcmp.gt.f32.partialorder %v7430, 0.0
        %vm7463 = vcmp.gt.f32.partialorder %v7431, 0.0
        %v7464 = vmul.f32 %v7400, 0.01
        %v7465 = vmul.f32 %v7401, 0.01
        %v7466 = vmul.f32 %v7402, 0.01
        %v7467 = vmul.f32 %v7403, 0.01
        %v7468 = vmul.f32 %v7404, 0.01
        %v7469 = vmul.f32 %v7405, 0.01
        %v7470 = vmul.f32 %v7406, 0.01
        %v7471 = vmul.f32 %v7407, 0.01
        %v7472 = vmul.f32 %v7408, 0.01
        %v7473 = vmul.f32 %v7409, 0.01
        %v7474 = vmul.f32 %v7410, 0.01
        %v7475 = vmul.f32 %v7411, 0.01
        %v7476 = vmul.f32 %v7412, 0.01
        %v7477 = vmul.f32 %v7413, 0.01
        %v7478 = vmul.f32 %v7414, 0.01
        %v7479 = vmul.f32 %v7415, 0.01
        %v7480 = vmul.f32 %v7416, 0.01
        %v7481 = vmul.f32 %v7417, 0.01
        %v7482 = vmul.f32 %v7418, 0.01
        %v7483 = vmul.f32 %v7419, 0.01
        %v7484 = vmul.f32 %v7420, 0.01
        %v7485 = vmul.f32 %v7421, 0.01
        %v7486 = vmul.f32 %v7422, 0.01
        %v7487 = vmul.f32 %v7423, 0.01
        %v7488 = vmul.f32 %v7424, 0.01
        %v7489 = vmul.f32 %v7425, 0.01
        %v7490 = vmul.f32 %v7426, 0.01
        %v7491 = vmul.f32 %v7427, 0.01
        %v7492 = vmul.f32 %v7428, 0.01
        %v7493 = vmul.f32 %v7429, 0.01
        %v7494 = vmul.f32 %v7430, 0.01
        %v7495 = vmul.f32 %v7431, 0.01
        %v7496 = vsel %vm7432, %v7400, %v7464
        %v7497 = vsel %vm7433, %v7401, %v7465
        %v7498 = vsel %vm7434, %v7402, %v7466
        %v7499 = vsel %vm7435, %v7403, %v7467
        %v7500 = vsel %vm7436, %v7404, %v7468
        %v7501 = vsel %vm7437, %v7405, %v7469
        %v7502 = vsel %vm7438, %v7406, %v7470
        %v7503 = vsel %vm7439, %v7407, %v7471
        %v7504 = vsel %vm7440, %v7408, %v7472
        %v7505 = vsel %vm7441, %v7409, %v7473
        %v7506 = vsel %vm7442, %v7410, %v7474
        %v7507 = vsel %vm7443, %v7411, %v7475
        %v7508 = vsel %vm7444, %v7412, %v7476
        %v7509 = vsel %vm7445, %v7413, %v7477
        %v7510 = vsel %vm7446, %v7414, %v7478
        %v7511 = vsel %vm7447, %v7415, %v7479
        %v7512 = vsel %vm7448, %v7416, %v7480
        %v7513 = vsel %vm7449, %v7417, %v7481
        %v7514 = vsel %vm7450, %v7418, %v7482
        %v7515 = vsel %vm7451, %v7419, %v7483
        %v7516 = vsel %vm7452, %v7420, %v7484
        %v7517 = vsel %vm7453, %v7421, %v7485
        %v7518 = vsel %vm7454, %v7422, %v7486
        %v7519 = vsel %vm7455, %v7423, %v7487
        %v7520 = vsel %vm7456, %v7424, %v7488
        %v7521 = vsel %vm7457, %v7425, %v7489
        %v7522 = vsel %vm7458, %v7426, %v7490
        %v7523 = vsel %vm7459, %v7427, %v7491
        %v7524 = vsel %vm7460, %v7428, %v7492
        %v7525 = vsel %vm7461, %v7429, %v7493
        %v7526 = vsel %vm7462, %v7430, %v7494
        %v7527 = vsel %vm7463, %v7431, %v7495
        %7560 = vrot.lane.b32.xlu0 %v7496, 101
        %v7561 = vpop.permute.xlu0 %7560
        %7562 = vrot.lane.b32.xlu0 %v7497, 101
        %v7563 = vpop.permute.xlu0 %7562
        %7564 = vrot.lane.b32.xlu0 %v7498, 101
        %v7565 = vpop.permute.xlu0 %7564
        %7566 = vrot.lane.b32.xlu0 %v7499, 101
        %v7567 = vpop.permute.xlu0 %7566
        %7568 = vrot.lane.b32.xlu0 %v7500, 101
        %v7569 = vpop.permute.xlu0 %7568
        %7570 = vrot.lane.b32.xlu0 %v7501, 101
        %v7571 = vpop.permute.xlu0 %7570
        %7572 = vrot.lane.b32.xlu0 %v7502, 101
        %v7573 = vpop.permute.xlu0 %7572
        %7574 = vrot.lane.b32.xlu0 %v7503, 101
        %v7575 = vpop.permute.xlu0 %7574
        %7576 = vrot.lane.b32.xlu0 %v7504, 101
        %v7577 = vpop.permute.xlu0 %7576
        %7578 = vrot.lane.b32.xlu0 %v7505, 101
        %v7579 = vpop.permute.xlu0 %7578
        %7580 = vrot.lane.b32.xlu0 %v7506, 101
        %v7581 = vpop.permute.xlu0 %7580
        %7582 = vrot.lane.b32.xlu0 %v7507, 101
        %v7583 = vpop.permute.xlu0 %7582
        %7584 = vrot.lane.b32.xlu0 %v7508, 101
        %v7585 = vpop.permute.xlu0 %7584
        %7586 = vrot.lane.b32.xlu0 %v7509, 101
        %v7587 = vpop.permute.xlu0 %7586
        %7588 = vrot.lane.b32.xlu0 %v7510, 101
        %v7589 = vpop.permute.xlu0 %7588
        %7590 = vrot.lane.b32.xlu0 %v7511, 101
        %v7591 = vpop.permute.xlu0 %7590
        %7592 = vrot.lane.b32.xlu0 %v7512, 101
        %v7593 = vpop.permute.xlu0 %7592
        %7594 = vrot.lane.b32.xlu0 %v7513, 101
        %v7595 = vpop.permute.xlu0 %7594
        %7596 = vrot.lane.b32.xlu0 %v7514, 101
        %v7597 = vpop.permute.xlu0 %7596
        %7598 = vrot.lane.b32.xlu0 %v7515, 101
        %v7599 = vpop.permute.xlu0 %7598
        %7600 = vrot.lane.b32.xlu0 %v7516, 101
        %v7601 = vpop.permute.xlu0 %7600
        %7602 = vrot.lane.b32.xlu0 %v7517, 101
        %v7603 = vpop.permute.xlu0 %7602
        %7604 = vrot.lane.b32.xlu0 %v7518, 101
        %v7605 = vpop.permute.xlu0 %7604
        %7606 = vrot.lane.b32.xlu0 %v7519, 101
        %v7607 = vpop.permute.xlu0 %7606
        %7608 = vrot.lane.b32.xlu0 %v7520, 101
        %v7609 = vpop.permute.xlu0 %7608
        %7610 = vrot.lane.b32.xlu0 %v7521, 101
        %v7611 = vpop.permute.xlu0 %7610
        %7612 = vrot.lane.b32.xlu0 %v7522, 101
        %v7613 = vpop.permute.xlu0 %7612
        %7614 = vrot.lane.b32.xlu0 %v7523, 101
        %v7615 = vpop.permute.xlu0 %7614
        %7616 = vrot.lane.b32.xlu0 %v7524, 101
        %v7617 = vpop.permute.xlu0 %7616
        %7618 = vrot.lane.b32.xlu0 %v7525, 101
        %v7619 = vpop.permute.xlu0 %7618
        %7620 = vrot.lane.b32.xlu0 %v7526, 101
        %v7621 = vpop.permute.xlu0 %7620
        %7622 = vrot.lane.b32.xlu0 %v7527, 101
        %v7623 = vpop.permute.xlu0 %7622
        %vm7624 = vcmask 826368
        %v7625 = vsel %vm7624, %v7561, %v7563
        %v7626 = vsel %vm7624, %v7563, %v7565
        %v7627 = vsel %vm7624, %v7565, %v7567
        %v7628 = vsel %vm7624, %v7569, %v7571
        %v7629 = vsel %vm7624, %v7571, %v7573
        %v7630 = vsel %vm7624, %v7573, %v7575
        %v7631 = vsel %vm7624, %v7577, %v7579
        %v7632 = vsel %vm7624, %v7579, %v7581
        %v7633 = vsel %vm7624, %v7581, %v7583
        %v7634 = vsel %vm7624, %v7585, %v7587
        %v7635 = vsel %vm7624, %v7587, %v7589
        %v7636 = vsel %vm7624, %v7589, %v7591
        %v7637 = vsel %vm7624, %v7593, %v7595
        %v7638 = vsel %vm7624, %v7595, %v7597
        %v7639 = vsel %vm7624, %v7597, %v7599
        %v7640 = vsel %vm7624, %v7601, %v7603
        %v7641 = vsel %vm7624, %v7603, %v7605
        %v7642 = vsel %vm7624, %v7605, %v7607
        %v7643 = vsel %vm7624, %v7609, %v7611
        %v7644 = vsel %vm7624, %v7611, %v7613
        %v7645 = vsel %vm7624, %v7613, %v7615
        %v7646 = vsel %vm7624, %v7617, %v7619
        %v7647 = vsel %vm7624, %v7619, %v7621
        %v7648 = vsel %vm7624, %v7621, %v7623
        %7673 = vst [vmem:[#allocation4 + $0x180] sm:$0xff] %v7625
        %7674 = vst [vmem:[#allocation4 + $0x188] sm:$0xff] %v7626
        %7675 = vst [vmem:[#allocation4 + $0x190] sm:$0xff] %v7627
        %7676 = vst [vmem:[#allocation4 + $0x198] sm:$0xff] %v7628
        %7677 = vst [vmem:[#allocation4 + $0x1a0] sm:$0xff] %v7629
        %7678 = vst [vmem:[#allocation4 + $0x1a8] sm:$0xff] %v7630
        %7679 = vst [vmem:[#allocation4 + $0x1b0] sm:$0xff] %v7631
        %7680 = vst [vmem:[#allocation4 + $0x1b8] sm:$0xff] %v7632
        %7681 = vst [vmem:[#allocation4 + $0x1c0] sm:$0xff] %v7633
        %7682 = vst [vmem:[#allocation4 + $0x1c8] sm:$0xff] %v7634
        %7683 = vst [vmem:[#allocation4 + $0x1d0] sm:$0xff] %v7635
        %7684 = vst [vmem:[#allocation4 + $0x1d8] sm:$0xff] %v7636
        %7685 = vst [vmem:[#allocation4 + $0x1e0] sm:$0xff] %v7637
        %7686 = vst [vmem:[#allocation4 + $0x1e8] sm:$0xff] %v7638
        %7687 = vst [vmem:[#allocation4 + $0x1f0] sm:$0xff] %v7639
        %7688 = vst [vmem:[#allocation4 + $0x1f8] sm:$0xff] %v7640
        %7689 = vst [vmem:[#allocation4 + $0x200] sm:$0xff] %v7641
        %7690 = vst [vmem:[#allocation4 + $0x208] sm:$0xff] %v7642
        %7691 = vst [vmem:[#allocation4 + $0x210] sm:$0xff] %v7643
        %7692 = vst [vmem:[#allocation4 + $0x218] sm:$0xff] %v7644
        %7693 = vst [vmem:[#allocation4 + $0x220] sm:$0xff] %v7645
        %7694 = vst [vmem:[#allocation4 + $0x228] sm:$0xff] %v7646
        %7695 = vst [vmem:[#allocation4 + $0x230] sm:$0xff] %v7647
        %7696 = vst [vmem:[#allocation4 + $0x238] sm:$0xff] %v7648
        %s7697 = scalar_lea.vmem %s3, 384
        %v7698 = vld [vmem:[%s7697] sm:$0xff]
        %v7699 = vld [vmem:[%s7697 + $0x8] sm:$0xff]
        %v7700 = vld [vmem:[%s7697 + $0x10] sm:$0xff]
        %v7701 = vld [vmem:[%s7697 + $0x18] sm:$0xff]
        %v7702 = vld [vmem:[%s7697 + $0x20] sm:$0xff]
        %v7703 = vld [vmem:[%s7697 + $0x28] sm:$0xff]
        %v7704 = vld [vmem:[%s7697 + $0x30] sm:$0xff]
        %v7705 = vld [vmem:[%s7697 + $0x38] sm:$0xff]
        %v7706 = vld [vmem:[%s7697 + $0x40] sm:$0xff]
        %v7707 = vld [vmem:[%s7697 + $0x48] sm:$0xff]
        %v7708 = vld [vmem:[%s7697 + $0x50] sm:$0xff]
        %v7709 = vld [vmem:[%s7697 + $0x58] sm:$0xff]
        %v7710 = vld [vmem:[%s7697 + $0x60] sm:$0xff]
        %v7711 = vld [vmem:[%s7697 + $0x68] sm:$0xff]
        %v7712 = vld [vmem:[%s7697 + $0x70] sm:$0xff]
        %v7713 = vld [vmem:[%s7697 + $0x78] sm:$0xff]
        %v7714 = vld [vmem:[#allocation4] sm:$0xff]
        %v7715 = vld [vmem:[#allocation4 + $0x8] sm:$0xff]
        %v7716 = vld [vmem:[#allocation4 + $0x10] sm:$0xff]
        %v7717 = vld [vmem:[#allocation4 + $0x18] sm:$0xff]
        %v7718 = vld [vmem:[#allocation4 + $0x20] sm:$0xff]
        %v7719 = vld [vmem:[#allocation4 + $0x28] sm:$0xff]
        %v7720 = vld [vmem:[#allocation4 + $0x30] sm:$0xff]
        %v7721 = vld [vmem:[#allocation4 + $0x38] sm:$0xff]
        %v7722 = vld [vmem:[#allocation4 + $0x40] sm:$0xff]
        %v7723 = vld [vmem:[#allocation4 + $0x48] sm:$0xff]
        %v7724 = vld [vmem:[#allocation4 + $0x50] sm:$0xff]
        %v7725 = vld [vmem:[#allocation4 + $0x58] sm:$0xff]
        %v7726 = vld [vmem:[#allocation4 + $0x60] sm:$0xff]
        %v7727 = vld [vmem:[#allocation4 + $0x68] sm:$0xff]
        %v7728 = vld [vmem:[#allocation4 + $0x70] sm:$0xff]
        %v7729 = vld [vmem:[#allocation4 + $0x78] sm:$0xff]
        %v7730 = vld [vmem:[#allocation4 + $0x80] sm:$0xff]
        %v7731 = vld [vmem:[#allocation4 + $0x88] sm:$0xff]
        %v7732 = vld [vmem:[#allocation4 + $0x90] sm:$0xff]
        %v7733 = vld [vmem:[#allocation4 + $0x98] sm:$0xff]
        %v7734 = vld [vmem:[#allocation4 + $0xa0] sm:$0xff]
        %v7735 = vld [vmem:[#allocation4 + $0xa8] sm:$0xff]
        %v7736 = vld [vmem:[#allocation4 + $0xb0] sm:$0xff]
        %v7737 = vld [vmem:[#allocation4 + $0xb8] sm:$0xff]
        %v7738 = vld [vmem:[#allocation4 + $0xc0] sm:$0xff]
        %v7739 = vld [vmem:[#allocation4 + $0xc8] sm:$0xff]
        %v7740 = vld [vmem:[#allocation4 + $0xd0] sm:$0xff]
        %v7741 = vld [vmem:[#allocation4 + $0xd8] sm:$0xff]
        %v7742 = vld [vmem:[#allocation4 + $0xe0] sm:$0xff]
        %v7743 = vld [vmem:[#allocation4 + $0xe8] sm:$0xff]
        %v7744 = vld [vmem:[#allocation4 + $0xf0] sm:$0xff]
        %v7745 = vld [vmem:[#allocation4 + $0xf8] sm:$0xff]
        %v7746 = vld [vmem:[#allocation4 + $0x100] sm:$0xff]
        %v7747 = vld [vmem:[#allocation4 + $0x108] sm:$0xff]
        %v7748 = vld [vmem:[#allocation4 + $0x110] sm:$0xff]
        %v7749 = vld [vmem:[#allocation4 + $0x118] sm:$0xff]
        %v7750 = vld [vmem:[#allocation4 + $0x120] sm:$0xff]
        %v7751 = vld [vmem:[#allocation4 + $0x128] sm:$0xff]
        %v7752 = vld [vmem:[#allocation4 + $0x130] sm:$0xff]
        %v7753 = vld [vmem:[#allocation4 + $0x138] sm:$0xff]
        %v7754 = vld [vmem:[#allocation4 + $0x140] sm:$0xff]
        %v7755 = vld [vmem:[#allocation4 + $0x148] sm:$0xff]
        %v7756 = vld [vmem:[#allocation4 + $0x150] sm:$0xff]
        %v7757 = vld [vmem:[#allocation4 + $0x158] sm:$0xff]
        %v7758 = vld [vmem:[#allocation4 + $0x160] sm:$0xff]
        %v7759 = vld [vmem:[#allocation4 + $0x168] sm:$0xff]
        %v7760 = vld [vmem:[#allocation4 + $0x170] sm:$0xff]
        %v7761 = vld [vmem:[#allocation4 + $0x178] sm:$0xff]
        %v7762 = vld [vmem:[#allocation4 + $0x180] sm:$0xff]
        %v7763 = vld [vmem:[#allocation4 + $0x188] sm:$0xff]
        %v7764 = vld [vmem:[#allocation4 + $0x190] sm:$0xff]
        %v7765 = vld [vmem:[#allocation4 + $0x198] sm:$0xff]
        %v7766 = vld [vmem:[#allocation4 + $0x1a0] sm:$0xff]
        %v7767 = vld [vmem:[#allocation4 + $0x1a8] sm:$0xff]
        %v7768 = vld [vmem:[#allocation4 + $0x1b0] sm:$0xff]
        %v7769 = vld [vmem:[#allocation4 + $0x1b8] sm:$0xff]
        %v7770 = vld [vmem:[#allocation4 + $0x1c0] sm:$0xff]
        %v7771 = vld [vmem:[#allocation4 + $0x1c8] sm:$0xff]
        %v7772 = vld [vmem:[#allocation4 + $0x1d0] sm:$0xff]
        %v7773 = vld [vmem:[#allocation4 + $0x1d8] sm:$0xff]
        %v7774 = vld [vmem:[#allocation4 + $0x1e0] sm:$0xff]
        %v7775 = vld [vmem:[#allocation4 + $0x1e8] sm:$0xff]
        %v7776 = vld [vmem:[#allocation4 + $0x1f0] sm:$0xff]
        %v7777 = vld [vmem:[#allocation4 + $0x1f8] sm:$0xff]
        %v7778 = vld [vmem:[#allocation4 + $0x200] sm:$0xff]
        %v7779 = vld [vmem:[#allocation4 + $0x208] sm:$0xff]
        %v7780 = vld [vmem:[#allocation4 + $0x210] sm:$0xff]
        %v7781 = vld [vmem:[#allocation4 + $0x218] sm:$0xff]
        %v7782 = vld [vmem:[#allocation4 + $0x220] sm:$0xff]
        %v7783 = vld [vmem:[#allocation4 + $0x228] sm:$0xff]
        %v7784 = vld [vmem:[#allocation4 + $0x230] sm:$0xff]
        %v7785 = vld [vmem:[#allocation4 + $0x238] sm:$0xff]
        %s7786 = scalar_lea.vmem %s4, 192
        %v7787 = vld [vmem:[%s7786] sm:$0xff]
        %v7788 = vld [vmem:[%s7786 + $0x8] sm:$0xff]
        %v7789 = vld [vmem:[%s7786 + $0x10] sm:$0xff]
        %v7790 = vld [vmem:[%s7786 + $0x18] sm:$0xff]
        %v7791 = vld [vmem:[%s7786 + $0x20] sm:$0xff]
        %v7792 = vld [vmem:[%s7786 + $0x28] sm:$0xff]
        %v7793 = vld [vmem:[%s7786 + $0x30] sm:$0xff]
        %v7794 = vld [vmem:[%s7786 + $0x38] sm:$0xff]
        %7796 = vset.pattern.permute.xlu0 0
        %7797 = vperm.xlu0 %7796, %v7787
        %v7798 = vpop.permute.xlu0 %7797
        %7801 = vset.pattern.permute.xlu0 0
        %7802 = vperm.xlu0 %7801, %v7788
        %v7803 = vpop.permute.xlu0 %7802
        %7806 = vset.pattern.permute.xlu0 0
        %7807 = vperm.xlu0 %7806, %v7789
        %v7808 = vpop.permute.xlu0 %7807
        %7811 = vset.pattern.permute.xlu0 0
        %7812 = vperm.xlu0 %7811, %v7790
        %v7813 = vpop.permute.xlu0 %7812
        %7816 = vset.pattern.permute.xlu0 0
        %7817 = vperm.xlu0 %7816, %v7791
        %v7818 = vpop.permute.xlu0 %7817
        %7821 = vset.pattern.permute.xlu0 0
        %7822 = vperm.xlu0 %7821, %v7792
        %v7823 = vpop.permute.xlu0 %7822
        %7826 = vset.pattern.permute.xlu0 0
        %7827 = vperm.xlu0 %7826, %v7793
        %v7828 = vpop.permute.xlu0 %7827
        %7831 = vset.pattern.permute.xlu0 0
        %7832 = vperm.xlu0 %7831, %v7794
        %v7833 = vpop.permute.xlu0 %7832
        %v7836 = vsel %vm1416, %v7699, 0
        %v7839 = vsel %vm1416, %v7701, 0
        %v7842 = vsel %vm1416, %v7703, 0
        %v7845 = vsel %vm1416, %v7705, 0
        %v7848 = vsel %vm1416, %v7707, 0
        %v7851 = vsel %vm1416, %v7709, 0
        %v7854 = vsel %vm1416, %v7711, 0
        %v7857 = vsel %vm1416, %v7713, 0
        %7859 = vmatprep.subr.mxu0 %v7715
        %7860 = vmatpush1.msra.mxu0 %v7714
        %7861 = vmatprep.subr.mxu0 %v7718
        %7862 = vmatpush1.msra.mxu0 %v7717
        %7863 = vmatprep.subr.mxu0 %v7721
        %7864 = vmatpush1.msra.mxu0 %v7720
        %7865 = vmatprep.subr.mxu0 %v7724
        %7866 = vmatpush1.msra.mxu0 %v7723
        %7867 = vmatprep.subr.mxu0 %v7727
        %7868 = vmatpush1.msra.mxu0 %v7726
        %7869 = vmatprep.subr.mxu0 %v7730
        %7870 = vmatpush1.msra.mxu0 %v7729
        %7871 = vmatprep.subr.mxu0 %v7733
        %7872 = vmatpush1.msra.mxu0 %v7732
        %7873 = vmatprep.subr.mxu0 %v7736
        %7874 = vmatpush1.msra.mxu0 %v7735
        %7875 = vmatprep.subr.mxu0 %v7739
        %7876 = vmatpush1.msra.mxu0 %v7738
        %7877 = vmatprep.subr.mxu0 %v7742
        %7878 = vmatpush1.msra.mxu0 %v7741
        %7879 = vmatprep.subr.mxu0 %v7745
        %7880 = vmatpush1.msra.mxu0 %v7744
        %7881 = vmatprep.subr.mxu0 %v7748
        %7882 = vmatpush1.msra.mxu0 %v7747
        %7883 = vmatprep.subr.mxu0 %v7751
        %7884 = vmatpush1.msra.mxu0 %v7750
        %7885 = vmatprep.subr.mxu0 %v7754
        %7886 = vmatpush1.msra.mxu0 %v7753
        %7887 = vmatprep.subr.mxu0 %v7757
        %7888 = vmatpush1.msra.mxu0 %v7756
        %7889 = vmatprep.subr.mxu0 %v7760
        %7890 = vmatpush1.msra.mxu0 %v7759
        %7891 = vmatprep.subr.mxu0 %v7763
        %7892 = vmatpush1.msra.mxu0 %v7762
        %7893 = vmatprep.subr.mxu0 %v7766
        %7894 = vmatpush1.msra.mxu0 %v7765
        %7895 = vmatprep.subr.mxu0 %v7769
        %7896 = vmatpush1.msra.mxu0 %v7768
        %7897 = vmatprep.subr.mxu0 %v7772
        %7898 = vmatpush1.msra.mxu0 %v7771
        %7899 = vmatprep.subr.mxu0 %v7775
        %7900 = vmatpush1.msra.mxu0 %v7774
        %7901 = vmatprep.subr.mxu0 %v7778
        %7902 = vmatpush1.msra.mxu0 %v7777
        %7903 = vmatprep.subr.mxu0 %v7781
        %7904 = vmatpush1.msra.mxu0 %v7780
        %7905 = vmatprep.subr.mxu0 %v7784
        %7906 = vmatpush1.msra.mxu0 %v7783
        %7907 = vmatprep.subr.mxu0 0.0
        %7908 = vmatpush1.msra.mxu0 0.0
        %7909 = vmatprep.subr.mxu0 0.0
        %7910 = vmatpush1.msra.mxu0 0.0
        %7911 = vmatprep.subr.mxu0 0.0
        %7912 = vmatpush1.msra.mxu0 0.0
        %7913 = vmatprep.subr.mxu0 0.0
        %7914 = vmatpush1.msra.mxu0 0.0
        %7915 = vmatprep.subr.mxu0 0.0
        %7916 = vmatpush1.msra.mxu0 0.0
        %7917 = vmatprep.subr.mxu0 0.0
        %7918 = vmatpush1.msra.mxu0 0.0
        %7919 = vmatprep.subr.mxu0 0.0
        %7920 = vmatpush1.msra.mxu0 0.0
        %7921 = vmatprep.subr.mxu0 0.0
        %7922 = vmatpush1.msra.mxu0 0.0
        %7923 = vmatprep.mubr.f32.mxu0 %v7836
        %7924 = vmatmul.mubr.f32.gmra.mrb[0].mxu0 %v7698
        %v7925 = vpop.f32.mrb[0].mxu0
        %v7926 = vadd.f32 %v7798, %v7925
        %v7927 = vpop.f32.mrb[0].mxu0
        %v7928 = vadd.f32 %v7798, %v7927
        %7929 = vmatprep.mubr.f32.mxu0 %v7839
        %7930 = vmatmul.mubr.f32.gmra.mrb[0].mxu0 %v7700
        %v7931 = vpop.f32.mrb[0].mxu0
        %v7932 = vadd.f32 %v7803, %v7931
        %v7933 = vpop.f32.mrb[0].mxu0
        %v7934 = vadd.f32 %v7803, %v7933
        %7935 = vmatprep.mubr.f32.mxu0 %v7842
        %7936 = vmatmul.mubr.f32.gmra.mrb[0].mxu0 %v7702
        %v7937 = vpop.f32.mrb[0].mxu0
        %v7938 = vadd.f32 %v7808, %v7937
        %v7939 = vpop.f32.mrb[0].mxu0
        %v7940 = vadd.f32 %v7808, %v7939
        %7941 = vmatprep.mubr.f32.mxu0 %v7845
        %7942 = vmatmul.mubr.f32.gmra.mrb[0].mxu0 %v7704
        %v7943 = vpop.f32.mrb[0].mxu0
        %v7944 = vadd.f32 %v7813, %v7943
        %v7945 = vpop.f32.mrb[0].mxu0
        %v7946 = vadd.f32 %v7813, %v7945
        %7947 = vmatprep.mubr.f32.mxu0 %v7848
        %7948 = vmatmul.mubr.f32.gmra.mrb[0].mxu0 %v7706
        %v7949 = vpop.f32.mrb[0].mxu0
        %v7950 = vadd.f32 %v7818, %v7949
        %v7951 = vpop.f32.mrb[0].mxu0
        %v7952 = vadd.f32 %v7818, %v7951
        %7953 = vmatprep.mubr.f32.mxu0 %v7851
        %7954 = vmatmul.mubr.f32.gmra.mrb[0].mxu0 %v7708
        %v7955 = vpop.f32.mrb[0].mxu0
        %v7956 = vadd.f32 %v7823, %v7955
        %v7957 = vpop.f32.mrb[0].mxu0
        %v7958 = vadd.f32 %v7823, %v7957
        %7959 = vmatprep.mubr.f32.mxu0 %v7854
        %7960 = vmatmul.mubr.f32.gmra.mrb[0].mxu0 %v7710
        %v7961 = vpop.f32.mrb[0].mxu0
        %v7962 = vadd.f32 %v7828, %v7961
        %v7963 = vpop.f32.mrb[0].mxu0
        %v7964 = vadd.f32 %v7828, %v7963
        %7965 = vmatprep.mubr.f32.mxu0 %v7857
        %7966 = vmatmul.mubr.f32.gmra.mrb[0].mxu0 %v7712
        %v7967 = vpop.f32.mrb[0].mxu0
        %v7968 = vadd.f32 %v7833, %v7967
        %v7969 = vpop.f32.mrb[0].mxu0
        %v7970 = vadd.f32 %v7833, %v7969
        %7971 = vdwg.mxu0
        %7972 = vmatprep.subr.mxu0 0.0
        %7973 = vmatpush1.msra.mxu0 %v7716
        %7974 = vmatprep.subr.mxu0 0.0
        %7975 = vmatpush1.msra.mxu0 %v7719
        %7976 = vmatprep.subr.mxu0 0.0
        %7977 = vmatpush1.msra.mxu0 %v7722
        %7978 = vmatprep.subr.mxu0 0.0
        %7979 = vmatpush1.msra.mxu0 %v7725
        %7980 = vmatprep.subr.mxu0 0.0
        %7981 = vmatpush1.msra.mxu0 %v7728
        %7982 = vmatprep.subr.mxu0 0.0
        %7983 = vmatpush1.msra.mxu0 %v7731
        %7984 = vmatprep.subr.mxu0 0.0
        %7985 = vmatpush1.msra.mxu0 %v7734
        %7986 = vmatprep.subr.mxu0 0.0
        %7987 = vmatpush1.msra.mxu0 %v7737
        %7988 = vmatprep.subr.mxu0 0.0
        %7989 = vmatpush1.msra.mxu0 %v7740
        %7990 = vmatprep.subr.mxu0 0.0
        %7991 = vmatpush1.msra.mxu0 %v7743
        %7992 = vmatprep.subr.mxu0 0.0
        %7993 = vmatpush1.msra.mxu0 %v7746
        %7994 = vmatprep.subr.mxu0 0.0
        %7995 = vmatpush1.msra.mxu0 %v7749
        %7996 = vmatprep.subr.mxu0 0.0
        %7997 = vmatpush1.msra.mxu0 %v7752
        %7998 = vmatprep.subr.mxu0 0.0
        %7999 = vmatpush1.msra.mxu0 %v7755
        %8000 = vmatprep.subr.mxu0 0.0
        %8001 = vmatpush1.msra.mxu0 %v7758
        %8002 = vmatprep.subr.mxu0 0.0
        %8003 = vmatpush1.msra.mxu0 %v7761
        %8004 = vmatprep.subr.mxu0 0.0
        %8005 = vmatpush1.msra.mxu0 %v7764
        %8006 = vmatprep.subr.mxu0 0.0
        %8007 = vmatpush1.msra.mxu0 %v7767
        %8008 = vmatprep.subr.mxu0 0.0
        %8009 = vmatpush1.msra.mxu0 %v7770
        %8010 = vmatprep.subr.mxu0 0.0
        %8011 = vmatpush1.msra.mxu0 %v7773
        %8012 = vmatprep.subr.mxu0 0.0
        %8013 = vmatpush1.msra.mxu0 %v7776
        %8014 = vmatprep.subr.mxu0 0.0
        %8015 = vmatpush1.msra.mxu0 %v7779
        %8016 = vmatprep.subr.mxu0 0.0
        %8017 = vmatpush1.msra.mxu0 %v7782
        %8018 = vmatprep.subr.mxu0 0.0
        %8019 = vmatpush1.msra.mxu0 %v7785
        %8020 = vmatprep.subr.mxu0 0.0
        %8021 = vmatpush1.msra.mxu0 0.0
        %8022 = vmatprep.subr.mxu0 0.0
        %8023 = vmatpush1.msra.mxu0 0.0
        %8024 = vmatprep.subr.mxu0 0.0
        %8025 = vmatpush1.msra.mxu0 0.0
        %8026 = vmatprep.subr.mxu0 0.0
        %8027 = vmatpush1.msra.mxu0 0.0
        %8028 = vmatprep.subr.mxu0 0.0
        %8029 = vmatpush1.msra.mxu0 0.0
        %8030 = vmatprep.subr.mxu0 0.0
        %8031 = vmatpush1.msra.mxu0 0.0
        %8032 = vmatprep.subr.mxu0 0.0
        %8033 = vmatpush1.msra.mxu0 0.0
        %8034 = vmatprep.subr.mxu0 0.0
        %8035 = vmatpush1.msra.mxu0 0.0
        %8036 = vmatprep.mubr.f32.mxu0 %v7836
        %8037 = vmatmul.mubr.f32.gmra.mrb[0].mxu0 %v7698
        %v8038 = vpop.f32.mrb[0].mxu0
        %v8039 = vadd.f32 %v7798, %v8038
        %v8040 = vpop.f32.mrb[0].mxu0
        %8041 = vmatprep.mubr.f32.mxu0 %v7839
        %8042 = vmatmul.mubr.f32.gmra.mrb[0].mxu0 %v7700
        %v8043 = vpop.f32.mrb[0].mxu0
        %v8044 = vadd.f32 %v7803, %v8043
        %v8045 = vpop.f32.mrb[0].mxu0
        %8046 = vmatprep.mubr.f32.mxu0 %v7842
        %8047 = vmatmul.mubr.f32.gmra.mrb[0].mxu0 %v7702
        %v8048 = vpop.f32.mrb[0].mxu0
        %v8049 = vadd.f32 %v7808, %v8048
        %v8050 = vpop.f32.mrb[0].mxu0
        %8051 = vmatprep.mubr.f32.mxu0 %v7845
        %8052 = vmatmul.mubr.f32.gmra.mrb[0].mxu0 %v7704
        %v8053 = vpop.f32.mrb[0].mxu0
        %v8054 = vadd.f32 %v7813, %v8053
        %v8055 = vpop.f32.mrb[0].mxu0
        %8056 = vmatprep.mubr.f32.mxu0 %v7848
        %8057 = vmatmul.mubr.f32.gmra.mrb[0].mxu0 %v7706
        %v8058 = vpop.f32.mrb[0].mxu0
        %v8059 = vadd.f32 %v7818, %v8058
        %v8060 = vpop.f32.mrb[0].mxu0
        %8061 = vmatprep.mubr.f32.mxu0 %v7851
        %8062 = vmatmul.mubr.f32.gmra.mrb[0].mxu0 %v7708
        %v8063 = vpop.f32.mrb[0].mxu0
        %v8064 = vadd.f32 %v7823, %v8063
        %v8065 = vpop.f32.mrb[0].mxu0
        %8066 = vmatprep.mubr.f32.mxu0 %v7854
        %8067 = vmatmul.mubr.f32.gmra.mrb[0].mxu0 %v7710
        %v8068 = vpop.f32.mrb[0].mxu0
        %v8069 = vadd.f32 %v7828, %v8068
        %v8070 = vpop.f32.mrb[0].mxu0
        %8071 = vmatprep.mubr.f32.mxu0 %v7857
        %8072 = vmatmul.mubr.f32.gmra.mrb[0].mxu0 %v7712
        %v8073 = vpop.f32.mrb[0].mxu0
        %v8074 = vadd.f32 %v7833, %v8073
        %v8075 = vpop.f32.mrb[0].mxu0
        %8076 = vdwg.mxu0
        %vm8077 = vcmp.gt.f32.partialorder %v7926, 0.0
        %vm8078 = vcmp.gt.f32.partialorder %v7928, 0.0
        %vm8079 = vcmp.gt.f32.partialorder %v8039, 0.0
        %vm8080 = vcmp.gt.f32.partialorder %v7932, 0.0
        %vm8081 = vcmp.gt.f32.partialorder %v7934, 0.0
        %vm8082 = vcmp.gt.f32.partialorder %v8044, 0.0
        %vm8083 = vcmp.gt.f32.partialorder %v7938, 0.0
        %vm8084 = vcmp.gt.f32.partialorder %v7940, 0.0
        %vm8085 = vcmp.gt.f32.partialorder %v8049, 0.0
        %vm8086 = vcmp.gt.f32.partialorder %v7944, 0.0
        %vm8087 = vcmp.gt.f32.partialorder %v7946, 0.0
        %vm8088 = vcmp.gt.f32.partialorder %v8054, 0.0
        %vm8089 = vcmp.gt.f32.partialorder %v7950, 0.0
        %vm8090 = vcmp.gt.f32.partialorder %v7952, 0.0
        %vm8091 = vcmp.gt.f32.partialorder %v8059, 0.0
        %vm8092 = vcmp.gt.f32.partialorder %v7956, 0.0
        %vm8093 = vcmp.gt.f32.partialorder %v7958, 0.0
        %vm8094 = vcmp.gt.f32.partialorder %v8064, 0.0
        %vm8095 = vcmp.gt.f32.partialorder %v7962, 0.0
        %vm8096 = vcmp.gt.f32.partialorder %v7964, 0.0
        %vm8097 = vcmp.gt.f32.partialorder %v8069, 0.0
        %vm8098 = vcmp.gt.f32.partialorder %v7968, 0.0
        %vm8099 = vcmp.gt.f32.partialorder %v7970, 0.0
        %vm8100 = vcmp.gt.f32.partialorder %v8074, 0.0
        %v8101 = vmul.f32 %v7926, 0.01
        %v8102 = vmul.f32 %v7928, 0.01
        %v8103 = vmul.f32 %v8039, 0.01
        %v8104 = vmul.f32 %v7932, 0.01
        %v8105 = vmul.f32 %v7934, 0.01
        %v8106 = vmul.f32 %v8044, 0.01
        %v8107 = vmul.f32 %v7938, 0.01
        %v8108 = vmul.f32 %v7940, 0.01
        %v8109 = vmul.f32 %v8049, 0.01
        %v8110 = vmul.f32 %v7944, 0.01
        %v8111 = vmul.f32 %v7946, 0.01
        %v8112 = vmul.f32 %v8054, 0.01
        %v8113 = vmul.f32 %v7950, 0.01
        %v8114 = vmul.f32 %v7952, 0.01
        %v8115 = vmul.f32 %v8059, 0.01
        %v8116 = vmul.f32 %v7956, 0.01
        %v8117 = vmul.f32 %v7958, 0.01
        %v8118 = vmul.f32 %v8064, 0.01
        %v8119 = vmul.f32 %v7962, 0.01
        %v8120 = vmul.f32 %v7964, 0.01
        %v8121 = vmul.f32 %v8069, 0.01
        %v8122 = vmul.f32 %v7968, 0.01
        %v8123 = vmul.f32 %v7970, 0.01
        %v8124 = vmul.f32 %v8074, 0.01
        %v8125 = vsel %vm8077, %v7926, %v8101
        %v8126 = vsel %vm8078, %v7928, %v8102
        %v8127 = vsel %vm8079, %v8039, %v8103
        %v8128 = vsel %vm8080, %v7932, %v8104
        %v8129 = vsel %vm8081, %v7934, %v8105
        %v8130 = vsel %vm8082, %v8044, %v8106
        %v8131 = vsel %vm8083, %v7938, %v8107
        %v8132 = vsel %vm8084, %v7940, %v8108
        %v8133 = vsel %vm8085, %v8049, %v8109
        %v8134 = vsel %vm8086, %v7944, %v8110
        %v8135 = vsel %vm8087, %v7946, %v8111
        %v8136 = vsel %vm8088, %v8054, %v8112
        %v8137 = vsel %vm8089, %v7950, %v8113
        %v8138 = vsel %vm8090, %v7952, %v8114
        %v8139 = vsel %vm8091, %v8059, %v8115
        %v8140 = vsel %vm8092, %v7956, %v8116
        %v8141 = vsel %vm8093, %v7958, %v8117
        %v8142 = vsel %vm8094, %v8064, %v8118
        %v8143 = vsel %vm8095, %v7962, %v8119
        %v8144 = vsel %vm8096, %v7964, %v8120
        %v8145 = vsel %vm8097, %v8069, %v8121
        %v8146 = vsel %vm8098, %v7968, %v8122
        %v8147 = vsel %vm8099, %v7970, %v8123
        %v8148 = vsel %vm8100, %v8074, %v8124
        %v8149 = vsel %vm1734, %v8125, 0.0
        %v8150 = vsel %vm1735, %v8126, 0.0
        %v8151 = vsel %vm1736, %v8127, 0.0
        %v8152 = vsel %vm1734, %v8128, 0.0
        %v8153 = vsel %vm1735, %v8129, 0.0
        %v8154 = vsel %vm1736, %v8130, 0.0
        %v8155 = vsel %vm1734, %v8131, 0.0
        %v8156 = vsel %vm1735, %v8132, 0.0
        %v8157 = vsel %vm1736, %v8133, 0.0
        %v8158 = vsel %vm1734, %v8134, 0.0
        %v8159 = vsel %vm1735, %v8135, 0.0
        %v8160 = vsel %vm1736, %v8136, 0.0
        %v8161 = vsel %vm1734, %v8137, 0.0
        %v8162 = vsel %vm1735, %v8138, 0.0
        %v8163 = vsel %vm1736, %v8139, 0.0
        %v8164 = vsel %vm1734, %v8140, 0.0
        %v8165 = vsel %vm1735, %v8141, 0.0
        %v8166 = vsel %vm1736, %v8142, 0.0
        %v8167 = vsel %vm1734, %v8143, 0.0
        %v8168 = vsel %vm1735, %v8144, 0.0
        %v8169 = vsel %vm1736, %v8145, 0.0
        %v8170 = vsel %vm1734, %v8146, 0.0
        %v8171 = vsel %vm1735, %v8147, 0.0
        %v8172 = vsel %vm1736, %v8148, 0.0
        %8173 = vst [vmem:[#allocation3 + $0x8] sm:$0xff] %v8149
        %8174 = vst [vmem:[#allocation3 + $0x10] sm:$0xff] %v8150
        %8175 = vst [vmem:[#allocation3 + $0x18] sm:$0xff] %v8151
        %8176 = vst [vmem:[#allocation3 + $0x30] sm:$0xff] %v8152
        %8177 = vst [vmem:[#allocation3 + $0x38] sm:$0xff] %v8153
        %8178 = vst [vmem:[#allocation3 + $0x40] sm:$0xff] %v8154
        %8179 = vst [vmem:[#allocation3 + $0x58] sm:$0xff] %v8155
        %8180 = vst [vmem:[#allocation3 + $0x60] sm:$0xff] %v8156
        %8181 = vst [vmem:[#allocation3 + $0x68] sm:$0xff] %v8157
        %8182 = vst [vmem:[#allocation3 + $0x80] sm:$0xff] %v8158
        %8183 = vst [vmem:[#allocation3 + $0x88] sm:$0xff] %v8159
        %8184 = vst [vmem:[#allocation3 + $0x90] sm:$0xff] %v8160
        %8185 = vst [vmem:[#allocation3 + $0xa8] sm:$0xff] %v8161
        %8186 = vst [vmem:[#allocation3 + $0xb0] sm:$0xff] %v8162
        %8187 = vst [vmem:[#allocation3 + $0xb8] sm:$0xff] %v8163
        %8188 = vst [vmem:[#allocation3 + $0xd0] sm:$0xff] %v8164
        %8189 = vst [vmem:[#allocation3 + $0xd8] sm:$0xff] %v8165
        %8190 = vst [vmem:[#allocation3 + $0xe0] sm:$0xff] %v8166
        %8191 = vst [vmem:[#allocation3 + $0xf8] sm:$0xff] %v8167
        %8192 = vst [vmem:[#allocation3 + $0x100] sm:$0xff] %v8168
        %8193 = vst [vmem:[#allocation3 + $0x108] sm:$0xff] %v8169
        %8194 = vst [vmem:[#allocation3 + $0x120] sm:$0xff] %v8170
        %8195 = vst [vmem:[#allocation3 + $0x128] sm:$0xff] %v8171
        %8196 = vst [vmem:[#allocation3 + $0x130] sm:$0xff] %v8172
        %v8197 = vld [vmem:[#allocation3] sm:$0xff]
        %v8198 = vld [vmem:[#allocation3 + $0x8] sm:$0xff]
        %v8199 = vld [vmem:[#allocation3 + $0x10] sm:$0xff]
        %v8200 = vld [vmem:[#allocation3 + $0x18] sm:$0xff]
        %v8201 = vld [vmem:[#allocation3 + $0x28] sm:$0xff]
        %v8202 = vld [vmem:[#allocation3 + $0x30] sm:$0xff]
        %v8203 = vld [vmem:[#allocation3 + $0x38] sm:$0xff]
        %v8204 = vld [vmem:[#allocation3 + $0x40] sm:$0xff]
        %v8205 = vld [vmem:[#allocation3 + $0x50] sm:$0xff]
        %v8206 = vld [vmem:[#allocation3 + $0x58] sm:$0xff]
        %v8207 = vld [vmem:[#allocation3 + $0x60] sm:$0xff]
        %v8208 = vld [vmem:[#allocation3 + $0x68] sm:$0xff]
        %v8209 = vld [vmem:[#allocation3 + $0x78] sm:$0xff]
        %v8210 = vld [vmem:[#allocation3 + $0x80] sm:$0xff]
        %v8211 = vld [vmem:[#allocation3 + $0x88] sm:$0xff]
        %v8212 = vld [vmem:[#allocation3 + $0x90] sm:$0xff]
        %v8213 = vld [vmem:[#allocation3 + $0xa0] sm:$0xff]
        %v8214 = vld [vmem:[#allocation3 + $0xa8] sm:$0xff]
        %v8215 = vld [vmem:[#allocation3 + $0xb0] sm:$0xff]
        %v8216 = vld [vmem:[#allocation3 + $0xb8] sm:$0xff]
        %v8217 = vld [vmem:[#allocation3 + $0xc8] sm:$0xff]
        %v8218 = vld [vmem:[#allocation3 + $0xd0] sm:$0xff]
        %v8219 = vld [vmem:[#allocation3 + $0xd8] sm:$0xff]
        %v8220 = vld [vmem:[#allocation3 + $0xe0] sm:$0xff]
        %v8221 = vld [vmem:[#allocation3 + $0xf0] sm:$0xff]
        %v8222 = vld [vmem:[#allocation3 + $0xf8] sm:$0xff]
        %v8223 = vld [vmem:[#allocation3 + $0x100] sm:$0xff]
        %v8224 = vld [vmem:[#allocation3 + $0x108] sm:$0xff]
        %v8225 = vld [vmem:[#allocation3 + $0x118] sm:$0xff]
        %v8226 = vld [vmem:[#allocation3 + $0x120] sm:$0xff]
        %v8227 = vld [vmem:[#allocation3 + $0x128] sm:$0xff]
        %v8228 = vld [vmem:[#allocation3 + $0x130] sm:$0xff]
        %8261 = vrot.lane.b32.xlu0 %v8197, 1
        %v8262 = vpop.permute.xlu0 %8261
        %8263 = vrot.lane.b32.xlu0 %v8198, 1
        %v8264 = vpop.permute.xlu0 %8263
        %8265 = vrot.lane.b32.xlu0 %v8199, 1
        %v8266 = vpop.permute.xlu0 %8265
        %8267 = vrot.lane.b32.xlu0 %v8200, 1
        %v8268 = vpop.permute.xlu0 %8267
        %8269 = vrot.lane.b32.xlu0 %v8201, 1
        %v8270 = vpop.permute.xlu0 %8269
        %8271 = vrot.lane.b32.xlu0 %v8202, 1
        %v8272 = vpop.permute.xlu0 %8271
        %8273 = vrot.lane.b32.xlu0 %v8203, 1
        %v8274 = vpop.permute.xlu0 %8273
        %8275 = vrot.lane.b32.xlu0 %v8204, 1
        %v8276 = vpop.permute.xlu0 %8275
        %8277 = vrot.lane.b32.xlu0 %v8205, 1
        %v8278 = vpop.permute.xlu0 %8277
        %8279 = vrot.lane.b32.xlu0 %v8206, 1
        %v8280 = vpop.permute.xlu0 %8279
        %8281 = vrot.lane.b32.xlu0 %v8207, 1
        %v8282 = vpop.permute.xlu0 %8281
        %8283 = vrot.lane.b32.xlu0 %v8208, 1
        %v8284 = vpop.permute.xlu0 %8283
        %8285 = vrot.lane.b32.xlu0 %v8209, 1
        %v8286 = vpop.permute.xlu0 %8285
        %8287 = vrot.lane.b32.xlu0 %v8210, 1
        %v8288 = vpop.permute.xlu0 %8287
        %8289 = vrot.lane.b32.xlu0 %v8211, 1
        %v8290 = vpop.permute.xlu0 %8289
        %8291 = vrot.lane.b32.xlu0 %v8212, 1
        %v8292 = vpop.permute.xlu0 %8291
        %8293 = vrot.lane.b32.xlu0 %v8213, 1
        %v8294 = vpop.permute.xlu0 %8293
        %8295 = vrot.lane.b32.xlu0 %v8214, 1
        %v8296 = vpop.permute.xlu0 %8295
        %8297 = vrot.lane.b32.xlu0 %v8215, 1
        %v8298 = vpop.permute.xlu0 %8297
        %8299 = vrot.lane.b32.xlu0 %v8216, 1
        %v8300 = vpop.permute.xlu0 %8299
        %8301 = vrot.lane.b32.xlu0 %v8217, 1
        %v8302 = vpop.permute.xlu0 %8301
        %8303 = vrot.lane.b32.xlu0 %v8218, 1
        %v8304 = vpop.permute.xlu0 %8303
        %8305 = vrot.lane.b32.xlu0 %v8219, 1
        %v8306 = vpop.permute.xlu0 %8305
        %8307 = vrot.lane.b32.xlu0 %v8220, 1
        %v8308 = vpop.permute.xlu0 %8307
        %8309 = vrot.lane.b32.xlu0 %v8221, 1
        %v8310 = vpop.permute.xlu0 %8309
        %8311 = vrot.lane.b32.xlu0 %v8222, 1
        %v8312 = vpop.permute.xlu0 %8311
        %8313 = vrot.lane.b32.xlu0 %v8223, 1
        %v8314 = vpop.permute.xlu0 %8313
        %8315 = vrot.lane.b32.xlu0 %v8224, 1
        %v8316 = vpop.permute.xlu0 %8315
        %8317 = vrot.lane.b32.xlu0 %v8225, 1
        %v8318 = vpop.permute.xlu0 %8317
        %8319 = vrot.lane.b32.xlu0 %v8226, 1
        %v8320 = vpop.permute.xlu0 %8319
        %8321 = vrot.lane.b32.xlu0 %v8227, 1
        %v8322 = vpop.permute.xlu0 %8321
        %8323 = vrot.lane.b32.xlu0 %v8228, 1
        %v8324 = vpop.permute.xlu0 %8323
        %v8325 = vsel %vm790, %v8262, %v8264
        %v8326 = vsel %vm790, %v8264, %v8266
        %v8327 = vsel %vm790, %v8266, %v8268
        %v8328 = vsel %vm790, %v8270, %v8272
        %v8329 = vsel %vm790, %v8272, %v8274
        %v8330 = vsel %vm790, %v8274, %v8276
        %v8331 = vsel %vm790, %v8278, %v8280
        %v8332 = vsel %vm790, %v8280, %v8282
        %v8333 = vsel %vm790, %v8282, %v8284
        %v8334 = vsel %vm790, %v8286, %v8288
        %v8335 = vsel %vm790, %v8288, %v8290
        %v8336 = vsel %vm790, %v8290, %v8292
        %v8337 = vsel %vm790, %v8294, %v8296
        %v8338 = vsel %vm790, %v8296, %v8298
        %v8339 = vsel %vm790, %v8298, %v8300
        %v8340 = vsel %vm790, %v8302, %v8304
        %v8341 = vsel %vm790, %v8304, %v8306
        %v8342 = vsel %vm790, %v8306, %v8308
        %v8343 = vsel %vm790, %v8310, %v8312
        %v8344 = vsel %vm790, %v8312, %v8314
        %v8345 = vsel %vm790, %v8314, %v8316
        %v8346 = vsel %vm790, %v8318, %v8320
        %v8347 = vsel %vm790, %v8320, %v8322
        %v8348 = vsel %vm790, %v8322, %v8324
        %8373 = vst [vmem:[#allocation4] sm:$0xff] %v8325
        %8374 = vst [vmem:[#allocation4 + $0x8] sm:$0xff] %v8326
        %8375 = vst [vmem:[#allocation4 + $0x10] sm:$0xff] %v8327
        %8376 = vst [vmem:[#allocation4 + $0x18] sm:$0xff] %v8328
        %8377 = vst [vmem:[#allocation4 + $0x20] sm:$0xff] %v8329
        %8378 = vst [vmem:[#allocation4 + $0x28] sm:$0xff] %v8330
        %8379 = vst [vmem:[#allocation4 + $0x30] sm:$0xff] %v8331
        %8380 = vst [vmem:[#allocation4 + $0x38] sm:$0xff] %v8332
        %8381 = vst [vmem:[#allocation4 + $0x40] sm:$0xff] %v8333
        %8382 = vst [vmem:[#allocation4 + $0x48] sm:$0xff] %v8334
        %8383 = vst [vmem:[#allocation4 + $0x50] sm:$0xff] %v8335
        %8384 = vst [vmem:[#allocation4 + $0x58] sm:$0xff] %v8336
        %8385 = vst [vmem:[#allocation4 + $0x60] sm:$0xff] %v8337
        %8386 = vst [vmem:[#allocation4 + $0x68] sm:$0xff] %v8338
        %8387 = vst [vmem:[#allocation4 + $0x70] sm:$0xff] %v8339
        %8388 = vst [vmem:[#allocation4 + $0x78] sm:$0xff] %v8340
        %8389 = vst [vmem:[#allocation4 + $0x80] sm:$0xff] %v8341
        %8390 = vst [vmem:[#allocation4 + $0x88] sm:$0xff] %v8342
        %8391 = vst [vmem:[#allocation4 + $0x90] sm:$0xff] %v8343
        %8392 = vst [vmem:[#allocation4 + $0x98] sm:$0xff] %v8344
        %8393 = vst [vmem:[#allocation4 + $0xa0] sm:$0xff] %v8345
        %8394 = vst [vmem:[#allocation4 + $0xa8] sm:$0xff] %v8346
        %8395 = vst [vmem:[#allocation4 + $0xb0] sm:$0xff] %v8347
        %8396 = vst [vmem:[#allocation4 + $0xb8] sm:$0xff] %v8348
        %v8397 = vld [vmem:[#allocation3 + $0x8] sm:$0xff]
        %v8398 = vld [vmem:[#allocation3 + $0x10] sm:$0xff]
        %v8399 = vld [vmem:[#allocation3 + $0x18] sm:$0xff]
        %v8400 = vld [vmem:[#allocation3 + $0x30] sm:$0xff]
        %v8401 = vld [vmem:[#allocation3 + $0x38] sm:$0xff]
        %v8402 = vld [vmem:[#allocation3 + $0x40] sm:$0xff]
        %v8403 = vld [vmem:[#allocation3 + $0x58] sm:$0xff]
        %v8404 = vld [vmem:[#allocation3 + $0x60] sm:$0xff]
        %v8405 = vld [vmem:[#allocation3 + $0x68] sm:$0xff]
        %v8406 = vld [vmem:[#allocation3 + $0x80] sm:$0xff]
        %v8407 = vld [vmem:[#allocation3 + $0x88] sm:$0xff]
        %v8408 = vld [vmem:[#allocation3 + $0x90] sm:$0xff]
        %v8409 = vld [vmem:[#allocation3 + $0xa8] sm:$0xff]
        %v8410 = vld [vmem:[#allocation3 + $0xb0] sm:$0xff]
        %v8411 = vld [vmem:[#allocation3 + $0xb8] sm:$0xff]
        %v8412 = vld [vmem:[#allocation3 + $0xd0] sm:$0xff]
        %v8413 = vld [vmem:[#allocation3 + $0xd8] sm:$0xff]
        %v8414 = vld [vmem:[#allocation3 + $0xe0] sm:$0xff]
        %v8415 = vld [vmem:[#allocation3 + $0xf8] sm:$0xff]
        %v8416 = vld [vmem:[#allocation3 + $0x100] sm:$0xff]
        %v8417 = vld [vmem:[#allocation3 + $0x108] sm:$0xff]
        %v8418 = vld [vmem:[#allocation3 + $0x120] sm:$0xff]
        %v8419 = vld [vmem:[#allocation3 + $0x128] sm:$0xff]
        %v8420 = vld [vmem:[#allocation3 + $0x130] sm:$0xff]
        %8421 = vst [vmem:[#allocation4 + $0xc0] sm:$0xff] %v8397
        %8422 = vst [vmem:[#allocation4 + $0xc8] sm:$0xff] %v8398
        %8423 = vst [vmem:[#allocation4 + $0xd0] sm:$0xff] %v8399
        %8424 = vst [vmem:[#allocation4 + $0xd8] sm:$0xff] %v8400
        %8425 = vst [vmem:[#allocation4 + $0xe0] sm:$0xff] %v8401
        %8426 = vst [vmem:[#allocation4 + $0xe8] sm:$0xff] %v8402
        %8427 = vst [vmem:[#allocation4 + $0xf0] sm:$0xff] %v8403
        %8428 = vst [vmem:[#allocation4 + $0xf8] sm:$0xff] %v8404
        %8429 = vst [vmem:[#allocation4 + $0x100] sm:$0xff] %v8405
        %8430 = vst [vmem:[#allocation4 + $0x108] sm:$0xff] %v8406
        %8431 = vst [vmem:[#allocation4 + $0x110] sm:$0xff] %v8407
        %8432 = vst [vmem:[#allocation4 + $0x118] sm:$0xff] %v8408
        %8433 = vst [vmem:[#allocation4 + $0x120] sm:$0xff] %v8409
        %8434 = vst [vmem:[#allocation4 + $0x128] sm:$0xff] %v8410
        %8435 = vst [vmem:[#allocation4 + $0x130] sm:$0xff] %v8411
        %8436 = vst [vmem:[#allocation4 + $0x138] sm:$0xff] %v8412
        %8437 = vst [vmem:[#allocation4 + $0x140] sm:$0xff] %v8413
        %8438 = vst [vmem:[#allocation4 + $0x148] sm:$0xff] %v8414
        %8439 = vst [vmem:[#allocation4 + $0x150] sm:$0xff] %v8415
        %8440 = vst [vmem:[#allocation4 + $0x158] sm:$0xff] %v8416
        %8441 = vst [vmem:[#allocation4 + $0x160] sm:$0xff] %v8417
        %8442 = vst [vmem:[#allocation4 + $0x168] sm:$0xff] %v8418
        %8443 = vst [vmem:[#allocation4 + $0x170] sm:$0xff] %v8419
        %8444 = vst [vmem:[#allocation4 + $0x178] sm:$0xff] %v8420
        %v8445 = vld [vmem:[#allocation3 + $0x8] sm:$0xff]
        %v8446 = vld [vmem:[#allocation3 + $0x10] sm:$0xff]
        %v8447 = vld [vmem:[#allocation3 + $0x18] sm:$0xff]
        %v8448 = vld [vmem:[#allocation3 + $0x20] sm:$0xff]
        %v8449 = vld [vmem:[#allocation3 + $0x30] sm:$0xff]
        %v8450 = vld [vmem:[#allocation3 + $0x38] sm:$0xff]
        %v8451 = vld [vmem:[#allocation3 + $0x40] sm:$0xff]
        %v8452 = vld [vmem:[#allocation3 + $0x48] sm:$0xff]
        %v8453 = vld [vmem:[#allocation3 + $0x58] sm:$0xff]
        %v8454 = vld [vmem:[#allocation3 + $0x60] sm:$0xff]
        %v8455 = vld [vmem:[#allocation3 + $0x68] sm:$0xff]
        %v8456 = vld [vmem:[#allocation3 + $0x70] sm:$0xff]
        %v8457 = vld [vmem:[#allocation3 + $0x80] sm:$0xff]
        %v8458 = vld [vmem:[#allocation3 + $0x88] sm:$0xff]
        %v8459 = vld [vmem:[#allocation3 + $0x90] sm:$0xff]
        %v8460 = vld [vmem:[#allocation3 + $0x98] sm:$0xff]
        %v8461 = vld [vmem:[#allocation3 + $0xa8] sm:$0xff]
        %v8462 = vld [vmem:[#allocation3 + $0xb0] sm:$0xff]
        %v8463 = vld [vmem:[#allocation3 + $0xb8] sm:$0xff]
        %v8464 = vld [vmem:[#allocation3 + $0xc0] sm:$0xff]
        %v8465 = vld [vmem:[#allocation3 + $0xd0] sm:$0xff]
        %v8466 = vld [vmem:[#allocation3 + $0xd8] sm:$0xff]
        %v8467 = vld [vmem:[#allocation3 + $0xe0] sm:$0xff]
        %v8468 = vld [vmem:[#allocation3 + $0xe8] sm:$0xff]
        %v8469 = vld [vmem:[#allocation3 + $0xf8] sm:$0xff]
        %v8470 = vld [vmem:[#allocation3 + $0x100] sm:$0xff]
        %v8471 = vld [vmem:[#allocation3 + $0x108] sm:$0xff]
        %v8472 = vld [vmem:[#allocation3 + $0x110] sm:$0xff]
        %v8473 = vld [vmem:[#allocation3 + $0x120] sm:$0xff]
        %v8474 = vld [vmem:[#allocation3 + $0x128] sm:$0xff]
        %v8475 = vld [vmem:[#allocation3 + $0x130] sm:$0xff]
        %v8476 = vld [vmem:[#allocation3 + $0x138] sm:$0xff]
        %8509 = vrot.lane.b32.xlu0 %v8445, 127
        %v8510 = vpop.permute.xlu0 %8509
        %8511 = vrot.lane.b32.xlu0 %v8446, 127
        %v8512 = vpop.permute.xlu0 %8511
        %8513 = vrot.lane.b32.xlu0 %v8447, 127
        %v8514 = vpop.permute.xlu0 %8513
        %8515 = vrot.lane.b32.xlu0 %v8448, 127
        %v8516 = vpop.permute.xlu0 %8515
        %8517 = vrot.lane.b32.xlu0 %v8449, 127
        %v8518 = vpop.permute.xlu0 %8517
        %8519 = vrot.lane.b32.xlu0 %v8450, 127
        %v8520 = vpop.permute.xlu0 %8519
        %8521 = vrot.lane.b32.xlu0 %v8451, 127
        %v8522 = vpop.permute.xlu0 %8521
        %8523 = vrot.lane.b32.xlu0 %v8452, 127
        %v8524 = vpop.permute.xlu0 %8523
        %8525 = vrot.lane.b32.xlu0 %v8453, 127
        %v8526 = vpop.permute.xlu0 %8525
        %8527 = vrot.lane.b32.xlu0 %v8454, 127
        %v8528 = vpop.permute.xlu0 %8527
        %8529 = vrot.lane.b32.xlu0 %v8455, 127
        %v8530 = vpop.permute.xlu0 %8529
        %8531 = vrot.lane.b32.xlu0 %v8456, 127
        %v8532 = vpop.permute.xlu0 %8531
        %8533 = vrot.lane.b32.xlu0 %v8457, 127
        %v8534 = vpop.permute.xlu0 %8533
        %8535 = vrot.lane.b32.xlu0 %v8458, 127
        %v8536 = vpop.permute.xlu0 %8535
        %8537 = vrot.lane.b32.xlu0 %v8459, 127
        %v8538 = vpop.permute.xlu0 %8537
        %8539 = vrot.lane.b32.xlu0 %v8460, 127
        %v8540 = vpop.permute.xlu0 %8539
        %8541 = vrot.lane.b32.xlu0 %v8461, 127
        %v8542 = vpop.permute.xlu0 %8541
        %8543 = vrot.lane.b32.xlu0 %v8462, 127
        %v8544 = vpop.permute.xlu0 %8543
        %8545 = vrot.lane.b32.xlu0 %v8463, 127
        %v8546 = vpop.permute.xlu0 %8545
        %8547 = vrot.lane.b32.xlu0 %v8464, 127
        %v8548 = vpop.permute.xlu0 %8547
        %8549 = vrot.lane.b32.xlu0 %v8465, 127
        %v8550 = vpop.permute.xlu0 %8549
        %8551 = vrot.lane.b32.xlu0 %v8466, 127
        %v8552 = vpop.permute.xlu0 %8551
        %8553 = vrot.lane.b32.xlu0 %v8467, 127
        %v8554 = vpop.permute.xlu0 %8553
        %8555 = vrot.lane.b32.xlu0 %v8468, 127
        %v8556 = vpop.permute.xlu0 %8555
        %8557 = vrot.lane.b32.xlu0 %v8469, 127
        %v8558 = vpop.permute.xlu0 %8557
        %8559 = vrot.lane.b32.xlu0 %v8470, 127
        %v8560 = vpop.permute.xlu0 %8559
        %8561 = vrot.lane.b32.xlu0 %v8471, 127
        %v8562 = vpop.permute.xlu0 %8561
        %8563 = vrot.lane.b32.xlu0 %v8472, 127
        %v8564 = vpop.permute.xlu0 %8563
        %8565 = vrot.lane.b32.xlu0 %v8473, 127
        %v8566 = vpop.permute.xlu0 %8565
        %8567 = vrot.lane.b32.xlu0 %v8474, 127
        %v8568 = vpop.permute.xlu0 %8567
        %8569 = vrot.lane.b32.xlu0 %v8475, 127
        %v8570 = vpop.permute.xlu0 %8569
        %8571 = vrot.lane.b32.xlu0 %v8476, 127
        %v8572 = vpop.permute.xlu0 %8571
        %v8573 = vsel %vm1207, %v8510, %v8512
        %v8574 = vsel %vm1207, %v8512, %v8514
        %v8575 = vsel %vm1207, %v8514, %v8516
        %v8576 = vsel %vm1207, %v8518, %v8520
        %v8577 = vsel %vm1207, %v8520, %v8522
        %v8578 = vsel %vm1207, %v8522, %v8524
        %v8579 = vsel %vm1207, %v8526, %v8528
        %v8580 = vsel %vm1207, %v8528, %v8530
        %v8581 = vsel %vm1207, %v8530, %v8532
        %v8582 = vsel %vm1207, %v8534, %v8536
        %v8583 = vsel %vm1207, %v8536, %v8538
        %v8584 = vsel %vm1207, %v8538, %v8540
        %v8585 = vsel %vm1207, %v8542, %v8544
        %v8586 = vsel %vm1207, %v8544, %v8546
        %v8587 = vsel %vm1207, %v8546, %v8548
        %v8588 = vsel %vm1207, %v8550, %v8552
        %v8589 = vsel %vm1207, %v8552, %v8554
        %v8590 = vsel %vm1207, %v8554, %v8556
        %v8591 = vsel %vm1207, %v8558, %v8560
        %v8592 = vsel %vm1207, %v8560, %v8562
        %v8593 = vsel %vm1207, %v8562, %v8564
        %v8594 = vsel %vm1207, %v8566, %v8568
        %v8595 = vsel %vm1207, %v8568, %v8570
        %v8596 = vsel %vm1207, %v8570, %v8572
        %8621 = vst [vmem:[#allocation4 + $0x180] sm:$0xff] %v8573
        %8622 = vst [vmem:[#allocation4 + $0x188] sm:$0xff] %v8574
        %8623 = vst [vmem:[#allocation4 + $0x190] sm:$0xff] %v8575
        %8624 = vst [vmem:[#allocation4 + $0x198] sm:$0xff] %v8576
        %8625 = vst [vmem:[#allocation4 + $0x1a0] sm:$0xff] %v8577
        %8626 = vst [vmem:[#allocation4 + $0x1a8] sm:$0xff] %v8578
        %8627 = vst [vmem:[#allocation4 + $0x1b0] sm:$0xff] %v8579
        %8628 = vst [vmem:[#allocation4 + $0x1b8] sm:$0xff] %v8580
        %8629 = vst [vmem:[#allocation4 + $0x1c0] sm:$0xff] %v8581
        %8630 = vst [vmem:[#allocation4 + $0x1c8] sm:$0xff] %v8582
        %8631 = vst [vmem:[#allocation4 + $0x1d0] sm:$0xff] %v8583
        %8632 = vst [vmem:[#allocation4 + $0x1d8] sm:$0xff] %v8584
        %8633 = vst [vmem:[#allocation4 + $0x1e0] sm:$0xff] %v8585
        %8634 = vst [vmem:[#allocation4 + $0x1e8] sm:$0xff] %v8586
        %8635 = vst [vmem:[#allocation4 + $0x1f0] sm:$0xff] %v8587
        %8636 = vst [vmem:[#allocation4 + $0x1f8] sm:$0xff] %v8588
        %8637 = vst [vmem:[#allocation4 + $0x200] sm:$0xff] %v8589
        %8638 = vst [vmem:[#allocation4 + $0x208] sm:$0xff] %v8590
        %8639 = vst [vmem:[#allocation4 + $0x210] sm:$0xff] %v8591
        %8640 = vst [vmem:[#allocation4 + $0x218] sm:$0xff] %v8592
        %8641 = vst [vmem:[#allocation4 + $0x220] sm:$0xff] %v8593
        %8642 = vst [vmem:[#allocation4 + $0x228] sm:$0xff] %v8594
        %8643 = vst [vmem:[#allocation4 + $0x230] sm:$0xff] %v8595
        %8644 = vst [vmem:[#allocation4 + $0x238] sm:$0xff] %v8596
        %s8645 = scalar_lea.vmem [#allocation11], 384
        %v8646 = vld [vmem:[%s8645] sm:$0xff]
        %v8647 = vld [vmem:[%s8645 + $0x8] sm:$0xff]
        %v8648 = vld [vmem:[%s8645 + $0x10] sm:$0xff]
        %v8649 = vld [vmem:[%s8645 + $0x18] sm:$0xff]
        %v8650 = vld [vmem:[%s8645 + $0x20] sm:$0xff]
        %v8651 = vld [vmem:[%s8645 + $0x28] sm:$0xff]
        %v8652 = vld [vmem:[%s8645 + $0x30] sm:$0xff]
        %v8653 = vld [vmem:[%s8645 + $0x38] sm:$0xff]
        %v8654 = vld [vmem:[%s8645 + $0x40] sm:$0xff]
        %v8655 = vld [vmem:[%s8645 + $0x48] sm:$0xff]
        %v8656 = vld [vmem:[%s8645 + $0x50] sm:$0xff]
        %v8657 = vld [vmem:[%s8645 + $0x58] sm:$0xff]
        %v8658 = vld [vmem:[%s8645 + $0x60] sm:$0xff]
        %v8659 = vld [vmem:[%s8645 + $0x68] sm:$0xff]
        %v8660 = vld [vmem:[%s8645 + $0x70] sm:$0xff]
        %v8661 = vld [vmem:[%s8645 + $0x78] sm:$0xff]
        %v8662 = vld [vmem:[#allocation4] sm:$0xff]
        %v8663 = vld [vmem:[#allocation4 + $0x8] sm:$0xff]
        %v8664 = vld [vmem:[#allocation4 + $0x10] sm:$0xff]
        %v8665 = vld [vmem:[#allocation4 + $0x18] sm:$0xff]
        %v8666 = vld [vmem:[#allocation4 + $0x20] sm:$0xff]
        %v8667 = vld [vmem:[#allocation4 + $0x28] sm:$0xff]
        %v8668 = vld [vmem:[#allocation4 + $0x30] sm:$0xff]
        %v8669 = vld [vmem:[#allocation4 + $0x38] sm:$0xff]
        %v8670 = vld [vmem:[#allocation4 + $0x40] sm:$0xff]
        %v8671 = vld [vmem:[#allocation4 + $0x48] sm:$0xff]
        %v8672 = vld [vmem:[#allocation4 + $0x50] sm:$0xff]
        %v8673 = vld [vmem:[#allocation4 + $0x58] sm:$0xff]
        %v8674 = vld [vmem:[#allocation4 + $0x60] sm:$0xff]
        %v8675 = vld [vmem:[#allocation4 + $0x68] sm:$0xff]
        %v8676 = vld [vmem:[#allocation4 + $0x70] sm:$0xff]
        %v8677 = vld [vmem:[#allocation4 + $0x78] sm:$0xff]
        %v8678 = vld [vmem:[#allocation4 + $0x80] sm:$0xff]
        %v8679 = vld [vmem:[#allocation4 + $0x88] sm:$0xff]
        %v8680 = vld [vmem:[#allocation4 + $0x90] sm:$0xff]
        %v8681 = vld [vmem:[#allocation4 + $0x98] sm:$0xff]
        %v8682 = vld [vmem:[#allocation4 + $0xa0] sm:$0xff]
        %v8683 = vld [vmem:[#allocation4 + $0xa8] sm:$0xff]
        %v8684 = vld [vmem:[#allocation4 + $0xb0] sm:$0xff]
        %v8685 = vld [vmem:[#allocation4 + $0xb8] sm:$0xff]
        %v8686 = vld [vmem:[#allocation4 + $0xc0] sm:$0xff]
        %v8687 = vld [vmem:[#allocation4 + $0xc8] sm:$0xff]
        %v8688 = vld [vmem:[#allocation4 + $0xd0] sm:$0xff]
        %v8689 = vld [vmem:[#allocation4 + $0xd8] sm:$0xff]
        %v8690 = vld [vmem:[#allocation4 + $0xe0] sm:$0xff]
        %v8691 = vld [vmem:[#allocation4 + $0xe8] sm:$0xff]
        %v8692 = vld [vmem:[#allocation4 + $0xf0] sm:$0xff]
        %v8693 = vld [vmem:[#allocation4 + $0xf8] sm:$0xff]
        %v8694 = vld [vmem:[#allocation4 + $0x100] sm:$0xff]
        %v8695 = vld [vmem:[#allocation4 + $0x108] sm:$0xff]
        %v8696 = vld [vmem:[#allocation4 + $0x110] sm:$0xff]
        %v8697 = vld [vmem:[#allocation4 + $0x118] sm:$0xff]
        %v8698 = vld [vmem:[#allocation4 + $0x120] sm:$0xff]
        %v8699 = vld [vmem:[#allocation4 + $0x128] sm:$0xff]
        %v8700 = vld [vmem:[#allocation4 + $0x130] sm:$0xff]
        %v8701 = vld [vmem:[#allocation4 + $0x138] sm:$0xff]
        %v8702 = vld [vmem:[#allocation4 + $0x140] sm:$0xff]
        %v8703 = vld [vmem:[#allocation4 + $0x148] sm:$0xff]
        %v8704 = vld [vmem:[#allocation4 + $0x150] sm:$0xff]
        %v8705 = vld [vmem:[#allocation4 + $0x158] sm:$0xff]
        %v8706 = vld [vmem:[#allocation4 + $0x160] sm:$0xff]
        %v8707 = vld [vmem:[#allocation4 + $0x168] sm:$0xff]
        %v8708 = vld [vmem:[#allocation4 + $0x170] sm:$0xff]
        %v8709 = vld [vmem:[#allocation4 + $0x178] sm:$0xff]
        %v8710 = vld [vmem:[#allocation4 + $0x180] sm:$0xff]
        %v8711 = vld [vmem:[#allocation4 + $0x188] sm:$0xff]
        %v8712 = vld [vmem:[#allocation4 + $0x190] sm:$0xff]
        %v8713 = vld [vmem:[#allocation4 + $0x198] sm:$0xff]
        %v8714 = vld [vmem:[#allocation4 + $0x1a0] sm:$0xff]
        %v8715 = vld [vmem:[#allocation4 + $0x1a8] sm:$0xff]
        %v8716 = vld [vmem:[#allocation4 + $0x1b0] sm:$0xff]
        %v8717 = vld [vmem:[#allocation4 + $0x1b8] sm:$0xff]
        %v8718 = vld [vmem:[#allocation4 + $0x1c0] sm:$0xff]
        %v8719 = vld [vmem:[#allocation4 + $0x1c8] sm:$0xff]
        %v8720 = vld [vmem:[#allocation4 + $0x1d0] sm:$0xff]
        %v8721 = vld [vmem:[#allocation4 + $0x1d8] sm:$0xff]
        %v8722 = vld [vmem:[#allocation4 + $0x1e0] sm:$0xff]
        %v8723 = vld [vmem:[#allocation4 + $0x1e8] sm:$0xff]
        %v8724 = vld [vmem:[#allocation4 + $0x1f0] sm:$0xff]
        %v8725 = vld [vmem:[#allocation4 + $0x1f8] sm:$0xff]
        %v8726 = vld [vmem:[#allocation4 + $0x200] sm:$0xff]
        %v8727 = vld [vmem:[#allocation4 + $0x208] sm:$0xff]
        %v8728 = vld [vmem:[#allocation4 + $0x210] sm:$0xff]
        %v8729 = vld [vmem:[#allocation4 + $0x218] sm:$0xff]
        %v8730 = vld [vmem:[#allocation4 + $0x220] sm:$0xff]
        %v8731 = vld [vmem:[#allocation4 + $0x228] sm:$0xff]
        %v8732 = vld [vmem:[#allocation4 + $0x230] sm:$0xff]
        %v8733 = vld [vmem:[#allocation4 + $0x238] sm:$0xff]
        %s8734 = scalar_lea.vmem %s6, 192
        %v8735 = vld [vmem:[%s8734] sm:$0xff]
        %v8736 = vld [vmem:[%s8734 + $0x8] sm:$0xff]
        %v8737 = vld [vmem:[%s8734 + $0x10] sm:$0xff]
        %v8738 = vld [vmem:[%s8734 + $0x18] sm:$0xff]
        %v8739 = vld [vmem:[%s8734 + $0x20] sm:$0xff]
        %v8740 = vld [vmem:[%s8734 + $0x28] sm:$0xff]
        %v8741 = vld [vmem:[%s8734 + $0x30] sm:$0xff]
        %v8742 = vld [vmem:[%s8734 + $0x38] sm:$0xff]
        %8744 = vset.pattern.permute.xlu0 0
        %8745 = vperm.xlu0 %8744, %v8735
        %v8746 = vpop.permute.xlu0 %8745
        %8749 = vset.pattern.permute.xlu0 0
        %8750 = vperm.xlu0 %8749, %v8736
        %v8751 = vpop.permute.xlu0 %8750
        %8754 = vset.pattern.permute.xlu0 0
        %8755 = vperm.xlu0 %8754, %v8737
        %v8756 = vpop.permute.xlu0 %8755
        %8759 = vset.pattern.permute.xlu0 0
        %8760 = vperm.xlu0 %8759, %v8738
        %v8761 = vpop.permute.xlu0 %8760
        %8764 = vset.pattern.permute.xlu0 0
        %8765 = vperm.xlu0 %8764, %v8739
        %v8766 = vpop.permute.xlu0 %8765
        %8769 = vset.pattern.permute.xlu0 0
        %8770 = vperm.xlu0 %8769, %v8740
        %v8771 = vpop.permute.xlu0 %8770
        %8774 = vset.pattern.permute.xlu0 0
        %8775 = vperm.xlu0 %8774, %v8741
        %v8776 = vpop.permute.xlu0 %8775
        %8779 = vset.pattern.permute.xlu0 0
        %8780 = vperm.xlu0 %8779, %v8742
        %v8781 = vpop.permute.xlu0 %8780
        %v8784 = vsel %vm1416, %v8647, 0
        %v8787 = vsel %vm1416, %v8649, 0
        %v8790 = vsel %vm1416, %v8651, 0
        %v8793 = vsel %vm1416, %v8653, 0
        %v8796 = vsel %vm1416, %v8655, 0
        %v8799 = vsel %vm1416, %v8657, 0
        %v8802 = vsel %vm1416, %v8659, 0
        %v8805 = vsel %vm1416, %v8661, 0
        %8807 = vmatprep.subr.mxu0 %v8663
        %8808 = vmatpush1.msra.mxu0 %v8662
        %8809 = vmatprep.subr.mxu0 %v8666
        %8810 = vmatpush1.msra.mxu0 %v8665
        %8811 = vmatprep.subr.mxu0 %v8669
        %8812 = vmatpush1.msra.mxu0 %v8668
        %8813 = vmatprep.subr.mxu0 %v8672
        %8814 = vmatpush1.msra.mxu0 %v8671
        %8815 = vmatprep.subr.mxu0 %v8675
        %8816 = vmatpush1.msra.mxu0 %v8674
        %8817 = vmatprep.subr.mxu0 %v8678
        %8818 = vmatpush1.msra.mxu0 %v8677
        %8819 = vmatprep.subr.mxu0 %v8681
        %8820 = vmatpush1.msra.mxu0 %v8680
        %8821 = vmatprep.subr.mxu0 %v8684
        %8822 = vmatpush1.msra.mxu0 %v8683
        %8823 = vmatprep.subr.mxu0 %v8687
        %8824 = vmatpush1.msra.mxu0 %v8686
        %8825 = vmatprep.subr.mxu0 %v8690
        %8826 = vmatpush1.msra.mxu0 %v8689
        %8827 = vmatprep.subr.mxu0 %v8693
        %8828 = vmatpush1.msra.mxu0 %v8692
        %8829 = vmatprep.subr.mxu0 %v8696
        %8830 = vmatpush1.msra.mxu0 %v8695
        %8831 = vmatprep.subr.mxu0 %v8699
        %8832 = vmatpush1.msra.mxu0 %v8698
        %8833 = vmatprep.subr.mxu0 %v8702
        %8834 = vmatpush1.msra.mxu0 %v8701
        %8835 = vmatprep.subr.mxu0 %v8705
        %8836 = vmatpush1.msra.mxu0 %v8704
        %8837 = vmatprep.subr.mxu0 %v8708
        %8838 = vmatpush1.msra.mxu0 %v8707
        %8839 = vmatprep.subr.mxu0 %v8711
        %8840 = vmatpush1.msra.mxu0 %v8710
        %8841 = vmatprep.subr.mxu0 %v8714
        %8842 = vmatpush1.msra.mxu0 %v8713
        %8843 = vmatprep.subr.mxu0 %v8717
        %8844 = vmatpush1.msra.mxu0 %v8716
        %8845 = vmatprep.subr.mxu0 %v8720
        %8846 = vmatpush1.msra.mxu0 %v8719
        %8847 = vmatprep.subr.mxu0 %v8723
        %8848 = vmatpush1.msra.mxu0 %v8722
        %8849 = vmatprep.subr.mxu0 %v8726
        %8850 = vmatpush1.msra.mxu0 %v8725
        %8851 = vmatprep.subr.mxu0 %v8729
        %8852 = vmatpush1.msra.mxu0 %v8728
        %8853 = vmatprep.subr.mxu0 %v8732
        %8854 = vmatpush1.msra.mxu0 %v8731
        %8855 = vmatprep.subr.mxu0 0.0
        %8856 = vmatpush1.msra.mxu0 0.0
        %8857 = vmatprep.subr.mxu0 0.0
        %8858 = vmatpush1.msra.mxu0 0.0
        %8859 = vmatprep.subr.mxu0 0.0
        %8860 = vmatpush1.msra.mxu0 0.0
        %8861 = vmatprep.subr.mxu0 0.0
        %8862 = vmatpush1.msra.mxu0 0.0
        %8863 = vmatprep.subr.mxu0 0.0
        %8864 = vmatpush1.msra.mxu0 0.0
        %8865 = vmatprep.subr.mxu0 0.0
        %8866 = vmatpush1.msra.mxu0 0.0
        %8867 = vmatprep.subr.mxu0 0.0
        %8868 = vmatpush1.msra.mxu0 0.0
        %8869 = vmatprep.subr.mxu0 0.0
        %8870 = vmatpush1.msra.mxu0 0.0
        %8871 = vmatprep.mubr.f32.mxu0 %v8784
        %8872 = vmatmul.mubr.f32.gmra.mrb[0].mxu0 %v8646
        %v8873 = vpop.f32.mrb[0].mxu0
        %v8874 = vadd.f32 %v8746, %v8873
        %v8875 = vpop.f32.mrb[0].mxu0
        %v8876 = vadd.f32 %v8746, %v8875
        %8877 = vmatprep.mubr.f32.mxu0 %v8787
        %8878 = vmatmul.mubr.f32.gmra.mrb[0].mxu0 %v8648
        %v8879 = vpop.f32.mrb[0].mxu0
        %v8880 = vadd.f32 %v8751, %v8879
        %v8881 = vpop.f32.mrb[0].mxu0
        %v8882 = vadd.f32 %v8751, %v8881
        %8883 = vmatprep.mubr.f32.mxu0 %v8790
        %8884 = vmatmul.mubr.f32.gmra.mrb[0].mxu0 %v8650
        %v8885 = vpop.f32.mrb[0].mxu0
        %v8886 = vadd.f32 %v8756, %v8885
        %v8887 = vpop.f32.mrb[0].mxu0
        %v8888 = vadd.f32 %v8756, %v8887
        %8889 = vmatprep.mubr.f32.mxu0 %v8793
        %8890 = vmatmul.mubr.f32.gmra.mrb[0].mxu0 %v8652
        %v8891 = vpop.f32.mrb[0].mxu0
        %v8892 = vadd.f32 %v8761, %v8891
        %v8893 = vpop.f32.mrb[0].mxu0
        %v8894 = vadd.f32 %v8761, %v8893
        %8895 = vmatprep.mubr.f32.mxu0 %v8796
        %8896 = vmatmul.mubr.f32.gmra.mrb[0].mxu0 %v8654
        %v8897 = vpop.f32.mrb[0].mxu0
        %v8898 = vadd.f32 %v8766, %v8897
        %v8899 = vpop.f32.mrb[0].mxu0
        %v8900 = vadd.f32 %v8766, %v8899
        %8901 = vmatprep.mubr.f32.mxu0 %v8799
        %8902 = vmatmul.mubr.f32.gmra.mrb[0].mxu0 %v8656
        %v8903 = vpop.f32.mrb[0].mxu0
        %v8904 = vadd.f32 %v8771, %v8903
        %v8905 = vpop.f32.mrb[0].mxu0
        %v8906 = vadd.f32 %v8771, %v8905
        %8907 = vmatprep.mubr.f32.mxu0 %v8802
        %8908 = vmatmul.mubr.f32.gmra.mrb[0].mxu0 %v8658
        %v8909 = vpop.f32.mrb[0].mxu0
        %v8910 = vadd.f32 %v8776, %v8909
        %v8911 = vpop.f32.mrb[0].mxu0
        %v8912 = vadd.f32 %v8776, %v8911
        %8913 = vmatprep.mubr.f32.mxu0 %v8805
        %8914 = vmatmul.mubr.f32.gmra.mrb[0].mxu0 %v8660
        %v8915 = vpop.f32.mrb[0].mxu0
        %v8916 = vadd.f32 %v8781, %v8915
        %v8917 = vpop.f32.mrb[0].mxu0
        %v8918 = vadd.f32 %v8781, %v8917
        %8919 = vdwg.mxu0
        %8920 = vmatprep.subr.mxu0 0.0
        %8921 = vmatpush1.msra.mxu0 %v8664
        %8922 = vmatprep.subr.mxu0 0.0
        %8923 = vmatpush1.msra.mxu0 %v8667
        %8924 = vmatprep.subr.mxu0 0.0
        %8925 = vmatpush1.msra.mxu0 %v8670
        %8926 = vmatprep.subr.mxu0 0.0
        %8927 = vmatpush1.msra.mxu0 %v8673
        %8928 = vmatprep.subr.mxu0 0.0
        %8929 = vmatpush1.msra.mxu0 %v8676
        %8930 = vmatprep.subr.mxu0 0.0
        %8931 = vmatpush1.msra.mxu0 %v8679
        %8932 = vmatprep.subr.mxu0 0.0
        %8933 = vmatpush1.msra.mxu0 %v8682
        %8934 = vmatprep.subr.mxu0 0.0
        %8935 = vmatpush1.msra.mxu0 %v8685
        %8936 = vmatprep.subr.mxu0 0.0
        %8937 = vmatpush1.msra.mxu0 %v8688
        %8938 = vmatprep.subr.mxu0 0.0
        %8939 = vmatpush1.msra.mxu0 %v8691
        %8940 = vmatprep.subr.mxu0 0.0
        %8941 = vmatpush1.msra.mxu0 %v8694
        %8942 = vmatprep.subr.mxu0 0.0
        %8943 = vmatpush1.msra.mxu0 %v8697
        %8944 = vmatprep.subr.mxu0 0.0
        %8945 = vmatpush1.msra.mxu0 %v8700
        %8946 = vmatprep.subr.mxu0 0.0
        %8947 = vmatpush1.msra.mxu0 %v8703
        %8948 = vmatprep.subr.mxu0 0.0
        %8949 = vmatpush1.msra.mxu0 %v8706
        %8950 = vmatprep.subr.mxu0 0.0
        %8951 = vmatpush1.msra.mxu0 %v8709
        %8952 = vmatprep.subr.mxu0 0.0
        %8953 = vmatpush1.msra.mxu0 %v8712
        %8954 = vmatprep.subr.mxu0 0.0
        %8955 = vmatpush1.msra.mxu0 %v8715
        %8956 = vmatprep.subr.mxu0 0.0
        %8957 = vmatpush1.msra.mxu0 %v8718
        %8958 = vmatprep.subr.mxu0 0.0
        %8959 = vmatpush1.msra.mxu0 %v8721
        %8960 = vmatprep.subr.mxu0 0.0
        %8961 = vmatpush1.msra.mxu0 %v8724
        %8962 = vmatprep.subr.mxu0 0.0
        %8963 = vmatpush1.msra.mxu0 %v8727
        %8964 = vmatprep.subr.mxu0 0.0
        %8965 = vmatpush1.msra.mxu0 %v8730
        %8966 = vmatprep.subr.mxu0 0.0
        %8967 = vmatpush1.msra.mxu0 %v8733
        %8968 = vmatprep.subr.mxu0 0.0
        %8969 = vmatpush1.msra.mxu0 0.0
        %8970 = vmatprep.subr.mxu0 0.0
        %8971 = vmatpush1.msra.mxu0 0.0
        %8972 = vmatprep.subr.mxu0 0.0
        %8973 = vmatpush1.msra.mxu0 0.0
        %8974 = vmatprep.subr.mxu0 0.0
        %8975 = vmatpush1.msra.mxu0 0.0
        %8976 = vmatprep.subr.mxu0 0.0
        %8977 = vmatpush1.msra.mxu0 0.0
        %8978 = vmatprep.subr.mxu0 0.0
        %8979 = vmatpush1.msra.mxu0 0.0
        %8980 = vmatprep.subr.mxu0 0.0
        %8981 = vmatpush1.msra.mxu0 0.0
        %8982 = vmatprep.subr.mxu0 0.0
        %8983 = vmatpush1.msra.mxu0 0.0
        %8984 = vmatprep.mubr.f32.mxu0 %v8784
        %8985 = vmatmul.mubr.f32.gmra.mrb[0].mxu0 %v8646
        %v8986 = vpop.f32.mrb[0].mxu0
        %v8987 = vadd.f32 %v8746, %v8986
        %v8988 = vpop.f32.mrb[0].mxu0
        %8989 = vmatprep.mubr.f32.mxu0 %v8787
        %8990 = vmatmul.mubr.f32.gmra.mrb[0].mxu0 %v8648
        %v8991 = vpop.f32.mrb[0].mxu0
        %v8992 = vadd.f32 %v8751, %v8991
        %v8993 = vpop.f32.mrb[0].mxu0
        %8994 = vmatprep.mubr.f32.mxu0 %v8790
        %8995 = vmatmul.mubr.f32.gmra.mrb[0].mxu0 %v8650
        %v8996 = vpop.f32.mrb[0].mxu0
        %v8997 = vadd.f32 %v8756, %v8996
        %v8998 = vpop.f32.mrb[0].mxu0
        %8999 = vmatprep.mubr.f32.mxu0 %v8793
        %9000 = vmatmul.mubr.f32.gmra.mrb[0].mxu0 %v8652
        %v9001 = vpop.f32.mrb[0].mxu0
        %v9002 = vadd.f32 %v8761, %v9001
        %v9003 = vpop.f32.mrb[0].mxu0
        %9004 = vmatprep.mubr.f32.mxu0 %v8796
        %9005 = vmatmul.mubr.f32.gmra.mrb[0].mxu0 %v8654
        %v9006 = vpop.f32.mrb[0].mxu0
        %v9007 = vadd.f32 %v8766, %v9006
        %v9008 = vpop.f32.mrb[0].mxu0
        %9009 = vmatprep.mubr.f32.mxu0 %v8799
        %9010 = vmatmul.mubr.f32.gmra.mrb[0].mxu0 %v8656
        %v9011 = vpop.f32.mrb[0].mxu0
        %v9012 = vadd.f32 %v8771, %v9011
        %v9013 = vpop.f32.mrb[0].mxu0
        %9014 = vmatprep.mubr.f32.mxu0 %v8802
        %9015 = vmatmul.mubr.f32.gmra.mrb[0].mxu0 %v8658
        %v9016 = vpop.f32.mrb[0].mxu0
        %v9017 = vadd.f32 %v8776, %v9016
        %v9018 = vpop.f32.mrb[0].mxu0
        %9019 = vmatprep.mubr.f32.mxu0 %v8805
        %9020 = vmatmul.mubr.f32.gmra.mrb[0].mxu0 %v8660
        %v9021 = vpop.f32.mrb[0].mxu0
        %v9022 = vadd.f32 %v8781, %v9021
        %v9023 = vpop.f32.mrb[0].mxu0
        %9024 = vdwg.mxu0
        %v9025 = vld [vmem:[#allocation2 + $0x8] sm:$0xff]
        %v9026 = vld [vmem:[#allocation2 + $0x10] sm:$0xff]
        %v9027 = vld [vmem:[#allocation2 + $0x18] sm:$0xff]
        %v9028 = vld [vmem:[#allocation2 + $0x30] sm:$0xff]
        %v9029 = vld [vmem:[#allocation2 + $0x38] sm:$0xff]
        %v9030 = vld [vmem:[#allocation2 + $0x40] sm:$0xff]
        %v9031 = vld [vmem:[#allocation2 + $0x58] sm:$0xff]
        %v9032 = vld [vmem:[#allocation2 + $0x60] sm:$0xff]
        %v9033 = vld [vmem:[#allocation2 + $0x68] sm:$0xff]
        %v9034 = vld [vmem:[#allocation2 + $0x80] sm:$0xff]
        %v9035 = vld [vmem:[#allocation2 + $0x88] sm:$0xff]
        %v9036 = vld [vmem:[#allocation2 + $0x90] sm:$0xff]
        %v9037 = vld [vmem:[#allocation2 + $0xa8] sm:$0xff]
        %v9038 = vld [vmem:[#allocation2 + $0xb0] sm:$0xff]
        %v9039 = vld [vmem:[#allocation2 + $0xb8] sm:$0xff]
        %v9040 = vld [vmem:[#allocation2 + $0xd0] sm:$0xff]
        %v9041 = vld [vmem:[#allocation2 + $0xd8] sm:$0xff]
        %v9042 = vld [vmem:[#allocation2 + $0xe0] sm:$0xff]
        %v9043 = vld [vmem:[#allocation2 + $0xf8] sm:$0xff]
        %v9044 = vld [vmem:[#allocation2 + $0x100] sm:$0xff]
        %v9045 = vld [vmem:[#allocation2 + $0x108] sm:$0xff]
        %v9046 = vld [vmem:[#allocation2 + $0x120] sm:$0xff]
        %v9047 = vld [vmem:[#allocation2 + $0x128] sm:$0xff]
        %v9048 = vld [vmem:[#allocation2 + $0x130] sm:$0xff]
        %v9049 = vsel %vm1734, %v8874, 0.0
        %v9050 = vsel %vm1735, %v8876, 0.0
        %v9051 = vsel %vm1736, %v8987, 0.0
        %v9052 = vsel %vm1734, %v8880, 0.0
        %v9053 = vsel %vm1735, %v8882, 0.0
        %v9054 = vsel %vm1736, %v8992, 0.0
        %v9055 = vsel %vm1734, %v8886, 0.0
        %v9056 = vsel %vm1735, %v8888, 0.0
        %v9057 = vsel %vm1736, %v8997, 0.0
        %v9058 = vsel %vm1734, %v8892, 0.0
        %v9059 = vsel %vm1735, %v8894, 0.0
        %v9060 = vsel %vm1736, %v9002, 0.0
        %v9061 = vsel %vm1734, %v8898, 0.0
        %v9062 = vsel %vm1735, %v8900, 0.0
        %v9063 = vsel %vm1736, %v9007, 0.0
        %v9064 = vsel %vm1734, %v8904, 0.0
        %v9065 = vsel %vm1735, %v8906, 0.0
        %v9066 = vsel %vm1736, %v9012, 0.0
        %v9067 = vsel %vm1734, %v8910, 0.0
        %v9068 = vsel %vm1735, %v8912, 0.0
        %v9069 = vsel %vm1736, %v9017, 0.0
        %v9070 = vsel %vm1734, %v8916, 0.0
        %v9071 = vsel %vm1735, %v8918, 0.0
        %v9072 = vsel %vm1736, %v9022, 0.0
        %v9073 = vadd.f32 %v9025, %v9049
        %v9074 = vadd.f32 %v9026, %v9050
        %v9075 = vadd.f32 %v9027, %v9051
        %v9076 = vadd.f32 %v9028, %v9052
        %v9077 = vadd.f32 %v9029, %v9053
        %v9078 = vadd.f32 %v9030, %v9054
        %v9079 = vadd.f32 %v9031, %v9055
        %v9080 = vadd.f32 %v9032, %v9056
        %v9081 = vadd.f32 %v9033, %v9057
        %v9082 = vadd.f32 %v9034, %v9058
        %v9083 = vadd.f32 %v9035, %v9059
        %v9084 = vadd.f32 %v9036, %v9060
        %v9085 = vadd.f32 %v9037, %v9061
        %v9086 = vadd.f32 %v9038, %v9062
        %v9087 = vadd.f32 %v9039, %v9063
        %v9088 = vadd.f32 %v9040, %v9064
        %v9089 = vadd.f32 %v9041, %v9065
        %v9090 = vadd.f32 %v9042, %v9066
        %v9091 = vadd.f32 %v9043, %v9067
        %v9092 = vadd.f32 %v9044, %v9068
        %v9093 = vadd.f32 %v9045, %v9069
        %v9094 = vadd.f32 %v9046, %v9070
        %v9095 = vadd.f32 %v9047, %v9071
        %v9096 = vadd.f32 %v9048, %v9072
        %9097 = vst [vmem:[#allocation2 + $0x8] sm:$0xff] %v9073
        %9098 = vst [vmem:[#allocation2 + $0x10] sm:$0xff] %v9074
        %9099 = vst [vmem:[#allocation2 + $0x18] sm:$0xff] %v9075
        %9100 = vst [vmem:[#allocation2 + $0x30] sm:$0xff] %v9076
        %9101 = vst [vmem:[#allocation2 + $0x38] sm:$0xff] %v9077
        %9102 = vst [vmem:[#allocation2 + $0x40] sm:$0xff] %v9078
        %9103 = vst [vmem:[#allocation2 + $0x58] sm:$0xff] %v9079
        %9104 = vst [vmem:[#allocation2 + $0x60] sm:$0xff] %v9080
        %9105 = vst [vmem:[#allocation2 + $0x68] sm:$0xff] %v9081
        %9106 = vst [vmem:[#allocation2 + $0x80] sm:$0xff] %v9082
        %9107 = vst [vmem:[#allocation2 + $0x88] sm:$0xff] %v9083
        %9108 = vst [vmem:[#allocation2 + $0x90] sm:$0xff] %v9084
        %9109 = vst [vmem:[#allocation2 + $0xa8] sm:$0xff] %v9085
        %9110 = vst [vmem:[#allocation2 + $0xb0] sm:$0xff] %v9086
        %9111 = vst [vmem:[#allocation2 + $0xb8] sm:$0xff] %v9087
        %9112 = vst [vmem:[#allocation2 + $0xd0] sm:$0xff] %v9088
        %9113 = vst [vmem:[#allocation2 + $0xd8] sm:$0xff] %v9089
        %9114 = vst [vmem:[#allocation2 + $0xe0] sm:$0xff] %v9090
        %9115 = vst [vmem:[#allocation2 + $0xf8] sm:$0xff] %v9091
        %9116 = vst [vmem:[#allocation2 + $0x100] sm:$0xff] %v9092
        %9117 = vst [vmem:[#allocation2 + $0x108] sm:$0xff] %v9093
        %9118 = vst [vmem:[#allocation2 + $0x120] sm:$0xff] %v9094
        %9119 = vst [vmem:[#allocation2 + $0x128] sm:$0xff] %v9095
        %9120 = vst [vmem:[#allocation2 + $0x130] sm:$0xff] %v9096
        %v9121 = vld [vmem:[#allocation2 + $0x10] sm:$0xff]
        %v9122 = vld [vmem:[#allocation2 + $0x38] sm:$0xff]
        %v9123 = vld [vmem:[#allocation2 + $0x60] sm:$0xff]
        %v9124 = vld [vmem:[#allocation2 + $0x88] sm:$0xff]
        %v9125 = vld [vmem:[#allocation2 + $0xb0] sm:$0xff]
        %v9126 = vld [vmem:[#allocation2 + $0xd8] sm:$0xff]
        %v9127 = vld [vmem:[#allocation2 + $0x100] sm:$0xff]
        %v9128 = vld [vmem:[#allocation2 + $0x128] sm:$0xff]
        %9129 = vst [vmem:[%s429] sm:$0xff] %v9121
        %9130 = vst [vmem:[%s429 + $0x8] sm:$0xff] %v9122
        %9131 = vst [vmem:[%s429 + $0x10] sm:$0xff] %v9123
        %9132 = vst [vmem:[%s429 + $0x18] sm:$0xff] %v9124
        %9133 = vst [vmem:[%s429 + $0x20] sm:$0xff] %v9125
        %9134 = vst [vmem:[%s429 + $0x28] sm:$0xff] %v9126
        %9135 = vst [vmem:[%s429 + $0x30] sm:$0xff] %v9127
        %9136 = vst [vmem:[%s429 + $0x38] sm:$0xff] %v9128
        %s9137 = sand.u32 %s230, 1
        %s9138 = scalar_lea.sflag [#allocation7], %s9137
        %s9139 = sand.u32 %s230, 1
        %s9140 = smul.addr %s9139, 64
        %s9141 = scalar_lea.vmem [#allocation13], %s9140
        // Predicated region
        $region81: #{tpu_custom_call.1} parent=47 // pred_check
          %p9142 = pneg %p240
        $region82: #{tpu_custom_call.1} parent=47 // pred_check_branch
          %9144 = sbr.rel (%p9142) target = $region84
        $region83: #{tpu_custom_call.1} parent=47 // pred_region
          %s9146 = ssub.s32 1024, 1024
          %9147 = vsyncadd %s9138, %s9146
          %s9148 = smul.addr %s32, 8
          %s9149 = sadd.s32 %s33, %s9148
          %s9150 = smul.addr %s9149, 128
          %s9151 = scalar_lea.hbm %s7, %s9150
          %s9152 = sshll.u32 %s9141, 4
          %s9153 = int_to_ptr.vmem [resolvable:$true] %s9152
          %9158 = dma.vmem_to_hbm [thread:$0]  %s9153, 1024, %s9151, %s9138, 128, 128, 8
        $region84: #{tpu_custom_call.1} parent=47 // pred_fallthru
          _
      $region48: #{tpu_custom_call.1} parent=5 // pred_fallthru
        _
      %p9159 = scmp.le.s32.totalorder 2, %s23
      // Predicated region
      $region85: #{tpu_custom_call.1} parent=5 // pred_check
        %p9160 = pneg %p9159
      $region86: #{tpu_custom_call.1} parent=5 // pred_check_branch
        %9162 = sbr.rel (%p9160) target = $region88
      $region87: #{tpu_custom_call.1} parent=5 // pred_region
        %s9163 = ssub.s32 %s23, 2
        // Predicated region
        $region89: #{tpu_custom_call.1} parent=87 // pred_check
          %p9164 = pneg %p246
        $region90: #{tpu_custom_call.1} parent=87 // pred_check_branch
          %9166 = sbr.rel (%p9164) target = $region92
        $region91: #{tpu_custom_call.1} parent=87 // pred_region
          %s9167 = sand.u32 %s231, 1
          %s9168 = scalar_lea.sflag [#allocation7], %s9167
          %s9169 = sand.u32 %s231, 1
          %s9170 = smul.addr %s9169, 64
          %s9171 = scalar_lea.vmem [#allocation13], %s9170
          %9172 = dma.done %s9168, 1024
        $region92: #{tpu_custom_call.1} parent=87 // pred_fallthru
          _
      $region88: #{tpu_custom_call.1} parent=5 // pred_fallthru
        _
    $region6: #{tpu_custom_call.1} parent=1 // loop_footer
      %s27 = sadd.s32 1, %s23
    $region7: #{tpu_custom_call.1} parent=1 // loop_footer_branch
      %22 = sbr.rel target = $region3
    $region8: #{tpu_custom_call.1} parent=1 // loop_exit
      _
    %9173 = vsyncpa [#allocation6], 1
    %s9174 = scalar_lea.sflag [#allocation6], 1
    %9175 = vsyncpa %s9174, 1
    %9176 = vsyncpa [#allocation9], 1
    %s9177 = scalar_lea.sflag [#allocation9], 1
    %9178 = vsyncpa %s9177, 1
    %9179 = vsyncpa [#allocation12], 1
    %9180 = vsyncpa [#allocation7], 1
    %s9181 = scalar_lea.sflag [#allocation7], 1
    %9182 = vsyncpa %s9181, 1

</llo_original>
